<compile_context>
chip_gen: v5e
topology: v5e:2x2
jax: 0.10.0
libtpu: 0.0.40
codegen_flags: <defaults>
</compile_context>

<pallas_src>
import functools
import math

import jax
import jax.numpy as jnp
from jax.experimental import pallas as pl
from jax.experimental.pallas import tpu as pltpu

LN_EPS = 1e-5
NEG_INF = -1e30
VMEM_LIMIT = 32 * 1024 * 1024   # raise v5e default (16 MiB); matches v6e/v7x defaults


def _compiler_params():
    return pltpu.CompilerParams(
        dimension_semantics=("parallel",),
        vmem_limit_bytes=VMEM_LIMIT,
    )


def _pick_tb(B, max_tb=16):
    """Largest power-of-two-ish divisor of B (<= max_tb) that still leaves >=2 grid steps."""
    tb = math.gcd(B, max_tb)
    while tb > 1 and (B // tb) < 2:
        tb //= 2
    return max(tb, 1)


# ----------------------------- Pallas kernels ------------------------------

def _embed_kernel(x_ref, pe_ref, w_ref, b_ref, g_ref, bb_ref, o_ref):
    """Feature embedding + positional encoding + LayerNorm for TB sequences."""
    TB, S, K = x_ref.shape
    d = w_ref.shape[1]
    x = x_ref[...].reshape(TB * S, K)                          # free merge
    emb = jnp.dot(x, w_ref[...], preferred_element_type=jnp.float32) + b_ref[...]
    emb = emb.reshape(TB, S, d) + pe_ref[...]
    mu = jnp.mean(emb, axis=-1, keepdims=True)
    var = jnp.mean(jnp.square(emb - mu), axis=-1, keepdims=True)
    xn = (emb - mu) * jax.lax.rsqrt(var + LN_EPS)
    o_ref[...] = xn * g_ref[...] + bb_ref[...]


def pallas_embed(x_cat, pe, fe_w, fe_b, ln_g, ln_b, *, tb):
    B, S, K = x_cat.shape
    d = fe_w.shape[1]
    const = lambda shape: pl.BlockSpec(shape, lambda b: (0,) * len(shape))
    return pl.pallas_call(
        _embed_kernel,
        out_shape=jax.ShapeDtypeStruct((B, S, d), jnp.float32),
        grid=(B // tb,),
        in_specs=[pl.BlockSpec((tb, S, K), lambda b: (b, 0, 0)),
                  const((S, d)), const((K, d)), const((1, d)),
                  const((1, d)), const((1, d))],
        out_specs=pl.BlockSpec((tb, S, d), lambda b: (b, 0, 0)),
        compiler_params=_compiler_params(),
    )(x_cat, pe, fe_w, fe_b.reshape(1, d), ln_g.reshape(1, d), ln_b.reshape(1, d))


def _block_kernel(x_ref, m1_ref, m2_ref, wqkv_ref, bqkv_ref, wo_ref, bo_ref,
                  w1_ref, b1_ref, w2_ref, b2_ref, o_ref, *,
                  nhead, dh, s_valid, att_scale, ff_chunk):
    """Fused transformer block for TB sequences:
    LN -> AdaLN -> QKV -> MHA -> out proj -> residual -> LN -> AdaLN -> FFN -> residual."""
    TB, S1p, d = x_ref.shape
    R = TB * S1p
    dff = w1_ref.shape[1]

    x3 = x_ref[...]                                            # (TB, S1p, d) f32

    # Masks: padded key columns get -inf; padded rows stay exactly zero.
    kidx = jax.lax.broadcasted_iota(jnp.int32, (1, 1, S1p), 2)
    kbias = jnp.where(kidx < s_valid, 0.0, NEG_INF).astype(jnp.float32)
    ridx = jax.lax.broadcasted_iota(jnp.int32, (1, S1p, 1), 1)
    row_mask = (ridx < s_valid).astype(jnp.float32)

    # -------- attention half: LN -> AdaLN(time) -> QKV -> MHA -> proj ------
    mu = jnp.mean(x3, axis=-1, keepdims=True)
    var = jnp.mean(jnp.square(x3 - mu), axis=-1, keepdims=True)
    xn = (x3 - mu) * jax.lax.rsqrt(var + LN_EPS)
    shift1 = m1_ref[:, :, :d]                                  # (TB, 1, d)
    scale1 = m1_ref[:, :, d:]
    h = (xn * (1.0 + scale1) + shift1).reshape(R, d).astype(jnp.bfloat16)

    qkv = jnp.dot(h, wqkv_ref[...],
                  preferred_element_type=jnp.float32) + bqkv_ref[...]   # (R, 3d) f32
    qkv_bf = qkv.astype(jnp.bfloat16)                          # single cast

    attn_proj = jnp.zeros((R, d), jnp.float32)
    for hh in range(nhead):
        q = qkv_bf[:, hh * dh:(hh + 1) * dh].reshape(TB, S1p, dh)
        k = qkv_bf[:, d + hh * dh:d + (hh + 1) * dh].reshape(TB, S1p, dh)
        v = qkv_bf[:, 2 * d + hh * dh:2 * d + (hh + 1) * dh].reshape(TB, S1p, dh)
        s = jnp.einsum('bqd,bkd->bqk', q, k,
                       preferred_element_type=jnp.float32) * att_scale + kbias
        m = jnp.max(s, axis=-1, keepdims=True)
        p = jnp.exp(s - m)
        p = p * pl.reciprocal(jnp.sum(p, axis=-1, keepdims=True), approx=True)
        ho = jnp.einsum('bqk,bkd->bqd', p.astype(jnp.bfloat16), v,
                        preferred_element_type=jnp.float32)    # (TB, S1p, dh)
        # accumulate this head through its slice of the output projection (no concat)
        attn_proj = attn_proj + jnp.dot(
            ho.reshape(R, dh).astype(jnp.bfloat16),
            wo_ref[hh * dh:(hh + 1) * dh, :],
            preferred_element_type=jnp.float32)
    attn_proj = attn_proj + bo_ref[...]
    x3 = x3 + attn_proj.reshape(TB, S1p, d) * row_mask

    # -------- FFN half: LN -> AdaLN(time) -> Linear -> GELU -> Linear ------
    mu2 = jnp.mean(x3, axis=-1, keepdims=True)
    var2 = jnp.mean(jnp.square(x3 - mu2), axis=-1, keepdims=True)
    xn2 = (x3 - mu2) * jax.lax.rsqrt(var2 + LN_EPS)
    shift2 = m2_ref[:, :, :d]
    scale2 = m2_ref[:, :, d:]
    h2 = (xn2 * (1.0 + scale2) + shift2).reshape(R, d).astype(jnp.bfloat16)

    ff = jnp.zeros((R, d), jnp.float32)
    for c0 in range(0, dff, ff_chunk):                         # bounded f32 GELU intermediate
        cw = min(ff_chunk, dff - c0)
        h1 = jnp.dot(h2, w1_ref[:, c0:c0 + cw],
                     preferred_element_type=jnp.float32) + b1_ref[:, c0:c0 + cw]
        h1 = jax.nn.gelu(h1)
        ff = ff + jnp.dot(h1.astype(jnp.bfloat16), w2_ref[c0:c0 + cw, :],
                          preferred_element_type=jnp.float32)
    ff = ff + b2_ref[...]
    o_ref[...] = x3 + ff.reshape(TB, S1p, d) * row_mask


def pallas_transformer_block(x, mod1, mod2, blk, *, nhead, s_valid, tb):
    B, S1p, d = x.shape
    dh = d // nhead
    dff = blk["ff_w1"].shape[1]
    kern = functools.partial(
        _block_kernel, nhead=nhead, dh=dh, s_valid=s_valid,
        att_scale=1.0 / math.sqrt(dh), ff_chunk=min(dff, 512))
    seq = pl.BlockSpec((tb, S1p, d), lambda b: (b, 0, 0))
    mod = pl.BlockSpec((tb, 1, 2 * d), lambda b: (b, 0, 0))
    const = lambda shape: pl.BlockSpec(shape, lambda b: (0,) * len(shape))
    return pl.pallas_call(
        kern,
        out_shape=jax.ShapeDtypeStruct((B, S1p, d), jnp.float32),
        grid=(B // tb,),
        in_specs=[seq, mod, mod,
                  const((d, 3 * d)), const((1, 3 * d)),
                  const((d, d)), const((1, d)),
                  const((d, dff)), const((1, dff)),
                  const((dff, d)), const((1, d))],
        out_specs=seq,
        compiler_params=_compiler_params(),
    )(x, mod1, mod2,
      blk["qkv_w"], blk["qkv_b"].reshape(1, 3 * d),
      blk["out_w"], blk["out_b"].reshape(1, d),
      blk["ff_w1"], blk["ff_b1"].reshape(1, dff),
      blk["ff_w2"], blk["ff_b2"].reshape(1, d))


# --------------------------- XLA-side small helpers -------------------------

def _ln_xla(x, g, b):
    mu = jnp.mean(x, axis=-1, keepdims=True)
    var = jnp.mean(jnp.square(x - mu), axis=-1, keepdims=True)
    return (x - mu) * jax.lax.rsqrt(var + LN_EPS) * g + b


# ------------------------- parameter initialization ------------------------

def _dense_init(key, fan_in, fan_out):
    kw, kb = jax.random.split(key)
    bound = 1.0 / math.sqrt(fan_in)
    w = jax.random.uniform(kw, (fan_in, fan_out), jnp.float32, -bound, bound)
    b = jax.random.uniform(kb, (fan_out,), jnp.float32, -bound, bound)
    return w, b


def _sinusoidal_pe(max_seq_len, d_model):
    pos = jnp.arange(max_seq_len, dtype=jnp.float32)[:, None]
    div = jnp.exp(
        jnp.arange(0, d_model, 2, dtype=jnp.float32) * (-math.log(10000.0) / d_model)
    )
    pe = jnp.zeros((max_seq_len, d_model), jnp.float32)
    pe = pe.at[:, 0::2].set(jnp.sin(pos * div))
    pe = pe.at[:, 1::2].set(jnp.cos(pos * div))
    return pe


def init_params(key, *, input_dim, d_model, nhead, depth, num_classes, max_seq_len):
    keys = jax.random.split(key, 10 + depth)
    p = {}
    p["fe_w"], p["fe_b"] = _dense_init(keys[0], input_dim * 2, d_model)
    p["pos_enc"] = _sinusoidal_pe(max_seq_len, d_model)
    p["ln_g"] = jnp.ones((d_model,), jnp.float32)
    p["ln_b"] = jnp.zeros((d_model,), jnp.float32)
    p["cls_token"] = jax.random.normal(keys[1], (1, 1, d_model), jnp.float32)
    # time embedding: GaussianRandomFourierFeatures -> MLP(SiLU) -> LayerNorm
    p["grff_w"] = jax.random.normal(keys[2], (d_model // 2,), jnp.float32)
    p["t_mlp_w1"], p["t_mlp_b1"] = _dense_init(keys[3], d_model, d_model)
    p["t_mlp_w2"], p["t_mlp_b2"] = _dense_init(keys[4], d_model, d_model)
    p["t_ln_g"] = jnp.ones((d_model,), jnp.float32)
    p["t_ln_b"] = jnp.zeros((d_model,), jnp.float32)
    p["cls_w"], p["cls_b"] = _dense_init(keys[5], d_model, num_classes)

    blocks = []
    for i in range(depth):
        bk = jax.random.split(keys[10 + i], 6)
        blk = {}
        blk["ada1_w"], blk["ada1_b"] = _dense_init(bk[0], d_model, 2 * d_model)
        qkv_w, blk["qkv_b"] = _dense_init(bk[1], d_model, 3 * d_model)
        out_w, blk["out_b"] = _dense_init(bk[2], d_model, d_model)
        blk["ada2_w"], blk["ada2_b"] = _dense_init(bk[3], d_model, 2 * d_model)
        ff_w1, blk["ff_b1"] = _dense_init(bk[4], d_model, 4 * d_model)
        ff_w2, blk["ff_b2"] = _dense_init(bk[5], 4 * d_model, d_model)
        # Pre-convert the big matmul weights to bf16 once (no per-forward casts).
        blk["qkv_w"] = qkv_w.astype(jnp.bfloat16)
        blk["out_w"] = out_w.astype(jnp.bfloat16)
        blk["ff_w1"] = ff_w1.astype(jnp.bfloat16)
        blk["ff_w2"] = ff_w2.astype(jnp.bfloat16)
        blocks.append(blk)
    p["blocks"] = blocks
    return p


# -------------------------------- forward ----------------------------------

def transformer_sequence_classifier(params, src, t, *, nhead, max_seq_len):
    B, S, in_dim = src.shape
    d = params["cls_token"].shape[-1]
    S1 = S + 1                              # CLS + sequence
    S1p = ((S1 + 7) // 8) * 8               # pad rows to a multiple of 8
    tb = _pick_tb(B)                        # sequences per grid step (>=2 grid steps)

    # bond / cumulative-sum feature concat (cheap, one-time, XLA)
    xyz = jnp.cumsum(src, axis=1)
    x_cat = jnp.concatenate([xyz, src], axis=-1)              # (B, S, 2*in_dim)

    # fused: feature embedding + positional encoding + layer norm   (Pallas)
    emb = pallas_embed(x_cat, params["pos_enc"][:S],
                       params["fe_w"], params["fe_b"],
                       params["ln_g"], params["ln_b"], tb=tb)  # (B, S, d)

    # time embedding: GRFF -> Linear -> SiLU -> Linear -> LayerNorm  (tiny, XLA)
    tn = t.astype(jnp.float32) / float(max_seq_len + 1)
    proj = 2.0 * math.pi * tn[:, None] * params["grff_w"][None, :]
    t_emb = jnp.concatenate([jnp.sin(proj), jnp.cos(proj)], axis=-1)   # (B, d)
    t_emb = jnp.dot(t_emb, params["t_mlp_w1"]) + params["t_mlp_b1"]
    t_emb = jax.nn.silu(t_emb)
    t_emb = jnp.dot(t_emb, params["t_mlp_w2"]) + params["t_mlp_b2"]
    t_emb = _ln_xla(t_emb, params["t_ln_g"], params["t_ln_b"])
    t_silu = jax.nn.silu(t_emb)

    # prepend CLS token and pad the sequence once up front
    cls = jnp.broadcast_to(params["cls_token"], (B, 1, d))
    pad = jnp.zeros((B, S1p - S1, d), jnp.float32)
    x = jnp.concatenate([cls, emb, pad], axis=1)              # (B, S1p, d)

    for blk in params["blocks"]:
        # AdaLN modulation params from the time embedding (tiny, XLA)
        mod1 = (jnp.dot(t_silu, blk["ada1_w"]) + blk["ada1_b"]).reshape(B, 1, 2 * d)
        mod2 = (jnp.dot(t_silu, blk["ada2_w"]) + blk["ada2_b"]).reshape(B, 1, 2 * d)
        # one fused Pallas call per transformer block (attention + FFN)
        x = pallas_transformer_block(x, mod1, mod2, blk,
                                     nhead=nhead, s_valid=S1, tb=tb)

    # CLS pooling, shared layer-norm (same params as the input LN), classifier
    out = x[:, 0]                                             # (B, d)
    out = _ln_xla(out, params["ln_g"], params["ln_b"])
    out = jnp.dot(out, params["cls_w"]) + params["cls_b"]     # (B, num_classes)
    return out


# --------------------------------- driver ----------------------------------

if __name__ == "__main__":
    # Small but lane-dense shapes: d_model=128 keeps every VMEM tile / store
    # at >=128 lanes; B=4 with TB=2 keeps the grid at 2 steps (both v7x TCs busy).
    B, S, input_dim = 4, 8, 3
    d_model, nhead, depth, num_classes, max_seq_len = 128, 4, 3, 10, 16

    key = jax.random.PRNGKey(0)
    kp, kx, kt = jax.random.split(key, 3)

    params = init_params(
        kp,
        input_dim=input_dim,
        d_model=d_model,
        nhead=nhead,
        depth=depth,
        num_classes=num_classes,
        max_seq_len=max_seq_len,
    )

    src = jax.random.normal(kx, (B, S, input_dim), jnp.float32)
    t = jax.random.uniform(kt, (B,), jnp.float32) * max_seq_len

    fwd = jax.jit(
        functools.partial(
            transformer_sequence_classifier, nhead=nhead, max_seq_len=max_seq_len
        )
    )
    out = fwd(params, src, t)
    out = jax.block_until_ready(out)

    assert out.shape == (B, num_classes), out.shape
    assert jnp.all(jnp.isfinite(out))
    print("KERNEL_OK")
</pallas_src>

<mosaic_0001>
module attributes {stable_mosaic.version = 11 : i64} {
  func.func @_embed_kernel(%arg0: i32, %arg1: memref<2x8x6xf32, #tpu.memory_space<vmem>>, %arg2: memref<8x128xf32, #tpu.memory_space<vmem>>, %arg3: memref<6x128xf32, #tpu.memory_space<vmem>>, %arg4: memref<1x128xf32, #tpu.memory_space<vmem>>, %arg5: memref<1x128xf32, #tpu.memory_space<vmem>>, %arg6: memref<1x128xf32, #tpu.memory_space<vmem>>, %arg7: memref<2x8x128xf32, #tpu.memory_space<vmem>>) attributes {dimension_semantics = [#tpu.dimension_semantics<parallel>], iteration_bounds = array<i64: 2>, scalar_prefetch = 0 : i64, scratch_operands = 0 : i64, tpu.core_type = #tpu.core_type<tc>, window_params = [{transform_indices = @transform_0, window_bounds = array<i64: 2, 8, 6>}, {pipeline_mode = #tpu.pipeline_mode<synchronous>, transform_indices = @transform_1, window_bounds = array<i64: 8, 128>}, {pipeline_mode = #tpu.pipeline_mode<synchronous>, transform_indices = @transform_2, window_bounds = array<i64: 6, 128>}, {pipeline_mode = #tpu.pipeline_mode<synchronous>, transform_indices = @transform_3, window_bounds = array<i64: 1, 128>}, {pipeline_mode = #tpu.pipeline_mode<synchronous>, transform_indices = @transform_4, window_bounds = array<i64: 1, 128>}, {pipeline_mode = #tpu.pipeline_mode<synchronous>, transform_indices = @transform_5, window_bounds = array<i64: 1, 128>}, {transform_indices = @transform_6, window_bounds = array<i64: 2, 8, 128>}]} {
    %c0 = arith.constant 0 : index
    %c0_0 = arith.constant 0 : index
    %c0_1 = arith.constant 0 : index
    %0 = vector.load %arg1[%c0, %c0_0, %c0_1] : memref<2x8x6xf32, #tpu.memory_space<vmem>>, vector<2x8x6xf32>
    %1 = vector.shape_cast %0 : vector<2x8x6xf32> to vector<16x6xf32>
    %c0_2 = arith.constant 0 : index
    %c0_3 = arith.constant 0 : index
    %2 = vector.load %arg3[%c0_2, %c0_3] : memref<6x128xf32, #tpu.memory_space<vmem>>, vector<6x128xf32>
    %cst = arith.constant dense<0.000000e+00> : vector<16x128xf32>
    %3 = tpu.matmul %1, %2, %cst {dimension_numbers = #tpu.dot_dimension_numbers<[1], [0], [0], [1], [0, 0, 1, 1], [], []>} : vector<16x6xf32>, vector<6x128xf32>, vector<16x128xf32> -> vector<16x128xf32>
    %c0_4 = arith.constant 0 : index
    %c0_5 = arith.constant 0 : index
    %4 = vector.load %arg4[%c0_4, %c0_5] : memref<1x128xf32, #tpu.memory_space<vmem>>, vector<1x128xf32>
    %5 = vector.broadcast %4 : vector<1x128xf32> to vector<16x128xf32>
    %6 = arith.addf %3, %5 : vector<16x128xf32>
    %7 = vector.shape_cast %6 : vector<16x128xf32> to vector<2x8x128xf32>
    %c0_6 = arith.constant 0 : index
    %c0_7 = arith.constant 0 : index
    %8 = vector.load %arg2[%c0_6, %c0_7] : memref<8x128xf32, #tpu.memory_space<vmem>>, vector<8x128xf32>
    %9 = vector.shape_cast %8 : vector<8x128xf32> to vector<1x8x128xf32>
    %10 = vector.broadcast %9 : vector<1x8x128xf32> to vector<2x8x128xf32>
    %11 = arith.addf %7, %10 : vector<2x8x128xf32>
    %cst_8 = arith.constant dense<0.000000e+00> : vector<2x8xf32>
    %12 = vector.multi_reduction <add>, %11, %cst_8 [2] : vector<2x8x128xf32> to vector<2x8xf32>
    %13 = vector.shape_cast %12 : vector<2x8xf32> to vector<2x8x1xf32>
    %cst_9 = arith.constant 1.280000e+02 : f32
    %14 = vector.broadcast %cst_9 : f32 to vector<2x8x1xf32>
    %15 = arith.divf %13, %14 : vector<2x8x1xf32>
    %16 = vector.broadcast %15 : vector<2x8x1xf32> to vector<2x8x128xf32>
    %17 = arith.subf %11, %16 : vector<2x8x128xf32>
    %18 = arith.mulf %17, %17 : vector<2x8x128xf32>
    %cst_10 = arith.constant dense<0.000000e+00> : vector<2x8xf32>
    %19 = vector.multi_reduction <add>, %18, %cst_10 [2] : vector<2x8x128xf32> to vector<2x8xf32>
    %20 = vector.shape_cast %19 : vector<2x8xf32> to vector<2x8x1xf32>
    %cst_11 = arith.constant 1.280000e+02 : f32
    %21 = vector.broadcast %cst_11 : f32 to vector<2x8x1xf32>
    %22 = arith.divf %20, %21 : vector<2x8x1xf32>
    %23 = vector.broadcast %15 : vector<2x8x1xf32> to vector<2x8x128xf32>
    %24 = arith.subf %11, %23 : vector<2x8x128xf32>
    %cst_12 = arith.constant 9.99999974E-6 : f32
    %25 = vector.broadcast %cst_12 : f32 to vector<2x8x1xf32>
    %26 = arith.addf %22, %25 : vector<2x8x1xf32>
    %27 = math.rsqrt %26 : vector<2x8x1xf32>
    %28 = vector.broadcast %27 : vector<2x8x1xf32> to vector<2x8x128xf32>
    %29 = arith.mulf %24, %28 : vector<2x8x128xf32>
    %c0_13 = arith.constant 0 : index
    %c0_14 = arith.constant 0 : index
    %30 = vector.load %arg5[%c0_13, %c0_14] : memref<1x128xf32, #tpu.memory_space<vmem>>, vector<1x128xf32>
    %31 = vector.shape_cast %30 : vector<1x128xf32> to vector<1x1x128xf32>
    %32 = vector.broadcast %31 : vector<1x1x128xf32> to vector<2x8x128xf32>
    %33 = arith.mulf %29, %32 : vector<2x8x128xf32>
    %c0_15 = arith.constant 0 : index
    %c0_16 = arith.constant 0 : index
    %34 = vector.load %arg6[%c0_15, %c0_16] : memref<1x128xf32, #tpu.memory_space<vmem>>, vector<1x128xf32>
    %35 = vector.shape_cast %34 : vector<1x128xf32> to vector<1x1x128xf32>
    %36 = vector.broadcast %35 : vector<1x1x128xf32> to vector<2x8x128xf32>
    %37 = arith.addf %33, %36 : vector<2x8x128xf32>
    %c0_17 = arith.constant 0 : index
    %c0_18 = arith.constant 0 : index
    %c0_19 = arith.constant 0 : index
    %38 = vector.load %arg7[%c0_17, %c0_18, %c0_19] : memref<2x8x128xf32, #tpu.memory_space<vmem>>, vector<2x8x128xf32>
    tpu.vector_store %arg7[%c0_17, %c0_18, %c0_19], %37 {strides = array<i32>} : memref<2x8x128xf32, #tpu.memory_space<vmem>>, vector<2x8x128xf32>,
    return
  }
  func.func @transform_0(%arg0: i32) -> (i32, i32, i32) {
    %c0_i32 = arith.constant 0 : i32
    %c0_i32_0 = arith.constant 0 : i32
    %c0_i32_1 = arith.constant 0 : i32
    return %arg0, %c0_i32, %c0_i32_0 : i32, i32, i32
  }
  func.func @transform_1(%arg0: i32) -> (i32, i32) {
    %c0_i32 = arith.constant 0 : i32
    %c0_i32_0 = arith.constant 0 : i32
    %c0_i32_1 = arith.constant 0 : i32
    return %c0_i32, %c0_i32_0 : i32, i32
  }
  func.func @transform_2(%arg0: i32) -> (i32, i32) {
    %c0_i32 = arith.constant 0 : i32
    %c0_i32_0 = arith.constant 0 : i32
    %c0_i32_1 = arith.constant 0 : i32
    return %c0_i32, %c0_i32_0 : i32, i32
  }
  func.func @transform_3(%arg0: i32) -> (i32, i32) {
    %c0_i32 = arith.constant 0 : i32
    %c0_i32_0 = arith.constant 0 : i32
    %c0_i32_1 = arith.constant 0 : i32
    return %c0_i32, %c0_i32_0 : i32, i32
  }
  func.func @transform_4(%arg0: i32) -> (i32, i32) {
    %c0_i32 = arith.constant 0 : i32
    %c0_i32_0 = arith.constant 0 : i32
    %c0_i32_1 = arith.constant 0 : i32
    return %c0_i32, %c0_i32_0 : i32, i32
  }
  func.func @transform_5(%arg0: i32) -> (i32, i32) {
    %c0_i32 = arith.constant 0 : i32
    %c0_i32_0 = arith.constant 0 : i32
    %c0_i32_1 = arith.constant 0 : i32
    return %c0_i32, %c0_i32_0 : i32, i32
  }
  func.func @transform_6(%arg0: i32) -> (i32, i32, i32) {
    %c0_i32 = arith.constant 0 : i32
    %c0_i32_0 = arith.constant 0 : i32
    %c0_i32_1 = arith.constant 0 : i32
    return %arg0, %c0_i32, %c0_i32_0 : i32, i32, i32
  }
}

module attributes {stable_mosaic.version = 11 : i64} {
  func.func @_block_kernel(%arg0: i32, %arg1: memref<2x16x128xf32, #tpu.memory_space<vmem>>, %arg2: memref<2x1x256xf32, #tpu.memory_space<vmem>>, %arg3: memref<2x1x256xf32, #tpu.memory_space<vmem>>, %arg4: memref<128x384xbf16, #tpu.memory_space<vmem>>, %arg5: memref<1x384xf32, #tpu.memory_space<vmem>>, %arg6: memref<128x128xbf16, #tpu.memory_space<vmem>>, %arg7: memref<1x128xf32, #tpu.memory_space<vmem>>, %arg8: memref<128x512xbf16, #tpu.memory_space<vmem>>, %arg9: memref<1x512xf32, #tpu.memory_space<vmem>>, %arg10: memref<512x128xbf16, #tpu.memory_space<vmem>>, %arg11: memref<1x128xf32, #tpu.memory_space<vmem>>, %arg12: memref<2x16x128xf32, #tpu.memory_space<vmem>>) attributes {dimension_semantics = [#tpu.dimension_semantics<parallel>], iteration_bounds = array<i64: 2>, scalar_prefetch = 0 : i64, scratch_operands = 0 : i64, tpu.core_type = #tpu.core_type<tc>, window_params = [{transform_indices = @transform_0, window_bounds = array<i64: 2, 16, 128>}, {transform_indices = @transform_1, window_bounds = array<i64: 2, 1, 256>}, {transform_indices = @transform_2, window_bounds = array<i64: 2, 1, 256>}, {pipeline_mode = #tpu.pipeline_mode<synchronous>, transform_indices = @transform_3, window_bounds = array<i64: 128, 384>}, {pipeline_mode = #tpu.pipeline_mode<synchronous>, transform_indices = @transform_4, window_bounds = array<i64: 1, 384>}, {pipeline_mode = #tpu.pipeline_mode<synchronous>, transform_indices = @transform_5, window_bounds = array<i64: 128, 128>}, {pipeline_mode = #tpu.pipeline_mode<synchronous>, transform_indices = @transform_6, window_bounds = array<i64: 1, 128>}, {pipeline_mode = #tpu.pipeline_mode<synchronous>, transform_indices = @transform_7, window_bounds = array<i64: 128, 512>}, {pipeline_mode = #tpu.pipeline_mode<synchronous>, transform_indices = @transform_8, window_bounds = array<i64: 1, 512>}, {pipeline_mode = #tpu.pipeline_mode<synchronous>, transform_indices = @transform_9, window_bounds = array<i64: 512, 128>}, {pipeline_mode = #tpu.pipeline_mode<synchronous>, transform_indices = @transform_10, window_bounds = array<i64: 1, 128>}, {transform_indices = @transform_11, window_bounds = array<i64: 2, 16, 128>}]} {
    %c0 = arith.constant 0 : index
    %c0_0 = arith.constant 0 : index
    %c0_1 = arith.constant 0 : index
    %0 = vector.load %arg1[%c0, %c0_0, %c0_1] : memref<2x16x128xf32, #tpu.memory_space<vmem>>, vector<2x16x128xf32>
    %1 = tpu.iota {dimensions = array<i32: 2>} : vector<1x1x16xi32>
    %c9_i32 = arith.constant 9 : i32
    %2 = vector.broadcast %c9_i32 : i32 to vector<1x1x16xi32>
    %3 = arith.cmpi slt, %1, %2 : vector<1x1x16xi32>
    %cst = arith.constant 0.000000e+00 : f32
    %cst_2 = arith.constant -1.000000e+30 : f32
    %4 = vector.broadcast %cst : f32 to vector<1x1x16xf32>
    %5 = vector.broadcast %cst_2 : f32 to vector<1x1x16xf32>
    %6 = arith.select %3, %4, %5 : vector<1x1x16xi1>, vector<1x1x16xf32>
    %7 = tpu.iota {dimensions = array<i32: 1>} : vector<1x16x1xi32>
    %c9_i32_3 = arith.constant 9 : i32
    %8 = vector.broadcast %c9_i32_3 : i32 to vector<1x16x1xi32>
    %9 = arith.cmpi slt, %7, %8 : vector<1x16x1xi32>
    %10 = arith.extui %9 : vector<1x16x1xi1> to vector<1x16x1xi32>
    %11 = arith.sitofp %10 : vector<1x16x1xi32> to vector<1x16x1xf32>
    %cst_4 = arith.constant dense<0.000000e+00> : vector<2x16xf32>
    %12 = vector.multi_reduction <add>, %0, %cst_4 [2] : vector<2x16x128xf32> to vector<2x16xf32>
    %13 = vector.shape_cast %12 : vector<2x16xf32> to vector<2x16x1xf32>
    %cst_5 = arith.constant 1.280000e+02 : f32
    %14 = vector.broadcast %cst_5 : f32 to vector<2x16x1xf32>
    %15 = arith.divf %13, %14 : vector<2x16x1xf32>
    %16 = vector.broadcast %15 : vector<2x16x1xf32> to vector<2x16x128xf32>
    %17 = arith.subf %0, %16 : vector<2x16x128xf32>
    %18 = arith.mulf %17, %17 : vector<2x16x128xf32>
    %cst_6 = arith.constant dense<0.000000e+00> : vector<2x16xf32>
    %19 = vector.multi_reduction <add>, %18, %cst_6 [2] : vector<2x16x128xf32> to vector<2x16xf32>
    %20 = vector.shape_cast %19 : vector<2x16xf32> to vector<2x16x1xf32>
    %cst_7 = arith.constant 1.280000e+02 : f32
    %21 = vector.broadcast %cst_7 : f32 to vector<2x16x1xf32>
    %22 = arith.divf %20, %21 : vector<2x16x1xf32>
    %23 = vector.broadcast %15 : vector<2x16x1xf32> to vector<2x16x128xf32>
    %24 = arith.subf %0, %23 : vector<2x16x128xf32>
    %cst_8 = arith.constant 9.99999974E-6 : f32
    %25 = vector.broadcast %cst_8 : f32 to vector<2x16x1xf32>
    %26 = arith.addf %22, %25 : vector<2x16x1xf32>
    %27 = math.rsqrt %26 : vector<2x16x1xf32>
    %28 = vector.broadcast %27 : vector<2x16x1xf32> to vector<2x16x128xf32>
    %29 = arith.mulf %24, %28 : vector<2x16x128xf32>
    %c0_9 = arith.constant 0 : index
    %c0_10 = arith.constant 0 : index
    %c0_11 = arith.constant 0 : index
    %30 = vector.load %arg2[%c0_9, %c0_10, %c0_11] : memref<2x1x256xf32, #tpu.memory_space<vmem>>, vector<2x1x128xf32>
    %c0_12 = arith.constant 0 : index
    %c0_13 = arith.constant 0 : index
    %c128 = arith.constant 128 : index
    %31 = vector.load %arg2[%c0_12, %c0_13, %c128] : memref<2x1x256xf32, #tpu.memory_space<vmem>>, vector<2x1x128xf32>
    %cst_14 = arith.constant 1.000000e+00 : f32
    %32 = vector.broadcast %cst_14 : f32 to vector<2x1x128xf32>
    %33 = arith.addf %32, %31 : vector<2x1x128xf32>
    %34 = vector.broadcast %33 : vector<2x1x128xf32> to vector<2x16x128xf32>
    %35 = arith.mulf %29, %34 : vector<2x16x128xf32>
    %36 = vector.broadcast %30 : vector<2x1x128xf32> to vector<2x16x128xf32>
    %37 = arith.addf %35, %36 : vector<2x16x128xf32>
    %38 = vector.shape_cast %37 : vector<2x16x128xf32> to vector<32x128xf32>
    %39 = arith.truncf %38 : vector<32x128xf32> to vector<32x128xbf16>
    %c0_15 = arith.constant 0 : index
    %c0_16 = arith.constant 0 : index
    %40 = vector.load %arg4[%c0_15, %c0_16] : memref<128x384xbf16, #tpu.memory_space<vmem>>, vector<128x384xbf16>
    %cst_17 = arith.constant dense<0.000000e+00> : vector<32x384xf32>
    %41 = tpu.matmul %39, %40, %cst_17 {dimension_numbers = #tpu.dot_dimension_numbers<[1], [0], [0], [1], [0, 0, 1, 1], [], []>} : vector<32x128xbf16>, vector<128x384xbf16>, vector<32x384xf32> -> vector<32x384xf32>
    %c0_18 = arith.constant 0 : index
    %c0_19 = arith.constant 0 : index
    %42 = vector.load %arg5[%c0_18, %c0_19] : memref<1x384xf32, #tpu.memory_space<vmem>>, vector<1x384xf32>
    %43 = vector.broadcast %42 : vector<1x384xf32> to vector<32x384xf32>
    %44 = arith.addf %41, %43 : vector<32x384xf32>
    %45 = arith.truncf %44 : vector<32x384xf32> to vector<32x384xbf16>
    %cst_20 = arith.constant 0.000000e+00 : f32
    %46 = vector.broadcast %cst_20 : f32 to vector<32x128xf32>
    %47 = vector.extract_strided_slice %45 {offsets = [0, 0], sizes = [32, 32], strides = [1, 1]} : vector<32x384xbf16> to vector<32x32xbf16>
    %48 = vector.shape_cast %47 : vector<32x32xbf16> to vector<2x16x32xbf16>
    %49 = vector.extract_strided_slice %45 {offsets = [0, 128], sizes = [32, 32], strides = [1, 1]} : vector<32x384xbf16> to vector<32x32xbf16>
    %50 = vector.shape_cast %49 : vector<32x32xbf16> to vector<2x16x32xbf16>
    %51 = vector.extract_strided_slice %45 {offsets = [0, 256], sizes = [32, 32], strides = [1, 1]} : vector<32x384xbf16> to vector<32x32xbf16>
    %52 = vector.shape_cast %51 : vector<32x32xbf16> to vector<2x16x32xbf16>
    "tpu.trace_start"() <{level = 10 : i32, message = "bqd,bkd->bqk"}> : () -> ()
    %cst_21 = arith.constant dense<0.000000e+00> : vector<2x16x16xf32>
    %53 = tpu.matmul %48, %50, %cst_21 {dimension_numbers = #tpu.dot_dimension_numbers<[2], [2], [1], [1], [0, 0, 0, 1, 1, 1], [0], [0]>} : vector<2x16x32xbf16>, vector<2x16x32xbf16>, vector<2x16x16xf32> -> vector<2x16x16xf32>
    "tpu.trace_stop"() : () -> ()
    %cst_22 = arith.constant 0.176776692 : f32
    %54 = vector.broadcast %cst_22 : f32 to vector<2x16x16xf32>
    %55 = arith.mulf %53, %54 : vector<2x16x16xf32>
    %56 = vector.broadcast %6 : vector<1x1x16xf32> to vector<2x16x16xf32>
    %57 = arith.addf %55, %56 : vector<2x16x16xf32>
    %cst_23 = arith.constant dense<0xFF800000> : vector<2x16xf32>
    %58 = vector.multi_reduction <maximumf>, %57, %cst_23 [2] : vector<2x16x16xf32> to vector<2x16xf32>
    %59 = vector.shape_cast %58 : vector<2x16xf32> to vector<2x16x1xf32>
    %60 = vector.broadcast %59 : vector<2x16x1xf32> to vector<2x16x16xf32>
    %61 = arith.subf %57, %60 : vector<2x16x16xf32>
    %62 = math.exp %61 : vector<2x16x16xf32>
    %cst_24 = arith.constant dense<0.000000e+00> : vector<2x16xf32>
    %63 = vector.multi_reduction <add>, %62, %cst_24 [2] : vector<2x16x16xf32> to vector<2x16xf32>
    %64 = vector.shape_cast %63 : vector<2x16xf32> to vector<2x16x1xf32>
    %65 = tpu.reciprocal %64 {approx = true} : vector<2x16x1xf32> -> vector<2x16x1xf32>
    %66 = vector.broadcast %65 : vector<2x16x1xf32> to vector<2x16x16xf32>
    %67 = arith.mulf %62, %66 : vector<2x16x16xf32>
    %68 = arith.truncf %67 : vector<2x16x16xf32> to vector<2x16x16xbf16>
    "tpu.trace_start"() <{level = 10 : i32, message = "bqk,bkd->bqd"}> : () -> ()
    %cst_25 = arith.constant dense<0.000000e+00> : vector<2x16x32xf32>
    %69 = tpu.matmul %68, %52, %cst_25 {dimension_numbers = #tpu.dot_dimension_numbers<[2], [1], [1], [2], [0, 0, 0, 1, 1, 2], [0], [0]>} : vector<2x16x16xbf16>, vector<2x16x32xbf16>, vector<2x16x32xf32> -> vector<2x16x32xf32>
    "tpu.trace_stop"() : () -> ()
    %70 = vector.shape_cast %69 : vector<2x16x32xf32> to vector<32x32xf32>
    %71 = arith.truncf %70 : vector<32x32xf32> to vector<32x32xbf16>
    %c0_26 = arith.constant 0 : index
    %c0_27 = arith.constant 0 : index
    %72 = vector.load %arg6[%c0_26, %c0_27] : memref<128x128xbf16, #tpu.memory_space<vmem>>, vector<32x128xbf16>
    %cst_28 = arith.constant dense<0.000000e+00> : vector<32x128xf32>
    %73 = tpu.matmul %71, %72, %cst_28 {dimension_numbers = #tpu.dot_dimension_numbers<[1], [0], [0], [1], [0, 0, 1, 1], [], []>} : vector<32x32xbf16>, vector<32x128xbf16>, vector<32x128xf32> -> vector<32x128xf32>
    %74 = arith.addf %46, %73 : vector<32x128xf32>
    %75 = vector.extract_strided_slice %45 {offsets = [0, 32], sizes = [32, 32], strides = [1, 1]} : vector<32x384xbf16> to vector<32x32xbf16>
    %76 = vector.shape_cast %75 : vector<32x32xbf16> to vector<2x16x32xbf16>
    %77 = vector.extract_strided_slice %45 {offsets = [0, 160], sizes = [32, 32], strides = [1, 1]} : vector<32x384xbf16> to vector<32x32xbf16>
    %78 = vector.shape_cast %77 : vector<32x32xbf16> to vector<2x16x32xbf16>
    %79 = vector.extract_strided_slice %45 {offsets = [0, 288], sizes = [32, 32], strides = [1, 1]} : vector<32x384xbf16> to vector<32x32xbf16>
    %80 = vector.shape_cast %79 : vector<32x32xbf16> to vector<2x16x32xbf16>
    "tpu.trace_start"() <{level = 10 : i32, message = "bqd,bkd->bqk"}> : () -> ()
    %cst_29 = arith.constant dense<0.000000e+00> : vector<2x16x16xf32>
    %81 = tpu.matmul %76, %78, %cst_29 {dimension_numbers = #tpu.dot_dimension_numbers<[2], [2], [1], [1], [0, 0, 0, 1, 1, 1], [0], [0]>} : vector<2x16x32xbf16>, vector<2x16x32xbf16>, vector<2x16x16xf32> -> vector<2x16x16xf32>
    "tpu.trace_stop"() : () -> ()
    %cst_30 = arith.constant 0.176776692 : f32
    %82 = vector.broadcast %cst_30 : f32 to vector<2x16x16xf32>
    %83 = arith.mulf %81, %82 : vector<2x16x16xf32>
    %84 = vector.broadcast %6 : vector<1x1x16xf32> to vector<2x16x16xf32>
    %85 = arith.addf %83, %84 : vector<2x16x16xf32>
    %cst_31 = arith.constant dense<0xFF800000> : vector<2x16xf32>
    %86 = vector.multi_reduction <maximumf>, %85, %cst_31 [2] : vector<2x16x16xf32> to vector<2x16xf32>
    %87 = vector.shape_cast %86 : vector<2x16xf32> to vector<2x16x1xf32>
    %88 = vector.broadcast %87 : vector<2x16x1xf32> to vector<2x16x16xf32>
    %89 = arith.subf %85, %88 : vector<2x16x16xf32>
    %90 = math.exp %89 : vector<2x16x16xf32>
    %cst_32 = arith.constant dense<0.000000e+00> : vector<2x16xf32>
    %91 = vector.multi_reduction <add>, %90, %cst_32 [2] : vector<2x16x16xf32> to vector<2x16xf32>
    %92 = vector.shape_cast %91 : vector<2x16xf32> to vector<2x16x1xf32>
    %93 = tpu.reciprocal %92 {approx = true} : vector<2x16x1xf32> -> vector<2x16x1xf32>
    %94 = vector.broadcast %93 : vector<2x16x1xf32> to vector<2x16x16xf32>
    %95 = arith.mulf %90, %94 : vector<2x16x16xf32>
    %96 = arith.truncf %95 : vector<2x16x16xf32> to vector<2x16x16xbf16>
    "tpu.trace_start"() <{level = 10 : i32, message = "bqk,bkd->bqd"}> : () -> ()
    %cst_33 = arith.constant dense<0.000000e+00> : vector<2x16x32xf32>
    %97 = tpu.matmul %96, %80, %cst_33 {dimension_numbers = #tpu.dot_dimension_numbers<[2], [1], [1], [2], [0, 0, 0, 1, 1, 2], [0], [0]>} : vector<2x16x16xbf16>, vector<2x16x32xbf16>, vector<2x16x32xf32> -> vector<2x16x32xf32>
    "tpu.trace_stop"() : () -> ()
    %98 = vector.shape_cast %97 : vector<2x16x32xf32> to vector<32x32xf32>
    %99 = arith.truncf %98 : vector<32x32xf32> to vector<32x32xbf16>
    %c32 = arith.constant 32 : index
    %c0_34 = arith.constant 0 : index
    %100 = vector.load %arg6[%c32, %c0_34] : memref<128x128xbf16, #tpu.memory_space<vmem>>, vector<32x128xbf16>
    %cst_35 = arith.constant dense<0.000000e+00> : vector<32x128xf32>
    %101 = tpu.matmul %99, %100, %cst_35 {dimension_numbers = #tpu.dot_dimension_numbers<[1], [0], [0], [1], [0, 0, 1, 1], [], []>} : vector<32x32xbf16>, vector<32x128xbf16>, vector<32x128xf32> -> vector<32x128xf32>
    %102 = arith.addf %74, %101 : vector<32x128xf32>
    %103 = vector.extract_strided_slice %45 {offsets = [0, 64], sizes = [32, 32], strides = [1, 1]} : vector<32x384xbf16> to vector<32x32xbf16>
    %104 = vector.shape_cast %103 : vector<32x32xbf16> to vector<2x16x32xbf16>
    %105 = vector.extract_strided_slice %45 {offsets = [0, 192], sizes = [32, 32], strides = [1, 1]} : vector<32x384xbf16> to vector<32x32xbf16>
    %106 = vector.shape_cast %105 : vector<32x32xbf16> to vector<2x16x32xbf16>
    %107 = vector.extract_strided_slice %45 {offsets = [0, 320], sizes = [32, 32], strides = [1, 1]} : vector<32x384xbf16> to vector<32x32xbf16>
    %108 = vector.shape_cast %107 : vector<32x32xbf16> to vector<2x16x32xbf16>
    "tpu.trace_start"() <{level = 10 : i32, message = "bqd,bkd->bqk"}> : () -> ()
    %cst_36 = arith.constant dense<0.000000e+00> : vector<2x16x16xf32>
    %109 = tpu.matmul %104, %106, %cst_36 {dimension_numbers = #tpu.dot_dimension_numbers<[2], [2], [1], [1], [0, 0, 0, 1, 1, 1], [0], [0]>} : vector<2x16x32xbf16>, vector<2x16x32xbf16>, vector<2x16x16xf32> -> vector<2x16x16xf32>
    "tpu.trace_stop"() : () -> ()
    %cst_37 = arith.constant 0.176776692 : f32
    %110 = vector.broadcast %cst_37 : f32 to vector<2x16x16xf32>
    %111 = arith.mulf %109, %110 : vector<2x16x16xf32>
    %112 = vector.broadcast %6 : vector<1x1x16xf32> to vector<2x16x16xf32>
    %113 = arith.addf %111, %112 : vector<2x16x16xf32>
    %cst_38 = arith.constant dense<0xFF800000> : vector<2x16xf32>
    %114 = vector.multi_reduction <maximumf>, %113, %cst_38 [2] : vector<2x16x16xf32> to vector<2x16xf32>
    %115 = vector.shape_cast %114 : vector<2x16xf32> to vector<2x16x1xf32>
    %116 = vector.broadcast %115 : vector<2x16x1xf32> to vector<2x16x16xf32>
    %117 = arith.subf %113, %116 : vector<2x16x16xf32>
    %118 = math.exp %117 : vector<2x16x16xf32>
    %cst_39 = arith.constant dense<0.000000e+00> : vector<2x16xf32>
    %119 = vector.multi_reduction <add>, %118, %cst_39 [2] : vector<2x16x16xf32> to vector<2x16xf32>
    %120 = vector.shape_cast %119 : vector<2x16xf32> to vector<2x16x1xf32>
    %121 = tpu.reciprocal %120 {approx = true} : vector<2x16x1xf32> -> vector<2x16x1xf32>
    %122 = vector.broadcast %121 : vector<2x16x1xf32> to vector<2x16x16xf32>
    %123 = arith.mulf %118, %122 : vector<2x16x16xf32>
    %124 = arith.truncf %123 : vector<2x16x16xf32> to vector<2x16x16xbf16>
    "tpu.trace_start"() <{level = 10 : i32, message = "bqk,bkd->bqd"}> : () -> ()
    %cst_40 = arith.constant dense<0.000000e+00> : vector<2x16x32xf32>
    %125 = tpu.matmul %124, %108, %cst_40 {dimension_numbers = #tpu.dot_dimension_numbers<[2], [1], [1], [2], [0, 0, 0, 1, 1, 2], [0], [0]>} : vector<2x16x16xbf16>, vector<2x16x32xbf16>, vector<2x16x32xf32> -> vector<2x16x32xf32>
    "tpu.trace_stop"() : () -> ()
    %126 = vector.shape_cast %125 : vector<2x16x32xf32> to vector<32x32xf32>
    %127 = arith.truncf %126 : vector<32x32xf32> to vector<32x32xbf16>
    %c64 = arith.constant 64 : index
    %c0_41 = arith.constant 0 : index
    %128 = vector.load %arg6[%c64, %c0_41] : memref<128x128xbf16, #tpu.memory_space<vmem>>, vector<32x128xbf16>
    %cst_42 = arith.constant dense<0.000000e+00> : vector<32x128xf32>
    %129 = tpu.matmul %127, %128, %cst_42 {dimension_numbers = #tpu.dot_dimension_numbers<[1], [0], [0], [1], [0, 0, 1, 1], [], []>} : vector<32x32xbf16>, vector<32x128xbf16>, vector<32x128xf32> -> vector<32x128xf32>
    %130 = arith.addf %102, %129 : vector<32x128xf32>
    %131 = vector.extract_strided_slice %45 {offsets = [0, 96], sizes = [32, 32], strides = [1, 1]} : vector<32x384xbf16> to vector<32x32xbf16>
    %132 = vector.shape_cast %131 : vector<32x32xbf16> to vector<2x16x32xbf16>
    %133 = vector.extract_strided_slice %45 {offsets = [0, 224], sizes = [32, 32], strides = [1, 1]} : vector<32x384xbf16> to vector<32x32xbf16>
    %134 = vector.shape_cast %133 : vector<32x32xbf16> to vector<2x16x32xbf16>
    %135 = vector.extract_strided_slice %45 {offsets = [0, 352], sizes = [32, 32], strides = [1, 1]} : vector<32x384xbf16> to vector<32x32xbf16>
    %136 = vector.shape_cast %135 : vector<32x32xbf16> to vector<2x16x32xbf16>
    "tpu.trace_start"() <{level = 10 : i32, message = "bqd,bkd->bqk"}> : () -> ()
    %cst_43 = arith.constant dense<0.000000e+00> : vector<2x16x16xf32>
    %137 = tpu.matmul %132, %134, %cst_43 {dimension_numbers = #tpu.dot_dimension_numbers<[2], [2], [1], [1], [0, 0, 0, 1, 1, 1], [0], [0]>} : vector<2x16x32xbf16>, vector<2x16x32xbf16>, vector<2x16x16xf32> -> vector<2x16x16xf32>
    "tpu.trace_stop"() : () -> ()
    %cst_44 = arith.constant 0.176776692 : f32
    %138 = vector.broadcast %cst_44 : f32 to vector<2x16x16xf32>
    %139 = arith.mulf %137, %138 : vector<2x16x16xf32>
    %140 = vector.broadcast %6 : vector<1x1x16xf32> to vector<2x16x16xf32>
    %141 = arith.addf %139, %140 : vector<2x16x16xf32>
    %cst_45 = arith.constant dense<0xFF800000> : vector<2x16xf32>
    %142 = vector.multi_reduction <maximumf>, %141, %cst_45 [2] : vector<2x16x16xf32> to vector<2x16xf32>
    %143 = vector.shape_cast %142 : vector<2x16xf32> to vector<2x16x1xf32>
    %144 = vector.broadcast %143 : vector<2x16x1xf32> to vector<2x16x16xf32>
    %145 = arith.subf %141, %144 : vector<2x16x16xf32>
    %146 = math.exp %145 : vector<2x16x16xf32>
    %cst_46 = arith.constant dense<0.000000e+00> : vector<2x16xf32>
    %147 = vector.multi_reduction <add>, %146, %cst_46 [2] : vector<2x16x16xf32> to vector<2x16xf32>
    %148 = vector.shape_cast %147 : vector<2x16xf32> to vector<2x16x1xf32>
    %149 = tpu.reciprocal %148 {approx = true} : vector<2x16x1xf32> -> vector<2x16x1xf32>
    %150 = vector.broadcast %149 : vector<2x16x1xf32> to vector<2x16x16xf32>
    %151 = arith.mulf %146, %150 : vector<2x16x16xf32>
    %152 = arith.truncf %151 : vector<2x16x16xf32> to vector<2x16x16xbf16>
    "tpu.trace_start"() <{level = 10 : i32, message = "bqk,bkd->bqd"}> : () -> ()
    %cst_47 = arith.constant dense<0.000000e+00> : vector<2x16x32xf32>
    %153 = tpu.matmul %152, %136, %cst_47 {dimension_numbers = #tpu.dot_dimension_numbers<[2], [1], [1], [2], [0, 0, 0, 1, 1, 2], [0], [0]>} : vector<2x16x16xbf16>, vector<2x16x32xbf16>, vector<2x16x32xf32> -> vector<2x16x32xf32>
    "tpu.trace_stop"() : () -> ()
    %154 = vector.shape_cast %153 : vector<2x16x32xf32> to vector<32x32xf32>
    %155 = arith.truncf %154 : vector<32x32xf32> to vector<32x32xbf16>
    %c96 = arith.constant 96 : index
    %c0_48 = arith.constant 0 : index
    %156 = vector.load %arg6[%c96, %c0_48] : memref<128x128xbf16, #tpu.memory_space<vmem>>, vector<32x128xbf16>
    %cst_49 = arith.constant dense<0.000000e+00> : vector<32x128xf32>
    %157 = tpu.matmul %155, %156, %cst_49 {dimension_numbers = #tpu.dot_dimension_numbers<[1], [0], [0], [1], [0, 0, 1, 1], [], []>} : vector<32x32xbf16>, vector<32x128xbf16>, vector<32x128xf32> -> vector<32x128xf32>
    %158 = arith.addf %130, %157 : vector<32x128xf32>
    %c0_50 = arith.constant 0 : index
    %c0_51 = arith.constant 0 : index
    %159 = vector.load %arg7[%c0_50, %c0_51] : memref<1x128xf32, #tpu.memory_space<vmem>>, vector<1x128xf32>
    %160 = vector.broadcast %159 : vector<1x128xf32> to vector<32x128xf32>
    %161 = arith.addf %158, %160 : vector<32x128xf32>
    %162 = vector.shape_cast %161 : vector<32x128xf32> to vector<2x16x128xf32>
    %163 = vector.broadcast %11 : vector<1x16x1xf32> to vector<2x16x128xf32>
    %164 = arith.mulf %162, %163 : vector<2x16x128xf32>
    %165 = arith.addf %0, %164 : vector<2x16x128xf32>
    %cst_52 = arith.constant dense<0.000000e+00> : vector<2x16xf32>
    %166 = vector.multi_reduction <add>, %165, %cst_52 [2] : vector<2x16x128xf32> to vector<2x16xf32>
    %167 = vector.shape_cast %166 : vector<2x16xf32> to vector<2x16x1xf32>
    %cst_53 = arith.constant 1.280000e+02 : f32
    %168 = vector.broadcast %cst_53 : f32 to vector<2x16x1xf32>
    %169 = arith.divf %167, %168 : vector<2x16x1xf32>
    %170 = vector.broadcast %169 : vector<2x16x1xf32> to vector<2x16x128xf32>
    %171 = arith.subf %165, %170 : vector<2x16x128xf32>
    %172 = arith.mulf %171, %171 : vector<2x16x128xf32>
    %cst_54 = arith.constant dense<0.000000e+00> : vector<2x16xf32>
    %173 = vector.multi_reduction <add>, %172, %cst_54 [2] : vector<2x16x128xf32> to vector<2x16xf32>
    %174 = vector.shape_cast %173 : vector<2x16xf32> to vector<2x16x1xf32>
    %cst_55 = arith.constant 1.280000e+02 : f32
    %175 = vector.broadcast %cst_55 : f32 to vector<2x16x1xf32>
    %176 = arith.divf %174, %175 : vector<2x16x1xf32>
    %177 = vector.broadcast %169 : vector<2x16x1xf32> to vector<2x16x128xf32>
    %178 = arith.subf %165, %177 : vector<2x16x128xf32>
    %cst_56 = arith.constant 9.99999974E-6 : f32
    %179 = vector.broadcast %cst_56 : f32 to vector<2x16x1xf32>
    %180 = arith.addf %176, %179 : vector<2x16x1xf32>
    %181 = math.rsqrt %180 : vector<2x16x1xf32>
    %182 = vector.broadcast %181 : vector<2x16x1xf32> to vector<2x16x128xf32>
    %183 = arith.mulf %178, %182 : vector<2x16x128xf32>
    %c0_57 = arith.constant 0 : index
    %c0_58 = arith.constant 0 : index
    %c0_59 = arith.constant 0 : index
    %184 = vector.load %arg3[%c0_57, %c0_58, %c0_59] : memref<2x1x256xf32, #tpu.memory_space<vmem>>, vector<2x1x128xf32>
    %c0_60 = arith.constant 0 : index
    %c0_61 = arith.constant 0 : index
    %c128_62 = arith.constant 128 : index
    %185 = vector.load %arg3[%c0_60, %c0_61, %c128_62] : memref<2x1x256xf32, #tpu.memory_space<vmem>>, vector<2x1x128xf32>
    %cst_63 = arith.constant 1.000000e+00 : f32
    %186 = vector.broadcast %cst_63 : f32 to vector<2x1x128xf32>
    %187 = arith.addf %186, %185 : vector<2x1x128xf32>
    %188 = vector.broadcast %187 : vector<2x1x128xf32> to vector<2x16x128xf32>
    %189 = arith.mulf %183, %188 : vector<2x16x128xf32>
    %190 = vector.broadcast %184 : vector<2x1x128xf32> to vector<2x16x128xf32>
    %191 = arith.addf %189, %190 : vector<2x16x128xf32>
    %192 = vector.shape_cast %191 : vector<2x16x128xf32> to vector<32x128xf32>
    %193 = arith.truncf %192 : vector<32x128xf32> to vector<32x128xbf16>
    %cst_64 = arith.constant 0.000000e+00 : f32
    %194 = vector.broadcast %cst_64 : f32 to vector<32x128xf32>
    %c0_65 = arith.constant 0 : index
    %c0_66 = arith.constant 0 : index
    %195 = vector.load %arg8[%c0_65, %c0_66] : memref<128x512xbf16, #tpu.memory_space<vmem>>, vector<128x512xbf16>
    %cst_67 = arith.constant dense<0.000000e+00> : vector<32x512xf32>
    %196 = tpu.matmul %193, %195, %cst_67 {dimension_numbers = #tpu.dot_dimension_numbers<[1], [0], [0], [1], [0, 0, 1, 1], [], []>} : vector<32x128xbf16>, vector<128x512xbf16>, vector<32x512xf32> -> vector<32x512xf32>
    %c0_68 = arith.constant 0 : index
    %c0_69 = arith.constant 0 : index
    %197 = vector.load %arg9[%c0_68, %c0_69] : memref<1x512xf32, #tpu.memory_space<vmem>>, vector<1x512xf32>
    %198 = vector.broadcast %197 : vector<1x512xf32> to vector<32x512xf32>
    %199 = arith.addf %196, %198 : vector<32x512xf32>
    %200 = arith.mulf %199, %199 : vector<32x512xf32>
    %201 = arith.mulf %199, %200 : vector<32x512xf32>
    %cst_70 = arith.constant 4.471500e-02 : f32
    %202 = vector.broadcast %cst_70 : f32 to vector<32x512xf32>
    %203 = arith.mulf %202, %201 : vector<32x512xf32>
    %204 = arith.addf %199, %203 : vector<32x512xf32>
    %cst_71 = arith.constant 0.797884583 : f32
    %205 = vector.broadcast %cst_71 : f32 to vector<32x512xf32>
    %206 = arith.mulf %205, %204 : vector<32x512xf32>
    %207 = math.tanh %206 : vector<32x512xf32>
    %cst_72 = arith.constant 1.000000e+00 : f32
    %208 = vector.broadcast %cst_72 : f32 to vector<32x512xf32>
    %209 = arith.addf %208, %207 : vector<32x512xf32>
    %cst_73 = arith.constant 5.000000e-01 : f32
    %210 = vector.broadcast %cst_73 : f32 to vector<32x512xf32>
    %211 = arith.mulf %210, %209 : vector<32x512xf32>
    %212 = arith.mulf %199, %211 : vector<32x512xf32>
    %213 = arith.truncf %212 : vector<32x512xf32> to vector<32x512xbf16>
    %c0_74 = arith.constant 0 : index
    %c0_75 = arith.constant 0 : index
    %214 = vector.load %arg10[%c0_74, %c0_75] : memref<512x128xbf16, #tpu.memory_space<vmem>>, vector<512x128xbf16>
    %cst_76 = arith.constant dense<0.000000e+00> : vector<32x128xf32>
    %215 = tpu.matmul %213, %214, %cst_76 {dimension_numbers = #tpu.dot_dimension_numbers<[1], [0], [0], [1], [0, 0, 1, 1], [], []>} : vector<32x512xbf16>, vector<512x128xbf16>, vector<32x128xf32> -> vector<32x128xf32>
    %216 = arith.addf %194, %215 : vector<32x128xf32>
    %c0_77 = arith.constant 0 : index
    %c0_78 = arith.constant 0 : index
    %217 = vector.load %arg11[%c0_77, %c0_78] : memref<1x128xf32, #tpu.memory_space<vmem>>, vector<1x128xf32>
    %218 = vector.broadcast %217 : vector<1x128xf32> to vector<32x128xf32>
    %219 = arith.addf %216, %218 : vector<32x128xf32>
    %220 = vector.shape_cast %219 : vector<32x128xf32> to vector<2x16x128xf32>
    %221 = vector.broadcast %11 : vector<1x16x1xf32> to vector<2x16x128xf32>
    %222 = arith.mulf %220, %221 : vector<2x16x128xf32>
    %223 = arith.addf %165, %222 : vector<2x16x128xf32>
    %c0_79 = arith.constant 0 : index
    %c0_80 = arith.constant 0 : index
    %c0_81 = arith.constant 0 : index
    %224 = vector.load %arg12[%c0_79, %c0_80, %c0_81] : memref<2x16x128xf32, #tpu.memory_space<vmem>>, vector<2x16x128xf32>
    tpu.vector_store %arg12[%c0_79, %c0_80, %c0_81], %223 {strides = array<i32>} : memref<2x16x128xf32, #tpu.memory_space<vmem>>, vector<2x16x128xf32>,
    return
  }
  func.func @transform_0(%arg0: i32) -> (i32, i32, i32) {
    %c0_i32 = arith.constant 0 : i32
    %c0_i32_0 = arith.constant 0 : i32
    %c0_i32_1 = arith.constant 0 : i32
    return %arg0, %c0_i32, %c0_i32_0 : i32, i32, i32
  }
  func.func @transform_1(%arg0: i32) -> (i32, i32, i32) {
    %c0_i32 = arith.constant 0 : i32
    %c0_i32_0 = arith.constant 0 : i32
    %c0_i32_1 = arith.constant 0 : i32
    return %arg0, %c0_i32, %c0_i32_0 : i32, i32, i32
  }
  func.func @transform_2(%arg0: i32) -> (i32, i32, i32) {
    %c0_i32 = arith.constant 0 : i32
    %c0_i32_0 = arith.constant 0 : i32
    %c0_i32_1 = arith.constant 0 : i32
    return %arg0, %c0_i32, %c0_i32_0 : i32, i32, i32
  }
  func.func @transform_3(%arg0: i32) -> (i32, i32) {
    %c0_i32 = arith.constant 0 : i32
    %c0_i32_0 = arith.constant 0 : i32
    %c0_i32_1 = arith.constant 0 : i32
    return %c0_i32, %c0_i32_0 : i32, i32
  }
  func.func @transform_4(%arg0: i32) -> (i32, i32) {
    %c0_i32 = arith.constant 0 : i32
    %c0_i32_0 = arith.constant 0 : i32
    %c0_i32_1 = arith.constant 0 : i32
    return %c0_i32, %c0_i32_0 : i32, i32
  }
  func.func @transform_5(%arg0: i32) -> (i32, i32) {
    %c0_i32 = arith.constant 0 : i32
    %c0_i32_0 = arith.constant 0 : i32
    %c0_i32_1 = arith.constant 0 : i32
    return %c0_i32, %c0_i32_0 : i32, i32
  }
  func.func @transform_6(%arg0: i32) -> (i32, i32) {
    %c0_i32 = arith.constant 0 : i32
    %c0_i32_0 = arith.constant 0 : i32
    %c0_i32_1 = arith.constant 0 : i32
    return %c0_i32, %c0_i32_0 : i32, i32
  }
  func.func @transform_7(%arg0: i32) -> (i32, i32) {
    %c0_i32 = arith.constant 0 : i32
    %c0_i32_0 = arith.constant 0 : i32
    %c0_i32_1 = arith.constant 0 : i32
    return %c0_i32, %c0_i32_0 : i32, i32
  }
  func.func @transform_8(%arg0: i32) -> (i32, i32) {
    %c0_i32 = arith.constant 0 : i32
    %c0_i32_0 = arith.constant 0 : i32
    %c0_i32_1 = arith.constant 0 : i32
    return %c0_i32, %c0_i32_0 : i32, i32
  }
  func.func @transform_9(%arg0: i32) -> (i32, i32) {
    %c0_i32 = arith.constant 0 : i32
    %c0_i32_0 = arith.constant 0 : i32
    %c0_i32_1 = arith.constant 0 : i32
    return %c0_i32, %c0_i32_0 : i32, i32
  }
  func.func @transform_10(%arg0: i32) -> (i32, i32) {
    %c0_i32 = arith.constant 0 : i32
    %c0_i32_0 = arith.constant 0 : i32
    %c0_i32_1 = arith.constant 0 : i32
    return %c0_i32, %c0_i32_0 : i32, i32
  }
  func.func @transform_11(%arg0: i32) -> (i32, i32, i32) {
    %c0_i32 = arith.constant 0 : i32
    %c0_i32_0 = arith.constant 0 : i32
    %c0_i32_1 = arith.constant 0 : i32
    return %arg0, %c0_i32, %c0_i32_0 : i32, i32, i32
  }
}

module attributes {stable_mosaic.version = 11 : i64} {
  func.func @_block_kernel(%arg0: i32, %arg1: memref<2x16x128xf32, #tpu.memory_space<vmem>>, %arg2: memref<2x1x256xf32, #tpu.memory_space<vmem>>, %arg3: memref<2x1x256xf32, #tpu.memory_space<vmem>>, %arg4: memref<128x384xbf16, #tpu.memory_space<vmem>>, %arg5: memref<1x384xf32, #tpu.memory_space<vmem>>, %arg6: memref<128x128xbf16, #tpu.memory_space<vmem>>, %arg7: memref<1x128xf32, #tpu.memory_space<vmem>>, %arg8: memref<128x512xbf16, #tpu.memory_space<vmem>>, %arg9: memref<1x512xf32, #tpu.memory_space<vmem>>, %arg10: memref<512x128xbf16, #tpu.memory_space<vmem>>, %arg11: memref<1x128xf32, #tpu.memory_space<vmem>>, %arg12: memref<2x16x128xf32, #tpu.memory_space<vmem>>) attributes {dimension_semantics = [#tpu.dimension_semantics<parallel>], iteration_bounds = array<i64: 2>, scalar_prefetch = 0 : i64, scratch_operands = 0 : i64, tpu.core_type = #tpu.core_type<tc>, window_params = [{transform_indices = @transform_0, window_bounds = array<i64: 2, 16, 128>}, {transform_indices = @transform_1, window_bounds = array<i64: 2, 1, 256>}, {transform_indices = @transform_2, window_bounds = array<i64: 2, 1, 256>}, {pipeline_mode = #tpu.pipeline_mode<synchronous>, transform_indices = @transform_3, window_bounds = array<i64: 128, 384>}, {pipeline_mode = #tpu.pipeline_mode<synchronous>, transform_indices = @transform_4, window_bounds = array<i64: 1, 384>}, {pipeline_mode = #tpu.pipeline_mode<synchronous>, transform_indices = @transform_5, window_bounds = array<i64: 128, 128>}, {pipeline_mode = #tpu.pipeline_mode<synchronous>, transform_indices = @transform_6, window_bounds = array<i64: 1, 128>}, {pipeline_mode = #tpu.pipeline_mode<synchronous>, transform_indices = @transform_7, window_bounds = array<i64: 128, 512>}, {pipeline_mode = #tpu.pipeline_mode<synchronous>, transform_indices = @transform_8, window_bounds = array<i64: 1, 512>}, {pipeline_mode = #tpu.pipeline_mode<synchronous>, transform_indices = @transform_9, window_bounds = array<i64: 512, 128>}, {pipeline_mode = #tpu.pipeline_mode<synchronous>, transform_indices = @transform_10, window_bounds = array<i64: 1, 128>}, {transform_indices = @transform_11, window_bounds = array<i64: 2, 16, 128>}]} {
    %c0 = arith.constant 0 : index
    %c0_0 = arith.constant 0 : index
    %c0_1 = arith.constant 0 : index
    %0 = vector.load %arg1[%c0, %c0_0, %c0_1] : memref<2x16x128xf32, #tpu.memory_space<vmem>>, vector<2x16x128xf32>
    %1 = tpu.iota {dimensions = array<i32: 2>} : vector<1x1x16xi32>
    %c9_i32 = arith.constant 9 : i32
    %2 = vector.broadcast %c9_i32 : i32 to vector<1x1x16xi32>
    %3 = arith.cmpi slt, %1, %2 : vector<1x1x16xi32>
    %cst = arith.constant 0.000000e+00 : f32
    %cst_2 = arith.constant -1.000000e+30 : f32
    %4 = vector.broadcast %cst : f32 to vector<1x1x16xf32>
    %5 = vector.broadcast %cst_2 : f32 to vector<1x1x16xf32>
    %6 = arith.select %3, %4, %5 : vector<1x1x16xi1>, vector<1x1x16xf32>
    %7 = tpu.iota {dimensions = array<i32: 1>} : vector<1x16x1xi32>
    %c9_i32_3 = arith.constant 9 : i32
    %8 = vector.broadcast %c9_i32_3 : i32 to vector<1x16x1xi32>
    %9 = arith.cmpi slt, %7, %8 : vector<1x16x1xi32>
    %10 = arith.extui %9 : vector<1x16x1xi1> to vector<1x16x1xi32>
    %11 = arith.sitofp %10 : vector<1x16x1xi32> to vector<1x16x1xf32>
    %cst_4 = arith.constant dense<0.000000e+00> : vector<2x16xf32>
    %12 = vector.multi_reduction <add>, %0, %cst_4 [2] : vector<2x16x128xf32> to vector<2x16xf32>
    %13 = vector.shape_cast %12 : vector<2x16xf32> to vector<2x16x1xf32>
    %cst_5 = arith.constant 1.280000e+02 : f32
    %14 = vector.broadcast %cst_5 : f32 to vector<2x16x1xf32>
    %15 = arith.divf %13, %14 : vector<2x16x1xf32>
    %16 = vector.broadcast %15 : vector<2x16x1xf32> to vector<2x16x128xf32>
    %17 = arith.subf %0, %16 : vector<2x16x128xf32>
    %18 = arith.mulf %17, %17 : vector<2x16x128xf32>
    %cst_6 = arith.constant dense<0.000000e+00> : vector<2x16xf32>
    %19 = vector.multi_reduction <add>, %18, %cst_6 [2] : vector<2x16x128xf32> to vector<2x16xf32>
    %20 = vector.shape_cast %19 : vector<2x16xf32> to vector<2x16x1xf32>
    %cst_7 = arith.constant 1.280000e+02 : f32
    %21 = vector.broadcast %cst_7 : f32 to vector<2x16x1xf32>
    %22 = arith.divf %20, %21 : vector<2x16x1xf32>
    %23 = vector.broadcast %15 : vector<2x16x1xf32> to vector<2x16x128xf32>
    %24 = arith.subf %0, %23 : vector<2x16x128xf32>
    %cst_8 = arith.constant 9.99999974E-6 : f32
    %25 = vector.broadcast %cst_8 : f32 to vector<2x16x1xf32>
    %26 = arith.addf %22, %25 : vector<2x16x1xf32>
    %27 = math.rsqrt %26 : vector<2x16x1xf32>
    %28 = vector.broadcast %27 : vector<2x16x1xf32> to vector<2x16x128xf32>
    %29 = arith.mulf %24, %28 : vector<2x16x128xf32>
    %c0_9 = arith.constant 0 : index
    %c0_10 = arith.constant 0 : index
    %c0_11 = arith.constant 0 : index
    %30 = vector.load %arg2[%c0_9, %c0_10, %c0_11] : memref<2x1x256xf32, #tpu.memory_space<vmem>>, vector<2x1x128xf32>
    %c0_12 = arith.constant 0 : index
    %c0_13 = arith.constant 0 : index
    %c128 = arith.constant 128 : index
    %31 = vector.load %arg2[%c0_12, %c0_13, %c128] : memref<2x1x256xf32, #tpu.memory_space<vmem>>, vector<2x1x128xf32>
    %cst_14 = arith.constant 1.000000e+00 : f32
    %32 = vector.broadcast %cst_14 : f32 to vector<2x1x128xf32>
    %33 = arith.addf %32, %31 : vector<2x1x128xf32>
    %34 = vector.broadcast %33 : vector<2x1x128xf32> to vector<2x16x128xf32>
    %35 = arith.mulf %29, %34 : vector<2x16x128xf32>
    %36 = vector.broadcast %30 : vector<2x1x128xf32> to vector<2x16x128xf32>
    %37 = arith.addf %35, %36 : vector<2x16x128xf32>
    %38 = vector.shape_cast %37 : vector<2x16x128xf32> to vector<32x128xf32>
    %39 = arith.truncf %38 : vector<32x128xf32> to vector<32x128xbf16>
    %c0_15 = arith.constant 0 : index
    %c0_16 = arith.constant 0 : index
    %40 = vector.load %arg4[%c0_15, %c0_16] : memref<128x384xbf16, #tpu.memory_space<vmem>>, vector<128x384xbf16>
    %cst_17 = arith.constant dense<0.000000e+00> : vector<32x384xf32>
    %41 = tpu.matmul %39, %40, %cst_17 {dimension_numbers = #tpu.dot_dimension_numbers<[1], [0], [0], [1], [0, 0, 1, 1], [], []>} : vector<32x128xbf16>, vector<128x384xbf16>, vector<32x384xf32> -> vector<32x384xf32>
    %c0_18 = arith.constant 0 : index
    %c0_19 = arith.constant 0 : index
    %42 = vector.load %arg5[%c0_18, %c0_19] : memref<1x384xf32, #tpu.memory_space<vmem>>, vector<1x384xf32>
    %43 = vector.broadcast %42 : vector<1x384xf32> to vector<32x384xf32>
    %44 = arith.addf %41, %43 : vector<32x384xf32>
    %45 = arith.truncf %44 : vector<32x384xf32> to vector<32x384xbf16>
    %cst_20 = arith.constant 0.000000e+00 : f32
    %46 = vector.broadcast %cst_20 : f32 to vector<32x128xf32>
    %47 = vector.extract_strided_slice %45 {offsets = [0, 0], sizes = [32, 32], strides = [1, 1]} : vector<32x384xbf16> to vector<32x32xbf16>
    %48 = vector.shape_cast %47 : vector<32x32xbf16> to vector<2x16x32xbf16>
    %49 = vector.extract_strided_slice %45 {offsets = [0, 128], sizes = [32, 32], strides = [1, 1]} : vector<32x384xbf16> to vector<32x32xbf16>
    %50 = vector.shape_cast %49 : vector<32x32xbf16> to vector<2x16x32xbf16>
    %51 = vector.extract_strided_slice %45 {offsets = [0, 256], sizes = [32, 32], strides = [1, 1]} : vector<32x384xbf16> to vector<32x32xbf16>
    %52 = vector.shape_cast %51 : vector<32x32xbf16> to vector<2x16x32xbf16>
    "tpu.trace_start"() <{level = 10 : i32, message = "bqd,bkd->bqk"}> : () -> ()
    %cst_21 = arith.constant dense<0.000000e+00> : vector<2x16x16xf32>
    %53 = tpu.matmul %48, %50, %cst_21 {dimension_numbers = #tpu.dot_dimension_numbers<[2], [2], [1], [1], [0, 0, 0, 1, 1, 1], [0], [0]>} : vector<2x16x32xbf16>, vector<2x16x32xbf16>, vector<2x16x16xf32> -> vector<2x16x16xf32>
    "tpu.trace_stop"() : () -> ()
    %cst_22 = arith.constant 0.176776692 : f32
    %54 = vector.broadcast %cst_22 : f32 to vector<2x16x16xf32>
    %55 = arith.mulf %53, %54 : vector<2x16x16xf32>
    %56 = vector.broadcast %6 : vector<1x1x16xf32> to vector<2x16x16xf32>
    %57 = arith.addf %55, %56 : vector<2x16x16xf32>
    %cst_23 = arith.constant dense<0xFF800000> : vector<2x16xf32>
    %58 = vector.multi_reduction <maximumf>, %57, %cst_23 [2] : vector<2x16x16xf32> to vector<2x16xf32>
    %59 = vector.shape_cast %58 : vector<2x16xf32> to vector<2x16x1xf32>
    %60 = vector.broadcast %59 : vector<2x16x1xf32> to vector<2x16x16xf32>
    %61 = arith.subf %57, %60 : vector<2x16x16xf32>
    %62 = math.exp %61 : vector<2x16x16xf32>
    %cst_24 = arith.constant dense<0.000000e+00> : vector<2x16xf32>
    %63 = vector.multi_reduction <add>, %62, %cst_24 [2] : vector<2x16x16xf32> to vector<2x16xf32>
    %64 = vector.shape_cast %63 : vector<2x16xf32> to vector<2x16x1xf32>
    %65 = tpu.reciprocal %64 {approx = true} : vector<2x16x1xf32> -> vector<2x16x1xf32>
    %66 = vector.broadcast %65 : vector<2x16x1xf32> to vector<2x16x16xf32>
    %67 = arith.mulf %62, %66 : vector<2x16x16xf32>
    %68 = arith.truncf %67 : vector<2x16x16xf32> to vector<2x16x16xbf16>
    "tpu.trace_start"() <{level = 10 : i32, message = "bqk,bkd->bqd"}> : () -> ()
    %cst_25 = arith.constant dense<0.000000e+00> : vector<2x16x32xf32>
    %69 = tpu.matmul %68, %52, %cst_25 {dimension_numbers = #tpu.dot_dimension_numbers<[2], [1], [1], [2], [0, 0, 0, 1, 1, 2], [0], [0]>} : vector<2x16x16xbf16>, vector<2x16x32xbf16>, vector<2x16x32xf32> -> vector<2x16x32xf32>
    "tpu.trace_stop"() : () -> ()
    %70 = vector.shape_cast %69 : vector<2x16x32xf32> to vector<32x32xf32>
    %71 = arith.truncf %70 : vector<32x32xf32> to vector<32x32xbf16>
    %c0_26 = arith.constant 0 : index
    %c0_27 = arith.constant 0 : index
    %72 = vector.load %arg6[%c0_26, %c0_27] : memref<128x128xbf16, #tpu.memory_space<vmem>>, vector<32x128xbf16>
    %cst_28 = arith.constant dense<0.000000e+00> : vector<32x128xf32>
    %73 = tpu.matmul %71, %72, %cst_28 {dimension_numbers = #tpu.dot_dimension_numbers<[1], [0], [0], [1], [0, 0, 1, 1], [], []>} : vector<32x32xbf16>, vector<32x128xbf16>, vector<32x128xf32> -> vector<32x128xf32>
    %74 = arith.addf %46, %73 : vector<32x128xf32>
    %75 = vector.extract_strided_slice %45 {offsets = [0, 32], sizes = [32, 32], strides = [1, 1]} : vector<32x384xbf16> to vector<32x32xbf16>
    %76 = vector.shape_cast %75 : vector<32x32xbf16> to vector<2x16x32xbf16>
    %77 = vector.extract_strided_slice %45 {offsets = [0, 160], sizes = [32, 32], strides = [1, 1]} : vector<32x384xbf16> to vector<32x32xbf16>
    %78 = vector.shape_cast %77 : vector<32x32xbf16> to vector<2x16x32xbf16>
    %79 = vector.extract_strided_slice %45 {offsets = [0, 288], sizes = [32, 32], strides = [1, 1]} : vector<32x384xbf16> to vector<32x32xbf16>
    %80 = vector.shape_cast %79 : vector<32x32xbf16> to vector<2x16x32xbf16>
    "tpu.trace_start"() <{level = 10 : i32, message = "bqd,bkd->bqk"}> : () -> ()
    %cst_29 = arith.constant dense<0.000000e+00> : vector<2x16x16xf32>
    %81 = tpu.matmul %76, %78, %cst_29 {dimension_numbers = #tpu.dot_dimension_numbers<[2], [2], [1], [1], [0, 0, 0, 1, 1, 1], [0], [0]>} : vector<2x16x32xbf16>, vector<2x16x32xbf16>, vector<2x16x16xf32> -> vector<2x16x16xf32>
    "tpu.trace_stop"() : () -> ()
    %cst_30 = arith.constant 0.176776692 : f32
    %82 = vector.broadcast %cst_30 : f32 to vector<2x16x16xf32>
    %83 = arith.mulf %81, %82 : vector<2x16x16xf32>
    %84 = vector.broadcast %6 : vector<1x1x16xf32> to vector<2x16x16xf32>
    %85 = arith.addf %83, %84 : vector<2x16x16xf32>
    %cst_31 = arith.constant dense<0xFF800000> : vector<2x16xf32>
    %86 = vector.multi_reduction <maximumf>, %85, %cst_31 [2] : vector<2x16x16xf32> to vector<2x16xf32>
    %87 = vector.shape_cast %86 : vector<2x16xf32> to vector<2x16x1xf32>
    %88 = vector.broadcast %87 : vector<2x16x1xf32> to vector<2x16x16xf32>
    %89 = arith.subf %85, %88 : vector<2x16x16xf32>
    %90 = math.exp %89 : vector<2x16x16xf32>
    %cst_32 = arith.constant dense<0.000000e+00> : vector<2x16xf32>
    %91 = vector.multi_reduction <add>, %90, %cst_32 [2] : vector<2x16x16xf32> to vector<2x16xf32>
    %92 = vector.shape_cast %91 : vector<2x16xf32> to vector<2x16x1xf32>
    %93 = tpu.reciprocal %92 {approx = true} : vector<2x16x1xf32> -> vector<2x16x1xf32>
    %94 = vector.broadcast %93 : vector<2x16x1xf32> to vector<2x16x16xf32>
    %95 = arith.mulf %90, %94 : vector<2x16x16xf32>
    %96 = arith.truncf %95 : vector<2x16x16xf32> to vector<2x16x16xbf16>
    "tpu.trace_start"() <{level = 10 : i32, message = "bqk,bkd->bqd"}> : () -> ()
    %cst_33 = arith.constant dense<0.000000e+00> : vector<2x16x32xf32>
    %97 = tpu.matmul %96, %80, %cst_33 {dimension_numbers = #tpu.dot_dimension_numbers<[2], [1], [1], [2], [0, 0, 0, 1, 1, 2], [0], [0]>} : vector<2x16x16xbf16>, vector<2x16x32xbf16>, vector<2x16x32xf32> -> vector<2x16x32xf32>
    "tpu.trace_stop"() : () -> ()
    %98 = vector.shape_cast %97 : vector<2x16x32xf32> to vector<32x32xf32>
    %99 = arith.truncf %98 : vector<32x32xf32> to vector<32x32xbf16>
    %c32 = arith.constant 32 : index
    %c0_34 = arith.constant 0 : index
    %100 = vector.load %arg6[%c32, %c0_34] : memref<128x128xbf16, #tpu.memory_space<vmem>>, vector<32x128xbf16>
    %cst_35 = arith.constant dense<0.000000e+00> : vector<32x128xf32>
    %101 = tpu.matmul %99, %100, %cst_35 {dimension_numbers = #tpu.dot_dimension_numbers<[1], [0], [0], [1], [0, 0, 1, 1], [], []>} : vector<32x32xbf16>, vector<32x128xbf16>, vector<32x128xf32> -> vector<32x128xf32>
    %102 = arith.addf %74, %101 : vector<32x128xf32>
    %103 = vector.extract_strided_slice %45 {offsets = [0, 64], sizes = [32, 32], strides = [1, 1]} : vector<32x384xbf16> to vector<32x32xbf16>
    %104 = vector.shape_cast %103 : vector<32x32xbf16> to vector<2x16x32xbf16>
    %105 = vector.extract_strided_slice %45 {offsets = [0, 192], sizes = [32, 32], strides = [1, 1]} : vector<32x384xbf16> to vector<32x32xbf16>
    %106 = vector.shape_cast %105 : vector<32x32xbf16> to vector<2x16x32xbf16>
    %107 = vector.extract_strided_slice %45 {offsets = [0, 320], sizes = [32, 32], strides = [1, 1]} : vector<32x384xbf16> to vector<32x32xbf16>
    %108 = vector.shape_cast %107 : vector<32x32xbf16> to vector<2x16x32xbf16>
    "tpu.trace_start"() <{level = 10 : i32, message = "bqd,bkd->bqk"}> : () -> ()
    %cst_36 = arith.constant dense<0.000000e+00> : vector<2x16x16xf32>
    %109 = tpu.matmul %104, %106, %cst_36 {dimension_numbers = #tpu.dot_dimension_numbers<[2], [2], [1], [1], [0, 0, 0, 1, 1, 1], [0], [0]>} : vector<2x16x32xbf16>, vector<2x16x32xbf16>, vector<2x16x16xf32> -> vector<2x16x16xf32>
    "tpu.trace_stop"() : () -> ()
    %cst_37 = arith.constant 0.176776692 : f32
    %110 = vector.broadcast %cst_37 : f32 to vector<2x16x16xf32>
    %111 = arith.mulf %109, %110 : vector<2x16x16xf32>
    %112 = vector.broadcast %6 : vector<1x1x16xf32> to vector<2x16x16xf32>
    %113 = arith.addf %111, %112 : vector<2x16x16xf32>
    %cst_38 = arith.constant dense<0xFF800000> : vector<2x16xf32>
    %114 = vector.multi_reduction <maximumf>, %113, %cst_38 [2] : vector<2x16x16xf32> to vector<2x16xf32>
    %115 = vector.shape_cast %114 : vector<2x16xf32> to vector<2x16x1xf32>
    %116 = vector.broadcast %115 : vector<2x16x1xf32> to vector<2x16x16xf32>
    %117 = arith.subf %113, %116 : vector<2x16x16xf32>
    %118 = math.exp %117 : vector<2x16x16xf32>
    %cst_39 = arith.constant dense<0.000000e+00> : vector<2x16xf32>
    %119 = vector.multi_reduction <add>, %118, %cst_39 [2] : vector<2x16x16xf32> to vector<2x16xf32>
    %120 = vector.shape_cast %119 : vector<2x16xf32> to vector<2x16x1xf32>
    %121 = tpu.reciprocal %120 {approx = true} : vector<2x16x1xf32> -> vector<2x16x1xf32>
    %122 = vector.broadcast %121 : vector<2x16x1xf32> to vector<2x16x16xf32>
    %123 = arith.mulf %118, %122 : vector<2x16x16xf32>
    %124 = arith.truncf %123 : vector<2x16x16xf32> to vector<2x16x16xbf16>
    "tpu.trace_start"() <{level = 10 : i32, message = "bqk,bkd->bqd"}> : () -> ()
    %cst_40 = arith.constant dense<0.000000e+00> : vector<2x16x32xf32>
    %125 = tpu.matmul %124, %108, %cst_40 {dimension_numbers = #tpu.dot_dimension_numbers<[2], [1], [1], [2], [0, 0, 0, 1, 1, 2], [0], [0]>} : vector<2x16x16xbf16>, vector<2x16x32xbf16>, vector<2x16x32xf32> -> vector<2x16x32xf32>
    "tpu.trace_stop"() : () -> ()
    %126 = vector.shape_cast %125 : vector<2x16x32xf32> to vector<32x32xf32>
    %127 = arith.truncf %126 : vector<32x32xf32> to vector<32x32xbf16>
    %c64 = arith.constant 64 : index
    %c0_41 = arith.constant 0 : index
    %128 = vector.load %arg6[%c64, %c0_41] : memref<128x128xbf16, #tpu.memory_space<vmem>>, vector<32x128xbf16>
    %cst_42 = arith.constant dense<0.000000e+00> : vector<32x128xf32>
    %129 = tpu.matmul %127, %128, %cst_42 {dimension_numbers = #tpu.dot_dimension_numbers<[1], [0], [0], [1], [0, 0, 1, 1], [], []>} : vector<32x32xbf16>, vector<32x128xbf16>, vector<32x128xf32> -> vector<32x128xf32>
    %130 = arith.addf %102, %129 : vector<32x128xf32>
    %131 = vector.extract_strided_slice %45 {offsets = [0, 96], sizes = [32, 32], strides = [1, 1]} : vector<32x384xbf16> to vector<32x32xbf16>
    %132 = vector.shape_cast %131 : vector<32x32xbf16> to vector<2x16x32xbf16>
    %133 = vector.extract_strided_slice %45 {offsets = [0, 224], sizes = [32, 32], strides = [1, 1]} : vector<32x384xbf16> to vector<32x32xbf16>
    %134 = vector.shape_cast %133 : vector<32x32xbf16> to vector<2x16x32xbf16>
    %135 = vector.extract_strided_slice %45 {offsets = [0, 352], sizes = [32, 32], strides = [1, 1]} : vector<32x384xbf16> to vector<32x32xbf16>
    %136 = vector.shape_cast %135 : vector<32x32xbf16> to vector<2x16x32xbf16>
    "tpu.trace_start"() <{level = 10 : i32, message = "bqd,bkd->bqk"}> : () -> ()
    %cst_43 = arith.constant dense<0.000000e+00> : vector<2x16x16xf32>
    %137 = tpu.matmul %132, %134, %cst_43 {dimension_numbers = #tpu.dot_dimension_numbers<[2], [2], [1], [1], [0, 0, 0, 1, 1, 1], [0], [0]>} : vector<2x16x32xbf16>, vector<2x16x32xbf16>, vector<2x16x16xf32> -> vector<2x16x16xf32>
    "tpu.trace_stop"() : () -> ()
    %cst_44 = arith.constant 0.176776692 : f32
    %138 = vector.broadcast %cst_44 : f32 to vector<2x16x16xf32>
    %139 = arith.mulf %137, %138 : vector<2x16x16xf32>
    %140 = vector.broadcast %6 : vector<1x1x16xf32> to vector<2x16x16xf32>
    %141 = arith.addf %139, %140 : vector<2x16x16xf32>
    %cst_45 = arith.constant dense<0xFF800000> : vector<2x16xf32>
    %142 = vector.multi_reduction <maximumf>, %141, %cst_45 [2] : vector<2x16x16xf32> to vector<2x16xf32>
    %143 = vector.shape_cast %142 : vector<2x16xf32> to vector<2x16x1xf32>
    %144 = vector.broadcast %143 : vector<2x16x1xf32> to vector<2x16x16xf32>
    %145 = arith.subf %141, %144 : vector<2x16x16xf32>
    %146 = math.exp %145 : vector<2x16x16xf32>
    %cst_46 = arith.constant dense<0.000000e+00> : vector<2x16xf32>
    %147 = vector.multi_reduction <add>, %146, %cst_46 [2] : vector<2x16x16xf32> to vector<2x16xf32>
    %148 = vector.shape_cast %147 : vector<2x16xf32> to vector<2x16x1xf32>
    %149 = tpu.reciprocal %148 {approx = true} : vector<2x16x1xf32> -> vector<2x16x1xf32>
    %150 = vector.broadcast %149 : vector<2x16x1xf32> to vector<2x16x16xf32>
    %151 = arith.mulf %146, %150 : vector<2x16x16xf32>
    %152 = arith.truncf %151 : vector<2x16x16xf32> to vector<2x16x16xbf16>
    "tpu.trace_start"() <{level = 10 : i32, message = "bqk,bkd->bqd"}> : () -> ()
    %cst_47 = arith.constant dense<0.000000e+00> : vector<2x16x32xf32>
    %153 = tpu.matmul %152, %136, %cst_47 {dimension_numbers = #tpu.dot_dimension_numbers<[2], [1], [1], [2], [0, 0, 0, 1, 1, 2], [0], [0]>} : vector<2x16x16xbf16>, vector<2x16x32xbf16>, vector<2x16x32xf32> -> vector<2x16x32xf32>
    "tpu.trace_stop"() : () -> ()
    %154 = vector.shape_cast %153 : vector<2x16x32xf32> to vector<32x32xf32>
    %155 = arith.truncf %154 : vector<32x32xf32> to vector<32x32xbf16>
    %c96 = arith.constant 96 : index
    %c0_48 = arith.constant 0 : index
    %156 = vector.load %arg6[%c96, %c0_48] : memref<128x128xbf16, #tpu.memory_space<vmem>>, vector<32x128xbf16>
    %cst_49 = arith.constant dense<0.000000e+00> : vector<32x128xf32>
    %157 = tpu.matmul %155, %156, %cst_49 {dimension_numbers = #tpu.dot_dimension_numbers<[1], [0], [0], [1], [0, 0, 1, 1], [], []>} : vector<32x32xbf16>, vector<32x128xbf16>, vector<32x128xf32> -> vector<32x128xf32>
    %158 = arith.addf %130, %157 : vector<32x128xf32>
    %c0_50 = arith.constant 0 : index
    %c0_51 = arith.constant 0 : index
    %159 = vector.load %arg7[%c0_50, %c0_51] : memref<1x128xf32, #tpu.memory_space<vmem>>, vector<1x128xf32>
    %160 = vector.broadcast %159 : vector<1x128xf32> to vector<32x128xf32>
    %161 = arith.addf %158, %160 : vector<32x128xf32>
    %162 = vector.shape_cast %161 : vector<32x128xf32> to vector<2x16x128xf32>
    %163 = vector.broadcast %11 : vector<1x16x1xf32> to vector<2x16x128xf32>
    %164 = arith.mulf %162, %163 : vector<2x16x128xf32>
    %165 = arith.addf %0, %164 : vector<2x16x128xf32>
    %cst_52 = arith.constant dense<0.000000e+00> : vector<2x16xf32>
    %166 = vector.multi_reduction <add>, %165, %cst_52 [2] : vector<2x16x128xf32> to vector<2x16xf32>
    %167 = vector.shape_cast %166 : vector<2x16xf32> to vector<2x16x1xf32>
    %cst_53 = arith.constant 1.280000e+02 : f32
    %168 = vector.broadcast %cst_53 : f32 to vector<2x16x1xf32>
    %169 = arith.divf %167, %168 : vector<2x16x1xf32>
    %170 = vector.broadcast %169 : vector<2x16x1xf32> to vector<2x16x128xf32>
    %171 = arith.subf %165, %170 : vector<2x16x128xf32>
    %172 = arith.mulf %171, %171 : vector<2x16x128xf32>
    %cst_54 = arith.constant dense<0.000000e+00> : vector<2x16xf32>
    %173 = vector.multi_reduction <add>, %172, %cst_54 [2] : vector<2x16x128xf32> to vector<2x16xf32>
    %174 = vector.shape_cast %173 : vector<2x16xf32> to vector<2x16x1xf32>
    %cst_55 = arith.constant 1.280000e+02 : f32
    %175 = vector.broadcast %cst_55 : f32 to vector<2x16x1xf32>
    %176 = arith.divf %174, %175 : vector<2x16x1xf32>
    %177 = vector.broadcast %169 : vector<2x16x1xf32> to vector<2x16x128xf32>
    %178 = arith.subf %165, %177 : vector<2x16x128xf32>
    %cst_56 = arith.constant 9.99999974E-6 : f32
    %179 = vector.broadcast %cst_56 : f32 to vector<2x16x1xf32>
    %180 = arith.addf %176, %179 : vector<2x16x1xf32>
    %181 = math.rsqrt %180 : vector<2x16x1xf32>
    %182 = vector.broadcast %181 : vector<2x16x1xf32> to vector<2x16x128xf32>
    %183 = arith.mulf %178, %182 : vector<2x16x128xf32>
    %c0_57 = arith.constant 0 : index
    %c0_58 = arith.constant 0 : index
    %c0_59 = arith.constant 0 : index
    %184 = vector.load %arg3[%c0_57, %c0_58, %c0_59] : memref<2x1x256xf32, #tpu.memory_space<vmem>>, vector<2x1x128xf32>
    %c0_60 = arith.constant 0 : index
    %c0_61 = arith.constant 0 : index
    %c128_62 = arith.constant 128 : index
    %185 = vector.load %arg3[%c0_60, %c0_61, %c128_62] : memref<2x1x256xf32, #tpu.memory_space<vmem>>, vector<2x1x128xf32>
    %cst_63 = arith.constant 1.000000e+00 : f32
    %186 = vector.broadcast %cst_63 : f32 to vector<2x1x128xf32>
    %187 = arith.addf %186, %185 : vector<2x1x128xf32>
    %188 = vector.broadcast %187 : vector<2x1x128xf32> to vector<2x16x128xf32>
    %189 = arith.mulf %183, %188 : vector<2x16x128xf32>
    %190 = vector.broadcast %184 : vector<2x1x128xf32> to vector<2x16x128xf32>
    %191 = arith.addf %189, %190 : vector<2x16x128xf32>
    %192 = vector.shape_cast %191 : vector<2x16x128xf32> to vector<32x128xf32>
    %193 = arith.truncf %192 : vector<32x128xf32> to vector<32x128xbf16>
    %cst_64 = arith.constant 0.000000e+00 : f32
    %194 = vector.broadcast %cst_64 : f32 to vector<32x128xf32>
    %c0_65 = arith.constant 0 : index
    %c0_66 = arith.constant 0 : index
    %195 = vector.load %arg8[%c0_65, %c0_66] : memref<128x512xbf16, #tpu.memory_space<vmem>>, vector<128x512xbf16>
    %cst_67 = arith.constant dense<0.000000e+00> : vector<32x512xf32>
    %196 = tpu.matmul %193, %195, %cst_67 {dimension_numbers = #tpu.dot_dimension_numbers<[1], [0], [0], [1], [0, 0, 1, 1], [], []>} : vector<32x128xbf16>, vector<128x512xbf16>, vector<32x512xf32> -> vector<32x512xf32>
    %c0_68 = arith.constant 0 : index
    %c0_69 = arith.constant 0 : index
    %197 = vector.load %arg9[%c0_68, %c0_69] : memref<1x512xf32, #tpu.memory_space<vmem>>, vector<1x512xf32>
    %198 = vector.broadcast %197 : vector<1x512xf32> to vector<32x512xf32>
    %199 = arith.addf %196, %198 : vector<32x512xf32>
    %200 = arith.mulf %199, %199 : vector<32x512xf32>
    %201 = arith.mulf %199, %200 : vector<32x512xf32>
    %cst_70 = arith.constant 4.471500e-02 : f32
    %202 = vector.broadcast %cst_70 : f32 to vector<32x512xf32>
    %203 = arith.mulf %202, %201 : vector<32x512xf32>
    %204 = arith.addf %199, %203 : vector<32x512xf32>
    %cst_71 = arith.constant 0.797884583 : f32
    %205 = vector.broadcast %cst_71 : f32 to vector<32x512xf32>
    %206 = arith.mulf %205, %204 : vector<32x512xf32>
    %207 = math.tanh %206 : vector<32x512xf32>
    %cst_72 = arith.constant 1.000000e+00 : f32
    %208 = vector.broadcast %cst_72 : f32 to vector<32x512xf32>
    %209 = arith.addf %208, %207 : vector<32x512xf32>
    %cst_73 = arith.constant 5.000000e-01 : f32
    %210 = vector.broadcast %cst_73 : f32 to vector<32x512xf32>
    %211 = arith.mulf %210, %209 : vector<32x512xf32>
    %212 = arith.mulf %199, %211 : vector<32x512xf32>
    %213 = arith.truncf %212 : vector<32x512xf32> to vector<32x512xbf16>
    %c0_74 = arith.constant 0 : index
    %c0_75 = arith.constant 0 : index
    %214 = vector.load %arg10[%c0_74, %c0_75] : memref<512x128xbf16, #tpu.memory_space<vmem>>, vector<512x128xbf16>
    %cst_76 = arith.constant dense<0.000000e+00> : vector<32x128xf32>
    %215 = tpu.matmul %213, %214, %cst_76 {dimension_numbers = #tpu.dot_dimension_numbers<[1], [0], [0], [1], [0, 0, 1, 1], [], []>} : vector<32x512xbf16>, vector<512x128xbf16>, vector<32x128xf32> -> vector<32x128xf32>
    %216 = arith.addf %194, %215 : vector<32x128xf32>
    %c0_77 = arith.constant 0 : index
    %c0_78 = arith.constant 0 : index
    %217 = vector.load %arg11[%c0_77, %c0_78] : memref<1x128xf32, #tpu.memory_space<vmem>>, vector<1x128xf32>
    %218 = vector.broadcast %217 : vector<1x128xf32> to vector<32x128xf32>
    %219 = arith.addf %216, %218 : vector<32x128xf32>
    %220 = vector.shape_cast %219 : vector<32x128xf32> to vector<2x16x128xf32>
    %221 = vector.broadcast %11 : vector<1x16x1xf32> to vector<2x16x128xf32>
    %222 = arith.mulf %220, %221 : vector<2x16x128xf32>
    %223 = arith.addf %165, %222 : vector<2x16x128xf32>
    %c0_79 = arith.constant 0 : index
    %c0_80 = arith.constant 0 : index
    %c0_81 = arith.constant 0 : index
    %224 = vector.load %arg12[%c0_79, %c0_80, %c0_81] : memref<2x16x128xf32, #tpu.memory_space<vmem>>, vector<2x16x128xf32>
    tpu.vector_store %arg12[%c0_79, %c0_80, %c0_81], %223 {strides = array<i32>} : memref<2x16x128xf32, #tpu.memory_space<vmem>>, vector<2x16x128xf32>,
    return
  }
  func.func @transform_0(%arg0: i32) -> (i32, i32, i32) {
    %c0_i32 = arith.constant 0 : i32
    %c0_i32_0 = arith.constant 0 : i32
    %c0_i32_1 = arith.constant 0 : i32
    return %arg0, %c0_i32, %c0_i32_0 : i32, i32, i32
  }
  func.func @transform_1(%arg0: i32) -> (i32, i32, i32) {
    %c0_i32 = arith.constant 0 : i32
    %c0_i32_0 = arith.constant 0 : i32
    %c0_i32_1 = arith.constant 0 : i32
    return %arg0, %c0_i32, %c0_i32_0 : i32, i32, i32
  }
  func.func @transform_2(%arg0: i32) -> (i32, i32, i32) {
    %c0_i32 = arith.constant 0 : i32
    %c0_i32_0 = arith.constant 0 : i32
    %c0_i32_1 = arith.constant 0 : i32
    return %arg0, %c0_i32, %c0_i32_0 : i32, i32, i32
  }
  func.func @transform_3(%arg0: i32) -> (i32, i32) {
    %c0_i32 = arith.constant 0 : i32
    %c0_i32_0 = arith.constant 0 : i32
    %c0_i32_1 = arith.constant 0 : i32
    return %c0_i32, %c0_i32_0 : i32, i32
  }
  func.func @transform_4(%arg0: i32) -> (i32, i32) {
    %c0_i32 = arith.constant 0 : i32
    %c0_i32_0 = arith.constant 0 : i32
    %c0_i32_1 = arith.constant 0 : i32
    return %c0_i32, %c0_i32_0 : i32, i32
  }
  func.func @transform_5(%arg0: i32) -> (i32, i32) {
    %c0_i32 = arith.constant 0 : i32
    %c0_i32_0 = arith.constant 0 : i32
    %c0_i32_1 = arith.constant 0 : i32
    return %c0_i32, %c0_i32_0 : i32, i32
  }
  func.func @transform_6(%arg0: i32) -> (i32, i32) {
    %c0_i32 = arith.constant 0 : i32
    %c0_i32_0 = arith.constant 0 : i32
    %c0_i32_1 = arith.constant 0 : i32
    return %c0_i32, %c0_i32_0 : i32, i32
  }
  func.func @transform_7(%arg0: i32) -> (i32, i32) {
    %c0_i32 = arith.constant 0 : i32
    %c0_i32_0 = arith.constant 0 : i32
    %c0_i32_1 = arith.constant 0 : i32
    return %c0_i32, %c0_i32_0 : i32, i32
  }
  func.func @transform_8(%arg0: i32) -> (i32, i32) {
    %c0_i32 = arith.constant 0 : i32
    %c0_i32_0 = arith.constant 0 : i32
    %c0_i32_1 = arith.constant 0 : i32
    return %c0_i32, %c0_i32_0 : i32, i32
  }
  func.func @transform_9(%arg0: i32) -> (i32, i32) {
    %c0_i32 = arith.constant 0 : i32
    %c0_i32_0 = arith.constant 0 : i32
    %c0_i32_1 = arith.constant 0 : i32
    return %c0_i32, %c0_i32_0 : i32, i32
  }
  func.func @transform_10(%arg0: i32) -> (i32, i32) {
    %c0_i32 = arith.constant 0 : i32
    %c0_i32_0 = arith.constant 0 : i32
    %c0_i32_1 = arith.constant 0 : i32
    return %c0_i32, %c0_i32_0 : i32, i32
  }
  func.func @transform_11(%arg0: i32) -> (i32, i32, i32) {
    %c0_i32 = arith.constant 0 : i32
    %c0_i32_0 = arith.constant 0 : i32
    %c0_i32_1 = arith.constant 0 : i32
    return %arg0, %c0_i32, %c0_i32_0 : i32, i32, i32
  }
}

module attributes {stable_mosaic.version = 11 : i64} {
  func.func @_block_kernel(%arg0: i32, %arg1: memref<2x16x128xf32, #tpu.memory_space<vmem>>, %arg2: memref<2x1x256xf32, #tpu.memory_space<vmem>>, %arg3: memref<2x1x256xf32, #tpu.memory_space<vmem>>, %arg4: memref<128x384xbf16, #tpu.memory_space<vmem>>, %arg5: memref<1x384xf32, #tpu.memory_space<vmem>>, %arg6: memref<128x128xbf16, #tpu.memory_space<vmem>>, %arg7: memref<1x128xf32, #tpu.memory_space<vmem>>, %arg8: memref<128x512xbf16, #tpu.memory_space<vmem>>, %arg9: memref<1x512xf32, #tpu.memory_space<vmem>>, %arg10: memref<512x128xbf16, #tpu.memory_space<vmem>>, %arg11: memref<1x128xf32, #tpu.memory_space<vmem>>, %arg12: memref<2x16x128xf32, #tpu.memory_space<vmem>>) attributes {dimension_semantics = [#tpu.dimension_semantics<parallel>], iteration_bounds = array<i64: 2>, scalar_prefetch = 0 : i64, scratch_operands = 0 : i64, tpu.core_type = #tpu.core_type<tc>, window_params = [{transform_indices = @transform_0, window_bounds = array<i64: 2, 16, 128>}, {transform_indices = @transform_1, window_bounds = array<i64: 2, 1, 256>}, {transform_indices = @transform_2, window_bounds = array<i64: 2, 1, 256>}, {pipeline_mode = #tpu.pipeline_mode<synchronous>, transform_indices = @transform_3, window_bounds = array<i64: 128, 384>}, {pipeline_mode = #tpu.pipeline_mode<synchronous>, transform_indices = @transform_4, window_bounds = array<i64: 1, 384>}, {pipeline_mode = #tpu.pipeline_mode<synchronous>, transform_indices = @transform_5, window_bounds = array<i64: 128, 128>}, {pipeline_mode = #tpu.pipeline_mode<synchronous>, transform_indices = @transform_6, window_bounds = array<i64: 1, 128>}, {pipeline_mode = #tpu.pipeline_mode<synchronous>, transform_indices = @transform_7, window_bounds = array<i64: 128, 512>}, {pipeline_mode = #tpu.pipeline_mode<synchronous>, transform_indices = @transform_8, window_bounds = array<i64: 1, 512>}, {pipeline_mode = #tpu.pipeline_mode<synchronous>, transform_indices = @transform_9, window_bounds = array<i64: 512, 128>}, {pipeline_mode = #tpu.pipeline_mode<synchronous>, transform_indices = @transform_10, window_bounds = array<i64: 1, 128>}, {transform_indices = @transform_11, window_bounds = array<i64: 2, 16, 128>}]} {
    %c0 = arith.constant 0 : index
    %c0_0 = arith.constant 0 : index
    %c0_1 = arith.constant 0 : index
    %0 = vector.load %arg1[%c0, %c0_0, %c0_1] : memref<2x16x128xf32, #tpu.memory_space<vmem>>, vector<2x16x128xf32>
    %1 = tpu.iota {dimensions = array<i32: 2>} : vector<1x1x16xi32>
    %c9_i32 = arith.constant 9 : i32
    %2 = vector.broadcast %c9_i32 : i32 to vector<1x1x16xi32>
    %3 = arith.cmpi slt, %1, %2 : vector<1x1x16xi32>
    %cst = arith.constant 0.000000e+00 : f32
    %cst_2 = arith.constant -1.000000e+30 : f32
    %4 = vector.broadcast %cst : f32 to vector<1x1x16xf32>
    %5 = vector.broadcast %cst_2 : f32 to vector<1x1x16xf32>
    %6 = arith.select %3, %4, %5 : vector<1x1x16xi1>, vector<1x1x16xf32>
    %7 = tpu.iota {dimensions = array<i32: 1>} : vector<1x16x1xi32>
    %c9_i32_3 = arith.constant 9 : i32
    %8 = vector.broadcast %c9_i32_3 : i32 to vector<1x16x1xi32>
    %9 = arith.cmpi slt, %7, %8 : vector<1x16x1xi32>
    %10 = arith.extui %9 : vector<1x16x1xi1> to vector<1x16x1xi32>
    %11 = arith.sitofp %10 : vector<1x16x1xi32> to vector<1x16x1xf32>
    %cst_4 = arith.constant dense<0.000000e+00> : vector<2x16xf32>
    %12 = vector.multi_reduction <add>, %0, %cst_4 [2] : vector<2x16x128xf32> to vector<2x16xf32>
    %13 = vector.shape_cast %12 : vector<2x16xf32> to vector<2x16x1xf32>
    %cst_5 = arith.constant 1.280000e+02 : f32
    %14 = vector.broadcast %cst_5 : f32 to vector<2x16x1xf32>
    %15 = arith.divf %13, %14 : vector<2x16x1xf32>
    %16 = vector.broadcast %15 : vector<2x16x1xf32> to vector<2x16x128xf32>
    %17 = arith.subf %0, %16 : vector<2x16x128xf32>
    %18 = arith.mulf %17, %17 : vector<2x16x128xf32>
    %cst_6 = arith.constant dense<0.000000e+00> : vector<2x16xf32>
    %19 = vector.multi_reduction <add>, %18, %cst_6 [2] : vector<2x16x128xf32> to vector<2x16xf32>
    %20 = vector.shape_cast %19 : vector<2x16xf32> to vector<2x16x1xf32>
    %cst_7 = arith.constant 1.280000e+02 : f32
    %21 = vector.broadcast %cst_7 : f32 to vector<2x16x1xf32>
    %22 = arith.divf %20, %21 : vector<2x16x1xf32>
    %23 = vector.broadcast %15 : vector<2x16x1xf32> to vector<2x16x128xf32>
    %24 = arith.subf %0, %23 : vector<2x16x128xf32>
    %cst_8 = arith.constant 9.99999974E-6 : f32
    %25 = vector.broadcast %cst_8 : f32 to vector<2x16x1xf32>
    %26 = arith.addf %22, %25 : vector<2x16x1xf32>
    %27 = math.rsqrt %26 : vector<2x16x1xf32>
    %28 = vector.broadcast %27 : vector<2x16x1xf32> to vector<2x16x128xf32>
    %29 = arith.mulf %24, %28 : vector<2x16x128xf32>
    %c0_9 = arith.constant 0 : index
    %c0_10 = arith.constant 0 : index
    %c0_11 = arith.constant 0 : index
    %30 = vector.load %arg2[%c0_9, %c0_10, %c0_11] : memref<2x1x256xf32, #tpu.memory_space<vmem>>, vector<2x1x128xf32>
    %c0_12 = arith.constant 0 : index
    %c0_13 = arith.constant 0 : index
    %c128 = arith.constant 128 : index
    %31 = vector.load %arg2[%c0_12, %c0_13, %c128] : memref<2x1x256xf32, #tpu.memory_space<vmem>>, vector<2x1x128xf32>
    %cst_14 = arith.constant 1.000000e+00 : f32
    %32 = vector.broadcast %cst_14 : f32 to vector<2x1x128xf32>
    %33 = arith.addf %32, %31 : vector<2x1x128xf32>
    %34 = vector.broadcast %33 : vector<2x1x128xf32> to vector<2x16x128xf32>
    %35 = arith.mulf %29, %34 : vector<2x16x128xf32>
    %36 = vector.broadcast %30 : vector<2x1x128xf32> to vector<2x16x128xf32>
    %37 = arith.addf %35, %36 : vector<2x16x128xf32>
    %38 = vector.shape_cast %37 : vector<2x16x128xf32> to vector<32x128xf32>
    %39 = arith.truncf %38 : vector<32x128xf32> to vector<32x128xbf16>
    %c0_15 = arith.constant 0 : index
    %c0_16 = arith.constant 0 : index
    %40 = vector.load %arg4[%c0_15, %c0_16] : memref<128x384xbf16, #tpu.memory_space<vmem>>, vector<128x384xbf16>
    %cst_17 = arith.constant dense<0.000000e+00> : vector<32x384xf32>
    %41 = tpu.matmul %39, %40, %cst_17 {dimension_numbers = #tpu.dot_dimension_numbers<[1], [0], [0], [1], [0, 0, 1, 1], [], []>} : vector<32x128xbf16>, vector<128x384xbf16>, vector<32x384xf32> -> vector<32x384xf32>
    %c0_18 = arith.constant 0 : index
    %c0_19 = arith.constant 0 : index
    %42 = vector.load %arg5[%c0_18, %c0_19] : memref<1x384xf32, #tpu.memory_space<vmem>>, vector<1x384xf32>
    %43 = vector.broadcast %42 : vector<1x384xf32> to vector<32x384xf32>
    %44 = arith.addf %41, %43 : vector<32x384xf32>
    %45 = arith.truncf %44 : vector<32x384xf32> to vector<32x384xbf16>
    %cst_20 = arith.constant 0.000000e+00 : f32
    %46 = vector.broadcast %cst_20 : f32 to vector<32x128xf32>
    %47 = vector.extract_strided_slice %45 {offsets = [0, 0], sizes = [32, 32], strides = [1, 1]} : vector<32x384xbf16> to vector<32x32xbf16>
    %48 = vector.shape_cast %47 : vector<32x32xbf16> to vector<2x16x32xbf16>
    %49 = vector.extract_strided_slice %45 {offsets = [0, 128], sizes = [32, 32], strides = [1, 1]} : vector<32x384xbf16> to vector<32x32xbf16>
    %50 = vector.shape_cast %49 : vector<32x32xbf16> to vector<2x16x32xbf16>
    %51 = vector.extract_strided_slice %45 {offsets = [0, 256], sizes = [32, 32], strides = [1, 1]} : vector<32x384xbf16> to vector<32x32xbf16>
    %52 = vector.shape_cast %51 : vector<32x32xbf16> to vector<2x16x32xbf16>
    "tpu.trace_start"() <{level = 10 : i32, message = "bqd,bkd->bqk"}> : () -> ()
    %cst_21 = arith.constant dense<0.000000e+00> : vector<2x16x16xf32>
    %53 = tpu.matmul %48, %50, %cst_21 {dimension_numbers = #tpu.dot_dimension_numbers<[2], [2], [1], [1], [0, 0, 0, 1, 1, 1], [0], [0]>} : vector<2x16x32xbf16>, vector<2x16x32xbf16>, vector<2x16x16xf32> -> vector<2x16x16xf32>
    "tpu.trace_stop"() : () -> ()
    %cst_22 = arith.constant 0.176776692 : f32
    %54 = vector.broadcast %cst_22 : f32 to vector<2x16x16xf32>
    %55 = arith.mulf %53, %54 : vector<2x16x16xf32>
    %56 = vector.broadcast %6 : vector<1x1x16xf32> to vector<2x16x16xf32>
    %57 = arith.addf %55, %56 : vector<2x16x16xf32>
    %cst_23 = arith.constant dense<0xFF800000> : vector<2x16xf32>
    %58 = vector.multi_reduction <maximumf>, %57, %cst_23 [2] : vector<2x16x16xf32> to vector<2x16xf32>
    %59 = vector.shape_cast %58 : vector<2x16xf32> to vector<2x16x1xf32>
    %60 = vector.broadcast %59 : vector<2x16x1xf32> to vector<2x16x16xf32>
    %61 = arith.subf %57, %60 : vector<2x16x16xf32>
    %62 = math.exp %61 : vector<2x16x16xf32>
    %cst_24 = arith.constant dense<0.000000e+00> : vector<2x16xf32>
    %63 = vector.multi_reduction <add>, %62, %cst_24 [2] : vector<2x16x16xf32> to vector<2x16xf32>
    %64 = vector.shape_cast %63 : vector<2x16xf32> to vector<2x16x1xf32>
    %65 = tpu.reciprocal %64 {approx = true} : vector<2x16x1xf32> -> vector<2x16x1xf32>
    %66 = vector.broadcast %65 : vector<2x16x1xf32> to vector<2x16x16xf32>
    %67 = arith.mulf %62, %66 : vector<2x16x16xf32>
    %68 = arith.truncf %67 : vector<2x16x16xf32> to vector<2x16x16xbf16>
    "tpu.trace_start"() <{level = 10 : i32, message = "bqk,bkd->bqd"}> : () -> ()
    %cst_25 = arith.constant dense<0.000000e+00> : vector<2x16x32xf32>
    %69 = tpu.matmul %68, %52, %cst_25 {dimension_numbers = #tpu.dot_dimension_numbers<[2], [1], [1], [2], [0, 0, 0, 1, 1, 2], [0], [0]>} : vector<2x16x16xbf16>, vector<2x16x32xbf16>, vector<2x16x32xf32> -> vector<2x16x32xf32>
    "tpu.trace_stop"() : () -> ()
    %70 = vector.shape_cast %69 : vector<2x16x32xf32> to vector<32x32xf32>
    %71 = arith.truncf %70 : vector<32x32xf32> to vector<32x32xbf16>
    %c0_26 = arith.constant 0 : index
    %c0_27 = arith.constant 0 : index
    %72 = vector.load %arg6[%c0_26, %c0_27] : memref<128x128xbf16, #tpu.memory_space<vmem>>, vector<32x128xbf16>
    %cst_28 = arith.constant dense<0.000000e+00> : vector<32x128xf32>
    %73 = tpu.matmul %71, %72, %cst_28 {dimension_numbers = #tpu.dot_dimension_numbers<[1], [0], [0], [1], [0, 0, 1, 1], [], []>} : vector<32x32xbf16>, vector<32x128xbf16>, vector<32x128xf32> -> vector<32x128xf32>
    %74 = arith.addf %46, %73 : vector<32x128xf32>
    %75 = vector.extract_strided_slice %45 {offsets = [0, 32], sizes = [32, 32], strides = [1, 1]} : vector<32x384xbf16> to vector<32x32xbf16>
    %76 = vector.shape_cast %75 : vector<32x32xbf16> to vector<2x16x32xbf16>
    %77 = vector.extract_strided_slice %45 {offsets = [0, 160], sizes = [32, 32], strides = [1, 1]} : vector<32x384xbf16> to vector<32x32xbf16>
    %78 = vector.shape_cast %77 : vector<32x32xbf16> to vector<2x16x32xbf16>
    %79 = vector.extract_strided_slice %45 {offsets = [0, 288], sizes = [32, 32], strides = [1, 1]} : vector<32x384xbf16> to vector<32x32xbf16>
    %80 = vector.shape_cast %79 : vector<32x32xbf16> to vector<2x16x32xbf16>
    "tpu.trace_start"() <{level = 10 : i32, message = "bqd,bkd->bqk"}> : () -> ()
    %cst_29 = arith.constant dense<0.000000e+00> : vector<2x16x16xf32>
    %81 = tpu.matmul %76, %78, %cst_29 {dimension_numbers = #tpu.dot_dimension_numbers<[2], [2], [1], [1], [0, 0, 0, 1, 1, 1], [0], [0]>} : vector<2x16x32xbf16>, vector<2x16x32xbf16>, vector<2x16x16xf32> -> vector<2x16x16xf32>
    "tpu.trace_stop"() : () -> ()
    %cst_30 = arith.constant 0.176776692 : f32
    %82 = vector.broadcast %cst_30 : f32 to vector<2x16x16xf32>
    %83 = arith.mulf %81, %82 : vector<2x16x16xf32>
    %84 = vector.broadcast %6 : vector<1x1x16xf32> to vector<2x16x16xf32>
    %85 = arith.addf %83, %84 : vector<2x16x16xf32>
    %cst_31 = arith.constant dense<0xFF800000> : vector<2x16xf32>
    %86 = vector.multi_reduction <maximumf>, %85, %cst_31 [2] : vector<2x16x16xf32> to vector<2x16xf32>
    %87 = vector.shape_cast %86 : vector<2x16xf32> to vector<2x16x1xf32>
    %88 = vector.broadcast %87 : vector<2x16x1xf32> to vector<2x16x16xf32>
    %89 = arith.subf %85, %88 : vector<2x16x16xf32>
    %90 = math.exp %89 : vector<2x16x16xf32>
    %cst_32 = arith.constant dense<0.000000e+00> : vector<2x16xf32>
    %91 = vector.multi_reduction <add>, %90, %cst_32 [2] : vector<2x16x16xf32> to vector<2x16xf32>
    %92 = vector.shape_cast %91 : vector<2x16xf32> to vector<2x16x1xf32>
    %93 = tpu.reciprocal %92 {approx = true} : vector<2x16x1xf32> -> vector<2x16x1xf32>
    %94 = vector.broadcast %93 : vector<2x16x1xf32> to vector<2x16x16xf32>
    %95 = arith.mulf %90, %94 : vector<2x16x16xf32>
    %96 = arith.truncf %95 : vector<2x16x16xf32> to vector<2x16x16xbf16>
    "tpu.trace_start"() <{level = 10 : i32, message = "bqk,bkd->bqd"}> : () -> ()
    %cst_33 = arith.constant dense<0.000000e+00> : vector<2x16x32xf32>
    %97 = tpu.matmul %96, %80, %cst_33 {dimension_numbers = #tpu.dot_dimension_numbers<[2], [1], [1], [2], [0, 0, 0, 1, 1, 2], [0], [0]>} : vector<2x16x16xbf16>, vector<2x16x32xbf16>, vector<2x16x32xf32> -> vector<2x16x32xf32>
    "tpu.trace_stop"() : () -> ()
    %98 = vector.shape_cast %97 : vector<2x16x32xf32> to vector<32x32xf32>
    %99 = arith.truncf %98 : vector<32x32xf32> to vector<32x32xbf16>
    %c32 = arith.constant 32 : index
    %c0_34 = arith.constant 0 : index
    %100 = vector.load %arg6[%c32, %c0_34] : memref<128x128xbf16, #tpu.memory_space<vmem>>, vector<32x128xbf16>
    %cst_35 = arith.constant dense<0.000000e+00> : vector<32x128xf32>
    %101 = tpu.matmul %99, %100, %cst_35 {dimension_numbers = #tpu.dot_dimension_numbers<[1], [0], [0], [1], [0, 0, 1, 1], [], []>} : vector<32x32xbf16>, vector<32x128xbf16>, vector<32x128xf32> -> vector<32x128xf32>
    %102 = arith.addf %74, %101 : vector<32x128xf32>
    %103 = vector.extract_strided_slice %45 {offsets = [0, 64], sizes = [32, 32], strides = [1, 1]} : vector<32x384xbf16> to vector<32x32xbf16>
    %104 = vector.shape_cast %103 : vector<32x32xbf16> to vector<2x16x32xbf16>
    %105 = vector.extract_strided_slice %45 {offsets = [0, 192], sizes = [32, 32], strides = [1, 1]} : vector<32x384xbf16> to vector<32x32xbf16>
    %106 = vector.shape_cast %105 : vector<32x32xbf16> to vector<2x16x32xbf16>
    %107 = vector.extract_strided_slice %45 {offsets = [0, 320], sizes = [32, 32], strides = [1, 1]} : vector<32x384xbf16> to vector<32x32xbf16>
    %108 = vector.shape_cast %107 : vector<32x32xbf16> to vector<2x16x32xbf16>
    "tpu.trace_start"() <{level = 10 : i32, message = "bqd,bkd->bqk"}> : () -> ()
    %cst_36 = arith.constant dense<0.000000e+00> : vector<2x16x16xf32>
    %109 = tpu.matmul %104, %106, %cst_36 {dimension_numbers = #tpu.dot_dimension_numbers<[2], [2], [1], [1], [0, 0, 0, 1, 1, 1], [0], [0]>} : vector<2x16x32xbf16>, vector<2x16x32xbf16>, vector<2x16x16xf32> -> vector<2x16x16xf32>
    "tpu.trace_stop"() : () -> ()
    %cst_37 = arith.constant 0.176776692 : f32
    %110 = vector.broadcast %cst_37 : f32 to vector<2x16x16xf32>
    %111 = arith.mulf %109, %110 : vector<2x16x16xf32>
    %112 = vector.broadcast %6 : vector<1x1x16xf32> to vector<2x16x16xf32>
    %113 = arith.addf %111, %112 : vector<2x16x16xf32>
    %cst_38 = arith.constant dense<0xFF800000> : vector<2x16xf32>
    %114 = vector.multi_reduction <maximumf>, %113, %cst_38 [2] : vector<2x16x16xf32> to vector<2x16xf32>
    %115 = vector.shape_cast %114 : vector<2x16xf32> to vector<2x16x1xf32>
    %116 = vector.broadcast %115 : vector<2x16x1xf32> to vector<2x16x16xf32>
    %117 = arith.subf %113, %116 : vector<2x16x16xf32>
    %118 = math.exp %117 : vector<2x16x16xf32>
    %cst_39 = arith.constant dense<0.000000e+00> : vector<2x16xf32>
    %119 = vector.multi_reduction <add>, %118, %cst_39 [2] : vector<2x16x16xf32> to vector<2x16xf32>
    %120 = vector.shape_cast %119 : vector<2x16xf32> to vector<2x16x1xf32>
    %121 = tpu.reciprocal %120 {approx = true} : vector<2x16x1xf32> -> vector<2x16x1xf32>
    %122 = vector.broadcast %121 : vector<2x16x1xf32> to vector<2x16x16xf32>
    %123 = arith.mulf %118, %122 : vector<2x16x16xf32>
    %124 = arith.truncf %123 : vector<2x16x16xf32> to vector<2x16x16xbf16>
    "tpu.trace_start"() <{level = 10 : i32, message = "bqk,bkd->bqd"}> : () -> ()
    %cst_40 = arith.constant dense<0.000000e+00> : vector<2x16x32xf32>
    %125 = tpu.matmul %124, %108, %cst_40 {dimension_numbers = #tpu.dot_dimension_numbers<[2], [1], [1], [2], [0, 0, 0, 1, 1, 2], [0], [0]>} : vector<2x16x16xbf16>, vector<2x16x32xbf16>, vector<2x16x32xf32> -> vector<2x16x32xf32>
    "tpu.trace_stop"() : () -> ()
    %126 = vector.shape_cast %125 : vector<2x16x32xf32> to vector<32x32xf32>
    %127 = arith.truncf %126 : vector<32x32xf32> to vector<32x32xbf16>
    %c64 = arith.constant 64 : index
    %c0_41 = arith.constant 0 : index
    %128 = vector.load %arg6[%c64, %c0_41] : memref<128x128xbf16, #tpu.memory_space<vmem>>, vector<32x128xbf16>
    %cst_42 = arith.constant dense<0.000000e+00> : vector<32x128xf32>
    %129 = tpu.matmul %127, %128, %cst_42 {dimension_numbers = #tpu.dot_dimension_numbers<[1], [0], [0], [1], [0, 0, 1, 1], [], []>} : vector<32x32xbf16>, vector<32x128xbf16>, vector<32x128xf32> -> vector<32x128xf32>
    %130 = arith.addf %102, %129 : vector<32x128xf32>
    %131 = vector.extract_strided_slice %45 {offsets = [0, 96], sizes = [32, 32], strides = [1, 1]} : vector<32x384xbf16> to vector<32x32xbf16>
    %132 = vector.shape_cast %131 : vector<32x32xbf16> to vector<2x16x32xbf16>
    %133 = vector.extract_strided_slice %45 {offsets = [0, 224], sizes = [32, 32], strides = [1, 1]} : vector<32x384xbf16> to vector<32x32xbf16>
    %134 = vector.shape_cast %133 : vector<32x32xbf16> to vector<2x16x32xbf16>
    %135 = vector.extract_strided_slice %45 {offsets = [0, 352], sizes = [32, 32], strides = [1, 1]} : vector<32x384xbf16> to vector<32x32xbf16>
    %136 = vector.shape_cast %135 : vector<32x32xbf16> to vector<2x16x32xbf16>
    "tpu.trace_start"() <{level = 10 : i32, message = "bqd,bkd->bqk"}> : () -> ()
    %cst_43 = arith.constant dense<0.000000e+00> : vector<2x16x16xf32>
    %137 = tpu.matmul %132, %134, %cst_43 {dimension_numbers = #tpu.dot_dimension_numbers<[2], [2], [1], [1], [0, 0, 0, 1, 1, 1], [0], [0]>} : vector<2x16x32xbf16>, vector<2x16x32xbf16>, vector<2x16x16xf32> -> vector<2x16x16xf32>
    "tpu.trace_stop"() : () -> ()
    %cst_44 = arith.constant 0.176776692 : f32
    %138 = vector.broadcast %cst_44 : f32 to vector<2x16x16xf32>
    %139 = arith.mulf %137, %138 : vector<2x16x16xf32>
    %140 = vector.broadcast %6 : vector<1x1x16xf32> to vector<2x16x16xf32>
    %141 = arith.addf %139, %140 : vector<2x16x16xf32>
    %cst_45 = arith.constant dense<0xFF800000> : vector<2x16xf32>
    %142 = vector.multi_reduction <maximumf>, %141, %cst_45 [2] : vector<2x16x16xf32> to vector<2x16xf32>
    %143 = vector.shape_cast %142 : vector<2x16xf32> to vector<2x16x1xf32>
    %144 = vector.broadcast %143 : vector<2x16x1xf32> to vector<2x16x16xf32>
    %145 = arith.subf %141, %144 : vector<2x16x16xf32>
    %146 = math.exp %145 : vector<2x16x16xf32>
    %cst_46 = arith.constant dense<0.000000e+00> : vector<2x16xf32>
    %147 = vector.multi_reduction <add>, %146, %cst_46 [2] : vector<2x16x16xf32> to vector<2x16xf32>
    %148 = vector.shape_cast %147 : vector<2x16xf32> to vector<2x16x1xf32>
    %149 = tpu.reciprocal %148 {approx = true} : vector<2x16x1xf32> -> vector<2x16x1xf32>
    %150 = vector.broadcast %149 : vector<2x16x1xf32> to vector<2x16x16xf32>
    %151 = arith.mulf %146, %150 : vector<2x16x16xf32>
    %152 = arith.truncf %151 : vector<2x16x16xf32> to vector<2x16x16xbf16>
    "tpu.trace_start"() <{level = 10 : i32, message = "bqk,bkd->bqd"}> : () -> ()
    %cst_47 = arith.constant dense<0.000000e+00> : vector<2x16x32xf32>
    %153 = tpu.matmul %152, %136, %cst_47 {dimension_numbers = #tpu.dot_dimension_numbers<[2], [1], [1], [2], [0, 0, 0, 1, 1, 2], [0], [0]>} : vector<2x16x16xbf16>, vector<2x16x32xbf16>, vector<2x16x32xf32> -> vector<2x16x32xf32>
    "tpu.trace_stop"() : () -> ()
    %154 = vector.shape_cast %153 : vector<2x16x32xf32> to vector<32x32xf32>
    %155 = arith.truncf %154 : vector<32x32xf32> to vector<32x32xbf16>
    %c96 = arith.constant 96 : index
    %c0_48 = arith.constant 0 : index
    %156 = vector.load %arg6[%c96, %c0_48] : memref<128x128xbf16, #tpu.memory_space<vmem>>, vector<32x128xbf16>
    %cst_49 = arith.constant dense<0.000000e+00> : vector<32x128xf32>
    %157 = tpu.matmul %155, %156, %cst_49 {dimension_numbers = #tpu.dot_dimension_numbers<[1], [0], [0], [1], [0, 0, 1, 1], [], []>} : vector<32x32xbf16>, vector<32x128xbf16>, vector<32x128xf32> -> vector<32x128xf32>
    %158 = arith.addf %130, %157 : vector<32x128xf32>
    %c0_50 = arith.constant 0 : index
    %c0_51 = arith.constant 0 : index
    %159 = vector.load %arg7[%c0_50, %c0_51] : memref<1x128xf32, #tpu.memory_space<vmem>>, vector<1x128xf32>
    %160 = vector.broadcast %159 : vector<1x128xf32> to vector<32x128xf32>
    %161 = arith.addf %158, %160 : vector<32x128xf32>
    %162 = vector.shape_cast %161 : vector<32x128xf32> to vector<2x16x128xf32>
    %163 = vector.broadcast %11 : vector<1x16x1xf32> to vector<2x16x128xf32>
    %164 = arith.mulf %162, %163 : vector<2x16x128xf32>
    %165 = arith.addf %0, %164 : vector<2x16x128xf32>
    %cst_52 = arith.constant dense<0.000000e+00> : vector<2x16xf32>
    %166 = vector.multi_reduction <add>, %165, %cst_52 [2] : vector<2x16x128xf32> to vector<2x16xf32>
    %167 = vector.shape_cast %166 : vector<2x16xf32> to vector<2x16x1xf32>
    %cst_53 = arith.constant 1.280000e+02 : f32
    %168 = vector.broadcast %cst_53 : f32 to vector<2x16x1xf32>
    %169 = arith.divf %167, %168 : vector<2x16x1xf32>
    %170 = vector.broadcast %169 : vector<2x16x1xf32> to vector<2x16x128xf32>
    %171 = arith.subf %165, %170 : vector<2x16x128xf32>
    %172 = arith.mulf %171, %171 : vector<2x16x128xf32>
    %cst_54 = arith.constant dense<0.000000e+00> : vector<2x16xf32>
    %173 = vector.multi_reduction <add>, %172, %cst_54 [2] : vector<2x16x128xf32> to vector<2x16xf32>
    %174 = vector.shape_cast %173 : vector<2x16xf32> to vector<2x16x1xf32>
    %cst_55 = arith.constant 1.280000e+02 : f32
    %175 = vector.broadcast %cst_55 : f32 to vector<2x16x1xf32>
    %176 = arith.divf %174, %175 : vector<2x16x1xf32>
    %177 = vector.broadcast %169 : vector<2x16x1xf32> to vector<2x16x128xf32>
    %178 = arith.subf %165, %177 : vector<2x16x128xf32>
    %cst_56 = arith.constant 9.99999974E-6 : f32
    %179 = vector.broadcast %cst_56 : f32 to vector<2x16x1xf32>
    %180 = arith.addf %176, %179 : vector<2x16x1xf32>
    %181 = math.rsqrt %180 : vector<2x16x1xf32>
    %182 = vector.broadcast %181 : vector<2x16x1xf32> to vector<2x16x128xf32>
    %183 = arith.mulf %178, %182 : vector<2x16x128xf32>
    %c0_57 = arith.constant 0 : index
    %c0_58 = arith.constant 0 : index
    %c0_59 = arith.constant 0 : index
    %184 = vector.load %arg3[%c0_57, %c0_58, %c0_59] : memref<2x1x256xf32, #tpu.memory_space<vmem>>, vector<2x1x128xf32>
    %c0_60 = arith.constant 0 : index
    %c0_61 = arith.constant 0 : index
    %c128_62 = arith.constant 128 : index
    %185 = vector.load %arg3[%c0_60, %c0_61, %c128_62] : memref<2x1x256xf32, #tpu.memory_space<vmem>>, vector<2x1x128xf32>
    %cst_63 = arith.constant 1.000000e+00 : f32
    %186 = vector.broadcast %cst_63 : f32 to vector<2x1x128xf32>
    %187 = arith.addf %186, %185 : vector<2x1x128xf32>
    %188 = vector.broadcast %187 : vector<2x1x128xf32> to vector<2x16x128xf32>
    %189 = arith.mulf %183, %188 : vector<2x16x128xf32>
    %190 = vector.broadcast %184 : vector<2x1x128xf32> to vector<2x16x128xf32>
    %191 = arith.addf %189, %190 : vector<2x16x128xf32>
    %192 = vector.shape_cast %191 : vector<2x16x128xf32> to vector<32x128xf32>
    %193 = arith.truncf %192 : vector<32x128xf32> to vector<32x128xbf16>
    %cst_64 = arith.constant 0.000000e+00 : f32
    %194 = vector.broadcast %cst_64 : f32 to vector<32x128xf32>
    %c0_65 = arith.constant 0 : index
    %c0_66 = arith.constant 0 : index
    %195 = vector.load %arg8[%c0_65, %c0_66] : memref<128x512xbf16, #tpu.memory_space<vmem>>, vector<128x512xbf16>
    %cst_67 = arith.constant dense<0.000000e+00> : vector<32x512xf32>
    %196 = tpu.matmul %193, %195, %cst_67 {dimension_numbers = #tpu.dot_dimension_numbers<[1], [0], [0], [1], [0, 0, 1, 1], [], []>} : vector<32x128xbf16>, vector<128x512xbf16>, vector<32x512xf32> -> vector<32x512xf32>
    %c0_68 = arith.constant 0 : index
    %c0_69 = arith.constant 0 : index
    %197 = vector.load %arg9[%c0_68, %c0_69] : memref<1x512xf32, #tpu.memory_space<vmem>>, vector<1x512xf32>
    %198 = vector.broadcast %197 : vector<1x512xf32> to vector<32x512xf32>
    %199 = arith.addf %196, %198 : vector<32x512xf32>
    %200 = arith.mulf %199, %199 : vector<32x512xf32>
    %201 = arith.mulf %199, %200 : vector<32x512xf32>
    %cst_70 = arith.constant 4.471500e-02 : f32
    %202 = vector.broadcast %cst_70 : f32 to vector<32x512xf32>
    %203 = arith.mulf %202, %201 : vector<32x512xf32>
    %204 = arith.addf %199, %203 : vector<32x512xf32>
    %cst_71 = arith.constant 0.797884583 : f32
    %205 = vector.broadcast %cst_71 : f32 to vector<32x512xf32>
    %206 = arith.mulf %205, %204 : vector<32x512xf32>
    %207 = math.tanh %206 : vector<32x512xf32>
    %cst_72 = arith.constant 1.000000e+00 : f32
    %208 = vector.broadcast %cst_72 : f32 to vector<32x512xf32>
    %209 = arith.addf %208, %207 : vector<32x512xf32>
    %cst_73 = arith.constant 5.000000e-01 : f32
    %210 = vector.broadcast %cst_73 : f32 to vector<32x512xf32>
    %211 = arith.mulf %210, %209 : vector<32x512xf32>
    %212 = arith.mulf %199, %211 : vector<32x512xf32>
    %213 = arith.truncf %212 : vector<32x512xf32> to vector<32x512xbf16>
    %c0_74 = arith.constant 0 : index
    %c0_75 = arith.constant 0 : index
    %214 = vector.load %arg10[%c0_74, %c0_75] : memref<512x128xbf16, #tpu.memory_space<vmem>>, vector<512x128xbf16>
    %cst_76 = arith.constant dense<0.000000e+00> : vector<32x128xf32>
    %215 = tpu.matmul %213, %214, %cst_76 {dimension_numbers = #tpu.dot_dimension_numbers<[1], [0], [0], [1], [0, 0, 1, 1], [], []>} : vector<32x512xbf16>, vector<512x128xbf16>, vector<32x128xf32> -> vector<32x128xf32>
    %216 = arith.addf %194, %215 : vector<32x128xf32>
    %c0_77 = arith.constant 0 : index
    %c0_78 = arith.constant 0 : index
    %217 = vector.load %arg11[%c0_77, %c0_78] : memref<1x128xf32, #tpu.memory_space<vmem>>, vector<1x128xf32>
    %218 = vector.broadcast %217 : vector<1x128xf32> to vector<32x128xf32>
    %219 = arith.addf %216, %218 : vector<32x128xf32>
    %220 = vector.shape_cast %219 : vector<32x128xf32> to vector<2x16x128xf32>
    %221 = vector.broadcast %11 : vector<1x16x1xf32> to vector<2x16x128xf32>
    %222 = arith.mulf %220, %221 : vector<2x16x128xf32>
    %223 = arith.addf %165, %222 : vector<2x16x128xf32>
    %c0_79 = arith.constant 0 : index
    %c0_80 = arith.constant 0 : index
    %c0_81 = arith.constant 0 : index
    %224 = vector.load %arg12[%c0_79, %c0_80, %c0_81] : memref<2x16x128xf32, #tpu.memory_space<vmem>>, vector<2x16x128xf32>
    tpu.vector_store %arg12[%c0_79, %c0_80, %c0_81], %223 {strides = array<i32>} : memref<2x16x128xf32, #tpu.memory_space<vmem>>, vector<2x16x128xf32>,
    return
  }
  func.func @transform_0(%arg0: i32) -> (i32, i32, i32) {
    %c0_i32 = arith.constant 0 : i32
    %c0_i32_0 = arith.constant 0 : i32
    %c0_i32_1 = arith.constant 0 : i32
    return %arg0, %c0_i32, %c0_i32_0 : i32, i32, i32
  }
  func.func @transform_1(%arg0: i32) -> (i32, i32, i32) {
    %c0_i32 = arith.constant 0 : i32
    %c0_i32_0 = arith.constant 0 : i32
    %c0_i32_1 = arith.constant 0 : i32
    return %arg0, %c0_i32, %c0_i32_0 : i32, i32, i32
  }
  func.func @transform_2(%arg0: i32) -> (i32, i32, i32) {
    %c0_i32 = arith.constant 0 : i32
    %c0_i32_0 = arith.constant 0 : i32
    %c0_i32_1 = arith.constant 0 : i32
    return %arg0, %c0_i32, %c0_i32_0 : i32, i32, i32
  }
  func.func @transform_3(%arg0: i32) -> (i32, i32) {
    %c0_i32 = arith.constant 0 : i32
    %c0_i32_0 = arith.constant 0 : i32
    %c0_i32_1 = arith.constant 0 : i32
    return %c0_i32, %c0_i32_0 : i32, i32
  }
  func.func @transform_4(%arg0: i32) -> (i32, i32) {
    %c0_i32 = arith.constant 0 : i32
    %c0_i32_0 = arith.constant 0 : i32
    %c0_i32_1 = arith.constant 0 : i32
    return %c0_i32, %c0_i32_0 : i32, i32
  }
  func.func @transform_5(%arg0: i32) -> (i32, i32) {
    %c0_i32 = arith.constant 0 : i32
    %c0_i32_0 = arith.constant 0 : i32
    %c0_i32_1 = arith.constant 0 : i32
    return %c0_i32, %c0_i32_0 : i32, i32
  }
  func.func @transform_6(%arg0: i32) -> (i32, i32) {
    %c0_i32 = arith.constant 0 : i32
    %c0_i32_0 = arith.constant 0 : i32
    %c0_i32_1 = arith.constant 0 : i32
    return %c0_i32, %c0_i32_0 : i32, i32
  }
  func.func @transform_7(%arg0: i32) -> (i32, i32) {
    %c0_i32 = arith.constant 0 : i32
    %c0_i32_0 = arith.constant 0 : i32
    %c0_i32_1 = arith.constant 0 : i32
    return %c0_i32, %c0_i32_0 : i32, i32
  }
  func.func @transform_8(%arg0: i32) -> (i32, i32) {
    %c0_i32 = arith.constant 0 : i32
    %c0_i32_0 = arith.constant 0 : i32
    %c0_i32_1 = arith.constant 0 : i32
    return %c0_i32, %c0_i32_0 : i32, i32
  }
  func.func @transform_9(%arg0: i32) -> (i32, i32) {
    %c0_i32 = arith.constant 0 : i32
    %c0_i32_0 = arith.constant 0 : i32
    %c0_i32_1 = arith.constant 0 : i32
    return %c0_i32, %c0_i32_0 : i32, i32
  }
  func.func @transform_10(%arg0: i32) -> (i32, i32) {
    %c0_i32 = arith.constant 0 : i32
    %c0_i32_0 = arith.constant 0 : i32
    %c0_i32_1 = arith.constant 0 : i32
    return %c0_i32, %c0_i32_0 : i32, i32
  }
  func.func @transform_11(%arg0: i32) -> (i32, i32, i32) {
    %c0_i32 = arith.constant 0 : i32
    %c0_i32_0 = arith.constant 0 : i32
    %c0_i32_1 = arith.constant 0 : i32
    return %arg0, %c0_i32, %c0_i32_0 : i32, i32, i32
  }
}

</mosaic_0001>

<llo_original>
// kernel: transformer_sequence_classifier.4
$region0: #{transformer_sequence_classifier.4}
  #allocation0 [shape = 'u32[]', space=smem, size = 0x4, offset = 0x4, fixed_abs, tag = 'smem constant byte address 0x4 - core index']
  #allocation1 [shape = 'u32[72,128]{1,0:T(1,128)}', space=vmem, size = 0x9000, scoped, tag = 'internal scratch']
  %s0 = inlined_call_operand.vmem [shape: f32[4,8,6], index: 0, kind: input, shape index: {}]
  %s1 = inlined_call_operand.vmem [shape: f32[8,128], index: 1, kind: input, shape index: {}]
  %s2 = inlined_call_operand.vmem [shape: f32[6,128], index: 2, kind: input, shape index: {}]
  %s3 = inlined_call_operand.vmem [shape: f32[1,128], index: 3, kind: input, shape index: {}]
  %s4 = inlined_call_operand.vmem [shape: f32[1,128], index: 4, kind: input, shape index: {}]
  %s5 = inlined_call_operand.vmem [shape: f32[1,128], index: 5, kind: input, shape index: {}]
  %s6 = inlined_call_operand.vmem [shape: f32[4,8,128], index: 6, kind: output, shape index: {}]
  %s7 = sld [smem:[#allocation0]]
  $region57: #{transformer_sequence_classifier.4} parent=0
    _
  %s9 = ssub.s32 1, %s7
  %s10 = scalar_select 0, %s9, %s7
  loop: start=0, step=1, limit=4
  $region2: #{transformer_sequence_classifier.4} parent=0 // loop_pre_header
    _
  $region3: #{transformer_sequence_classifier.4} parent=0 // loop_header
    %s12 = sphi 0, %s16
    %p13 = scmp.ge.s32.totalorder %s12, 4
    %s22 = sphi 0, %s24
    %s25 = sphi 0, %s22
    %s26 = sphi 0, %s25
    %s42 = sphi 0, %s26
    %s46 = sphi 0, %s46
    %s48 = sphi 0, %s46
    %s49 = sphi 0, %s48
    %s63 = sphi 0, %s49
    %s67 = sphi 0, %s67
    %s69 = sphi 0, %s67
    %s70 = sphi 0, %s69
    %s84 = sphi 0, %s70
    %s88 = sphi 0, %s88
    %s90 = sphi 0, %s88
    %s91 = sphi 0, %s90
    %s105 = sphi 0, %s91
    %s109 = sphi 0, %s109
    %s111 = sphi 0, %s109
    %s112 = sphi 0, %s111
    %s126 = sphi 0, %s112
    %s130 = sphi 0, %s130
    %s132 = sphi 0, %s130
    %s133 = sphi 0, %s132
    %s147 = sphi 0, %s133
    %s153 = sphi 0, %s155
    %s156 = sphi 0, %s153
    %s157 = sphi 0, %s156
    %s173 = sphi 0, %s157
  $region4: #{transformer_sequence_classifier.4} parent=0 // loop_header_branch
    %15 = sbr.rel (%p13) target = $region8
  $region5: #{transformer_sequence_classifier.4} parent=0 // loop_body
    %s17 = ssub.s32 %s12, 1
    %s18 = ssub.s32 %s12, 2
    %s19 = sadd.s32 %s12, 1
    %s20 = ssub.s32 %s12, %s19
    %p21 = scmp.eq.s32.totalorder %s20, 0
    %s23 = sadd.s32 %s22, 1
    %s24 = scalar_select %p21, %s22, %s23
    %p27 = pneg %p21
    %p28 = scmp.eq.s32.totalorder %s12, 1
    %p29 = por %p27, %p28
    %p30 = scmp.ne.s32.totalorder %s22, %s25
    %p31 = scmp.eq.s32.totalorder %s12, 0
    %p32 = por %p30, %p31
    %p33 = scmp.ne.s32.totalorder %s22, %s25
    %p34 = scmp.eq.s32.totalorder %s17, 1
    %p35 = por %p33, %p34
    %p36 = scmp.ne.s32.totalorder %s25, %s26
    %p37 = scmp.eq.s32.totalorder %s17, 0
    %p38 = por %p36, %p37
    %p39 = scmp.ne.s32.totalorder %s25, %s26
    %p40 = scmp.eq.s32.totalorder %s18, 1
    %p41 = por %p39, %p40
    %p43 = scmp.ne.s32.totalorder %s26, %s42
    %p44 = scmp.eq.s32.totalorder %s18, 0
    %p45 = por %p43, %p44
    %s47 = sadd.s32 %s46, 1
    %p50 = scmp.eq.s32.totalorder %s12, 1
    %p51 = scmp.ne.s32.totalorder %s46, %s48
    %p52 = scmp.eq.s32.totalorder %s12, 0
    %p53 = por %p51, %p52
    %p54 = scmp.ne.s32.totalorder %s46, %s48
    %p55 = scmp.eq.s32.totalorder %s17, 1
    %p56 = por %p54, %p55
    %p57 = scmp.ne.s32.totalorder %s48, %s49
    %p58 = scmp.eq.s32.totalorder %s17, 0
    %p59 = por %p57, %p58
    %p60 = scmp.ne.s32.totalorder %s48, %s49
    %p61 = scmp.eq.s32.totalorder %s18, 1
    %p62 = por %p60, %p61
    %p64 = scmp.ne.s32.totalorder %s49, %s63
    %p65 = scmp.eq.s32.totalorder %s18, 0
    %p66 = por %p64, %p65
    %s68 = sadd.s32 %s67, 1
    %p71 = scmp.eq.s32.totalorder %s12, 1
    %p72 = scmp.ne.s32.totalorder %s67, %s69
    %p73 = scmp.eq.s32.totalorder %s12, 0
    %p74 = por %p72, %p73
    %p75 = scmp.ne.s32.totalorder %s67, %s69
    %p76 = scmp.eq.s32.totalorder %s17, 1
    %p77 = por %p75, %p76
    %p78 = scmp.ne.s32.totalorder %s69, %s70
    %p79 = scmp.eq.s32.totalorder %s17, 0
    %p80 = por %p78, %p79
    %p81 = scmp.ne.s32.totalorder %s69, %s70
    %p82 = scmp.eq.s32.totalorder %s18, 1
    %p83 = por %p81, %p82
    %p85 = scmp.ne.s32.totalorder %s70, %s84
    %p86 = scmp.eq.s32.totalorder %s18, 0
    %p87 = por %p85, %p86
    %s89 = sadd.s32 %s88, 1
    %p92 = scmp.eq.s32.totalorder %s12, 1
    %p93 = scmp.ne.s32.totalorder %s88, %s90
    %p94 = scmp.eq.s32.totalorder %s12, 0
    %p95 = por %p93, %p94
    %p96 = scmp.ne.s32.totalorder %s88, %s90
    %p97 = scmp.eq.s32.totalorder %s17, 1
    %p98 = por %p96, %p97
    %p99 = scmp.ne.s32.totalorder %s90, %s91
    %p100 = scmp.eq.s32.totalorder %s17, 0
    %p101 = por %p99, %p100
    %p102 = scmp.ne.s32.totalorder %s90, %s91
    %p103 = scmp.eq.s32.totalorder %s18, 1
    %p104 = por %p102, %p103
    %p106 = scmp.ne.s32.totalorder %s91, %s105
    %p107 = scmp.eq.s32.totalorder %s18, 0
    %p108 = por %p106, %p107
    %s110 = sadd.s32 %s109, 1
    %p113 = scmp.eq.s32.totalorder %s12, 1
    %p114 = scmp.ne.s32.totalorder %s109, %s111
    %p115 = scmp.eq.s32.totalorder %s12, 0
    %p116 = por %p114, %p115
    %p117 = scmp.ne.s32.totalorder %s109, %s111
    %p118 = scmp.eq.s32.totalorder %s17, 1
    %p119 = por %p117, %p118
    %p120 = scmp.ne.s32.totalorder %s111, %s112
    %p121 = scmp.eq.s32.totalorder %s17, 0
    %p122 = por %p120, %p121
    %p123 = scmp.ne.s32.totalorder %s111, %s112
    %p124 = scmp.eq.s32.totalorder %s18, 1
    %p125 = por %p123, %p124
    %p127 = scmp.ne.s32.totalorder %s112, %s126
    %p128 = scmp.eq.s32.totalorder %s18, 0
    %p129 = por %p127, %p128
    %s131 = sadd.s32 %s130, 1
    %p134 = scmp.eq.s32.totalorder %s12, 1
    %p135 = scmp.ne.s32.totalorder %s130, %s132
    %p136 = scmp.eq.s32.totalorder %s12, 0
    %p137 = por %p135, %p136
    %p138 = scmp.ne.s32.totalorder %s130, %s132
    %p139 = scmp.eq.s32.totalorder %s17, 1
    %p140 = por %p138, %p139
    %p141 = scmp.ne.s32.totalorder %s132, %s133
    %p142 = scmp.eq.s32.totalorder %s17, 0
    %p143 = por %p141, %p142
    %p144 = scmp.ne.s32.totalorder %s132, %s133
    %p145 = scmp.eq.s32.totalorder %s18, 1
    %p146 = por %p144, %p145
    %p148 = scmp.ne.s32.totalorder %s133, %s147
    %p149 = scmp.eq.s32.totalorder %s18, 0
    %p150 = por %p148, %p149
    %s151 = ssub.s32 %s12, %s19
    %p152 = scmp.eq.s32.totalorder %s151, 0
    %s154 = sadd.s32 %s153, 1
    %s155 = scalar_select %p152, %s153, %s154
    %p158 = pneg %p152
    %p159 = scmp.eq.s32.totalorder %s12, 1
    %p160 = por %p158, %p159
    %p161 = scmp.ne.s32.totalorder %s153, %s156
    %p162 = scmp.eq.s32.totalorder %s12, 0
    %p163 = por %p161, %p162
    %p164 = scmp.ne.s32.totalorder %s153, %s156
    %p165 = scmp.eq.s32.totalorder %s17, 1
    %p166 = por %p164, %p165
    %p167 = scmp.ne.s32.totalorder %s156, %s157
    %p168 = scmp.eq.s32.totalorder %s17, 0
    %p169 = por %p167, %p168
    %p170 = scmp.ne.s32.totalorder %s156, %s157
    %p171 = scmp.eq.s32.totalorder %s18, 1
    %p172 = por %p170, %p171
    %p174 = scmp.ne.s32.totalorder %s157, %s173
    %p175 = scmp.eq.s32.totalorder %s18, 0
    %p176 = por %p174, %p175
    %p177 = scmp.le.s32.totalorder 1, %s12
    %p178 = scmp.lt.s32.totalorder %s12, 3
    %p179 = pnand %p177, %p178
    %p180 = pneg %p179
    // Predicated region
    $region9: #{transformer_sequence_classifier.4} parent=5 // pred_check
      _
    $region10: #{transformer_sequence_classifier.4} parent=5 // pred_check_branch
      %182 = sbr.rel (%p179) target = $region12
    $region11: #{transformer_sequence_classifier.4} parent=5 // pred_region
      %s183 = ssub.s32 %s12, 1
      // Predicated region
      $region13: #{transformer_sequence_classifier.4} parent=11 // pred_check
        %p184 = pneg %p59
      $region14: #{transformer_sequence_classifier.4} parent=11 // pred_check_branch
        %186 = sbr.rel (%p184) target = $region16
      $region15: #{transformer_sequence_classifier.4} parent=11 // pred_region
        _
      $region16: #{transformer_sequence_classifier.4} parent=11 // pred_fallthru
        _
      // Predicated region
      $region17: #{transformer_sequence_classifier.4} parent=11 // pred_check
        %p187 = pneg %p80
      $region18: #{transformer_sequence_classifier.4} parent=11 // pred_check_branch
        %189 = sbr.rel (%p187) target = $region20
      $region19: #{transformer_sequence_classifier.4} parent=11 // pred_region
        _
      $region20: #{transformer_sequence_classifier.4} parent=11 // pred_fallthru
        _
      // Predicated region
      $region21: #{transformer_sequence_classifier.4} parent=11 // pred_check
        %p190 = pneg %p101
      $region22: #{transformer_sequence_classifier.4} parent=11 // pred_check_branch
        %192 = sbr.rel (%p190) target = $region24
      $region23: #{transformer_sequence_classifier.4} parent=11 // pred_region
        _
      $region24: #{transformer_sequence_classifier.4} parent=11 // pred_fallthru
        _
      // Predicated region
      $region25: #{transformer_sequence_classifier.4} parent=11 // pred_check
        %p193 = pneg %p122
      $region26: #{transformer_sequence_classifier.4} parent=11 // pred_check_branch
        %195 = sbr.rel (%p193) target = $region28
      $region27: #{transformer_sequence_classifier.4} parent=11 // pred_region
        _
      $region28: #{transformer_sequence_classifier.4} parent=11 // pred_fallthru
        _
      // Predicated region
      $region29: #{transformer_sequence_classifier.4} parent=11 // pred_check
        %p196 = pneg %p143
      $region30: #{transformer_sequence_classifier.4} parent=11 // pred_check_branch
        %198 = sbr.rel (%p196) target = $region32
      $region31: #{transformer_sequence_classifier.4} parent=11 // pred_region
        _
      $region32: #{transformer_sequence_classifier.4} parent=11 // pred_fallthru
        _
    $region12: #{transformer_sequence_classifier.4} parent=5 // pred_fallthru
      _
    %p199 = scmp.lt.s32.totalorder %s12, 2
    // Predicated region
    $region33: #{transformer_sequence_classifier.4} parent=5 // pred_check
      %p200 = pneg %p199
    $region34: #{transformer_sequence_classifier.4} parent=5 // pred_check_branch
      %202 = sbr.rel (%p200) target = $region36
    $region35: #{transformer_sequence_classifier.4} parent=5 // pred_region
      // Predicated region
      $region37: #{transformer_sequence_classifier.4} parent=35 // pred_check
        %p203 = pneg %p32
      $region38: #{transformer_sequence_classifier.4} parent=35 // pred_check_branch
        %205 = sbr.rel (%p203) target = $region40
      $region39: #{transformer_sequence_classifier.4} parent=35 // pred_region
        %s206 = smul.u32 2, %s12
        %p207 = scmp.lt.s32.totalorder %s206, 3
        %s208 = scalar_select %p207, %s206, 3
        %s209 = smul.addr %s208, 8
        %s210 = scalar_lea.vmem %s0, %s209
        %s211 = smul.u32 2, %s12
      $region40: #{transformer_sequence_classifier.4} parent=35 // pred_fallthru
        _
    $region36: #{transformer_sequence_classifier.4} parent=5 // pred_fallthru
      _
    %p212 = scmp.le.s32.totalorder 1, %s12
    %p213 = scmp.lt.s32.totalorder %s12, 3
    %p214 = pnand %p212, %p213
    %p215 = pneg %p214
    // Predicated region
    $region41: #{transformer_sequence_classifier.4} parent=5 // pred_check
      _
    $region42: #{transformer_sequence_classifier.4} parent=5 // pred_check_branch
      %217 = sbr.rel (%p214) target = $region44
    $region43: #{transformer_sequence_classifier.4} parent=5 // pred_region
      %s218 = ssub.s32 %s12, 1
      %s219 = smul.u32 2, %s17
      %p220 = scmp.lt.s32.totalorder %s219, 3
      %s221 = scalar_select %p220, %s219, 3
      %s222 = smul.addr %s221, 8
      %s223 = scalar_lea.vmem %s0, %s222
      %p224 = pneg %p38
      %p225 = pneg %p35
      %p226 = pneg %p59
      %p227 = pneg %p56
      %p228 = pneg %p80
      %p229 = pneg %p77
      %p230 = pneg %p101
      %p231 = pneg %p98
      %p232 = pneg %p122
      %p233 = pneg %p119
      %p234 = pneg %p143
      %p235 = pneg %p140
      %p236 = pneg %p169
      %p237 = pneg %p166
      %s238 = smul.u32 2, %s17
      %p239 = scmp.lt.s32.totalorder %s238, 3
      %s240 = scalar_select %p239, %s238, 3
      %s241 = smul.addr %s240, 8
      %s242 = scalar_lea.vmem %s6, %s241
      %s243 = smul.u32 2, %s17
      %p244 = scmp.lt.s32.totalorder %s243, 3
      %s245 = scalar_select %p244, %s243, 3
      %s246 = smul.addr %s245, 8
      %s247 = scalar_lea.vmem %s0, %s246
      %s248 = smul.u32 2, %s17
      %s249 = smul.u32 2, %s17
      %p250 = scmp.lt.s32.totalorder %s249, 3
      %s251 = scalar_select %p250, %s249, 3
      %s252 = smul.addr %s251, 8
      %s253 = scalar_lea.vmem %s6, %s252
      %s254 = smul.u32 2, %s17
      %v255 = vld [vmem:[%s247] sm:$0xff]
      %v256 = vld [vmem:[%s247 + $0x8] sm:$0xff]
      %v257 = vld [vmem:[%s2] sm:$0x3f]
      %v258 = vld [vmem:[%s3] sm:$0x1]
      %v260 = vperm.slane %v258, 0
      %vm262 = vcmask 48128
      %v264 = vsel %vm262, %v255, 0
      %v267 = vsel %vm262, %v256, 0
      %vm269 = vcmask 1045504
      %v271 = vsel %vm269, %v257, 0
      %273 = vmatpush.msra.mxu0 0.0
      %274 = vmatpush.msra.mxu0 0.0
      %275 = vmatpush.msra.mxu0 0.0
      %276 = vmatpush.msra.mxu0 0.0
      %277 = vmatpush.msra.mxu0 0.0
      %278 = vmatpush.msra.mxu0 0.0
      %279 = vmatpush.msra.mxu0 0.0
      %280 = vmatpush.msra.mxu0 0.0
      %281 = vmatpush.msra.mxu0 0.0
      %282 = vmatpush.msra.mxu0 0.0
      %283 = vmatpush.msra.mxu0 0.0
      %284 = vmatpush.msra.mxu0 0.0
      %285 = vmatpush.msra.mxu0 0.0
      %286 = vmatpush.msra.mxu0 0.0
      %287 = vmatpush.msra.mxu0 0.0
      %288 = vmatpush.msra.mxu0 %v271
      %289 = vmatmul.f32.gmra.mxu0 %v264
      %v290 = vpop.f32.mrf.mxu0
      %v291 = vadd.f32 %v260, %v290
      %292 = vmatmul.f32.gmra.mxu0 %v267
      %v293 = vpop.f32.mrf.mxu0
      %v294 = vadd.f32 %v260, %v293
      %295 = vdwg.mxu0
      %v296 = vld [vmem:[%s1] sm:$0xff]
      %v297 = vadd.f32 %v291, %v296
      %v298 = vadd.f32 %v294, %v296
      %299 = vadd.xlane.f32.xlu0 %v297
      %v300 = vpop.xlane.xlu0 %299
      %301 = vadd.xlane.f32.xlu0 %v298
      %v302 = vpop.xlane.xlu0 %301
      %v303 = vrcp.pop 128.0
      %v304 = vmul.f32 128.0, %v303
      %v305 = vsub.f32 1.0, %v304
      %v306 = vmul.f32 %v303, %v305
      %v307 = vadd.f32 %v303, %v306
      %vm308 = vweird.f32 %v303
      %v309 = vsel %vm308, %v303, %v307
      %v310 = vmul.f32 %v300, %v309
      %v311 = vmul.f32 %v302, %v309
      %v312 = vsub.f32 %v297, %v310
      %v313 = vsub.f32 %v298, %v311
      %v314 = vmul.f32 %v312, %v312
      %v315 = vmul.f32 %v313, %v313
      %316 = vadd.xlane.f32.xlu0 %v314
      %v317 = vpop.xlane.xlu0 %316
      %318 = vadd.xlane.f32.xlu0 %v315
      %v319 = vpop.xlane.xlu0 %318
      %v320 = vmul.f32 %v317, %v309
      %v321 = vmul.f32 %v319, %v309
      %v322 = vadd.f32 %v320, 1e-05
      %v323 = vadd.f32 %v321, 1e-05
      %v324 = vrsqrt.pop %v322
      %v325 = vmul.f32 %v324, %v322
      %v326 = vmul.f32 %v325, %v324
      %v327 = vmul.f32 0.5, %v326
      %v328 = vsub.f32 1.5, %v327
      %v329 = vmul.f32 %v324, %v328
      %vm330 = vweird.f32 %v322
      %vm331 = vweird.f32 %v324
      %vm332 = vmor %vm330, %vm331
      %v333 = vsel %vm332, %v324, %v329
      %v334 = vrsqrt.pop %v323
      %v335 = vmul.f32 %v334, %v323
      %v336 = vmul.f32 %v335, %v334
      %v337 = vmul.f32 0.5, %v336
      %v338 = vsub.f32 1.5, %v337
      %v339 = vmul.f32 %v334, %v338
      %vm340 = vweird.f32 %v323
      %vm341 = vweird.f32 %v334
      %vm342 = vmor %vm340, %vm341
      %v343 = vsel %vm342, %v334, %v339
      %v344 = vmul.f32 %v312, %v333
      %v345 = vmul.f32 %v313, %v343
      %v346 = vld [vmem:[%s4] sm:$0x1]
      %v348 = vperm.slane %v346, 0
      %v350 = vmul.f32 %v344, %v348
      %v351 = vmul.f32 %v345, %v348
      %v352 = vld [vmem:[%s5] sm:$0x1]
      %v354 = vperm.slane %v352, 0
      %v356 = vadd.f32 %v350, %v354
      %v357 = vadd.f32 %v351, %v354
      %358 = vst [vmem:[%s253] sm:$0xff] %v356
      %359 = vst [vmem:[%s253 + $0x8] sm:$0xff] %v357
      %s360 = smul.u32 2, %s17
      %p361 = scmp.lt.s32.totalorder %s360, 3
      %s362 = scalar_select %p361, %s360, 3
      %s363 = smul.addr %s362, 8
      %s364 = scalar_lea.vmem %s6, %s363
      // Predicated region
      $region45: #{transformer_sequence_classifier.4} parent=43 // pred_check
        %p365 = pneg %p166
      $region46: #{transformer_sequence_classifier.4} parent=43 // pred_check_branch
        %367 = sbr.rel (%p365) target = $region48
      $region47: #{transformer_sequence_classifier.4} parent=43 // pred_region
        %s368 = smul.u32 2, %s17
      $region48: #{transformer_sequence_classifier.4} parent=43 // pred_fallthru
        _
    $region44: #{transformer_sequence_classifier.4} parent=5 // pred_fallthru
      _
    %p369 = scmp.le.s32.totalorder 2, %s12
    // Predicated region
    $region49: #{transformer_sequence_classifier.4} parent=5 // pred_check
      %p370 = pneg %p369
    $region50: #{transformer_sequence_classifier.4} parent=5 // pred_check_branch
      %372 = sbr.rel (%p370) target = $region52
    $region51: #{transformer_sequence_classifier.4} parent=5 // pred_region
      %s373 = ssub.s32 %s12, 2
      // Predicated region
      $region53: #{transformer_sequence_classifier.4} parent=51 // pred_check
        %p374 = pneg %p172
      $region54: #{transformer_sequence_classifier.4} parent=51 // pred_check_branch
        %376 = sbr.rel (%p374) target = $region56
      $region55: #{transformer_sequence_classifier.4} parent=51 // pred_region
        %s377 = smul.u32 2, %s18
        %p378 = scmp.lt.s32.totalorder %s377, 3
        %s379 = scalar_select %p378, %s377, 3
        %s380 = smul.addr %s379, 8
        %s381 = scalar_lea.vmem %s6, %s380
      $region56: #{transformer_sequence_classifier.4} parent=51 // pred_fallthru
        _
    $region52: #{transformer_sequence_classifier.4} parent=5 // pred_fallthru
      _
  $region6: #{transformer_sequence_classifier.4} parent=0 // loop_footer
    %s16 = sadd.s32 1, %s12
  $region7: #{transformer_sequence_classifier.4} parent=0 // loop_footer_branch
    %11 = sbr.rel target = $region3
  $region8: #{transformer_sequence_classifier.4} parent=0 // loop_exit
    _

// kernel: transformer_sequence_classifier.7
$region0: #{transformer_sequence_classifier.7}
  #allocation0 [shape = 'u32[]', space=smem, size = 0x4, offset = 0x4, fixed_abs, tag = 'smem constant byte address 0x4 - core index']
  #allocation1 [shape = 'u32[72,128]{1,0:T(1,128)}', space=vmem, size = 0x9000, scoped, tag = 'internal scratch']
  %s0 = inlined_call_operand.vmem [shape: f32[4,16,128], index: 0, kind: input, shape index: {}]
  %s1 = inlined_call_operand.vmem [shape: f32[4,1,256], index: 1, kind: input, shape index: {}]
  %s2 = inlined_call_operand.vmem [shape: f32[4,1,256], index: 2, kind: input, shape index: {}]
  %s3 = inlined_call_operand.hbm [shape: bf16[128,384], index: 3, kind: input, shape index: {}]
  %s4 = inlined_call_operand.vmem [shape: f32[1,384], index: 4, kind: input, shape index: {}]
  %s5 = inlined_call_operand.hbm [shape: bf16[128,128], index: 5, kind: input, shape index: {}]
  %s6 = inlined_call_operand.vmem [shape: f32[1,128], index: 6, kind: input, shape index: {}]
  %s7 = inlined_call_operand.vmem [shape: bf16[128,512], index: 7, kind: input, shape index: {}]
  %s8 = inlined_call_operand.vmem [shape: f32[1,512], index: 8, kind: input, shape index: {}]
  %s9 = inlined_call_operand.vmem [shape: bf16[512,128], index: 9, kind: input, shape index: {}]
  %s10 = inlined_call_operand.vmem [shape: f32[1,128], index: 10, kind: input, shape index: {}]
  %s11 = inlined_call_operand.vmem [shape: f32[4,16,128], index: 11, kind: output, shape index: {}]
  %s12 = sld [smem:[#allocation0]]
  $region85: #{transformer_sequence_classifier.7} parent=0
    _
  %s14 = ssub.s32 1, %s12
  %s15 = scalar_select 0, %s14, %s12
  $region1: #{transformer_sequence_classifier.7} parent=0
    #allocation2 [shape = 'u8[98304]{0}', space=vmem, size = 0x18000, scoped, tag = 'input window, operand 3, single buffered']
    #allocation3 [shape = 's32[2]{0}', space=sflag, size = 0x8, scoped, tag = 'scoped memory for transformer_sequence_classifier.7']
    #allocation4 [shape = 'u8[32768]{0}', space=vmem, size = 0x8000, scoped, tag = 'input window, operand 5, single buffered']
    #allocation5 [shape = 's32[1]{0}', space=sflag, size = 0x4, scoped, tag = 'scoped memory for transformer_sequence_classifier.7']
    %16 = vsyncpa [#allocation3], 0
    %17 = vsyncpa [#allocation5], 0
    loop: start=0, step=1, limit=4
    $region2: #{transformer_sequence_classifier.7} parent=1 // loop_pre_header
      _
    $region3: #{transformer_sequence_classifier.7} parent=1 // loop_header
      %s19 = sphi 0, %s23
      %p20 = scmp.ge.s32.totalorder %s19, 4
      %s29 = sphi 0, %s31
      %s32 = sphi 0, %s29
      %s33 = sphi 0, %s32
      %s49 = sphi 0, %s33
      %s55 = sphi 0, %s57
      %s58 = sphi 0, %s55
      %s59 = sphi 0, %s58
      %s75 = sphi 0, %s59
      %s81 = sphi 0, %s83
      %s84 = sphi 0, %s81
      %s85 = sphi 0, %s84
      %s101 = sphi 0, %s85
      %s105 = sphi 0, %s105
      %s107 = sphi 0, %s105
      %s108 = sphi 0, %s107
      %s122 = sphi 0, %s108
      %s126 = sphi 0, %s126
      %s128 = sphi 0, %s126
      %s129 = sphi 0, %s128
      %s143 = sphi 0, %s129
      %s147 = sphi 0, %s147
      %s149 = sphi 0, %s147
      %s150 = sphi 0, %s149
      %s164 = sphi 0, %s150
      %s168 = sphi 0, %s168
      %s170 = sphi 0, %s168
      %s171 = sphi 0, %s170
      %s185 = sphi 0, %s171
      %s189 = sphi 0, %s189
      %s191 = sphi 0, %s189
      %s192 = sphi 0, %s191
      %s206 = sphi 0, %s192
      %s210 = sphi 0, %s210
      %s212 = sphi 0, %s210
      %s213 = sphi 0, %s212
      %s227 = sphi 0, %s213
      %s231 = sphi 0, %s231
      %s233 = sphi 0, %s231
      %s234 = sphi 0, %s233
      %s248 = sphi 0, %s234
      %s252 = sphi 0, %s252
      %s254 = sphi 0, %s252
      %s255 = sphi 0, %s254
      %s269 = sphi 0, %s255
      %s275 = sphi 0, %s277
      %s278 = sphi 0, %s275
      %s279 = sphi 0, %s278
      %s295 = sphi 0, %s279
    $region4: #{transformer_sequence_classifier.7} parent=1 // loop_header_branch
      %22 = sbr.rel (%p20) target = $region8
    $region5: #{transformer_sequence_classifier.7} parent=1 // loop_body
      %s24 = ssub.s32 %s19, 1
      %s25 = ssub.s32 %s19, 2
      %s26 = sadd.s32 %s19, 1
      %s27 = ssub.s32 %s19, %s26
      %p28 = scmp.eq.s32.totalorder %s27, 0
      %s30 = sadd.s32 %s29, 1
      %s31 = scalar_select %p28, %s29, %s30
      %p34 = pneg %p28
      %p35 = scmp.eq.s32.totalorder %s19, 1
      %p36 = por %p34, %p35
      %p37 = scmp.ne.s32.totalorder %s29, %s32
      %p38 = scmp.eq.s32.totalorder %s19, 0
      %p39 = por %p37, %p38
      %p40 = scmp.ne.s32.totalorder %s29, %s32
      %p41 = scmp.eq.s32.totalorder %s24, 1
      %p42 = por %p40, %p41
      %p43 = scmp.ne.s32.totalorder %s32, %s33
      %p44 = scmp.eq.s32.totalorder %s24, 0
      %p45 = por %p43, %p44
      %p46 = scmp.ne.s32.totalorder %s32, %s33
      %p47 = scmp.eq.s32.totalorder %s25, 1
      %p48 = por %p46, %p47
      %p50 = scmp.ne.s32.totalorder %s33, %s49
      %p51 = scmp.eq.s32.totalorder %s25, 0
      %p52 = por %p50, %p51
      %s53 = ssub.s32 %s19, %s26
      %p54 = scmp.eq.s32.totalorder %s53, 0
      %s56 = sadd.s32 %s55, 1
      %s57 = scalar_select %p54, %s55, %s56
      %p60 = pneg %p54
      %p61 = scmp.eq.s32.totalorder %s19, 1
      %p62 = por %p60, %p61
      %p63 = scmp.ne.s32.totalorder %s55, %s58
      %p64 = scmp.eq.s32.totalorder %s19, 0
      %p65 = por %p63, %p64
      %p66 = scmp.ne.s32.totalorder %s55, %s58
      %p67 = scmp.eq.s32.totalorder %s24, 1
      %p68 = por %p66, %p67
      %p69 = scmp.ne.s32.totalorder %s58, %s59
      %p70 = scmp.eq.s32.totalorder %s24, 0
      %p71 = por %p69, %p70
      %p72 = scmp.ne.s32.totalorder %s58, %s59
      %p73 = scmp.eq.s32.totalorder %s25, 1
      %p74 = por %p72, %p73
      %p76 = scmp.ne.s32.totalorder %s59, %s75
      %p77 = scmp.eq.s32.totalorder %s25, 0
      %p78 = por %p76, %p77
      %s79 = ssub.s32 %s19, %s26
      %p80 = scmp.eq.s32.totalorder %s79, 0
      %s82 = sadd.s32 %s81, 1
      %s83 = scalar_select %p80, %s81, %s82
      %p86 = pneg %p80
      %p87 = scmp.eq.s32.totalorder %s19, 1
      %p88 = por %p86, %p87
      %p89 = scmp.ne.s32.totalorder %s81, %s84
      %p90 = scmp.eq.s32.totalorder %s19, 0
      %p91 = por %p89, %p90
      %p92 = scmp.ne.s32.totalorder %s81, %s84
      %p93 = scmp.eq.s32.totalorder %s24, 1
      %p94 = por %p92, %p93
      %p95 = scmp.ne.s32.totalorder %s84, %s85
      %p96 = scmp.eq.s32.totalorder %s24, 0
      %p97 = por %p95, %p96
      %p98 = scmp.ne.s32.totalorder %s84, %s85
      %p99 = scmp.eq.s32.totalorder %s25, 1
      %p100 = por %p98, %p99
      %p102 = scmp.ne.s32.totalorder %s85, %s101
      %p103 = scmp.eq.s32.totalorder %s25, 0
      %p104 = por %p102, %p103
      %s106 = sadd.s32 %s105, 1
      %p109 = scmp.eq.s32.totalorder %s19, 1
      %p110 = scmp.ne.s32.totalorder %s105, %s107
      %p111 = scmp.eq.s32.totalorder %s19, 0
      %p112 = por %p110, %p111
      %p113 = scmp.ne.s32.totalorder %s105, %s107
      %p114 = scmp.eq.s32.totalorder %s24, 1
      %p115 = por %p113, %p114
      %p116 = scmp.ne.s32.totalorder %s107, %s108
      %p117 = scmp.eq.s32.totalorder %s24, 0
      %p118 = por %p116, %p117
      %p119 = scmp.ne.s32.totalorder %s107, %s108
      %p120 = scmp.eq.s32.totalorder %s25, 1
      %p121 = por %p119, %p120
      %p123 = scmp.ne.s32.totalorder %s108, %s122
      %p124 = scmp.eq.s32.totalorder %s25, 0
      %p125 = por %p123, %p124
      %s127 = sadd.s32 %s126, 1
      %p130 = scmp.eq.s32.totalorder %s19, 1
      %p131 = scmp.ne.s32.totalorder %s126, %s128
      %p132 = scmp.eq.s32.totalorder %s19, 0
      %p133 = por %p131, %p132
      %p134 = scmp.ne.s32.totalorder %s126, %s128
      %p135 = scmp.eq.s32.totalorder %s24, 1
      %p136 = por %p134, %p135
      %p137 = scmp.ne.s32.totalorder %s128, %s129
      %p138 = scmp.eq.s32.totalorder %s24, 0
      %p139 = por %p137, %p138
      %p140 = scmp.ne.s32.totalorder %s128, %s129
      %p141 = scmp.eq.s32.totalorder %s25, 1
      %p142 = por %p140, %p141
      %p144 = scmp.ne.s32.totalorder %s129, %s143
      %p145 = scmp.eq.s32.totalorder %s25, 0
      %p146 = por %p144, %p145
      %s148 = sadd.s32 %s147, 1
      %p151 = scmp.eq.s32.totalorder %s19, 1
      %p152 = scmp.ne.s32.totalorder %s147, %s149
      %p153 = scmp.eq.s32.totalorder %s19, 0
      %p154 = por %p152, %p153
      %p155 = scmp.ne.s32.totalorder %s147, %s149
      %p156 = scmp.eq.s32.totalorder %s24, 1
      %p157 = por %p155, %p156
      %p158 = scmp.ne.s32.totalorder %s149, %s150
      %p159 = scmp.eq.s32.totalorder %s24, 0
      %p160 = por %p158, %p159
      %p161 = scmp.ne.s32.totalorder %s149, %s150
      %p162 = scmp.eq.s32.totalorder %s25, 1
      %p163 = por %p161, %p162
      %p165 = scmp.ne.s32.totalorder %s150, %s164
      %p166 = scmp.eq.s32.totalorder %s25, 0
      %p167 = por %p165, %p166
      %s169 = sadd.s32 %s168, 1
      %p172 = scmp.eq.s32.totalorder %s19, 1
      %p173 = scmp.ne.s32.totalorder %s168, %s170
      %p174 = scmp.eq.s32.totalorder %s19, 0
      %p175 = por %p173, %p174
      %p176 = scmp.ne.s32.totalorder %s168, %s170
      %p177 = scmp.eq.s32.totalorder %s24, 1
      %p178 = por %p176, %p177
      %p179 = scmp.ne.s32.totalorder %s170, %s171
      %p180 = scmp.eq.s32.totalorder %s24, 0
      %p181 = por %p179, %p180
      %p182 = scmp.ne.s32.totalorder %s170, %s171
      %p183 = scmp.eq.s32.totalorder %s25, 1
      %p184 = por %p182, %p183
      %p186 = scmp.ne.s32.totalorder %s171, %s185
      %p187 = scmp.eq.s32.totalorder %s25, 0
      %p188 = por %p186, %p187
      %s190 = sadd.s32 %s189, 1
      %p193 = scmp.eq.s32.totalorder %s19, 1
      %p194 = scmp.ne.s32.totalorder %s189, %s191
      %p195 = scmp.eq.s32.totalorder %s19, 0
      %p196 = por %p194, %p195
      %p197 = scmp.ne.s32.totalorder %s189, %s191
      %p198 = scmp.eq.s32.totalorder %s24, 1
      %p199 = por %p197, %p198
      %p200 = scmp.ne.s32.totalorder %s191, %s192
      %p201 = scmp.eq.s32.totalorder %s24, 0
      %p202 = por %p200, %p201
      %p203 = scmp.ne.s32.totalorder %s191, %s192
      %p204 = scmp.eq.s32.totalorder %s25, 1
      %p205 = por %p203, %p204
      %p207 = scmp.ne.s32.totalorder %s192, %s206
      %p208 = scmp.eq.s32.totalorder %s25, 0
      %p209 = por %p207, %p208
      %s211 = sadd.s32 %s210, 1
      %p214 = scmp.eq.s32.totalorder %s19, 1
      %p215 = scmp.ne.s32.totalorder %s210, %s212
      %p216 = scmp.eq.s32.totalorder %s19, 0
      %p217 = por %p215, %p216
      %p218 = scmp.ne.s32.totalorder %s210, %s212
      %p219 = scmp.eq.s32.totalorder %s24, 1
      %p220 = por %p218, %p219
      %p221 = scmp.ne.s32.totalorder %s212, %s213
      %p222 = scmp.eq.s32.totalorder %s24, 0
      %p223 = por %p221, %p222
      %p224 = scmp.ne.s32.totalorder %s212, %s213
      %p225 = scmp.eq.s32.totalorder %s25, 1
      %p226 = por %p224, %p225
      %p228 = scmp.ne.s32.totalorder %s213, %s227
      %p229 = scmp.eq.s32.totalorder %s25, 0
      %p230 = por %p228, %p229
      %s232 = sadd.s32 %s231, 1
      %p235 = scmp.eq.s32.totalorder %s19, 1
      %p236 = scmp.ne.s32.totalorder %s231, %s233
      %p237 = scmp.eq.s32.totalorder %s19, 0
      %p238 = por %p236, %p237
      %p239 = scmp.ne.s32.totalorder %s231, %s233
      %p240 = scmp.eq.s32.totalorder %s24, 1
      %p241 = por %p239, %p240
      %p242 = scmp.ne.s32.totalorder %s233, %s234
      %p243 = scmp.eq.s32.totalorder %s24, 0
      %p244 = por %p242, %p243
      %p245 = scmp.ne.s32.totalorder %s233, %s234
      %p246 = scmp.eq.s32.totalorder %s25, 1
      %p247 = por %p245, %p246
      %p249 = scmp.ne.s32.totalorder %s234, %s248
      %p250 = scmp.eq.s32.totalorder %s25, 0
      %p251 = por %p249, %p250
      %s253 = sadd.s32 %s252, 1
      %p256 = scmp.eq.s32.totalorder %s19, 1
      %p257 = scmp.ne.s32.totalorder %s252, %s254
      %p258 = scmp.eq.s32.totalorder %s19, 0
      %p259 = por %p257, %p258
      %p260 = scmp.ne.s32.totalorder %s252, %s254
      %p261 = scmp.eq.s32.totalorder %s24, 1
      %p262 = por %p260, %p261
      %p263 = scmp.ne.s32.totalorder %s254, %s255
      %p264 = scmp.eq.s32.totalorder %s24, 0
      %p265 = por %p263, %p264
      %p266 = scmp.ne.s32.totalorder %s254, %s255
      %p267 = scmp.eq.s32.totalorder %s25, 1
      %p268 = por %p266, %p267
      %p270 = scmp.ne.s32.totalorder %s255, %s269
      %p271 = scmp.eq.s32.totalorder %s25, 0
      %p272 = por %p270, %p271
      %s273 = ssub.s32 %s19, %s26
      %p274 = scmp.eq.s32.totalorder %s273, 0
      %s276 = sadd.s32 %s275, 1
      %s277 = scalar_select %p274, %s275, %s276
      %p280 = pneg %p274
      %p281 = scmp.eq.s32.totalorder %s19, 1
      %p282 = por %p280, %p281
      %p283 = scmp.ne.s32.totalorder %s275, %s278
      %p284 = scmp.eq.s32.totalorder %s19, 0
      %p285 = por %p283, %p284
      %p286 = scmp.ne.s32.totalorder %s275, %s278
      %p287 = scmp.eq.s32.totalorder %s24, 1
      %p288 = por %p286, %p287
      %p289 = scmp.ne.s32.totalorder %s278, %s279
      %p290 = scmp.eq.s32.totalorder %s24, 0
      %p291 = por %p289, %p290
      %p292 = scmp.ne.s32.totalorder %s278, %s279
      %p293 = scmp.eq.s32.totalorder %s25, 1
      %p294 = por %p292, %p293
      %p296 = scmp.ne.s32.totalorder %s279, %s295
      %p297 = scmp.eq.s32.totalorder %s25, 0
      %p298 = por %p296, %p297
      %p299 = scmp.le.s32.totalorder 1, %s19
      %p300 = scmp.lt.s32.totalorder %s19, 3
      %p301 = pnand %p299, %p300
      %p302 = pneg %p301
      // Predicated region
      $region9: #{transformer_sequence_classifier.7} parent=5 // pred_check
        _
      $region10: #{transformer_sequence_classifier.7} parent=5 // pred_check_branch
        %304 = sbr.rel (%p301) target = $region12
      $region11: #{transformer_sequence_classifier.7} parent=5 // pred_region
        %s305 = ssub.s32 %s19, 1
        // Predicated region
        $region13: #{transformer_sequence_classifier.7} parent=11 // pred_check
          %p306 = pneg %p118
        $region14: #{transformer_sequence_classifier.7} parent=11 // pred_check_branch
          %308 = sbr.rel (%p306) target = $region16
        $region15: #{transformer_sequence_classifier.7} parent=11 // pred_region
          %310 = vsyncadd [#allocation3], 0
          %s311 = sshll.u32 %s3, 4
          %s312 = int_to_ptr.hbm [resolvable:$true] %s311
          %s313 = sshll.u32 [#allocation2], 4
          %s314 = int_to_ptr.vmem [resolvable:$true] %s313
          %319 = dma.hbm_to_vmem [thread:$0]  %s312, 3072, %s314, [#allocation3], 192, 192, 12
        $region16: #{transformer_sequence_classifier.7} parent=11 // pred_fallthru
          _
        // Predicated region
        $region17: #{transformer_sequence_classifier.7} parent=11 // pred_check
          %p320 = pneg %p139
        $region18: #{transformer_sequence_classifier.7} parent=11 // pred_check_branch
          %322 = sbr.rel (%p320) target = $region20
        $region19: #{transformer_sequence_classifier.7} parent=11 // pred_region
          _
        $region20: #{transformer_sequence_classifier.7} parent=11 // pred_fallthru
          _
        // Predicated region
        $region21: #{transformer_sequence_classifier.7} parent=11 // pred_check
          %p323 = pneg %p160
        $region22: #{transformer_sequence_classifier.7} parent=11 // pred_check_branch
          %325 = sbr.rel (%p323) target = $region24
        $region23: #{transformer_sequence_classifier.7} parent=11 // pred_region
          %327 = vsyncadd [#allocation5], 0
          %s328 = sshll.u32 %s5, 4
          %s329 = int_to_ptr.hbm [resolvable:$true] %s328
          %s330 = sshll.u32 [#allocation4], 4
          %s331 = int_to_ptr.vmem [resolvable:$true] %s330
          %336 = dma.hbm_to_vmem [thread:$0]  %s329, 1024, %s331, [#allocation5], 64, 64, 4
        $region24: #{transformer_sequence_classifier.7} parent=11 // pred_fallthru
          _
        // Predicated region
        $region25: #{transformer_sequence_classifier.7} parent=11 // pred_check
          %p337 = pneg %p181
        $region26: #{transformer_sequence_classifier.7} parent=11 // pred_check_branch
          %339 = sbr.rel (%p337) target = $region28
        $region27: #{transformer_sequence_classifier.7} parent=11 // pred_region
          _
        $region28: #{transformer_sequence_classifier.7} parent=11 // pred_fallthru
          _
        // Predicated region
        $region29: #{transformer_sequence_classifier.7} parent=11 // pred_check
          %p340 = pneg %p202
        $region30: #{transformer_sequence_classifier.7} parent=11 // pred_check_branch
          %342 = sbr.rel (%p340) target = $region32
        $region31: #{transformer_sequence_classifier.7} parent=11 // pred_region
          _
        $region32: #{transformer_sequence_classifier.7} parent=11 // pred_fallthru
          _
        // Predicated region
        $region33: #{transformer_sequence_classifier.7} parent=11 // pred_check
          %p343 = pneg %p223
        $region34: #{transformer_sequence_classifier.7} parent=11 // pred_check_branch
          %345 = sbr.rel (%p343) target = $region36
        $region35: #{transformer_sequence_classifier.7} parent=11 // pred_region
          _
        $region36: #{transformer_sequence_classifier.7} parent=11 // pred_fallthru
          _
        // Predicated region
        $region37: #{transformer_sequence_classifier.7} parent=11 // pred_check
          %p346 = pneg %p244
        $region38: #{transformer_sequence_classifier.7} parent=11 // pred_check_branch
          %348 = sbr.rel (%p346) target = $region40
        $region39: #{transformer_sequence_classifier.7} parent=11 // pred_region
          _
        $region40: #{transformer_sequence_classifier.7} parent=11 // pred_fallthru
          _
        // Predicated region
        $region41: #{transformer_sequence_classifier.7} parent=11 // pred_check
          %p349 = pneg %p265
        $region42: #{transformer_sequence_classifier.7} parent=11 // pred_check_branch
          %351 = sbr.rel (%p349) target = $region44
        $region43: #{transformer_sequence_classifier.7} parent=11 // pred_region
          _
        $region44: #{transformer_sequence_classifier.7} parent=11 // pred_fallthru
          _
      $region12: #{transformer_sequence_classifier.7} parent=5 // pred_fallthru
        _
      %p352 = scmp.lt.s32.totalorder %s19, 2
      // Predicated region
      $region45: #{transformer_sequence_classifier.7} parent=5 // pred_check
        %p353 = pneg %p352
      $region46: #{transformer_sequence_classifier.7} parent=5 // pred_check_branch
        %355 = sbr.rel (%p353) target = $region48
      $region47: #{transformer_sequence_classifier.7} parent=5 // pred_region
        // Predicated region
        $region49: #{transformer_sequence_classifier.7} parent=47 // pred_check
          %p356 = pneg %p39
        $region50: #{transformer_sequence_classifier.7} parent=47 // pred_check_branch
          %358 = sbr.rel (%p356) target = $region52
        $region51: #{transformer_sequence_classifier.7} parent=47 // pred_region
          %s359 = smul.u32 2, %s19
          %p360 = scmp.lt.s32.totalorder %s359, 3
          %s361 = scalar_select %p360, %s359, 3
          %s362 = smul.addr %s361, 2
          %s363 = smul.addr %s362, 8
          %s364 = scalar_lea.vmem %s0, %s363
          %s365 = smul.u32 2, %s19
        $region52: #{transformer_sequence_classifier.7} parent=47 // pred_fallthru
          _
        // Predicated region
        $region53: #{transformer_sequence_classifier.7} parent=47 // pred_check
          %p366 = pneg %p65
        $region54: #{transformer_sequence_classifier.7} parent=47 // pred_check_branch
          %368 = sbr.rel (%p366) target = $region56
        $region55: #{transformer_sequence_classifier.7} parent=47 // pred_region
          %s369 = smul.u32 2, %s19
          %p370 = scmp.lt.s32.totalorder %s369, 3
          %s371 = scalar_select %p370, %s369, 3
          %s372 = smul.addr %s371, 2
          %s373 = scalar_lea.vmem %s1, %s372
          %s374 = smul.u32 2, %s19
        $region56: #{transformer_sequence_classifier.7} parent=47 // pred_fallthru
          _
        // Predicated region
        $region57: #{transformer_sequence_classifier.7} parent=47 // pred_check
          %p375 = pneg %p91
        $region58: #{transformer_sequence_classifier.7} parent=47 // pred_check_branch
          %377 = sbr.rel (%p375) target = $region60
        $region59: #{transformer_sequence_classifier.7} parent=47 // pred_region
          %s378 = smul.u32 2, %s19
          %p379 = scmp.lt.s32.totalorder %s378, 3
          %s380 = scalar_select %p379, %s378, 3
          %s381 = smul.addr %s380, 2
          %s382 = scalar_lea.vmem %s2, %s381
          %s383 = smul.u32 2, %s19
        $region60: #{transformer_sequence_classifier.7} parent=47 // pred_fallthru
          _
      $region48: #{transformer_sequence_classifier.7} parent=5 // pred_fallthru
        _
      %p384 = scmp.le.s32.totalorder 1, %s19
      %p385 = scmp.lt.s32.totalorder %s19, 3
      %p386 = pnand %p384, %p385
      %p387 = pneg %p386
      // Predicated region
      $region61: #{transformer_sequence_classifier.7} parent=5 // pred_check
        _
      $region62: #{transformer_sequence_classifier.7} parent=5 // pred_check_branch
        %389 = sbr.rel (%p386) target = $region64
      $region63: #{transformer_sequence_classifier.7} parent=5 // pred_region
        %s390 = ssub.s32 %s19, 1
        // Predicated region
        $region65: #{transformer_sequence_classifier.7} parent=63 // pred_check
          %p391 = pneg %p118
        $region66: #{transformer_sequence_classifier.7} parent=63 // pred_check_branch
          %393 = sbr.rel (%p391) target = $region68
        $region67: #{transformer_sequence_classifier.7} parent=63 // pred_region
          %395 = dma.done [#allocation3], 3072
        $region68: #{transformer_sequence_classifier.7} parent=63 // pred_fallthru
          _
        // Predicated region
        $region69: #{transformer_sequence_classifier.7} parent=63 // pred_check
          %p396 = pneg %p160
        $region70: #{transformer_sequence_classifier.7} parent=63 // pred_check_branch
          %398 = sbr.rel (%p396) target = $region72
        $region71: #{transformer_sequence_classifier.7} parent=63 // pred_region
          %400 = dma.done [#allocation5], 1024
        $region72: #{transformer_sequence_classifier.7} parent=63 // pred_fallthru
          _
        %s401 = smul.u32 2, %s24
        %p402 = scmp.lt.s32.totalorder %s401, 3
        %s403 = scalar_select %p402, %s401, 3
        %s404 = smul.addr %s403, 2
        %s405 = smul.addr %s404, 8
        %s406 = scalar_lea.vmem %s0, %s405
        %p407 = pneg %p45
        %p408 = pneg %p42
        %s409 = smul.u32 2, %s24
        %p410 = scmp.lt.s32.totalorder %s409, 3
        %s411 = scalar_select %p410, %s409, 3
        %s412 = smul.addr %s411, 2
        %s413 = scalar_lea.vmem %s1, %s412
        %p414 = pneg %p71
        %p415 = pneg %p68
        %s416 = smul.u32 2, %s24
        %p417 = scmp.lt.s32.totalorder %s416, 3
        %s418 = scalar_select %p417, %s416, 3
        %s419 = smul.addr %s418, 2
        %s420 = scalar_lea.vmem %s2, %s419
        %p421 = pneg %p97
        %p422 = pneg %p94
        %p423 = pneg %p118
        %p424 = pneg %p115
        %p425 = pneg %p139
        %p426 = pneg %p136
        %p427 = pneg %p160
        %p428 = pneg %p157
        %p429 = pneg %p181
        %p430 = pneg %p178
        %p431 = pneg %p202
        %p432 = pneg %p199
        %p433 = pneg %p223
        %p434 = pneg %p220
        %p435 = pneg %p244
        %p436 = pneg %p241
        %p437 = pneg %p265
        %p438 = pneg %p262
        %p439 = pneg %p291
        %p440 = pneg %p288
        %s441 = smul.u32 2, %s24
        %p442 = scmp.lt.s32.totalorder %s441, 3
        %s443 = scalar_select %p442, %s441, 3
        %s444 = smul.addr %s443, 2
        %s445 = smul.addr %s444, 8
        %s446 = scalar_lea.vmem %s11, %s445
        %s447 = smul.u32 2, %s24
        %p448 = scmp.lt.s32.totalorder %s447, 3
        %s449 = scalar_select %p448, %s447, 3
        %s450 = smul.addr %s449, 2
        %s451 = smul.addr %s450, 8
        %s452 = scalar_lea.vmem %s0, %s451
        %s453 = smul.u32 2, %s24
        %s454 = smul.u32 2, %s24
        %p455 = scmp.lt.s32.totalorder %s454, 3
        %s456 = scalar_select %p455, %s454, 3
        %s457 = smul.addr %s456, 2
        %s458 = scalar_lea.vmem %s1, %s457
        %s459 = smul.u32 2, %s24
        %s460 = smul.u32 2, %s24
        %p461 = scmp.lt.s32.totalorder %s460, 3
        %s462 = scalar_select %p461, %s460, 3
        %s463 = smul.addr %s462, 2
        %s464 = scalar_lea.vmem %s2, %s463
        %s465 = smul.u32 2, %s24
        %s466 = smul.u32 2, %s24
        %p467 = scmp.lt.s32.totalorder %s466, 3
        %s468 = scalar_select %p467, %s466, 3
        %s469 = smul.addr %s468, 2
        %s470 = smul.addr %s469, 8
        %s471 = scalar_lea.vmem %s11, %s470
        %s472 = smul.u32 2, %s24
        %v474 = vld [vmem:[%s452] sm:$0xff]
        %v475 = vld [vmem:[%s452 + $0x8] sm:$0xff]
        %v476 = vld [vmem:[%s452 + $0x10] sm:$0xff]
        %v477 = vld [vmem:[%s452 + $0x18] sm:$0xff]
        %v478 = vlaneseq
        %v479 = vand.u32 %v478, 127
        %vm480 = vcmp.lt.s32.totalorder %v479, 9
        %v481 = vsel %vm480, 0.0, -1e+30
        %v482 = vlaneseq
        %v483 = vshrl.u32 %v482, 7
        %v484 = vadd.s32 %v483, 8
        %vm485 = vcmp.lt.s32.totalorder %v483, 9
        %vm486 = vcmp.lt.s32.totalorder %v484, 9
        %v487 = vsel %vm485, 1, 0
        %v488 = vsel %vm486, 1, 0
        %v489 = vcvt.s32.f32 %v487
        %v490 = vcvt.s32.f32 %v488
        %491 = vadd.xlane.f32.xlu0 %v474
        %v492 = vpop.xlane.xlu0 %491
        %493 = vadd.xlane.f32.xlu0 %v475
        %v494 = vpop.xlane.xlu0 %493
        %495 = vadd.xlane.f32.xlu0 %v476
        %v496 = vpop.xlane.xlu0 %495
        %497 = vadd.xlane.f32.xlu0 %v477
        %v498 = vpop.xlane.xlu0 %497
        %v499 = vrcp.pop 128.0
        %v500 = vmul.f32 128.0, %v499
        %v501 = vsub.f32 1.0, %v500
        %v502 = vmul.f32 %v499, %v501
        %v503 = vadd.f32 %v499, %v502
        %vm504 = vweird.f32 %v499
        %v505 = vsel %vm504, %v499, %v503
        %v506 = vmul.f32 %v492, %v505
        %v507 = vmul.f32 %v494, %v505
        %v508 = vmul.f32 %v496, %v505
        %v509 = vmul.f32 %v498, %v505
        %v510 = vsub.f32 %v474, %v506
        %v511 = vsub.f32 %v475, %v507
        %v512 = vsub.f32 %v476, %v508
        %v513 = vsub.f32 %v477, %v509
        %v514 = vmul.f32 %v510, %v510
        %v515 = vmul.f32 %v511, %v511
        %v516 = vmul.f32 %v512, %v512
        %v517 = vmul.f32 %v513, %v513
        %518 = vadd.xlane.f32.xlu0 %v514
        %v519 = vpop.xlane.xlu0 %518
        %520 = vadd.xlane.f32.xlu0 %v515
        %v521 = vpop.xlane.xlu0 %520
        %522 = vadd.xlane.f32.xlu0 %v516
        %v523 = vpop.xlane.xlu0 %522
        %524 = vadd.xlane.f32.xlu0 %v517
        %v525 = vpop.xlane.xlu0 %524
        %v526 = vmul.f32 %v519, %v505
        %v527 = vmul.f32 %v521, %v505
        %v528 = vmul.f32 %v523, %v505
        %v529 = vmul.f32 %v525, %v505
        %v530 = vadd.f32 %v526, 1e-05
        %v531 = vadd.f32 %v527, 1e-05
        %v532 = vadd.f32 %v528, 1e-05
        %v533 = vadd.f32 %v529, 1e-05
        %v534 = vrsqrt.pop %v530
        %v535 = vmul.f32 %v534, %v530
        %v536 = vmul.f32 %v535, %v534
        %v537 = vmul.f32 0.5, %v536
        %v538 = vsub.f32 1.5, %v537
        %v539 = vmul.f32 %v534, %v538
        %vm540 = vweird.f32 %v530
        %vm541 = vweird.f32 %v534
        %vm542 = vmor %vm540, %vm541
        %v543 = vsel %vm542, %v534, %v539
        %v544 = vrsqrt.pop %v531
        %v545 = vmul.f32 %v544, %v531
        %v546 = vmul.f32 %v545, %v544
        %v547 = vmul.f32 0.5, %v546
        %v548 = vsub.f32 1.5, %v547
        %v549 = vmul.f32 %v544, %v548
        %vm550 = vweird.f32 %v531
        %vm551 = vweird.f32 %v544
        %vm552 = vmor %vm550, %vm551
        %v553 = vsel %vm552, %v544, %v549
        %v554 = vrsqrt.pop %v532
        %v555 = vmul.f32 %v554, %v532
        %v556 = vmul.f32 %v555, %v554
        %v557 = vmul.f32 0.5, %v556
        %v558 = vsub.f32 1.5, %v557
        %v559 = vmul.f32 %v554, %v558
        %vm560 = vweird.f32 %v532
        %vm561 = vweird.f32 %v554
        %vm562 = vmor %vm560, %vm561
        %v563 = vsel %vm562, %v554, %v559
        %v564 = vrsqrt.pop %v533
        %v565 = vmul.f32 %v564, %v533
        %v566 = vmul.f32 %v565, %v564
        %v567 = vmul.f32 0.5, %v566
        %v568 = vsub.f32 1.5, %v567
        %v569 = vmul.f32 %v564, %v568
        %vm570 = vweird.f32 %v533
        %vm571 = vweird.f32 %v564
        %vm572 = vmor %vm570, %vm571
        %v573 = vsel %vm572, %v564, %v569
        %v574 = vmul.f32 %v510, %v543
        %v575 = vmul.f32 %v511, %v553
        %v576 = vmul.f32 %v512, %v563
        %v577 = vmul.f32 %v513, %v573
        %v578 = vld [vmem:[%s458] sm:$0x1]
        %v579 = vld [vmem:[%s458 + $0x2] sm:$0x1]
        %v580 = vld [vmem:[%s458 + $0x1] sm:$0x1]
        %v581 = vld [vmem:[%s458 + $0x3] sm:$0x1]
        %v582 = vadd.f32 %v580, 1.0
        %v583 = vadd.f32 %v581, 1.0
        %v586 = vperm.slane %v582, 0
        %v587 = vperm.slane %v583, 0
        %v590 = vmul.f32 %v574, %v586
        %v591 = vmul.f32 %v575, %v586
        %v592 = vmul.f32 %v576, %v587
        %v593 = vmul.f32 %v577, %v587
        %v596 = vperm.slane %v578, 0
        %v597 = vperm.slane %v579, 0
        %v600 = vadd.f32 %v590, %v596
        %v601 = vadd.f32 %v591, %v596
        %v602 = vadd.f32 %v592, %v597
        %v603 = vadd.f32 %v593, %v597
        %v604 = vpack.c.bf16 %v601, %v600
        %v605 = vpack.c.bf16 %v603, %v602
        %v606 = vld [vmem:[#allocation2] sm:$0xff]
        %v607 = vld [vmem:[#allocation2 + $0x8] sm:$0xf]
        %v608 = vld [vmem:[#allocation2 + $0xc] sm:$0xff]
        %v609 = vld [vmem:[#allocation2 + $0x14] sm:$0xf]
        %v610 = vld [vmem:[#allocation2 + $0x18] sm:$0xff]
        %v611 = vld [vmem:[#allocation2 + $0x20] sm:$0xf]
        %v612 = vld [vmem:[#allocation2 + $0x24] sm:$0xff]
        %v613 = vld [vmem:[#allocation2 + $0x2c] sm:$0xf]
        %v614 = vld [vmem:[#allocation2 + $0x30] sm:$0xff]
        %v615 = vld [vmem:[#allocation2 + $0x38] sm:$0xf]
        %v616 = vld [vmem:[#allocation2 + $0x3c] sm:$0xff]
        %v617 = vld [vmem:[#allocation2 + $0x44] sm:$0xf]
        %v618 = vld [vmem:[#allocation2 + $0x48] sm:$0xff]
        %v619 = vld [vmem:[#allocation2 + $0x50] sm:$0xf]
        %v620 = vld [vmem:[#allocation2 + $0x54] sm:$0xff]
        %v621 = vld [vmem:[#allocation2 + $0x5c] sm:$0xf]
        %v622 = vld [vmem:[#allocation2 + $0x60] sm:$0xff]
        %v623 = vld [vmem:[#allocation2 + $0x68] sm:$0xf]
        %v624 = vld [vmem:[#allocation2 + $0x6c] sm:$0xff]
        %v625 = vld [vmem:[#allocation2 + $0x74] sm:$0xf]
        %v626 = vld [vmem:[#allocation2 + $0x78] sm:$0xff]
        %v627 = vld [vmem:[#allocation2 + $0x80] sm:$0xf]
        %v628 = vld [vmem:[#allocation2 + $0x84] sm:$0xff]
        %v629 = vld [vmem:[#allocation2 + $0x8c] sm:$0xf]
        %v630 = vld [vmem:[#allocation2 + $0x90] sm:$0xff]
        %v631 = vld [vmem:[#allocation2 + $0x98] sm:$0xf]
        %v632 = vld [vmem:[#allocation2 + $0x9c] sm:$0xff]
        %v633 = vld [vmem:[#allocation2 + $0xa4] sm:$0xf]
        %v634 = vld [vmem:[#allocation2 + $0xa8] sm:$0xff]
        %v635 = vld [vmem:[#allocation2 + $0xb0] sm:$0xf]
        %v636 = vld [vmem:[#allocation2 + $0xb4] sm:$0xff]
        %v637 = vld [vmem:[#allocation2 + $0xbc] sm:$0xf]
        %v638 = vld [vmem:[%s4] sm:$0x7]
        %v640 = vperm.slane %v638, 0
        %v641 = vperm.slane %v638, 1
        %v642 = vperm.slane %v638, 2
        %v678 = vunpack.c.l.b16 %v606
        %v679 = vunpack.c.h.b16 %v606
        %v680 = vunpack.c.l.b16 %v607
        %v681 = vunpack.c.l.b16 %v608
        %v682 = vunpack.c.h.b16 %v608
        %v683 = vunpack.c.l.b16 %v609
        %v684 = vunpack.c.l.b16 %v610
        %v685 = vunpack.c.h.b16 %v610
        %v686 = vunpack.c.l.b16 %v611
        %v687 = vunpack.c.l.b16 %v612
        %v688 = vunpack.c.h.b16 %v612
        %v689 = vunpack.c.l.b16 %v613
        %v690 = vunpack.c.l.b16 %v614
        %v691 = vunpack.c.h.b16 %v614
        %v692 = vunpack.c.l.b16 %v615
        %v693 = vunpack.c.l.b16 %v616
        %v694 = vunpack.c.h.b16 %v616
        %v695 = vunpack.c.l.b16 %v617
        %v696 = vunpack.c.l.b16 %v618
        %v697 = vunpack.c.h.b16 %v618
        %v698 = vunpack.c.l.b16 %v619
        %v699 = vunpack.c.l.b16 %v620
        %v700 = vunpack.c.h.b16 %v620
        %v701 = vunpack.c.l.b16 %v621
        %v702 = vunpack.c.l.b16 %v622
        %v703 = vunpack.c.h.b16 %v622
        %v704 = vunpack.c.l.b16 %v623
        %v705 = vunpack.c.l.b16 %v624
        %v706 = vunpack.c.h.b16 %v624
        %v707 = vunpack.c.l.b16 %v625
        %v708 = vunpack.c.l.b16 %v626
        %v709 = vunpack.c.h.b16 %v626
        %v710 = vunpack.c.l.b16 %v627
        %v711 = vunpack.c.l.b16 %v628
        %v712 = vunpack.c.h.b16 %v628
        %v713 = vunpack.c.l.b16 %v629
        %v714 = vunpack.c.l.b16 %v630
        %v715 = vunpack.c.h.b16 %v630
        %v716 = vunpack.c.l.b16 %v631
        %v717 = vunpack.c.l.b16 %v632
        %v718 = vunpack.c.h.b16 %v632
        %v719 = vunpack.c.l.b16 %v633
        %v720 = vunpack.c.l.b16 %v634
        %v721 = vunpack.c.h.b16 %v634
        %v722 = vunpack.c.l.b16 %v635
        %v723 = vunpack.c.l.b16 %v636
        %v724 = vunpack.c.h.b16 %v636
        %v725 = vunpack.c.l.b16 %v637
        %v726 = vpack.c.b16 %v681, %v678
        %v727 = vpack.c.b16 %v682, %v679
        %v728 = vpack.c.b16 %v683, %v680
        %v729 = vpack.c.b16 %v687, %v684
        %v730 = vpack.c.b16 %v688, %v685
        %v731 = vpack.c.b16 %v689, %v686
        %v732 = vpack.c.b16 %v693, %v690
        %v733 = vpack.c.b16 %v694, %v691
        %v734 = vpack.c.b16 %v695, %v692
        %v735 = vpack.c.b16 %v699, %v696
        %v736 = vpack.c.b16 %v700, %v697
        %v737 = vpack.c.b16 %v701, %v698
        %v738 = vpack.c.b16 %v705, %v702
        %v739 = vpack.c.b16 %v706, %v703
        %v740 = vpack.c.b16 %v707, %v704
        %v741 = vpack.c.b16 %v711, %v708
        %v742 = vpack.c.b16 %v712, %v709
        %v743 = vpack.c.b16 %v713, %v710
        %v744 = vpack.c.b16 %v717, %v714
        %v745 = vpack.c.b16 %v718, %v715
        %v746 = vpack.c.b16 %v719, %v716
        %v747 = vpack.c.b16 %v723, %v720
        %v748 = vpack.c.b16 %v724, %v721
        %v749 = vpack.c.b16 %v725, %v722
        %774 = vmatpush.bf16.msra.mxu0 %v747
        %775 = vmatpush.bf16.msra.mxu0 %v744
        %776 = vmatpush.bf16.msra.mxu0 %v741
        %777 = vmatpush.bf16.msra.mxu0 %v738
        %778 = vmatpush.bf16.msra.mxu0 %v735
        %779 = vmatpush.bf16.msra.mxu0 %v732
        %780 = vmatpush.bf16.msra.mxu0 %v729
        %781 = vmatpush.bf16.msra.mxu0 %v726
        %782 = vmatmul.bf16.gmra.mxu0 %v604
        %v783 = vpop.f32.mrf.mxu0
        %v784 = vadd.f32 %v640, %v783
        %v785 = vpop.f32.mrf.mxu0
        %v786 = vadd.f32 %v640, %v785
        %787 = vmatmul.bf16.gmra.mxu0 %v605
        %v788 = vpop.f32.mrf.mxu0
        %v789 = vadd.f32 %v640, %v788
        %v790 = vpop.f32.mrf.mxu0
        %v791 = vadd.f32 %v640, %v790
        %792 = vdwg.mxu0
        %793 = vmatpush.bf16.msra.mxu0 %v748
        %794 = vmatpush.bf16.msra.mxu0 %v745
        %795 = vmatpush.bf16.msra.mxu0 %v742
        %796 = vmatpush.bf16.msra.mxu0 %v739
        %797 = vmatpush.bf16.msra.mxu0 %v736
        %798 = vmatpush.bf16.msra.mxu0 %v733
        %799 = vmatpush.bf16.msra.mxu0 %v730
        %800 = vmatpush.bf16.msra.mxu0 %v727
        %801 = vmatmul.bf16.gmra.mxu0 %v604
        %v802 = vpop.f32.mrf.mxu0
        %v803 = vadd.f32 %v641, %v802
        %v804 = vpop.f32.mrf.mxu0
        %v805 = vadd.f32 %v641, %v804
        %806 = vmatmul.bf16.gmra.mxu0 %v605
        %v807 = vpop.f32.mrf.mxu0
        %v808 = vadd.f32 %v641, %v807
        %v809 = vpop.f32.mrf.mxu0
        %v810 = vadd.f32 %v641, %v809
        %811 = vdwg.mxu0
        %812 = vmatpush.bf16.msra.mxu0 %v749
        %813 = vmatpush.bf16.msra.mxu0 %v746
        %814 = vmatpush.bf16.msra.mxu0 %v743
        %815 = vmatpush.bf16.msra.mxu0 %v740
        %816 = vmatpush.bf16.msra.mxu0 %v737
        %817 = vmatpush.bf16.msra.mxu0 %v734
        %818 = vmatpush.bf16.msra.mxu0 %v731
        %819 = vmatpush.bf16.msra.mxu0 %v728
        %820 = vmatmul.bf16.gmra.mxu0 %v604
        %v821 = vpop.f32.mrf.mxu0
        %v822 = vadd.f32 %v642, %v821
        %v823 = vpop.f32.mrf.mxu0
        %v824 = vadd.f32 %v642, %v823
        %825 = vmatmul.bf16.gmra.mxu0 %v605
        %v826 = vpop.f32.mrf.mxu0
        %v827 = vadd.f32 %v642, %v826
        %v828 = vpop.f32.mrf.mxu0
        %v829 = vadd.f32 %v642, %v828
        %830 = vdwg.mxu0
        %v831 = vpack.c.bf16 %v803, %v784
        %v832 = vpack.c.bf16 %v822, %v822
        %v833 = vpack.c.bf16 %v805, %v786
        %v834 = vpack.c.bf16 %v824, %v824
        %v835 = vpack.c.bf16 %v808, %v789
        %v836 = vpack.c.bf16 %v827, %v827
        %v837 = vpack.c.bf16 %v810, %v791
        %v838 = vpack.c.bf16 %v829, %v829
        %v843 = vrot.slane %v831, 4
        %v844 = vrot.slane %v833, 4
        %v845 = vrot.slane %v835, 4
        %v846 = vrot.slane %v837, 4
        %v847 = vunpack.c.l.b16 %v831
        %v848 = vunpack.c.l.b16 %v833
        %v849 = vpack.c.b16 %v848, %v847
        %v850 = vunpack.c.l.b16 %v843
        %v851 = vunpack.c.l.b16 %v844
        %v852 = vpack.c.b16 %v851, %v850
        %vm853 = vcmask 261120
        %v855 = vsel %vm853, %v849, 0
        %v858 = vsel %vm853, %v852, 0
        %860 = vmatpush.bf16.xpose.msra.mxu0 0
        %861 = vmatpush.bf16.xpose.msra.mxu0 0
        %862 = vmatpush.bf16.xpose.msra.mxu0 0
        %863 = vmatpush.bf16.xpose.msra.mxu0 0
        %864 = vmatpush.bf16.xpose.msra.mxu0 0
        %865 = vmatpush.bf16.xpose.msra.mxu0 0
        %866 = vmatpush.bf16.xpose.msra.mxu0 0
        %867 = vmatpush.bf16.xpose.msra.mxu0 %v858
        %868 = vmatmul.bf16.gmra.mxu0 %v855
        %v869 = vpop.f32.mrf.mxu0
        %v870 = vadd.f32 0.0, %v869
        %v871 = vpop.f32.mrf.mxu0
        %v872 = vadd.f32 0.0, %v871
        %873 = vdwg.mxu0
        %v874 = vunpack.c.l.b16 %v835
        %v875 = vunpack.c.l.b16 %v837
        %v876 = vpack.c.b16 %v875, %v874
        %v877 = vunpack.c.l.b16 %v845
        %v878 = vunpack.c.l.b16 %v846
        %v879 = vpack.c.b16 %v878, %v877
        %v881 = vsel %vm853, %v876, 0
        %v884 = vsel %vm853, %v879, 0
        %886 = vmatpush.bf16.xpose.msra.mxu0 0
        %887 = vmatpush.bf16.xpose.msra.mxu0 0
        %888 = vmatpush.bf16.xpose.msra.mxu0 0
        %889 = vmatpush.bf16.xpose.msra.mxu0 0
        %890 = vmatpush.bf16.xpose.msra.mxu0 0
        %891 = vmatpush.bf16.xpose.msra.mxu0 0
        %892 = vmatpush.bf16.xpose.msra.mxu0 0
        %893 = vmatpush.bf16.xpose.msra.mxu0 %v884
        %894 = vmatmul.bf16.gmra.mxu0 %v881
        %v895 = vpop.f32.mrf.mxu0
        %v896 = vadd.f32 0.0, %v895
        %v897 = vpop.f32.mrf.mxu0
        %v898 = vadd.f32 0.0, %v897
        %899 = vdwg.mxu0
        %v900 = vmul.f32 %v870, 0.17677669
        %v901 = vmul.f32 %v872, 0.17677669
        %v902 = vmul.f32 %v896, 0.17677669
        %v903 = vmul.f32 %v898, 0.17677669
        %v904 = vadd.f32 %v900, %v481
        %v905 = vadd.f32 %v901, %v481
        %v906 = vadd.f32 %v902, %v481
        %v907 = vadd.f32 %v903, %v481
        %vm908 = vcmask 130048
        %v909 = vsel %vm908, %v904, -inf
        %910 = vmax.xlane.f32.xlu0 %v909
        %v911 = vpop.xlane.xlu0 %910
        %v912 = vsel %vm908, %v905, -inf
        %913 = vmax.xlane.f32.xlu0 %v912
        %v914 = vpop.xlane.xlu0 %913
        %v915 = vsel %vm908, %v906, -inf
        %916 = vmax.xlane.f32.xlu0 %v915
        %v917 = vpop.xlane.xlu0 %916
        %v918 = vsel %vm908, %v907, -inf
        %919 = vmax.xlane.f32.xlu0 %v918
        %v920 = vpop.xlane.xlu0 %919
        %v921 = vsub.f32 %v904, %v911
        %v922 = vsub.f32 %v905, %v914
        %v923 = vsub.f32 %v906, %v917
        %v924 = vsub.f32 %v907, %v920
        %v925 = vmul.f32 %v921, 1.442695
        %v926 = vpow.pop %v925
        %v927 = vmul.f32 %v922, 1.442695
        %v928 = vpow.pop %v927
        %v929 = vmul.f32 %v923, 1.442695
        %v930 = vpow.pop %v929
        %v931 = vmul.f32 %v924, 1.442695
        %v932 = vpow.pop %v931
        %v933 = vsel %vm908, %v926, 0.0
        %934 = vadd.xlane.f32.xlu0 %v933
        %v935 = vpop.xlane.xlu0 %934
        %v936 = vsel %vm908, %v928, 0.0
        %937 = vadd.xlane.f32.xlu0 %v936
        %v938 = vpop.xlane.xlu0 %937
        %v939 = vsel %vm908, %v930, 0.0
        %940 = vadd.xlane.f32.xlu0 %v939
        %v941 = vpop.xlane.xlu0 %940
        %v942 = vsel %vm908, %v932, 0.0
        %943 = vadd.xlane.f32.xlu0 %v942
        %v944 = vpop.xlane.xlu0 %943
        %v945 = vrcp.pop %v935
        %v946 = vrcp.pop %v938
        %v947 = vrcp.pop %v941
        %v948 = vrcp.pop %v944
        %v949 = vmul.f32 %v926, %v945
        %v950 = vmul.f32 %v928, %v946
        %v951 = vmul.f32 %v930, %v947
        %v952 = vmul.f32 %v932, %v948
        %v953 = vpack.c.bf16 %v949, %v949
        %v954 = vpack.c.bf16 %v950, %v950
        %v955 = vpack.c.bf16 %v951, %v951
        %v956 = vpack.c.bf16 %v952, %v952
        %v959 = vunpack.c.l.b16 %v953
        %v960 = vunpack.c.l.b16 %v954
        %v961 = vpack.c.b16 %v960, %v959
        %v964 = vunpack.c.l.b16 %v832
        %v965 = vunpack.c.l.b16 %v834
        %v966 = vpack.c.b16 %v965, %v964
        %v969 = vsel %vm908, %v961, 0
        %971 = vmatpush.bf16.msra.mxu0 0
        %972 = vmatpush.bf16.msra.mxu0 0
        %973 = vmatpush.bf16.msra.mxu0 0
        %974 = vmatpush.bf16.msra.mxu0 0
        %975 = vmatpush.bf16.msra.mxu0 0
        %976 = vmatpush.bf16.msra.mxu0 0
        %977 = vmatpush.bf16.msra.mxu0 0
        %978 = vmatpush.bf16.msra.mxu0 %v966
        %979 = vmatmul.bf16.gmra.mxu0 %v969
        %v980 = vpop.f32.mrf.mxu0
        %v981 = vadd.f32 0.0, %v980
        %v982 = vpop.f32.mrf.mxu0
        %v983 = vadd.f32 0.0, %v982
        %984 = vdwg.mxu0
        %v987 = vunpack.c.l.b16 %v955
        %v988 = vunpack.c.l.b16 %v956
        %v989 = vpack.c.b16 %v988, %v987
        %v992 = vunpack.c.l.b16 %v836
        %v993 = vunpack.c.l.b16 %v838
        %v994 = vpack.c.b16 %v993, %v992
        %v997 = vsel %vm908, %v989, 0
        %999 = vmatpush.bf16.msra.mxu0 0
        %1000 = vmatpush.bf16.msra.mxu0 0
        %1001 = vmatpush.bf16.msra.mxu0 0
        %1002 = vmatpush.bf16.msra.mxu0 0
        %1003 = vmatpush.bf16.msra.mxu0 0
        %1004 = vmatpush.bf16.msra.mxu0 0
        %1005 = vmatpush.bf16.msra.mxu0 0
        %1006 = vmatpush.bf16.msra.mxu0 %v994
        %1007 = vmatmul.bf16.gmra.mxu0 %v997
        %v1008 = vpop.f32.mrf.mxu0
        %v1009 = vadd.f32 0.0, %v1008
        %v1010 = vpop.f32.mrf.mxu0
        %v1011 = vadd.f32 0.0, %v1010
        %1012 = vdwg.mxu0
        %v1013 = vpack.c.bf16 %v983, %v981
        %v1014 = vpack.c.bf16 %v1011, %v1009
        %v1015 = vld [vmem:[#allocation4] sm:$0xf]
        %v1016 = vld [vmem:[#allocation4 + $0x4] sm:$0xf]
        %v1017 = vld [vmem:[#allocation4 + $0x8] sm:$0xf]
        %v1018 = vld [vmem:[#allocation4 + $0xc] sm:$0xf]
        %1019 = vrot.lane.b32.xlu0 %v831, 96
        %v1020 = vpop.permute.xlu0 %1019
        %1021 = vrot.lane.b32.xlu0 %v833, 96
        %v1022 = vpop.permute.xlu0 %1021
        %1023 = vrot.lane.b32.xlu0 %v835, 96
        %v1024 = vpop.permute.xlu0 %1023
        %1025 = vrot.lane.b32.xlu0 %v837, 96
        %v1026 = vpop.permute.xlu0 %1025
        %v1027 = vrot.slane %v1020, 4
        %v1028 = vrot.slane %v1022, 4
        %v1029 = vrot.slane %v1024, 4
        %v1030 = vrot.slane %v1026, 4
        %1031 = vrot.lane.b32.xlu0 %v849, 96
        %v1032 = vpop.permute.xlu0 %1031
        %v1033 = vunpack.c.l.b16 %v1027
        %v1034 = vunpack.c.l.b16 %v1028
        %v1035 = vpack.c.b16 %v1034, %v1033
        %v1037 = vsel %vm853, %v1032, 0
        %v1040 = vsel %vm853, %v1035, 0
        %1042 = vmatpush.bf16.xpose.msra.mxu0 0
        %1043 = vmatpush.bf16.xpose.msra.mxu0 0
        %1044 = vmatpush.bf16.xpose.msra.mxu0 0
        %1045 = vmatpush.bf16.xpose.msra.mxu0 0
        %1046 = vmatpush.bf16.xpose.msra.mxu0 0
        %1047 = vmatpush.bf16.xpose.msra.mxu0 0
        %1048 = vmatpush.bf16.xpose.msra.mxu0 0
        %1049 = vmatpush.bf16.xpose.msra.mxu0 %v1040
        %1050 = vmatmul.bf16.gmra.mxu0 %v1037
        %v1051 = vpop.f32.mrf.mxu0
        %v1052 = vadd.f32 0.0, %v1051
        %v1053 = vpop.f32.mrf.mxu0
        %v1054 = vadd.f32 0.0, %v1053
        %1055 = vdwg.mxu0
        %1056 = vrot.lane.b32.xlu0 %v876, 96
        %v1057 = vpop.permute.xlu0 %1056
        %v1058 = vunpack.c.l.b16 %v1029
        %v1059 = vunpack.c.l.b16 %v1030
        %v1060 = vpack.c.b16 %v1059, %v1058
        %v1062 = vsel %vm853, %v1057, 0
        %v1065 = vsel %vm853, %v1060, 0
        %1067 = vmatpush.bf16.xpose.msra.mxu0 0
        %1068 = vmatpush.bf16.xpose.msra.mxu0 0
        %1069 = vmatpush.bf16.xpose.msra.mxu0 0
        %1070 = vmatpush.bf16.xpose.msra.mxu0 0
        %1071 = vmatpush.bf16.xpose.msra.mxu0 0
        %1072 = vmatpush.bf16.xpose.msra.mxu0 0
        %1073 = vmatpush.bf16.xpose.msra.mxu0 0
        %1074 = vmatpush.bf16.xpose.msra.mxu0 %v1065
        %1075 = vmatmul.bf16.gmra.mxu0 %v1062
        %v1076 = vpop.f32.mrf.mxu0
        %v1077 = vadd.f32 0.0, %v1076
        %v1078 = vpop.f32.mrf.mxu0
        %v1079 = vadd.f32 0.0, %v1078
        %1080 = vdwg.mxu0
        %v1081 = vmul.f32 %v1052, 0.17677669
        %v1082 = vmul.f32 %v1054, 0.17677669
        %v1083 = vmul.f32 %v1077, 0.17677669
        %v1084 = vmul.f32 %v1079, 0.17677669
        %v1085 = vadd.f32 %v1081, %v481
        %v1086 = vadd.f32 %v1082, %v481
        %v1087 = vadd.f32 %v1083, %v481
        %v1088 = vadd.f32 %v1084, %v481
        %v1089 = vsel %vm908, %v1085, -inf
        %1090 = vmax.xlane.f32.xlu0 %v1089
        %v1091 = vpop.xlane.xlu0 %1090
        %v1092 = vsel %vm908, %v1086, -inf
        %1093 = vmax.xlane.f32.xlu0 %v1092
        %v1094 = vpop.xlane.xlu0 %1093
        %v1095 = vsel %vm908, %v1087, -inf
        %1096 = vmax.xlane.f32.xlu0 %v1095
        %v1097 = vpop.xlane.xlu0 %1096
        %v1098 = vsel %vm908, %v1088, -inf
        %1099 = vmax.xlane.f32.xlu0 %v1098
        %v1100 = vpop.xlane.xlu0 %1099
        %v1101 = vsub.f32 %v1085, %v1091
        %v1102 = vsub.f32 %v1086, %v1094
        %v1103 = vsub.f32 %v1087, %v1097
        %v1104 = vsub.f32 %v1088, %v1100
        %v1105 = vmul.f32 %v1101, 1.442695
        %v1106 = vpow.pop %v1105
        %v1107 = vmul.f32 %v1102, 1.442695
        %v1108 = vpow.pop %v1107
        %v1109 = vmul.f32 %v1103, 1.442695
        %v1110 = vpow.pop %v1109
        %v1111 = vmul.f32 %v1104, 1.442695
        %v1112 = vpow.pop %v1111
        %v1113 = vsel %vm908, %v1106, 0.0
        %1114 = vadd.xlane.f32.xlu0 %v1113
        %v1115 = vpop.xlane.xlu0 %1114
        %v1116 = vsel %vm908, %v1108, 0.0
        %1117 = vadd.xlane.f32.xlu0 %v1116
        %v1118 = vpop.xlane.xlu0 %1117
        %v1119 = vsel %vm908, %v1110, 0.0
        %1120 = vadd.xlane.f32.xlu0 %v1119
        %v1121 = vpop.xlane.xlu0 %1120
        %v1122 = vsel %vm908, %v1112, 0.0
        %1123 = vadd.xlane.f32.xlu0 %v1122
        %v1124 = vpop.xlane.xlu0 %1123
        %v1125 = vrcp.pop %v1115
        %v1126 = vrcp.pop %v1118
        %v1127 = vrcp.pop %v1121
        %v1128 = vrcp.pop %v1124
        %v1129 = vmul.f32 %v1106, %v1125
        %v1130 = vmul.f32 %v1108, %v1126
        %v1131 = vmul.f32 %v1110, %v1127
        %v1132 = vmul.f32 %v1112, %v1128
        %v1133 = vpack.c.bf16 %v1129, %v1129
        %v1134 = vpack.c.bf16 %v1130, %v1130
        %v1135 = vpack.c.bf16 %v1131, %v1131
        %v1136 = vpack.c.bf16 %v1132, %v1132
        %v1139 = vunpack.c.l.b16 %v1133
        %v1140 = vunpack.c.l.b16 %v1134
        %v1141 = vpack.c.b16 %v1140, %v1139
        %1142 = vrot.lane.b32.xlu0 %v966, 96
        %v1143 = vpop.permute.xlu0 %1142
        %v1146 = vsel %vm908, %v1141, 0
        %1148 = vmatpush.bf16.msra.mxu0 0
        %1149 = vmatpush.bf16.msra.mxu0 0
        %1150 = vmatpush.bf16.msra.mxu0 0
        %1151 = vmatpush.bf16.msra.mxu0 0
        %1152 = vmatpush.bf16.msra.mxu0 0
        %1153 = vmatpush.bf16.msra.mxu0 0
        %1154 = vmatpush.bf16.msra.mxu0 0
        %1155 = vmatpush.bf16.msra.mxu0 %v1143
        %1156 = vmatmul.bf16.gmra.mxu0 %v1146
        %v1157 = vpop.f32.mrf.mxu0
        %v1158 = vadd.f32 0.0, %v1157
        %v1159 = vpop.f32.mrf.mxu0
        %v1160 = vadd.f32 0.0, %v1159
        %1161 = vdwg.mxu0
        %v1164 = vunpack.c.l.b16 %v1135
        %v1165 = vunpack.c.l.b16 %v1136
        %v1166 = vpack.c.b16 %v1165, %v1164
        %1167 = vrot.lane.b32.xlu0 %v994, 96
        %v1168 = vpop.permute.xlu0 %1167
        %v1171 = vsel %vm908, %v1166, 0
        %1173 = vmatpush.bf16.msra.mxu0 0
        %1174 = vmatpush.bf16.msra.mxu0 0
        %1175 = vmatpush.bf16.msra.mxu0 0
        %1176 = vmatpush.bf16.msra.mxu0 0
        %1177 = vmatpush.bf16.msra.mxu0 0
        %1178 = vmatpush.bf16.msra.mxu0 0
        %1179 = vmatpush.bf16.msra.mxu0 0
        %1180 = vmatpush.bf16.msra.mxu0 %v1168
        %1181 = vmatmul.bf16.gmra.mxu0 %v1171
        %v1182 = vpop.f32.mrf.mxu0
        %v1183 = vadd.f32 0.0, %v1182
        %v1184 = vpop.f32.mrf.mxu0
        %v1185 = vadd.f32 0.0, %v1184
        %1186 = vdwg.mxu0
        %v1187 = vpack.c.bf16 %v1160, %v1158
        %v1188 = vpack.c.bf16 %v1185, %v1183
        %v1189 = vld [vmem:[#allocation4 + $0x10] sm:$0xf]
        %v1190 = vld [vmem:[#allocation4 + $0x14] sm:$0xf]
        %v1191 = vld [vmem:[#allocation4 + $0x18] sm:$0xf]
        %v1192 = vld [vmem:[#allocation4 + $0x1c] sm:$0xf]
        %v1197 = vunpack.c.l.b16 %v1189
        %v1198 = vunpack.c.l.b16 %v1190
        %v1199 = vunpack.c.l.b16 %v1191
        %v1200 = vunpack.c.l.b16 %v1192
        %v1201 = vpack.c.b16 %v1198, %v1197
        %v1202 = vpack.c.b16 %v1200, %v1199
        %v1206 = vsel %vm853, %v1187, 0
        %v1209 = vsel %vm853, %v1188, 0
        %1211 = vmatpush.bf16.msra.mxu0 0
        %1212 = vmatpush.bf16.msra.mxu0 0
        %1213 = vmatpush.bf16.msra.mxu0 0
        %1214 = vmatpush.bf16.msra.mxu0 0
        %1215 = vmatpush.bf16.msra.mxu0 0
        %1216 = vmatpush.bf16.msra.mxu0 0
        %1217 = vmatpush.bf16.msra.mxu0 %v1202
        %1218 = vmatpush.bf16.msra.mxu0 %v1201
        %1219 = vmatmul.bf16.gmra.mxu0 %v1206
        %v1220 = vpop.f32.mrf.mxu0
        %v1221 = vadd.f32 0.0, %v1220
        %v1222 = vpop.f32.mrf.mxu0
        %v1223 = vadd.f32 0.0, %v1222
        %1224 = vmatmul.bf16.gmra.mxu0 %v1209
        %v1225 = vpop.f32.mrf.mxu0
        %v1226 = vadd.f32 0.0, %v1225
        %v1227 = vpop.f32.mrf.mxu0
        %v1228 = vadd.f32 0.0, %v1227
        %1229 = vdwg.mxu0
        %v1234 = vunpack.c.l.b16 %v1015
        %v1235 = vunpack.c.l.b16 %v1016
        %v1236 = vunpack.c.l.b16 %v1017
        %v1237 = vunpack.c.l.b16 %v1018
        %v1238 = vpack.c.b16 %v1235, %v1234
        %v1239 = vpack.c.b16 %v1237, %v1236
        %v1243 = vsel %vm853, %v1013, 0
        %v1246 = vsel %vm853, %v1014, 0
        %1248 = vmatpush.bf16.msra.mxu0 0
        %1249 = vmatpush.bf16.msra.mxu0 0
        %1250 = vmatpush.bf16.msra.mxu0 0
        %1251 = vmatpush.bf16.msra.mxu0 0
        %1252 = vmatpush.bf16.msra.mxu0 0
        %1253 = vmatpush.bf16.msra.mxu0 0
        %1254 = vmatpush.bf16.msra.mxu0 %v1239
        %1255 = vmatpush.bf16.msra.mxu0 %v1238
        %1256 = vmatmul.bf16.gmra.mxu0 %v1243
        %v1257 = vpop.f32.mrf.mxu0
        %v1258 = vadd.f32 %v1221, %v1257
        %v1259 = vpop.f32.mrf.mxu0
        %v1260 = vadd.f32 %v1223, %v1259
        %1261 = vmatmul.bf16.gmra.mxu0 %v1246
        %v1262 = vpop.f32.mrf.mxu0
        %v1263 = vadd.f32 %v1226, %v1262
        %v1264 = vpop.f32.mrf.mxu0
        %v1265 = vadd.f32 %v1228, %v1264
        %1266 = vdwg.mxu0
        %1267 = vrot.lane.b32.xlu0 %v831, 64
        %v1268 = vpop.permute.xlu0 %1267
        %1269 = vrot.lane.b32.xlu0 %v833, 64
        %v1270 = vpop.permute.xlu0 %1269
        %1271 = vrot.lane.b32.xlu0 %v835, 64
        %v1272 = vpop.permute.xlu0 %1271
        %1273 = vrot.lane.b32.xlu0 %v837, 64
        %v1274 = vpop.permute.xlu0 %1273
        %v1275 = vrot.slane %v1268, 4
        %v1276 = vrot.slane %v1270, 4
        %v1277 = vrot.slane %v1272, 4
        %v1278 = vrot.slane %v1274, 4
        %1279 = vrot.lane.b32.xlu0 %v849, 64
        %v1280 = vpop.permute.xlu0 %1279
        %v1281 = vunpack.c.l.b16 %v1275
        %v1282 = vunpack.c.l.b16 %v1276
        %v1283 = vpack.c.b16 %v1282, %v1281
        %v1285 = vsel %vm853, %v1280, 0
        %v1288 = vsel %vm853, %v1283, 0
        %1290 = vmatpush.bf16.xpose.msra.mxu0 0
        %1291 = vmatpush.bf16.xpose.msra.mxu0 0
        %1292 = vmatpush.bf16.xpose.msra.mxu0 0
        %1293 = vmatpush.bf16.xpose.msra.mxu0 0
        %1294 = vmatpush.bf16.xpose.msra.mxu0 0
        %1295 = vmatpush.bf16.xpose.msra.mxu0 0
        %1296 = vmatpush.bf16.xpose.msra.mxu0 0
        %1297 = vmatpush.bf16.xpose.msra.mxu0 %v1288
        %1298 = vmatmul.bf16.gmra.mxu0 %v1285
        %v1299 = vpop.f32.mrf.mxu0
        %v1300 = vadd.f32 0.0, %v1299
        %v1301 = vpop.f32.mrf.mxu0
        %v1302 = vadd.f32 0.0, %v1301
        %1303 = vdwg.mxu0
        %1304 = vrot.lane.b32.xlu0 %v876, 64
        %v1305 = vpop.permute.xlu0 %1304
        %v1306 = vunpack.c.l.b16 %v1277
        %v1307 = vunpack.c.l.b16 %v1278
        %v1308 = vpack.c.b16 %v1307, %v1306
        %v1310 = vsel %vm853, %v1305, 0
        %v1313 = vsel %vm853, %v1308, 0
        %1315 = vmatpush.bf16.xpose.msra.mxu0 0
        %1316 = vmatpush.bf16.xpose.msra.mxu0 0
        %1317 = vmatpush.bf16.xpose.msra.mxu0 0
        %1318 = vmatpush.bf16.xpose.msra.mxu0 0
        %1319 = vmatpush.bf16.xpose.msra.mxu0 0
        %1320 = vmatpush.bf16.xpose.msra.mxu0 0
        %1321 = vmatpush.bf16.xpose.msra.mxu0 0
        %1322 = vmatpush.bf16.xpose.msra.mxu0 %v1313
        %1323 = vmatmul.bf16.gmra.mxu0 %v1310
        %v1324 = vpop.f32.mrf.mxu0
        %v1325 = vadd.f32 0.0, %v1324
        %v1326 = vpop.f32.mrf.mxu0
        %v1327 = vadd.f32 0.0, %v1326
        %1328 = vdwg.mxu0
        %v1329 = vmul.f32 %v1300, 0.17677669
        %v1330 = vmul.f32 %v1302, 0.17677669
        %v1331 = vmul.f32 %v1325, 0.17677669
        %v1332 = vmul.f32 %v1327, 0.17677669
        %v1333 = vadd.f32 %v1329, %v481
        %v1334 = vadd.f32 %v1330, %v481
        %v1335 = vadd.f32 %v1331, %v481
        %v1336 = vadd.f32 %v1332, %v481
        %v1337 = vsel %vm908, %v1333, -inf
        %1338 = vmax.xlane.f32.xlu0 %v1337
        %v1339 = vpop.xlane.xlu0 %1338
        %v1340 = vsel %vm908, %v1334, -inf
        %1341 = vmax.xlane.f32.xlu0 %v1340
        %v1342 = vpop.xlane.xlu0 %1341
        %v1343 = vsel %vm908, %v1335, -inf
        %1344 = vmax.xlane.f32.xlu0 %v1343
        %v1345 = vpop.xlane.xlu0 %1344
        %v1346 = vsel %vm908, %v1336, -inf
        %1347 = vmax.xlane.f32.xlu0 %v1346
        %v1348 = vpop.xlane.xlu0 %1347
        %v1349 = vsub.f32 %v1333, %v1339
        %v1350 = vsub.f32 %v1334, %v1342
        %v1351 = vsub.f32 %v1335, %v1345
        %v1352 = vsub.f32 %v1336, %v1348
        %v1353 = vmul.f32 %v1349, 1.442695
        %v1354 = vpow.pop %v1353
        %v1355 = vmul.f32 %v1350, 1.442695
        %v1356 = vpow.pop %v1355
        %v1357 = vmul.f32 %v1351, 1.442695
        %v1358 = vpow.pop %v1357
        %v1359 = vmul.f32 %v1352, 1.442695
        %v1360 = vpow.pop %v1359
        %v1361 = vsel %vm908, %v1354, 0.0
        %1362 = vadd.xlane.f32.xlu0 %v1361
        %v1363 = vpop.xlane.xlu0 %1362
        %v1364 = vsel %vm908, %v1356, 0.0
        %1365 = vadd.xlane.f32.xlu0 %v1364
        %v1366 = vpop.xlane.xlu0 %1365
        %v1367 = vsel %vm908, %v1358, 0.0
        %1368 = vadd.xlane.f32.xlu0 %v1367
        %v1369 = vpop.xlane.xlu0 %1368
        %v1370 = vsel %vm908, %v1360, 0.0
        %1371 = vadd.xlane.f32.xlu0 %v1370
        %v1372 = vpop.xlane.xlu0 %1371
        %v1373 = vrcp.pop %v1363
        %v1374 = vrcp.pop %v1366
        %v1375 = vrcp.pop %v1369
        %v1376 = vrcp.pop %v1372
        %v1377 = vmul.f32 %v1354, %v1373
        %v1378 = vmul.f32 %v1356, %v1374
        %v1379 = vmul.f32 %v1358, %v1375
        %v1380 = vmul.f32 %v1360, %v1376
        %v1381 = vpack.c.bf16 %v1377, %v1377
        %v1382 = vpack.c.bf16 %v1378, %v1378
        %v1383 = vpack.c.bf16 %v1379, %v1379
        %v1384 = vpack.c.bf16 %v1380, %v1380
        %v1387 = vunpack.c.l.b16 %v1381
        %v1388 = vunpack.c.l.b16 %v1382
        %v1389 = vpack.c.b16 %v1388, %v1387
        %1390 = vrot.lane.b32.xlu0 %v966, 64
        %v1391 = vpop.permute.xlu0 %1390
        %v1394 = vsel %vm908, %v1389, 0
        %1396 = vmatpush.bf16.msra.mxu0 0
        %1397 = vmatpush.bf16.msra.mxu0 0
        %1398 = vmatpush.bf16.msra.mxu0 0
        %1399 = vmatpush.bf16.msra.mxu0 0
        %1400 = vmatpush.bf16.msra.mxu0 0
        %1401 = vmatpush.bf16.msra.mxu0 0
        %1402 = vmatpush.bf16.msra.mxu0 0
        %1403 = vmatpush.bf16.msra.mxu0 %v1391
        %1404 = vmatmul.bf16.gmra.mxu0 %v1394
        %v1405 = vpop.f32.mrf.mxu0
        %v1406 = vadd.f32 0.0, %v1405
        %v1407 = vpop.f32.mrf.mxu0
        %v1408 = vadd.f32 0.0, %v1407
        %1409 = vdwg.mxu0
        %v1412 = vunpack.c.l.b16 %v1383
        %v1413 = vunpack.c.l.b16 %v1384
        %v1414 = vpack.c.b16 %v1413, %v1412
        %1415 = vrot.lane.b32.xlu0 %v994, 64
        %v1416 = vpop.permute.xlu0 %1415
        %v1419 = vsel %vm908, %v1414, 0
        %1421 = vmatpush.bf16.msra.mxu0 0
        %1422 = vmatpush.bf16.msra.mxu0 0
        %1423 = vmatpush.bf16.msra.mxu0 0
        %1424 = vmatpush.bf16.msra.mxu0 0
        %1425 = vmatpush.bf16.msra.mxu0 0
        %1426 = vmatpush.bf16.msra.mxu0 0
        %1427 = vmatpush.bf16.msra.mxu0 0
        %1428 = vmatpush.bf16.msra.mxu0 %v1416
        %1429 = vmatmul.bf16.gmra.mxu0 %v1419
        %v1430 = vpop.f32.mrf.mxu0
        %v1431 = vadd.f32 0.0, %v1430
        %v1432 = vpop.f32.mrf.mxu0
        %v1433 = vadd.f32 0.0, %v1432
        %1434 = vdwg.mxu0
        %v1435 = vpack.c.bf16 %v1408, %v1406
        %v1436 = vpack.c.bf16 %v1433, %v1431
        %v1437 = vld [vmem:[#allocation4 + $0x20] sm:$0xf]
        %v1438 = vld [vmem:[#allocation4 + $0x24] sm:$0xf]
        %v1439 = vld [vmem:[#allocation4 + $0x28] sm:$0xf]
        %v1440 = vld [vmem:[#allocation4 + $0x2c] sm:$0xf]
        %v1445 = vunpack.c.l.b16 %v1437
        %v1446 = vunpack.c.l.b16 %v1438
        %v1447 = vunpack.c.l.b16 %v1439
        %v1448 = vunpack.c.l.b16 %v1440
        %v1449 = vpack.c.b16 %v1446, %v1445
        %v1450 = vpack.c.b16 %v1448, %v1447
        %v1454 = vsel %vm853, %v1435, 0
        %v1457 = vsel %vm853, %v1436, 0
        %1459 = vmatpush.bf16.msra.mxu0 0
        %1460 = vmatpush.bf16.msra.mxu0 0
        %1461 = vmatpush.bf16.msra.mxu0 0
        %1462 = vmatpush.bf16.msra.mxu0 0
        %1463 = vmatpush.bf16.msra.mxu0 0
        %1464 = vmatpush.bf16.msra.mxu0 0
        %1465 = vmatpush.bf16.msra.mxu0 %v1450
        %1466 = vmatpush.bf16.msra.mxu0 %v1449
        %1467 = vmatmul.bf16.gmra.mxu0 %v1454
        %v1468 = vpop.f32.mrf.mxu0
        %v1469 = vadd.f32 0.0, %v1468
        %v1470 = vpop.f32.mrf.mxu0
        %v1471 = vadd.f32 0.0, %v1470
        %1472 = vmatmul.bf16.gmra.mxu0 %v1457
        %v1473 = vpop.f32.mrf.mxu0
        %v1474 = vadd.f32 0.0, %v1473
        %v1475 = vpop.f32.mrf.mxu0
        %v1476 = vadd.f32 0.0, %v1475
        %1477 = vdwg.mxu0
        %v1478 = vadd.f32 %v1258, %v1469
        %v1479 = vadd.f32 %v1260, %v1471
        %v1480 = vadd.f32 %v1263, %v1474
        %v1481 = vadd.f32 %v1265, %v1476
        %1482 = vrot.lane.b32.xlu0 %v831, 32
        %v1483 = vpop.permute.xlu0 %1482
        %1484 = vrot.lane.b32.xlu0 %v833, 32
        %v1485 = vpop.permute.xlu0 %1484
        %1486 = vrot.lane.b32.xlu0 %v835, 32
        %v1487 = vpop.permute.xlu0 %1486
        %1488 = vrot.lane.b32.xlu0 %v837, 32
        %v1489 = vpop.permute.xlu0 %1488
        %v1490 = vrot.slane %v1483, 4
        %v1491 = vrot.slane %v1485, 4
        %v1492 = vrot.slane %v1487, 4
        %v1493 = vrot.slane %v1489, 4
        %1494 = vrot.lane.b32.xlu0 %v849, 32
        %v1495 = vpop.permute.xlu0 %1494
        %v1496 = vunpack.c.l.b16 %v1490
        %v1497 = vunpack.c.l.b16 %v1491
        %v1498 = vpack.c.b16 %v1497, %v1496
        %v1500 = vsel %vm853, %v1495, 0
        %v1503 = vsel %vm853, %v1498, 0
        %1505 = vmatpush.bf16.xpose.msra.mxu0 0
        %1506 = vmatpush.bf16.xpose.msra.mxu0 0
        %1507 = vmatpush.bf16.xpose.msra.mxu0 0
        %1508 = vmatpush.bf16.xpose.msra.mxu0 0
        %1509 = vmatpush.bf16.xpose.msra.mxu0 0
        %1510 = vmatpush.bf16.xpose.msra.mxu0 0
        %1511 = vmatpush.bf16.xpose.msra.mxu0 0
        %1512 = vmatpush.bf16.xpose.msra.mxu0 %v1503
        %1513 = vmatmul.bf16.gmra.mxu0 %v1500
        %v1514 = vpop.f32.mrf.mxu0
        %v1515 = vadd.f32 0.0, %v1514
        %v1516 = vpop.f32.mrf.mxu0
        %v1517 = vadd.f32 0.0, %v1516
        %1518 = vdwg.mxu0
        %1519 = vrot.lane.b32.xlu0 %v876, 32
        %v1520 = vpop.permute.xlu0 %1519
        %v1521 = vunpack.c.l.b16 %v1492
        %v1522 = vunpack.c.l.b16 %v1493
        %v1523 = vpack.c.b16 %v1522, %v1521
        %v1525 = vsel %vm853, %v1520, 0
        %v1528 = vsel %vm853, %v1523, 0
        %1530 = vmatpush.bf16.xpose.msra.mxu0 0
        %1531 = vmatpush.bf16.xpose.msra.mxu0 0
        %1532 = vmatpush.bf16.xpose.msra.mxu0 0
        %1533 = vmatpush.bf16.xpose.msra.mxu0 0
        %1534 = vmatpush.bf16.xpose.msra.mxu0 0
        %1535 = vmatpush.bf16.xpose.msra.mxu0 0
        %1536 = vmatpush.bf16.xpose.msra.mxu0 0
        %1537 = vmatpush.bf16.xpose.msra.mxu0 %v1528
        %1538 = vmatmul.bf16.gmra.mxu0 %v1525
        %v1539 = vpop.f32.mrf.mxu0
        %v1540 = vadd.f32 0.0, %v1539
        %v1541 = vpop.f32.mrf.mxu0
        %v1542 = vadd.f32 0.0, %v1541
        %1543 = vdwg.mxu0
        %v1544 = vmul.f32 %v1515, 0.17677669
        %v1545 = vmul.f32 %v1517, 0.17677669
        %v1546 = vmul.f32 %v1540, 0.17677669
        %v1547 = vmul.f32 %v1542, 0.17677669
        %v1548 = vadd.f32 %v1544, %v481
        %v1549 = vadd.f32 %v1545, %v481
        %v1550 = vadd.f32 %v1546, %v481
        %v1551 = vadd.f32 %v1547, %v481
        %v1552 = vsel %vm908, %v1548, -inf
        %1553 = vmax.xlane.f32.xlu0 %v1552
        %v1554 = vpop.xlane.xlu0 %1553
        %v1555 = vsel %vm908, %v1549, -inf
        %1556 = vmax.xlane.f32.xlu0 %v1555
        %v1557 = vpop.xlane.xlu0 %1556
        %v1558 = vsel %vm908, %v1550, -inf
        %1559 = vmax.xlane.f32.xlu0 %v1558
        %v1560 = vpop.xlane.xlu0 %1559
        %v1561 = vsel %vm908, %v1551, -inf
        %1562 = vmax.xlane.f32.xlu0 %v1561
        %v1563 = vpop.xlane.xlu0 %1562
        %v1564 = vsub.f32 %v1548, %v1554
        %v1565 = vsub.f32 %v1549, %v1557
        %v1566 = vsub.f32 %v1550, %v1560
        %v1567 = vsub.f32 %v1551, %v1563
        %v1568 = vmul.f32 %v1564, 1.442695
        %v1569 = vpow.pop %v1568
        %v1570 = vmul.f32 %v1565, 1.442695
        %v1571 = vpow.pop %v1570
        %v1572 = vmul.f32 %v1566, 1.442695
        %v1573 = vpow.pop %v1572
        %v1574 = vmul.f32 %v1567, 1.442695
        %v1575 = vpow.pop %v1574
        %v1576 = vsel %vm908, %v1569, 0.0
        %1577 = vadd.xlane.f32.xlu0 %v1576
        %v1578 = vpop.xlane.xlu0 %1577
        %v1579 = vsel %vm908, %v1571, 0.0
        %1580 = vadd.xlane.f32.xlu0 %v1579
        %v1581 = vpop.xlane.xlu0 %1580
        %v1582 = vsel %vm908, %v1573, 0.0
        %1583 = vadd.xlane.f32.xlu0 %v1582
        %v1584 = vpop.xlane.xlu0 %1583
        %v1585 = vsel %vm908, %v1575, 0.0
        %1586 = vadd.xlane.f32.xlu0 %v1585
        %v1587 = vpop.xlane.xlu0 %1586
        %v1588 = vrcp.pop %v1578
        %v1589 = vrcp.pop %v1581
        %v1590 = vrcp.pop %v1584
        %v1591 = vrcp.pop %v1587
        %v1592 = vmul.f32 %v1569, %v1588
        %v1593 = vmul.f32 %v1571, %v1589
        %v1594 = vmul.f32 %v1573, %v1590
        %v1595 = vmul.f32 %v1575, %v1591
        %v1596 = vpack.c.bf16 %v1592, %v1592
        %v1597 = vpack.c.bf16 %v1593, %v1593
        %v1598 = vpack.c.bf16 %v1594, %v1594
        %v1599 = vpack.c.bf16 %v1595, %v1595
        %v1602 = vunpack.c.l.b16 %v1596
        %v1603 = vunpack.c.l.b16 %v1597
        %v1604 = vpack.c.b16 %v1603, %v1602
        %1605 = vrot.lane.b32.xlu0 %v966, 32
        %v1606 = vpop.permute.xlu0 %1605
        %v1609 = vsel %vm908, %v1604, 0
        %1611 = vmatpush.bf16.msra.mxu0 0
        %1612 = vmatpush.bf16.msra.mxu0 0
        %1613 = vmatpush.bf16.msra.mxu0 0
        %1614 = vmatpush.bf16.msra.mxu0 0
        %1615 = vmatpush.bf16.msra.mxu0 0
        %1616 = vmatpush.bf16.msra.mxu0 0
        %1617 = vmatpush.bf16.msra.mxu0 0
        %1618 = vmatpush.bf16.msra.mxu0 %v1606
        %1619 = vmatmul.bf16.gmra.mxu0 %v1609
        %v1620 = vpop.f32.mrf.mxu0
        %v1621 = vadd.f32 0.0, %v1620
        %v1622 = vpop.f32.mrf.mxu0
        %v1623 = vadd.f32 0.0, %v1622
        %1624 = vdwg.mxu0
        %v1627 = vunpack.c.l.b16 %v1598
        %v1628 = vunpack.c.l.b16 %v1599
        %v1629 = vpack.c.b16 %v1628, %v1627
        %1630 = vrot.lane.b32.xlu0 %v994, 32
        %v1631 = vpop.permute.xlu0 %1630
        %v1634 = vsel %vm908, %v1629, 0
        %1636 = vmatpush.bf16.msra.mxu0 0
        %1637 = vmatpush.bf16.msra.mxu0 0
        %1638 = vmatpush.bf16.msra.mxu0 0
        %1639 = vmatpush.bf16.msra.mxu0 0
        %1640 = vmatpush.bf16.msra.mxu0 0
        %1641 = vmatpush.bf16.msra.mxu0 0
        %1642 = vmatpush.bf16.msra.mxu0 0
        %1643 = vmatpush.bf16.msra.mxu0 %v1631
        %1644 = vmatmul.bf16.gmra.mxu0 %v1634
        %v1645 = vpop.f32.mrf.mxu0
        %v1646 = vadd.f32 0.0, %v1645
        %v1647 = vpop.f32.mrf.mxu0
        %v1648 = vadd.f32 0.0, %v1647
        %1649 = vdwg.mxu0
        %v1650 = vpack.c.bf16 %v1623, %v1621
        %v1651 = vpack.c.bf16 %v1648, %v1646
        %v1652 = vld [vmem:[#allocation4 + $0x30] sm:$0xf]
        %v1653 = vld [vmem:[#allocation4 + $0x34] sm:$0xf]
        %v1654 = vld [vmem:[#allocation4 + $0x38] sm:$0xf]
        %v1655 = vld [vmem:[#allocation4 + $0x3c] sm:$0xf]
        %v1660 = vunpack.c.l.b16 %v1652
        %v1661 = vunpack.c.l.b16 %v1653
        %v1662 = vunpack.c.l.b16 %v1654
        %v1663 = vunpack.c.l.b16 %v1655
        %v1664 = vpack.c.b16 %v1661, %v1660
        %v1665 = vpack.c.b16 %v1663, %v1662
        %v1669 = vsel %vm853, %v1650, 0
        %v1672 = vsel %vm853, %v1651, 0
        %1674 = vmatpush.bf16.msra.mxu0 0
        %1675 = vmatpush.bf16.msra.mxu0 0
        %1676 = vmatpush.bf16.msra.mxu0 0
        %1677 = vmatpush.bf16.msra.mxu0 0
        %1678 = vmatpush.bf16.msra.mxu0 0
        %1679 = vmatpush.bf16.msra.mxu0 0
        %1680 = vmatpush.bf16.msra.mxu0 %v1665
        %1681 = vmatpush.bf16.msra.mxu0 %v1664
        %1682 = vmatmul.bf16.gmra.mxu0 %v1669
        %v1683 = vpop.f32.mrf.mxu0
        %v1684 = vadd.f32 0.0, %v1683
        %v1685 = vpop.f32.mrf.mxu0
        %v1686 = vadd.f32 0.0, %v1685
        %1687 = vmatmul.bf16.gmra.mxu0 %v1672
        %v1688 = vpop.f32.mrf.mxu0
        %v1689 = vadd.f32 0.0, %v1688
        %v1690 = vpop.f32.mrf.mxu0
        %v1691 = vadd.f32 0.0, %v1690
        %1692 = vdwg.mxu0
        %v1693 = vadd.f32 %v1478, %v1684
        %v1694 = vadd.f32 %v1479, %v1686
        %v1695 = vadd.f32 %v1480, %v1689
        %v1696 = vadd.f32 %v1481, %v1691
        %v1697 = vld [vmem:[%s6] sm:$0x1]
        %v1699 = vperm.slane %v1697, 0
        %v1701 = vadd.f32 %v1693, %v1699
        %v1702 = vadd.f32 %v1694, %v1699
        %v1703 = vadd.f32 %v1695, %v1699
        %v1704 = vadd.f32 %v1696, %v1699
        %v1705 = vmul.f32 %v1701, %v489
        %v1706 = vmul.f32 %v1702, %v490
        %v1707 = vmul.f32 %v1703, %v489
        %v1708 = vmul.f32 %v1704, %v490
        %v1709 = vadd.f32 %v474, %v1705
        %v1710 = vadd.f32 %v475, %v1706
        %v1711 = vadd.f32 %v476, %v1707
        %v1712 = vadd.f32 %v477, %v1708
        %1713 = vadd.xlane.f32.xlu0 %v1709
        %v1714 = vpop.xlane.xlu0 %1713
        %1715 = vadd.xlane.f32.xlu0 %v1710
        %v1716 = vpop.xlane.xlu0 %1715
        %1717 = vadd.xlane.f32.xlu0 %v1711
        %v1718 = vpop.xlane.xlu0 %1717
        %1719 = vadd.xlane.f32.xlu0 %v1712
        %v1720 = vpop.xlane.xlu0 %1719
        %v1721 = vmul.f32 %v1714, %v505
        %v1722 = vmul.f32 %v1716, %v505
        %v1723 = vmul.f32 %v1718, %v505
        %v1724 = vmul.f32 %v1720, %v505
        %v1725 = vsub.f32 %v1709, %v1721
        %v1726 = vsub.f32 %v1710, %v1722
        %v1727 = vsub.f32 %v1711, %v1723
        %v1728 = vsub.f32 %v1712, %v1724
        %v1729 = vmul.f32 %v1725, %v1725
        %v1730 = vmul.f32 %v1726, %v1726
        %v1731 = vmul.f32 %v1727, %v1727
        %v1732 = vmul.f32 %v1728, %v1728
        %1733 = vadd.xlane.f32.xlu0 %v1729
        %v1734 = vpop.xlane.xlu0 %1733
        %1735 = vadd.xlane.f32.xlu0 %v1730
        %v1736 = vpop.xlane.xlu0 %1735
        %1737 = vadd.xlane.f32.xlu0 %v1731
        %v1738 = vpop.xlane.xlu0 %1737
        %1739 = vadd.xlane.f32.xlu0 %v1732
        %v1740 = vpop.xlane.xlu0 %1739
        %v1741 = vmul.f32 %v1734, %v505
        %v1742 = vmul.f32 %v1736, %v505
        %v1743 = vmul.f32 %v1738, %v505
        %v1744 = vmul.f32 %v1740, %v505
        %v1745 = vadd.f32 %v1741, 1e-05
        %v1746 = vadd.f32 %v1742, 1e-05
        %v1747 = vadd.f32 %v1743, 1e-05
        %v1748 = vadd.f32 %v1744, 1e-05
        %v1749 = vrsqrt.pop %v1745
        %v1750 = vmul.f32 %v1749, %v1745
        %v1751 = vmul.f32 %v1750, %v1749
        %v1752 = vmul.f32 0.5, %v1751
        %v1753 = vsub.f32 1.5, %v1752
        %v1754 = vmul.f32 %v1749, %v1753
        %vm1755 = vweird.f32 %v1745
        %vm1756 = vweird.f32 %v1749
        %vm1757 = vmor %vm1755, %vm1756
        %v1758 = vsel %vm1757, %v1749, %v1754
        %v1759 = vrsqrt.pop %v1746
        %v1760 = vmul.f32 %v1759, %v1746
        %v1761 = vmul.f32 %v1760, %v1759
        %v1762 = vmul.f32 0.5, %v1761
        %v1763 = vsub.f32 1.5, %v1762
        %v1764 = vmul.f32 %v1759, %v1763
        %vm1765 = vweird.f32 %v1746
        %vm1766 = vweird.f32 %v1759
        %vm1767 = vmor %vm1765, %vm1766
        %v1768 = vsel %vm1767, %v1759, %v1764
        %v1769 = vrsqrt.pop %v1747
        %v1770 = vmul.f32 %v1769, %v1747
        %v1771 = vmul.f32 %v1770, %v1769
        %v1772 = vmul.f32 0.5, %v1771
        %v1773 = vsub.f32 1.5, %v1772
        %v1774 = vmul.f32 %v1769, %v1773
        %vm1775 = vweird.f32 %v1747
        %vm1776 = vweird.f32 %v1769
        %vm1777 = vmor %vm1775, %vm1776
        %v1778 = vsel %vm1777, %v1769, %v1774
        %v1779 = vrsqrt.pop %v1748
        %v1780 = vmul.f32 %v1779, %v1748
        %v1781 = vmul.f32 %v1780, %v1779
        %v1782 = vmul.f32 0.5, %v1781
        %v1783 = vsub.f32 1.5, %v1782
        %v1784 = vmul.f32 %v1779, %v1783
        %vm1785 = vweird.f32 %v1748
        %vm1786 = vweird.f32 %v1779
        %vm1787 = vmor %vm1785, %vm1786
        %v1788 = vsel %vm1787, %v1779, %v1784
        %v1789 = vmul.f32 %v1725, %v1758
        %v1790 = vmul.f32 %v1726, %v1768
        %v1791 = vmul.f32 %v1727, %v1778
        %v1792 = vmul.f32 %v1728, %v1788
        %v1793 = vld [vmem:[%s464] sm:$0x1]
        %v1794 = vld [vmem:[%s464 + $0x2] sm:$0x1]
        %v1795 = vld [vmem:[%s464 + $0x1] sm:$0x1]
        %v1796 = vld [vmem:[%s464 + $0x3] sm:$0x1]
        %v1797 = vadd.f32 %v1795, 1.0
        %v1798 = vadd.f32 %v1796, 1.0
        %v1801 = vperm.slane %v1797, 0
        %v1802 = vperm.slane %v1798, 0
        %v1805 = vmul.f32 %v1789, %v1801
        %v1806 = vmul.f32 %v1790, %v1801
        %v1807 = vmul.f32 %v1791, %v1802
        %v1808 = vmul.f32 %v1792, %v1802
        %v1811 = vperm.slane %v1793, 0
        %v1812 = vperm.slane %v1794, 0
        %v1815 = vadd.f32 %v1805, %v1811
        %v1816 = vadd.f32 %v1806, %v1811
        %v1817 = vadd.f32 %v1807, %v1812
        %v1818 = vadd.f32 %v1808, %v1812
        %v1819 = vpack.c.bf16 %v1816, %v1815
        %v1820 = vpack.c.bf16 %v1818, %v1817
        %v1821 = vld [vmem:[%s7] sm:$0xff]
        %v1822 = vld [vmem:[%s7 + $0x8] sm:$0xff]
        %v1823 = vld [vmem:[%s7 + $0x10] sm:$0xff]
        %v1824 = vld [vmem:[%s7 + $0x18] sm:$0xff]
        %v1825 = vld [vmem:[%s7 + $0x20] sm:$0xff]
        %v1826 = vld [vmem:[%s7 + $0x28] sm:$0xff]
        %v1827 = vld [vmem:[%s7 + $0x30] sm:$0xff]
        %v1828 = vld [vmem:[%s7 + $0x38] sm:$0xff]
        %v1829 = vld [vmem:[%s7 + $0x40] sm:$0xff]
        %v1830 = vld [vmem:[%s7 + $0x48] sm:$0xff]
        %v1831 = vld [vmem:[%s7 + $0x50] sm:$0xff]
        %v1832 = vld [vmem:[%s7 + $0x58] sm:$0xff]
        %v1833 = vld [vmem:[%s7 + $0x60] sm:$0xff]
        %v1834 = vld [vmem:[%s7 + $0x68] sm:$0xff]
        %v1835 = vld [vmem:[%s7 + $0x70] sm:$0xff]
        %v1836 = vld [vmem:[%s7 + $0x78] sm:$0xff]
        %v1837 = vld [vmem:[%s7 + $0x80] sm:$0xff]
        %v1838 = vld [vmem:[%s7 + $0x88] sm:$0xff]
        %v1839 = vld [vmem:[%s7 + $0x90] sm:$0xff]
        %v1840 = vld [vmem:[%s7 + $0x98] sm:$0xff]
        %v1841 = vld [vmem:[%s7 + $0xa0] sm:$0xff]
        %v1842 = vld [vmem:[%s7 + $0xa8] sm:$0xff]
        %v1843 = vld [vmem:[%s7 + $0xb0] sm:$0xff]
        %v1844 = vld [vmem:[%s7 + $0xb8] sm:$0xff]
        %v1845 = vld [vmem:[%s7 + $0xc0] sm:$0xff]
        %v1846 = vld [vmem:[%s7 + $0xc8] sm:$0xff]
        %v1847 = vld [vmem:[%s7 + $0xd0] sm:$0xff]
        %v1848 = vld [vmem:[%s7 + $0xd8] sm:$0xff]
        %v1849 = vld [vmem:[%s7 + $0xe0] sm:$0xff]
        %v1850 = vld [vmem:[%s7 + $0xe8] sm:$0xff]
        %v1851 = vld [vmem:[%s7 + $0xf0] sm:$0xff]
        %v1852 = vld [vmem:[%s7 + $0xf8] sm:$0xff]
        %v1853 = vld [vmem:[%s8] sm:$0xf]
        %v1855 = vperm.slane %v1853, 0
        %v1856 = vperm.slane %v1853, 1
        %v1857 = vperm.slane %v1853, 2
        %v1858 = vperm.slane %v1853, 3
        %v1895 = vunpack.c.l.b16 %v1821
        %v1896 = vunpack.c.h.b16 %v1821
        %v1897 = vunpack.c.l.b16 %v1822
        %v1898 = vunpack.c.h.b16 %v1822
        %v1899 = vunpack.c.l.b16 %v1823
        %v1900 = vunpack.c.h.b16 %v1823
        %v1901 = vunpack.c.l.b16 %v1824
        %v1902 = vunpack.c.h.b16 %v1824
        %v1903 = vunpack.c.l.b16 %v1825
        %v1904 = vunpack.c.h.b16 %v1825
        %v1905 = vunpack.c.l.b16 %v1826
        %v1906 = vunpack.c.h.b16 %v1826
        %v1907 = vunpack.c.l.b16 %v1827
        %v1908 = vunpack.c.h.b16 %v1827
        %v1909 = vunpack.c.l.b16 %v1828
        %v1910 = vunpack.c.h.b16 %v1828
        %v1911 = vunpack.c.l.b16 %v1829
        %v1912 = vunpack.c.h.b16 %v1829
        %v1913 = vunpack.c.l.b16 %v1830
        %v1914 = vunpack.c.h.b16 %v1830
        %v1915 = vunpack.c.l.b16 %v1831
        %v1916 = vunpack.c.h.b16 %v1831
        %v1917 = vunpack.c.l.b16 %v1832
        %v1918 = vunpack.c.h.b16 %v1832
        %v1919 = vunpack.c.l.b16 %v1833
        %v1920 = vunpack.c.h.b16 %v1833
        %v1921 = vunpack.c.l.b16 %v1834
        %v1922 = vunpack.c.h.b16 %v1834
        %v1923 = vunpack.c.l.b16 %v1835
        %v1924 = vunpack.c.h.b16 %v1835
        %v1925 = vunpack.c.l.b16 %v1836
        %v1926 = vunpack.c.h.b16 %v1836
        %v1927 = vunpack.c.l.b16 %v1837
        %v1928 = vunpack.c.h.b16 %v1837
        %v1929 = vunpack.c.l.b16 %v1838
        %v1930 = vunpack.c.h.b16 %v1838
        %v1931 = vunpack.c.l.b16 %v1839
        %v1932 = vunpack.c.h.b16 %v1839
        %v1933 = vunpack.c.l.b16 %v1840
        %v1934 = vunpack.c.h.b16 %v1840
        %v1935 = vunpack.c.l.b16 %v1841
        %v1936 = vunpack.c.h.b16 %v1841
        %v1937 = vunpack.c.l.b16 %v1842
        %v1938 = vunpack.c.h.b16 %v1842
        %v1939 = vunpack.c.l.b16 %v1843
        %v1940 = vunpack.c.h.b16 %v1843
        %v1941 = vunpack.c.l.b16 %v1844
        %v1942 = vunpack.c.h.b16 %v1844
        %v1943 = vunpack.c.l.b16 %v1845
        %v1944 = vunpack.c.h.b16 %v1845
        %v1945 = vunpack.c.l.b16 %v1846
        %v1946 = vunpack.c.h.b16 %v1846
        %v1947 = vunpack.c.l.b16 %v1847
        %v1948 = vunpack.c.h.b16 %v1847
        %v1949 = vunpack.c.l.b16 %v1848
        %v1950 = vunpack.c.h.b16 %v1848
        %v1951 = vunpack.c.l.b16 %v1849
        %v1952 = vunpack.c.h.b16 %v1849
        %v1953 = vunpack.c.l.b16 %v1850
        %v1954 = vunpack.c.h.b16 %v1850
        %v1955 = vunpack.c.l.b16 %v1851
        %v1956 = vunpack.c.h.b16 %v1851
        %v1957 = vunpack.c.l.b16 %v1852
        %v1958 = vunpack.c.h.b16 %v1852
        %v1959 = vpack.c.b16 %v1899, %v1895
        %v1960 = vpack.c.b16 %v1900, %v1896
        %v1961 = vpack.c.b16 %v1901, %v1897
        %v1962 = vpack.c.b16 %v1902, %v1898
        %v1963 = vpack.c.b16 %v1907, %v1903
        %v1964 = vpack.c.b16 %v1908, %v1904
        %v1965 = vpack.c.b16 %v1909, %v1905
        %v1966 = vpack.c.b16 %v1910, %v1906
        %v1967 = vpack.c.b16 %v1915, %v1911
        %v1968 = vpack.c.b16 %v1916, %v1912
        %v1969 = vpack.c.b16 %v1917, %v1913
        %v1970 = vpack.c.b16 %v1918, %v1914
        %v1971 = vpack.c.b16 %v1923, %v1919
        %v1972 = vpack.c.b16 %v1924, %v1920
        %v1973 = vpack.c.b16 %v1925, %v1921
        %v1974 = vpack.c.b16 %v1926, %v1922
        %v1975 = vpack.c.b16 %v1931, %v1927
        %v1976 = vpack.c.b16 %v1932, %v1928
        %v1977 = vpack.c.b16 %v1933, %v1929
        %v1978 = vpack.c.b16 %v1934, %v1930
        %v1979 = vpack.c.b16 %v1939, %v1935
        %v1980 = vpack.c.b16 %v1940, %v1936
        %v1981 = vpack.c.b16 %v1941, %v1937
        %v1982 = vpack.c.b16 %v1942, %v1938
        %v1983 = vpack.c.b16 %v1947, %v1943
        %v1984 = vpack.c.b16 %v1948, %v1944
        %v1985 = vpack.c.b16 %v1949, %v1945
        %v1986 = vpack.c.b16 %v1950, %v1946
        %v1987 = vpack.c.b16 %v1955, %v1951
        %v1988 = vpack.c.b16 %v1956, %v1952
        %v1989 = vpack.c.b16 %v1957, %v1953
        %v1990 = vpack.c.b16 %v1958, %v1954
        %2023 = vmatpush.bf16.msra.mxu0 %v1987
        %2024 = vmatpush.bf16.msra.mxu0 %v1983
        %2025 = vmatpush.bf16.msra.mxu0 %v1979
        %2026 = vmatpush.bf16.msra.mxu0 %v1975
        %2027 = vmatpush.bf16.msra.mxu0 %v1971
        %2028 = vmatpush.bf16.msra.mxu0 %v1967
        %2029 = vmatpush.bf16.msra.mxu0 %v1963
        %2030 = vmatpush.bf16.msra.mxu0 %v1959
        %2031 = vmatmul.bf16.gmra.mxu0 %v1819
        %v2032 = vpop.f32.mrf.mxu0
        %v2033 = vadd.f32 %v1855, %v2032
        %v2034 = vpop.f32.mrf.mxu0
        %v2035 = vadd.f32 %v1855, %v2034
        %2036 = vmatmul.bf16.gmra.mxu0 %v1820
        %v2037 = vpop.f32.mrf.mxu0
        %v2038 = vadd.f32 %v1855, %v2037
        %v2039 = vpop.f32.mrf.mxu0
        %v2040 = vadd.f32 %v1855, %v2039
        %2041 = vdwg.mxu0
        %2042 = vmatpush.bf16.msra.mxu0 %v1988
        %2043 = vmatpush.bf16.msra.mxu0 %v1984
        %2044 = vmatpush.bf16.msra.mxu0 %v1980
        %2045 = vmatpush.bf16.msra.mxu0 %v1976
        %2046 = vmatpush.bf16.msra.mxu0 %v1972
        %2047 = vmatpush.bf16.msra.mxu0 %v1968
        %2048 = vmatpush.bf16.msra.mxu0 %v1964
        %2049 = vmatpush.bf16.msra.mxu0 %v1960
        %2050 = vmatmul.bf16.gmra.mxu0 %v1819
        %v2051 = vpop.f32.mrf.mxu0
        %v2052 = vadd.f32 %v1856, %v2051
        %v2053 = vpop.f32.mrf.mxu0
        %v2054 = vadd.f32 %v1856, %v2053
        %2055 = vmatmul.bf16.gmra.mxu0 %v1820
        %v2056 = vpop.f32.mrf.mxu0
        %v2057 = vadd.f32 %v1856, %v2056
        %v2058 = vpop.f32.mrf.mxu0
        %v2059 = vadd.f32 %v1856, %v2058
        %2060 = vdwg.mxu0
        %2061 = vmatpush.bf16.msra.mxu0 %v1989
        %2062 = vmatpush.bf16.msra.mxu0 %v1985
        %2063 = vmatpush.bf16.msra.mxu0 %v1981
        %2064 = vmatpush.bf16.msra.mxu0 %v1977
        %2065 = vmatpush.bf16.msra.mxu0 %v1973
        %2066 = vmatpush.bf16.msra.mxu0 %v1969
        %2067 = vmatpush.bf16.msra.mxu0 %v1965
        %2068 = vmatpush.bf16.msra.mxu0 %v1961
        %2069 = vmatmul.bf16.gmra.mxu0 %v1819
        %v2070 = vpop.f32.mrf.mxu0
        %v2071 = vadd.f32 %v1857, %v2070
        %v2072 = vpop.f32.mrf.mxu0
        %v2073 = vadd.f32 %v1857, %v2072
        %2074 = vmatmul.bf16.gmra.mxu0 %v1820
        %v2075 = vpop.f32.mrf.mxu0
        %v2076 = vadd.f32 %v1857, %v2075
        %v2077 = vpop.f32.mrf.mxu0
        %v2078 = vadd.f32 %v1857, %v2077
        %2079 = vdwg.mxu0
        %2080 = vmatpush.bf16.msra.mxu0 %v1990
        %2081 = vmatpush.bf16.msra.mxu0 %v1986
        %2082 = vmatpush.bf16.msra.mxu0 %v1982
        %2083 = vmatpush.bf16.msra.mxu0 %v1978
        %2084 = vmatpush.bf16.msra.mxu0 %v1974
        %2085 = vmatpush.bf16.msra.mxu0 %v1970
        %2086 = vmatpush.bf16.msra.mxu0 %v1966
        %2087 = vmatpush.bf16.msra.mxu0 %v1962
        %2088 = vmatmul.bf16.gmra.mxu0 %v1819
        %v2089 = vpop.f32.mrf.mxu0
        %v2090 = vadd.f32 %v1858, %v2089
        %v2091 = vpop.f32.mrf.mxu0
        %v2092 = vadd.f32 %v1858, %v2091
        %2093 = vmatmul.bf16.gmra.mxu0 %v1820
        %v2094 = vpop.f32.mrf.mxu0
        %v2095 = vadd.f32 %v1858, %v2094
        %v2096 = vpop.f32.mrf.mxu0
        %v2097 = vadd.f32 %v1858, %v2096
        %2098 = vdwg.mxu0
        %v2099 = vmul.f32 %v2033, %v2033
        %v2100 = vmul.f32 %v2052, %v2052
        %v2101 = vmul.f32 %v2071, %v2071
        %v2102 = vmul.f32 %v2090, %v2090
        %v2103 = vmul.f32 %v2035, %v2035
        %v2104 = vmul.f32 %v2054, %v2054
        %v2105 = vmul.f32 %v2073, %v2073
        %v2106 = vmul.f32 %v2092, %v2092
        %v2107 = vmul.f32 %v2038, %v2038
        %v2108 = vmul.f32 %v2057, %v2057
        %v2109 = vmul.f32 %v2076, %v2076
        %v2110 = vmul.f32 %v2095, %v2095
        %v2111 = vmul.f32 %v2040, %v2040
        %v2112 = vmul.f32 %v2059, %v2059
        %v2113 = vmul.f32 %v2078, %v2078
        %v2114 = vmul.f32 %v2097, %v2097
        %v2115 = vmul.f32 %v2033, %v2099
        %v2116 = vmul.f32 %v2052, %v2100
        %v2117 = vmul.f32 %v2071, %v2101
        %v2118 = vmul.f32 %v2090, %v2102
        %v2119 = vmul.f32 %v2035, %v2103
        %v2120 = vmul.f32 %v2054, %v2104
        %v2121 = vmul.f32 %v2073, %v2105
        %v2122 = vmul.f32 %v2092, %v2106
        %v2123 = vmul.f32 %v2038, %v2107
        %v2124 = vmul.f32 %v2057, %v2108
        %v2125 = vmul.f32 %v2076, %v2109
        %v2126 = vmul.f32 %v2095, %v2110
        %v2127 = vmul.f32 %v2040, %v2111
        %v2128 = vmul.f32 %v2059, %v2112
        %v2129 = vmul.f32 %v2078, %v2113
        %v2130 = vmul.f32 %v2097, %v2114
        %v2131 = vmul.f32 %v2115, 0.044715
        %v2132 = vmul.f32 %v2116, 0.044715
        %v2133 = vmul.f32 %v2117, 0.044715
        %v2134 = vmul.f32 %v2118, 0.044715
        %v2135 = vmul.f32 %v2119, 0.044715
        %v2136 = vmul.f32 %v2120, 0.044715
        %v2137 = vmul.f32 %v2121, 0.044715
        %v2138 = vmul.f32 %v2122, 0.044715
        %v2139 = vmul.f32 %v2123, 0.044715
        %v2140 = vmul.f32 %v2124, 0.044715
        %v2141 = vmul.f32 %v2125, 0.044715
        %v2142 = vmul.f32 %v2126, 0.044715
        %v2143 = vmul.f32 %v2127, 0.044715
        %v2144 = vmul.f32 %v2128, 0.044715
        %v2145 = vmul.f32 %v2129, 0.044715
        %v2146 = vmul.f32 %v2130, 0.044715
        %v2147 = vadd.f32 %v2033, %v2131
        %v2148 = vadd.f32 %v2052, %v2132
        %v2149 = vadd.f32 %v2071, %v2133
        %v2150 = vadd.f32 %v2090, %v2134
        %v2151 = vadd.f32 %v2035, %v2135
        %v2152 = vadd.f32 %v2054, %v2136
        %v2153 = vadd.f32 %v2073, %v2137
        %v2154 = vadd.f32 %v2092, %v2138
        %v2155 = vadd.f32 %v2038, %v2139
        %v2156 = vadd.f32 %v2057, %v2140
        %v2157 = vadd.f32 %v2076, %v2141
        %v2158 = vadd.f32 %v2095, %v2142
        %v2159 = vadd.f32 %v2040, %v2143
        %v2160 = vadd.f32 %v2059, %v2144
        %v2161 = vadd.f32 %v2078, %v2145
        %v2162 = vadd.f32 %v2097, %v2146
        %v2163 = vmul.f32 %v2147, 0.7978846
        %v2164 = vmul.f32 %v2148, 0.7978846
        %v2165 = vmul.f32 %v2149, 0.7978846
        %v2166 = vmul.f32 %v2150, 0.7978846
        %v2167 = vmul.f32 %v2151, 0.7978846
        %v2168 = vmul.f32 %v2152, 0.7978846
        %v2169 = vmul.f32 %v2153, 0.7978846
        %v2170 = vmul.f32 %v2154, 0.7978846
        %v2171 = vmul.f32 %v2155, 0.7978846
        %v2172 = vmul.f32 %v2156, 0.7978846
        %v2173 = vmul.f32 %v2157, 0.7978846
        %v2174 = vmul.f32 %v2158, 0.7978846
        %v2175 = vmul.f32 %v2159, 0.7978846
        %v2176 = vmul.f32 %v2160, 0.7978846
        %v2177 = vmul.f32 %v2161, 0.7978846
        %v2178 = vmul.f32 %v2162, 0.7978846
        %v2179 = vtanh.pop %v2163
        %v2180 = vtanh.pop %v2164
        %v2181 = vtanh.pop %v2165
        %v2182 = vtanh.pop %v2166
        %v2183 = vtanh.pop %v2167
        %v2184 = vtanh.pop %v2168
        %v2185 = vtanh.pop %v2169
        %v2186 = vtanh.pop %v2170
        %v2187 = vtanh.pop %v2171
        %v2188 = vtanh.pop %v2172
        %v2189 = vtanh.pop %v2173
        %v2190 = vtanh.pop %v2174
        %v2191 = vtanh.pop %v2175
        %v2192 = vtanh.pop %v2176
        %v2193 = vtanh.pop %v2177
        %v2194 = vtanh.pop %v2178
        %v2195 = vadd.f32 %v2179, 1.0
        %v2196 = vadd.f32 %v2180, 1.0
        %v2197 = vadd.f32 %v2181, 1.0
        %v2198 = vadd.f32 %v2182, 1.0
        %v2199 = vadd.f32 %v2183, 1.0
        %v2200 = vadd.f32 %v2184, 1.0
        %v2201 = vadd.f32 %v2185, 1.0
        %v2202 = vadd.f32 %v2186, 1.0
        %v2203 = vadd.f32 %v2187, 1.0
        %v2204 = vadd.f32 %v2188, 1.0
        %v2205 = vadd.f32 %v2189, 1.0
        %v2206 = vadd.f32 %v2190, 1.0
        %v2207 = vadd.f32 %v2191, 1.0
        %v2208 = vadd.f32 %v2192, 1.0
        %v2209 = vadd.f32 %v2193, 1.0
        %v2210 = vadd.f32 %v2194, 1.0
        %v2211 = vmul.f32 %v2195, 0.5
        %v2212 = vmul.f32 %v2196, 0.5
        %v2213 = vmul.f32 %v2197, 0.5
        %v2214 = vmul.f32 %v2198, 0.5
        %v2215 = vmul.f32 %v2199, 0.5
        %v2216 = vmul.f32 %v2200, 0.5
        %v2217 = vmul.f32 %v2201, 0.5
        %v2218 = vmul.f32 %v2202, 0.5
        %v2219 = vmul.f32 %v2203, 0.5
        %v2220 = vmul.f32 %v2204, 0.5
        %v2221 = vmul.f32 %v2205, 0.5
        %v2222 = vmul.f32 %v2206, 0.5
        %v2223 = vmul.f32 %v2207, 0.5
        %v2224 = vmul.f32 %v2208, 0.5
        %v2225 = vmul.f32 %v2209, 0.5
        %v2226 = vmul.f32 %v2210, 0.5
        %v2227 = vmul.f32 %v2033, %v2211
        %v2228 = vmul.f32 %v2052, %v2212
        %v2229 = vmul.f32 %v2071, %v2213
        %v2230 = vmul.f32 %v2090, %v2214
        %v2231 = vmul.f32 %v2035, %v2215
        %v2232 = vmul.f32 %v2054, %v2216
        %v2233 = vmul.f32 %v2073, %v2217
        %v2234 = vmul.f32 %v2092, %v2218
        %v2235 = vmul.f32 %v2038, %v2219
        %v2236 = vmul.f32 %v2057, %v2220
        %v2237 = vmul.f32 %v2076, %v2221
        %v2238 = vmul.f32 %v2095, %v2222
        %v2239 = vmul.f32 %v2040, %v2223
        %v2240 = vmul.f32 %v2059, %v2224
        %v2241 = vmul.f32 %v2078, %v2225
        %v2242 = vmul.f32 %v2097, %v2226
        %v2243 = vpack.c.bf16 %v2231, %v2227
        %v2244 = vpack.c.bf16 %v2232, %v2228
        %v2245 = vpack.c.bf16 %v2233, %v2229
        %v2246 = vpack.c.bf16 %v2234, %v2230
        %v2247 = vpack.c.bf16 %v2239, %v2235
        %v2248 = vpack.c.bf16 %v2240, %v2236
        %v2249 = vpack.c.bf16 %v2241, %v2237
        %v2250 = vpack.c.bf16 %v2242, %v2238
        %v2251 = vld [vmem:[%s9] sm:$0xf]
        %v2252 = vld [vmem:[%s9 + $0x4] sm:$0xf]
        %v2253 = vld [vmem:[%s9 + $0x8] sm:$0xf]
        %v2254 = vld [vmem:[%s9 + $0xc] sm:$0xf]
        %v2255 = vld [vmem:[%s9 + $0x10] sm:$0xf]
        %v2256 = vld [vmem:[%s9 + $0x14] sm:$0xf]
        %v2257 = vld [vmem:[%s9 + $0x18] sm:$0xf]
        %v2258 = vld [vmem:[%s9 + $0x1c] sm:$0xf]
        %v2259 = vld [vmem:[%s9 + $0x20] sm:$0xf]
        %v2260 = vld [vmem:[%s9 + $0x24] sm:$0xf]
        %v2261 = vld [vmem:[%s9 + $0x28] sm:$0xf]
        %v2262 = vld [vmem:[%s9 + $0x2c] sm:$0xf]
        %v2263 = vld [vmem:[%s9 + $0x30] sm:$0xf]
        %v2264 = vld [vmem:[%s9 + $0x34] sm:$0xf]
        %v2265 = vld [vmem:[%s9 + $0x38] sm:$0xf]
        %v2266 = vld [vmem:[%s9 + $0x3c] sm:$0xf]
        %v2267 = vld [vmem:[%s9 + $0x40] sm:$0xf]
        %v2268 = vld [vmem:[%s9 + $0x44] sm:$0xf]
        %v2269 = vld [vmem:[%s9 + $0x48] sm:$0xf]
        %v2270 = vld [vmem:[%s9 + $0x4c] sm:$0xf]
        %v2271 = vld [vmem:[%s9 + $0x50] sm:$0xf]
        %v2272 = vld [vmem:[%s9 + $0x54] sm:$0xf]
        %v2273 = vld [vmem:[%s9 + $0x58] sm:$0xf]
        %v2274 = vld [vmem:[%s9 + $0x5c] sm:$0xf]
        %v2275 = vld [vmem:[%s9 + $0x60] sm:$0xf]
        %v2276 = vld [vmem:[%s9 + $0x64] sm:$0xf]
        %v2277 = vld [vmem:[%s9 + $0x68] sm:$0xf]
        %v2278 = vld [vmem:[%s9 + $0x6c] sm:$0xf]
        %v2279 = vld [vmem:[%s9 + $0x70] sm:$0xf]
        %v2280 = vld [vmem:[%s9 + $0x74] sm:$0xf]
        %v2281 = vld [vmem:[%s9 + $0x78] sm:$0xf]
        %v2282 = vld [vmem:[%s9 + $0x7c] sm:$0xf]
        %v2283 = vld [vmem:[%s9 + $0x80] sm:$0xf]
        %v2284 = vld [vmem:[%s9 + $0x84] sm:$0xf]
        %v2285 = vld [vmem:[%s9 + $0x88] sm:$0xf]
        %v2286 = vld [vmem:[%s9 + $0x8c] sm:$0xf]
        %v2287 = vld [vmem:[%s9 + $0x90] sm:$0xf]
        %v2288 = vld [vmem:[%s9 + $0x94] sm:$0xf]
        %v2289 = vld [vmem:[%s9 + $0x98] sm:$0xf]
        %v2290 = vld [vmem:[%s9 + $0x9c] sm:$0xf]
        %v2291 = vld [vmem:[%s9 + $0xa0] sm:$0xf]
        %v2292 = vld [vmem:[%s9 + $0xa4] sm:$0xf]
        %v2293 = vld [vmem:[%s9 + $0xa8] sm:$0xf]
        %v2294 = vld [vmem:[%s9 + $0xac] sm:$0xf]
        %v2295 = vld [vmem:[%s9 + $0xb0] sm:$0xf]
        %v2296 = vld [vmem:[%s9 + $0xb4] sm:$0xf]
        %v2297 = vld [vmem:[%s9 + $0xb8] sm:$0xf]
        %v2298 = vld [vmem:[%s9 + $0xbc] sm:$0xf]
        %v2299 = vld [vmem:[%s9 + $0xc0] sm:$0xf]
        %v2300 = vld [vmem:[%s9 + $0xc4] sm:$0xf]
        %v2301 = vld [vmem:[%s9 + $0xc8] sm:$0xf]
        %v2302 = vld [vmem:[%s9 + $0xcc] sm:$0xf]
        %v2303 = vld [vmem:[%s9 + $0xd0] sm:$0xf]
        %v2304 = vld [vmem:[%s9 + $0xd4] sm:$0xf]
        %v2305 = vld [vmem:[%s9 + $0xd8] sm:$0xf]
        %v2306 = vld [vmem:[%s9 + $0xdc] sm:$0xf]
        %v2307 = vld [vmem:[%s9 + $0xe0] sm:$0xf]
        %v2308 = vld [vmem:[%s9 + $0xe4] sm:$0xf]
        %v2309 = vld [vmem:[%s9 + $0xe8] sm:$0xf]
        %v2310 = vld [vmem:[%s9 + $0xec] sm:$0xf]
        %v2311 = vld [vmem:[%s9 + $0xf0] sm:$0xf]
        %v2312 = vld [vmem:[%s9 + $0xf4] sm:$0xf]
        %v2313 = vld [vmem:[%s9 + $0xf8] sm:$0xf]
        %v2314 = vld [vmem:[%s9 + $0xfc] sm:$0xf]
        %v2315 = vld [vmem:[%s10] sm:$0x1]
        %v2317 = vperm.slane %v2315, 0
        %v2383 = vunpack.c.l.b16 %v2251
        %v2384 = vunpack.c.l.b16 %v2252
        %v2385 = vunpack.c.l.b16 %v2253
        %v2386 = vunpack.c.l.b16 %v2254
        %v2387 = vunpack.c.l.b16 %v2255
        %v2388 = vunpack.c.l.b16 %v2256
        %v2389 = vunpack.c.l.b16 %v2257
        %v2390 = vunpack.c.l.b16 %v2258
        %v2391 = vunpack.c.l.b16 %v2259
        %v2392 = vunpack.c.l.b16 %v2260
        %v2393 = vunpack.c.l.b16 %v2261
        %v2394 = vunpack.c.l.b16 %v2262
        %v2395 = vunpack.c.l.b16 %v2263
        %v2396 = vunpack.c.l.b16 %v2264
        %v2397 = vunpack.c.l.b16 %v2265
        %v2398 = vunpack.c.l.b16 %v2266
        %v2399 = vunpack.c.l.b16 %v2267
        %v2400 = vunpack.c.l.b16 %v2268
        %v2401 = vunpack.c.l.b16 %v2269
        %v2402 = vunpack.c.l.b16 %v2270
        %v2403 = vunpack.c.l.b16 %v2271
        %v2404 = vunpack.c.l.b16 %v2272
        %v2405 = vunpack.c.l.b16 %v2273
        %v2406 = vunpack.c.l.b16 %v2274
        %v2407 = vunpack.c.l.b16 %v2275
        %v2408 = vunpack.c.l.b16 %v2276
        %v2409 = vunpack.c.l.b16 %v2277
        %v2410 = vunpack.c.l.b16 %v2278
        %v2411 = vunpack.c.l.b16 %v2279
        %v2412 = vunpack.c.l.b16 %v2280
        %v2413 = vunpack.c.l.b16 %v2281
        %v2414 = vunpack.c.l.b16 %v2282
        %v2415 = vunpack.c.l.b16 %v2283
        %v2416 = vunpack.c.l.b16 %v2284
        %v2417 = vunpack.c.l.b16 %v2285
        %v2418 = vunpack.c.l.b16 %v2286
        %v2419 = vunpack.c.l.b16 %v2287
        %v2420 = vunpack.c.l.b16 %v2288
        %v2421 = vunpack.c.l.b16 %v2289
        %v2422 = vunpack.c.l.b16 %v2290
        %v2423 = vunpack.c.l.b16 %v2291
        %v2424 = vunpack.c.l.b16 %v2292
        %v2425 = vunpack.c.l.b16 %v2293
        %v2426 = vunpack.c.l.b16 %v2294
        %v2427 = vunpack.c.l.b16 %v2295
        %v2428 = vunpack.c.l.b16 %v2296
        %v2429 = vunpack.c.l.b16 %v2297
        %v2430 = vunpack.c.l.b16 %v2298
        %v2431 = vunpack.c.l.b16 %v2299
        %v2432 = vunpack.c.l.b16 %v2300
        %v2433 = vunpack.c.l.b16 %v2301
        %v2434 = vunpack.c.l.b16 %v2302
        %v2435 = vunpack.c.l.b16 %v2303
        %v2436 = vunpack.c.l.b16 %v2304
        %v2437 = vunpack.c.l.b16 %v2305
        %v2438 = vunpack.c.l.b16 %v2306
        %v2439 = vunpack.c.l.b16 %v2307
        %v2440 = vunpack.c.l.b16 %v2308
        %v2441 = vunpack.c.l.b16 %v2309
        %v2442 = vunpack.c.l.b16 %v2310
        %v2443 = vunpack.c.l.b16 %v2311
        %v2444 = vunpack.c.l.b16 %v2312
        %v2445 = vunpack.c.l.b16 %v2313
        %v2446 = vunpack.c.l.b16 %v2314
        %v2447 = vpack.c.b16 %v2384, %v2383
        %v2448 = vpack.c.b16 %v2386, %v2385
        %v2449 = vpack.c.b16 %v2388, %v2387
        %v2450 = vpack.c.b16 %v2390, %v2389
        %v2451 = vpack.c.b16 %v2392, %v2391
        %v2452 = vpack.c.b16 %v2394, %v2393
        %v2453 = vpack.c.b16 %v2396, %v2395
        %v2454 = vpack.c.b16 %v2398, %v2397
        %v2455 = vpack.c.b16 %v2400, %v2399
        %v2456 = vpack.c.b16 %v2402, %v2401
        %v2457 = vpack.c.b16 %v2404, %v2403
        %v2458 = vpack.c.b16 %v2406, %v2405
        %v2459 = vpack.c.b16 %v2408, %v2407
        %v2460 = vpack.c.b16 %v2410, %v2409
        %v2461 = vpack.c.b16 %v2412, %v2411
        %v2462 = vpack.c.b16 %v2414, %v2413
        %v2463 = vpack.c.b16 %v2416, %v2415
        %v2464 = vpack.c.b16 %v2418, %v2417
        %v2465 = vpack.c.b16 %v2420, %v2419
        %v2466 = vpack.c.b16 %v2422, %v2421
        %v2467 = vpack.c.b16 %v2424, %v2423
        %v2468 = vpack.c.b16 %v2426, %v2425
        %v2469 = vpack.c.b16 %v2428, %v2427
        %v2470 = vpack.c.b16 %v2430, %v2429
        %v2471 = vpack.c.b16 %v2432, %v2431
        %v2472 = vpack.c.b16 %v2434, %v2433
        %v2473 = vpack.c.b16 %v2436, %v2435
        %v2474 = vpack.c.b16 %v2438, %v2437
        %v2475 = vpack.c.b16 %v2440, %v2439
        %v2476 = vpack.c.b16 %v2442, %v2441
        %v2477 = vpack.c.b16 %v2444, %v2443
        %v2478 = vpack.c.b16 %v2446, %v2445
        %2511 = vmatpush.bf16.msra.mxu0 %v2454
        %2512 = vmatpush.bf16.msra.mxu0 %v2453
        %2513 = vmatpush.bf16.msra.mxu0 %v2452
        %2514 = vmatpush.bf16.msra.mxu0 %v2451
        %2515 = vmatpush.bf16.msra.mxu0 %v2450
        %2516 = vmatpush.bf16.msra.mxu0 %v2449
        %2517 = vmatpush.bf16.msra.mxu0 %v2448
        %2518 = vmatpush.bf16.msra.mxu0 %v2447
        %2519 = vmatmul.bf16.gmra.mxu0 %v2243
        %v2520 = vpop.f32.mrf.mxu0
        %v2521 = vadd.f32 %v2317, %v2520
        %v2522 = vpop.f32.mrf.mxu0
        %v2523 = vadd.f32 %v2317, %v2522
        %2524 = vmatmul.bf16.gmra.mxu0 %v2247
        %v2525 = vpop.f32.mrf.mxu0
        %v2526 = vadd.f32 %v2317, %v2525
        %v2527 = vpop.f32.mrf.mxu0
        %v2528 = vadd.f32 %v2317, %v2527
        %2529 = vdwg.mxu0
        %2530 = vmatpush.bf16.msra.mxu0 %v2462
        %2531 = vmatpush.bf16.msra.mxu0 %v2461
        %2532 = vmatpush.bf16.msra.mxu0 %v2460
        %2533 = vmatpush.bf16.msra.mxu0 %v2459
        %2534 = vmatpush.bf16.msra.mxu0 %v2458
        %2535 = vmatpush.bf16.msra.mxu0 %v2457
        %2536 = vmatpush.bf16.msra.mxu0 %v2456
        %2537 = vmatpush.bf16.msra.mxu0 %v2455
        %2538 = vmatmul.bf16.gmra.mxu0 %v2244
        %v2539 = vpop.f32.mrf.mxu0
        %v2540 = vadd.f32 %v2521, %v2539
        %v2541 = vpop.f32.mrf.mxu0
        %v2542 = vadd.f32 %v2523, %v2541
        %2543 = vmatmul.bf16.gmra.mxu0 %v2248
        %v2544 = vpop.f32.mrf.mxu0
        %v2545 = vadd.f32 %v2526, %v2544
        %v2546 = vpop.f32.mrf.mxu0
        %v2547 = vadd.f32 %v2528, %v2546
        %2548 = vdwg.mxu0
        %2549 = vmatpush.bf16.msra.mxu0 %v2470
        %2550 = vmatpush.bf16.msra.mxu0 %v2469
        %2551 = vmatpush.bf16.msra.mxu0 %v2468
        %2552 = vmatpush.bf16.msra.mxu0 %v2467
        %2553 = vmatpush.bf16.msra.mxu0 %v2466
        %2554 = vmatpush.bf16.msra.mxu0 %v2465
        %2555 = vmatpush.bf16.msra.mxu0 %v2464
        %2556 = vmatpush.bf16.msra.mxu0 %v2463
        %2557 = vmatmul.bf16.gmra.mxu0 %v2245
        %v2558 = vpop.f32.mrf.mxu0
        %v2559 = vadd.f32 %v2540, %v2558
        %v2560 = vpop.f32.mrf.mxu0
        %v2561 = vadd.f32 %v2542, %v2560
        %2562 = vmatmul.bf16.gmra.mxu0 %v2249
        %v2563 = vpop.f32.mrf.mxu0
        %v2564 = vadd.f32 %v2545, %v2563
        %v2565 = vpop.f32.mrf.mxu0
        %v2566 = vadd.f32 %v2547, %v2565
        %2567 = vdwg.mxu0
        %2568 = vmatpush.bf16.msra.mxu0 %v2478
        %2569 = vmatpush.bf16.msra.mxu0 %v2477
        %2570 = vmatpush.bf16.msra.mxu0 %v2476
        %2571 = vmatpush.bf16.msra.mxu0 %v2475
        %2572 = vmatpush.bf16.msra.mxu0 %v2474
        %2573 = vmatpush.bf16.msra.mxu0 %v2473
        %2574 = vmatpush.bf16.msra.mxu0 %v2472
        %2575 = vmatpush.bf16.msra.mxu0 %v2471
        %2576 = vmatmul.bf16.gmra.mxu0 %v2246
        %v2577 = vpop.f32.mrf.mxu0
        %v2578 = vadd.f32 %v2559, %v2577
        %v2579 = vpop.f32.mrf.mxu0
        %v2580 = vadd.f32 %v2561, %v2579
        %2581 = vmatmul.bf16.gmra.mxu0 %v2250
        %v2582 = vpop.f32.mrf.mxu0
        %v2583 = vadd.f32 %v2564, %v2582
        %v2584 = vpop.f32.mrf.mxu0
        %v2585 = vadd.f32 %v2566, %v2584
        %2586 = vdwg.mxu0
        %v2587 = vmul.f32 %v2578, %v489
        %v2588 = vmul.f32 %v2580, %v490
        %v2589 = vmul.f32 %v2583, %v489
        %v2590 = vmul.f32 %v2585, %v490
        %v2591 = vadd.f32 %v1709, %v2587
        %v2592 = vadd.f32 %v1710, %v2588
        %v2593 = vadd.f32 %v1711, %v2589
        %v2594 = vadd.f32 %v1712, %v2590
        %2595 = vst [vmem:[%s471] sm:$0xff] %v2591
        %2596 = vst [vmem:[%s471 + $0x8] sm:$0xff] %v2592
        %2597 = vst [vmem:[%s471 + $0x10] sm:$0xff] %v2593
        %2598 = vst [vmem:[%s471 + $0x18] sm:$0xff] %v2594
        %s2599 = smul.u32 2, %s24
        %p2600 = scmp.lt.s32.totalorder %s2599, 3
        %s2601 = scalar_select %p2600, %s2599, 3
        %s2602 = smul.addr %s2601, 2
        %s2603 = smul.addr %s2602, 8
        %s2604 = scalar_lea.vmem %s11, %s2603
        // Predicated region
        $region73: #{transformer_sequence_classifier.7} parent=63 // pred_check
          %p2605 = pneg %p288
        $region74: #{transformer_sequence_classifier.7} parent=63 // pred_check_branch
          %2607 = sbr.rel (%p2605) target = $region76
        $region75: #{transformer_sequence_classifier.7} parent=63 // pred_region
          %s2608 = smul.u32 2, %s24
        $region76: #{transformer_sequence_classifier.7} parent=63 // pred_fallthru
          _
      $region64: #{transformer_sequence_classifier.7} parent=5 // pred_fallthru
        _
      %p2609 = scmp.le.s32.totalorder 2, %s19
      // Predicated region
      $region77: #{transformer_sequence_classifier.7} parent=5 // pred_check
        %p2610 = pneg %p2609
      $region78: #{transformer_sequence_classifier.7} parent=5 // pred_check_branch
        %2612 = sbr.rel (%p2610) target = $region80
      $region79: #{transformer_sequence_classifier.7} parent=5 // pred_region
        %s2613 = ssub.s32 %s19, 2
        // Predicated region
        $region81: #{transformer_sequence_classifier.7} parent=79 // pred_check
          %p2614 = pneg %p294
        $region82: #{transformer_sequence_classifier.7} parent=79 // pred_check_branch
          %2616 = sbr.rel (%p2614) target = $region84
        $region83: #{transformer_sequence_classifier.7} parent=79 // pred_region
          %s2617 = smul.u32 2, %s25
          %p2618 = scmp.lt.s32.totalorder %s2617, 3
          %s2619 = scalar_select %p2618, %s2617, 3
          %s2620 = smul.addr %s2619, 2
          %s2621 = smul.addr %s2620, 8
          %s2622 = scalar_lea.vmem %s11, %s2621
        $region84: #{transformer_sequence_classifier.7} parent=79 // pred_fallthru
          _
      $region80: #{transformer_sequence_classifier.7} parent=5 // pred_fallthru
        _
    $region6: #{transformer_sequence_classifier.7} parent=1 // loop_footer
      %s23 = sadd.s32 1, %s19
    $region7: #{transformer_sequence_classifier.7} parent=1 // loop_footer_branch
      %18 = sbr.rel target = $region3
    $region8: #{transformer_sequence_classifier.7} parent=1 // loop_exit
      _
    %2623 = vsyncpa [#allocation3], 1
    %s2624 = scalar_lea.sflag [#allocation3], 1
    %2625 = vsyncpa %s2624, 1
    %2626 = vsyncpa [#allocation5], 1

// kernel: transformer_sequence_classifier.5
$region0: #{transformer_sequence_classifier.5}
  #allocation0 [shape = 'u32[]', space=smem, size = 0x4, offset = 0x4, fixed_abs, tag = 'smem constant byte address 0x4 - core index']
  #allocation1 [shape = 'u32[72,128]{1,0:T(1,128)}', space=vmem, size = 0x9000, scoped, tag = 'internal scratch']
  %s0 = inlined_call_operand.vmem [shape: f32[4,16,128], index: 0, kind: input, shape index: {}]
  %s1 = inlined_call_operand.vmem [shape: f32[4,1,256], index: 1, kind: input, shape index: {}]
  %s2 = inlined_call_operand.vmem [shape: f32[4,1,256], index: 2, kind: input, shape index: {}]
  %s3 = inlined_call_operand.hbm [shape: bf16[128,384], index: 3, kind: input, shape index: {}]
  %s4 = inlined_call_operand.vmem [shape: f32[1,384], index: 4, kind: input, shape index: {}]
  %s5 = inlined_call_operand.vmem [shape: bf16[128,128], index: 5, kind: input, shape index: {}]
  %s6 = inlined_call_operand.vmem [shape: f32[1,128], index: 6, kind: input, shape index: {}]
  %s7 = inlined_call_operand.vmem [shape: bf16[128,512], index: 7, kind: input, shape index: {}]
  %s8 = inlined_call_operand.vmem [shape: f32[1,512], index: 8, kind: input, shape index: {}]
  %s9 = inlined_call_operand.hbm [shape: bf16[512,128], index: 9, kind: input, shape index: {}]
  %s10 = inlined_call_operand.vmem [shape: f32[1,128], index: 10, kind: input, shape index: {}]
  %s11 = inlined_call_operand.vmem [shape: f32[4,16,128], index: 11, kind: output, shape index: {}]
  %s12 = sld [smem:[#allocation0]]
  $region85: #{transformer_sequence_classifier.5} parent=0
    _
  %s14 = ssub.s32 1, %s12
  %s15 = scalar_select 0, %s14, %s12
  $region1: #{transformer_sequence_classifier.5} parent=0
    #allocation2 [shape = 'u8[98304]{0}', space=vmem, size = 0x18000, scoped, tag = 'input window, operand 3, single buffered']
    #allocation3 [shape = 's32[2]{0}', space=sflag, size = 0x8, scoped, tag = 'scoped memory for transformer_sequence_classifier.5']
    #allocation4 [shape = 'u8[131072]{0}', space=vmem, size = 0x20000, scoped, tag = 'input window, operand 9, single buffered']
    #allocation5 [shape = 's32[1]{0}', space=sflag, size = 0x4, scoped, tag = 'scoped memory for transformer_sequence_classifier.5']
    %16 = vsyncpa [#allocation3], 0
    %17 = vsyncpa [#allocation5], 0
    loop: start=0, step=1, limit=4
    $region2: #{transformer_sequence_classifier.5} parent=1 // loop_pre_header
      _
    $region3: #{transformer_sequence_classifier.5} parent=1 // loop_header
      %s19 = sphi 0, %s23
      %p20 = scmp.ge.s32.totalorder %s19, 4
      %s29 = sphi 0, %s31
      %s32 = sphi 0, %s29
      %s33 = sphi 0, %s32
      %s49 = sphi 0, %s33
      %s55 = sphi 0, %s57
      %s58 = sphi 0, %s55
      %s59 = sphi 0, %s58
      %s75 = sphi 0, %s59
      %s81 = sphi 0, %s83
      %s84 = sphi 0, %s81
      %s85 = sphi 0, %s84
      %s101 = sphi 0, %s85
      %s105 = sphi 0, %s105
      %s107 = sphi 0, %s105
      %s108 = sphi 0, %s107
      %s122 = sphi 0, %s108
      %s126 = sphi 0, %s126
      %s128 = sphi 0, %s126
      %s129 = sphi 0, %s128
      %s143 = sphi 0, %s129
      %s147 = sphi 0, %s147
      %s149 = sphi 0, %s147
      %s150 = sphi 0, %s149
      %s164 = sphi 0, %s150
      %s168 = sphi 0, %s168
      %s170 = sphi 0, %s168
      %s171 = sphi 0, %s170
      %s185 = sphi 0, %s171
      %s189 = sphi 0, %s189
      %s191 = sphi 0, %s189
      %s192 = sphi 0, %s191
      %s206 = sphi 0, %s192
      %s210 = sphi 0, %s210
      %s212 = sphi 0, %s210
      %s213 = sphi 0, %s212
      %s227 = sphi 0, %s213
      %s231 = sphi 0, %s231
      %s233 = sphi 0, %s231
      %s234 = sphi 0, %s233
      %s248 = sphi 0, %s234
      %s252 = sphi 0, %s252
      %s254 = sphi 0, %s252
      %s255 = sphi 0, %s254
      %s269 = sphi 0, %s255
      %s275 = sphi 0, %s277
      %s278 = sphi 0, %s275
      %s279 = sphi 0, %s278
      %s295 = sphi 0, %s279
    $region4: #{transformer_sequence_classifier.5} parent=1 // loop_header_branch
      %22 = sbr.rel (%p20) target = $region8
    $region5: #{transformer_sequence_classifier.5} parent=1 // loop_body
      %s24 = ssub.s32 %s19, 1
      %s25 = ssub.s32 %s19, 2
      %s26 = sadd.s32 %s19, 1
      %s27 = ssub.s32 %s19, %s26
      %p28 = scmp.eq.s32.totalorder %s27, 0
      %s30 = sadd.s32 %s29, 1
      %s31 = scalar_select %p28, %s29, %s30
      %p34 = pneg %p28
      %p35 = scmp.eq.s32.totalorder %s19, 1
      %p36 = por %p34, %p35
      %p37 = scmp.ne.s32.totalorder %s29, %s32
      %p38 = scmp.eq.s32.totalorder %s19, 0
      %p39 = por %p37, %p38
      %p40 = scmp.ne.s32.totalorder %s29, %s32
      %p41 = scmp.eq.s32.totalorder %s24, 1
      %p42 = por %p40, %p41
      %p43 = scmp.ne.s32.totalorder %s32, %s33
      %p44 = scmp.eq.s32.totalorder %s24, 0
      %p45 = por %p43, %p44
      %p46 = scmp.ne.s32.totalorder %s32, %s33
      %p47 = scmp.eq.s32.totalorder %s25, 1
      %p48 = por %p46, %p47
      %p50 = scmp.ne.s32.totalorder %s33, %s49
      %p51 = scmp.eq.s32.totalorder %s25, 0
      %p52 = por %p50, %p51
      %s53 = ssub.s32 %s19, %s26
      %p54 = scmp.eq.s32.totalorder %s53, 0
      %s56 = sadd.s32 %s55, 1
      %s57 = scalar_select %p54, %s55, %s56
      %p60 = pneg %p54
      %p61 = scmp.eq.s32.totalorder %s19, 1
      %p62 = por %p60, %p61
      %p63 = scmp.ne.s32.totalorder %s55, %s58
      %p64 = scmp.eq.s32.totalorder %s19, 0
      %p65 = por %p63, %p64
      %p66 = scmp.ne.s32.totalorder %s55, %s58
      %p67 = scmp.eq.s32.totalorder %s24, 1
      %p68 = por %p66, %p67
      %p69 = scmp.ne.s32.totalorder %s58, %s59
      %p70 = scmp.eq.s32.totalorder %s24, 0
      %p71 = por %p69, %p70
      %p72 = scmp.ne.s32.totalorder %s58, %s59
      %p73 = scmp.eq.s32.totalorder %s25, 1
      %p74 = por %p72, %p73
      %p76 = scmp.ne.s32.totalorder %s59, %s75
      %p77 = scmp.eq.s32.totalorder %s25, 0
      %p78 = por %p76, %p77
      %s79 = ssub.s32 %s19, %s26
      %p80 = scmp.eq.s32.totalorder %s79, 0
      %s82 = sadd.s32 %s81, 1
      %s83 = scalar_select %p80, %s81, %s82
      %p86 = pneg %p80
      %p87 = scmp.eq.s32.totalorder %s19, 1
      %p88 = por %p86, %p87
      %p89 = scmp.ne.s32.totalorder %s81, %s84
      %p90 = scmp.eq.s32.totalorder %s19, 0
      %p91 = por %p89, %p90
      %p92 = scmp.ne.s32.totalorder %s81, %s84
      %p93 = scmp.eq.s32.totalorder %s24, 1
      %p94 = por %p92, %p93
      %p95 = scmp.ne.s32.totalorder %s84, %s85
      %p96 = scmp.eq.s32.totalorder %s24, 0
      %p97 = por %p95, %p96
      %p98 = scmp.ne.s32.totalorder %s84, %s85
      %p99 = scmp.eq.s32.totalorder %s25, 1
      %p100 = por %p98, %p99
      %p102 = scmp.ne.s32.totalorder %s85, %s101
      %p103 = scmp.eq.s32.totalorder %s25, 0
      %p104 = por %p102, %p103
      %s106 = sadd.s32 %s105, 1
      %p109 = scmp.eq.s32.totalorder %s19, 1
      %p110 = scmp.ne.s32.totalorder %s105, %s107
      %p111 = scmp.eq.s32.totalorder %s19, 0
      %p112 = por %p110, %p111
      %p113 = scmp.ne.s32.totalorder %s105, %s107
      %p114 = scmp.eq.s32.totalorder %s24, 1
      %p115 = por %p113, %p114
      %p116 = scmp.ne.s32.totalorder %s107, %s108
      %p117 = scmp.eq.s32.totalorder %s24, 0
      %p118 = por %p116, %p117
      %p119 = scmp.ne.s32.totalorder %s107, %s108
      %p120 = scmp.eq.s32.totalorder %s25, 1
      %p121 = por %p119, %p120
      %p123 = scmp.ne.s32.totalorder %s108, %s122
      %p124 = scmp.eq.s32.totalorder %s25, 0
      %p125 = por %p123, %p124
      %s127 = sadd.s32 %s126, 1
      %p130 = scmp.eq.s32.totalorder %s19, 1
      %p131 = scmp.ne.s32.totalorder %s126, %s128
      %p132 = scmp.eq.s32.totalorder %s19, 0
      %p133 = por %p131, %p132
      %p134 = scmp.ne.s32.totalorder %s126, %s128
      %p135 = scmp.eq.s32.totalorder %s24, 1
      %p136 = por %p134, %p135
      %p137 = scmp.ne.s32.totalorder %s128, %s129
      %p138 = scmp.eq.s32.totalorder %s24, 0
      %p139 = por %p137, %p138
      %p140 = scmp.ne.s32.totalorder %s128, %s129
      %p141 = scmp.eq.s32.totalorder %s25, 1
      %p142 = por %p140, %p141
      %p144 = scmp.ne.s32.totalorder %s129, %s143
      %p145 = scmp.eq.s32.totalorder %s25, 0
      %p146 = por %p144, %p145
      %s148 = sadd.s32 %s147, 1
      %p151 = scmp.eq.s32.totalorder %s19, 1
      %p152 = scmp.ne.s32.totalorder %s147, %s149
      %p153 = scmp.eq.s32.totalorder %s19, 0
      %p154 = por %p152, %p153
      %p155 = scmp.ne.s32.totalorder %s147, %s149
      %p156 = scmp.eq.s32.totalorder %s24, 1
      %p157 = por %p155, %p156
      %p158 = scmp.ne.s32.totalorder %s149, %s150
      %p159 = scmp.eq.s32.totalorder %s24, 0
      %p160 = por %p158, %p159
      %p161 = scmp.ne.s32.totalorder %s149, %s150
      %p162 = scmp.eq.s32.totalorder %s25, 1
      %p163 = por %p161, %p162
      %p165 = scmp.ne.s32.totalorder %s150, %s164
      %p166 = scmp.eq.s32.totalorder %s25, 0
      %p167 = por %p165, %p166
      %s169 = sadd.s32 %s168, 1
      %p172 = scmp.eq.s32.totalorder %s19, 1
      %p173 = scmp.ne.s32.totalorder %s168, %s170
      %p174 = scmp.eq.s32.totalorder %s19, 0
      %p175 = por %p173, %p174
      %p176 = scmp.ne.s32.totalorder %s168, %s170
      %p177 = scmp.eq.s32.totalorder %s24, 1
      %p178 = por %p176, %p177
      %p179 = scmp.ne.s32.totalorder %s170, %s171
      %p180 = scmp.eq.s32.totalorder %s24, 0
      %p181 = por %p179, %p180
      %p182 = scmp.ne.s32.totalorder %s170, %s171
      %p183 = scmp.eq.s32.totalorder %s25, 1
      %p184 = por %p182, %p183
      %p186 = scmp.ne.s32.totalorder %s171, %s185
      %p187 = scmp.eq.s32.totalorder %s25, 0
      %p188 = por %p186, %p187
      %s190 = sadd.s32 %s189, 1
      %p193 = scmp.eq.s32.totalorder %s19, 1
      %p194 = scmp.ne.s32.totalorder %s189, %s191
      %p195 = scmp.eq.s32.totalorder %s19, 0
      %p196 = por %p194, %p195
      %p197 = scmp.ne.s32.totalorder %s189, %s191
      %p198 = scmp.eq.s32.totalorder %s24, 1
      %p199 = por %p197, %p198
      %p200 = scmp.ne.s32.totalorder %s191, %s192
      %p201 = scmp.eq.s32.totalorder %s24, 0
      %p202 = por %p200, %p201
      %p203 = scmp.ne.s32.totalorder %s191, %s192
      %p204 = scmp.eq.s32.totalorder %s25, 1
      %p205 = por %p203, %p204
      %p207 = scmp.ne.s32.totalorder %s192, %s206
      %p208 = scmp.eq.s32.totalorder %s25, 0
      %p209 = por %p207, %p208
      %s211 = sadd.s32 %s210, 1
      %p214 = scmp.eq.s32.totalorder %s19, 1
      %p215 = scmp.ne.s32.totalorder %s210, %s212
      %p216 = scmp.eq.s32.totalorder %s19, 0
      %p217 = por %p215, %p216
      %p218 = scmp.ne.s32.totalorder %s210, %s212
      %p219 = scmp.eq.s32.totalorder %s24, 1
      %p220 = por %p218, %p219
      %p221 = scmp.ne.s32.totalorder %s212, %s213
      %p222 = scmp.eq.s32.totalorder %s24, 0
      %p223 = por %p221, %p222
      %p224 = scmp.ne.s32.totalorder %s212, %s213
      %p225 = scmp.eq.s32.totalorder %s25, 1
      %p226 = por %p224, %p225
      %p228 = scmp.ne.s32.totalorder %s213, %s227
      %p229 = scmp.eq.s32.totalorder %s25, 0
      %p230 = por %p228, %p229
      %s232 = sadd.s32 %s231, 1
      %p235 = scmp.eq.s32.totalorder %s19, 1
      %p236 = scmp.ne.s32.totalorder %s231, %s233
      %p237 = scmp.eq.s32.totalorder %s19, 0
      %p238 = por %p236, %p237
      %p239 = scmp.ne.s32.totalorder %s231, %s233
      %p240 = scmp.eq.s32.totalorder %s24, 1
      %p241 = por %p239, %p240
      %p242 = scmp.ne.s32.totalorder %s233, %s234
      %p243 = scmp.eq.s32.totalorder %s24, 0
      %p244 = por %p242, %p243
      %p245 = scmp.ne.s32.totalorder %s233, %s234
      %p246 = scmp.eq.s32.totalorder %s25, 1
      %p247 = por %p245, %p246
      %p249 = scmp.ne.s32.totalorder %s234, %s248
      %p250 = scmp.eq.s32.totalorder %s25, 0
      %p251 = por %p249, %p250
      %s253 = sadd.s32 %s252, 1
      %p256 = scmp.eq.s32.totalorder %s19, 1
      %p257 = scmp.ne.s32.totalorder %s252, %s254
      %p258 = scmp.eq.s32.totalorder %s19, 0
      %p259 = por %p257, %p258
      %p260 = scmp.ne.s32.totalorder %s252, %s254
      %p261 = scmp.eq.s32.totalorder %s24, 1
      %p262 = por %p260, %p261
      %p263 = scmp.ne.s32.totalorder %s254, %s255
      %p264 = scmp.eq.s32.totalorder %s24, 0
      %p265 = por %p263, %p264
      %p266 = scmp.ne.s32.totalorder %s254, %s255
      %p267 = scmp.eq.s32.totalorder %s25, 1
      %p268 = por %p266, %p267
      %p270 = scmp.ne.s32.totalorder %s255, %s269
      %p271 = scmp.eq.s32.totalorder %s25, 0
      %p272 = por %p270, %p271
      %s273 = ssub.s32 %s19, %s26
      %p274 = scmp.eq.s32.totalorder %s273, 0
      %s276 = sadd.s32 %s275, 1
      %s277 = scalar_select %p274, %s275, %s276
      %p280 = pneg %p274
      %p281 = scmp.eq.s32.totalorder %s19, 1
      %p282 = por %p280, %p281
      %p283 = scmp.ne.s32.totalorder %s275, %s278
      %p284 = scmp.eq.s32.totalorder %s19, 0
      %p285 = por %p283, %p284
      %p286 = scmp.ne.s32.totalorder %s275, %s278
      %p287 = scmp.eq.s32.totalorder %s24, 1
      %p288 = por %p286, %p287
      %p289 = scmp.ne.s32.totalorder %s278, %s279
      %p290 = scmp.eq.s32.totalorder %s24, 0
      %p291 = por %p289, %p290
      %p292 = scmp.ne.s32.totalorder %s278, %s279
      %p293 = scmp.eq.s32.totalorder %s25, 1
      %p294 = por %p292, %p293
      %p296 = scmp.ne.s32.totalorder %s279, %s295
      %p297 = scmp.eq.s32.totalorder %s25, 0
      %p298 = por %p296, %p297
      %p299 = scmp.le.s32.totalorder 1, %s19
      %p300 = scmp.lt.s32.totalorder %s19, 3
      %p301 = pnand %p299, %p300
      %p302 = pneg %p301
      // Predicated region
      $region9: #{transformer_sequence_classifier.5} parent=5 // pred_check
        _
      $region10: #{transformer_sequence_classifier.5} parent=5 // pred_check_branch
        %304 = sbr.rel (%p301) target = $region12
      $region11: #{transformer_sequence_classifier.5} parent=5 // pred_region
        %s305 = ssub.s32 %s19, 1
        // Predicated region
        $region13: #{transformer_sequence_classifier.5} parent=11 // pred_check
          %p306 = pneg %p118
        $region14: #{transformer_sequence_classifier.5} parent=11 // pred_check_branch
          %308 = sbr.rel (%p306) target = $region16
        $region15: #{transformer_sequence_classifier.5} parent=11 // pred_region
          %310 = vsyncadd [#allocation3], 0
          %s311 = sshll.u32 %s3, 4
          %s312 = int_to_ptr.hbm [resolvable:$true] %s311
          %s313 = sshll.u32 [#allocation2], 4
          %s314 = int_to_ptr.vmem [resolvable:$true] %s313
          %319 = dma.hbm_to_vmem [thread:$0]  %s312, 3072, %s314, [#allocation3], 192, 192, 12
        $region16: #{transformer_sequence_classifier.5} parent=11 // pred_fallthru
          _
        // Predicated region
        $region17: #{transformer_sequence_classifier.5} parent=11 // pred_check
          %p320 = pneg %p139
        $region18: #{transformer_sequence_classifier.5} parent=11 // pred_check_branch
          %322 = sbr.rel (%p320) target = $region20
        $region19: #{transformer_sequence_classifier.5} parent=11 // pred_region
          _
        $region20: #{transformer_sequence_classifier.5} parent=11 // pred_fallthru
          _
        // Predicated region
        $region21: #{transformer_sequence_classifier.5} parent=11 // pred_check
          %p323 = pneg %p160
        $region22: #{transformer_sequence_classifier.5} parent=11 // pred_check_branch
          %325 = sbr.rel (%p323) target = $region24
        $region23: #{transformer_sequence_classifier.5} parent=11 // pred_region
          _
        $region24: #{transformer_sequence_classifier.5} parent=11 // pred_fallthru
          _
        // Predicated region
        $region25: #{transformer_sequence_classifier.5} parent=11 // pred_check
          %p326 = pneg %p181
        $region26: #{transformer_sequence_classifier.5} parent=11 // pred_check_branch
          %328 = sbr.rel (%p326) target = $region28
        $region27: #{transformer_sequence_classifier.5} parent=11 // pred_region
          _
        $region28: #{transformer_sequence_classifier.5} parent=11 // pred_fallthru
          _
        // Predicated region
        $region29: #{transformer_sequence_classifier.5} parent=11 // pred_check
          %p329 = pneg %p202
        $region30: #{transformer_sequence_classifier.5} parent=11 // pred_check_branch
          %331 = sbr.rel (%p329) target = $region32
        $region31: #{transformer_sequence_classifier.5} parent=11 // pred_region
          _
        $region32: #{transformer_sequence_classifier.5} parent=11 // pred_fallthru
          _
        // Predicated region
        $region33: #{transformer_sequence_classifier.5} parent=11 // pred_check
          %p332 = pneg %p223
        $region34: #{transformer_sequence_classifier.5} parent=11 // pred_check_branch
          %334 = sbr.rel (%p332) target = $region36
        $region35: #{transformer_sequence_classifier.5} parent=11 // pred_region
          _
        $region36: #{transformer_sequence_classifier.5} parent=11 // pred_fallthru
          _
        // Predicated region
        $region37: #{transformer_sequence_classifier.5} parent=11 // pred_check
          %p335 = pneg %p244
        $region38: #{transformer_sequence_classifier.5} parent=11 // pred_check_branch
          %337 = sbr.rel (%p335) target = $region40
        $region39: #{transformer_sequence_classifier.5} parent=11 // pred_region
          %339 = vsyncadd [#allocation5], 0
          %s340 = sshll.u32 %s9, 4
          %s341 = int_to_ptr.hbm [resolvable:$true] %s340
          %s342 = sshll.u32 [#allocation4], 4
          %s343 = int_to_ptr.vmem [resolvable:$true] %s342
          %348 = dma.hbm_to_vmem [thread:$0]  %s341, 4096, %s343, [#allocation5], 64, 64, 4
        $region40: #{transformer_sequence_classifier.5} parent=11 // pred_fallthru
          _
        // Predicated region
        $region41: #{transformer_sequence_classifier.5} parent=11 // pred_check
          %p349 = pneg %p265
        $region42: #{transformer_sequence_classifier.5} parent=11 // pred_check_branch
          %351 = sbr.rel (%p349) target = $region44
        $region43: #{transformer_sequence_classifier.5} parent=11 // pred_region
          _
        $region44: #{transformer_sequence_classifier.5} parent=11 // pred_fallthru
          _
      $region12: #{transformer_sequence_classifier.5} parent=5 // pred_fallthru
        _
      %p352 = scmp.lt.s32.totalorder %s19, 2
      // Predicated region
      $region45: #{transformer_sequence_classifier.5} parent=5 // pred_check
        %p353 = pneg %p352
      $region46: #{transformer_sequence_classifier.5} parent=5 // pred_check_branch
        %355 = sbr.rel (%p353) target = $region48
      $region47: #{transformer_sequence_classifier.5} parent=5 // pred_region
        // Predicated region
        $region49: #{transformer_sequence_classifier.5} parent=47 // pred_check
          %p356 = pneg %p39
        $region50: #{transformer_sequence_classifier.5} parent=47 // pred_check_branch
          %358 = sbr.rel (%p356) target = $region52
        $region51: #{transformer_sequence_classifier.5} parent=47 // pred_region
          %s359 = smul.u32 2, %s19
          %p360 = scmp.lt.s32.totalorder %s359, 3
          %s361 = scalar_select %p360, %s359, 3
          %s362 = smul.addr %s361, 2
          %s363 = smul.addr %s362, 8
          %s364 = scalar_lea.vmem %s0, %s363
          %s365 = smul.u32 2, %s19
        $region52: #{transformer_sequence_classifier.5} parent=47 // pred_fallthru
          _
        // Predicated region
        $region53: #{transformer_sequence_classifier.5} parent=47 // pred_check
          %p366 = pneg %p65
        $region54: #{transformer_sequence_classifier.5} parent=47 // pred_check_branch
          %368 = sbr.rel (%p366) target = $region56
        $region55: #{transformer_sequence_classifier.5} parent=47 // pred_region
          %s369 = smul.u32 2, %s19
          %p370 = scmp.lt.s32.totalorder %s369, 3
          %s371 = scalar_select %p370, %s369, 3
          %s372 = smul.addr %s371, 2
          %s373 = scalar_lea.vmem %s1, %s372
          %s374 = smul.u32 2, %s19
        $region56: #{transformer_sequence_classifier.5} parent=47 // pred_fallthru
          _
        // Predicated region
        $region57: #{transformer_sequence_classifier.5} parent=47 // pred_check
          %p375 = pneg %p91
        $region58: #{transformer_sequence_classifier.5} parent=47 // pred_check_branch
          %377 = sbr.rel (%p375) target = $region60
        $region59: #{transformer_sequence_classifier.5} parent=47 // pred_region
          %s378 = smul.u32 2, %s19
          %p379 = scmp.lt.s32.totalorder %s378, 3
          %s380 = scalar_select %p379, %s378, 3
          %s381 = smul.addr %s380, 2
          %s382 = scalar_lea.vmem %s2, %s381
          %s383 = smul.u32 2, %s19
        $region60: #{transformer_sequence_classifier.5} parent=47 // pred_fallthru
          _
      $region48: #{transformer_sequence_classifier.5} parent=5 // pred_fallthru
        _
      %p384 = scmp.le.s32.totalorder 1, %s19
      %p385 = scmp.lt.s32.totalorder %s19, 3
      %p386 = pnand %p384, %p385
      %p387 = pneg %p386
      // Predicated region
      $region61: #{transformer_sequence_classifier.5} parent=5 // pred_check
        _
      $region62: #{transformer_sequence_classifier.5} parent=5 // pred_check_branch
        %389 = sbr.rel (%p386) target = $region64
      $region63: #{transformer_sequence_classifier.5} parent=5 // pred_region
        %s390 = ssub.s32 %s19, 1
        // Predicated region
        $region65: #{transformer_sequence_classifier.5} parent=63 // pred_check
          %p391 = pneg %p118
        $region66: #{transformer_sequence_classifier.5} parent=63 // pred_check_branch
          %393 = sbr.rel (%p391) target = $region68
        $region67: #{transformer_sequence_classifier.5} parent=63 // pred_region
          %395 = dma.done [#allocation3], 3072
        $region68: #{transformer_sequence_classifier.5} parent=63 // pred_fallthru
          _
        // Predicated region
        $region69: #{transformer_sequence_classifier.5} parent=63 // pred_check
          %p396 = pneg %p244
        $region70: #{transformer_sequence_classifier.5} parent=63 // pred_check_branch
          %398 = sbr.rel (%p396) target = $region72
        $region71: #{transformer_sequence_classifier.5} parent=63 // pred_region
          %400 = dma.done [#allocation5], 4096
        $region72: #{transformer_sequence_classifier.5} parent=63 // pred_fallthru
          _
        %s401 = smul.u32 2, %s24
        %p402 = scmp.lt.s32.totalorder %s401, 3
        %s403 = scalar_select %p402, %s401, 3
        %s404 = smul.addr %s403, 2
        %s405 = smul.addr %s404, 8
        %s406 = scalar_lea.vmem %s0, %s405
        %p407 = pneg %p45
        %p408 = pneg %p42
        %s409 = smul.u32 2, %s24
        %p410 = scmp.lt.s32.totalorder %s409, 3
        %s411 = scalar_select %p410, %s409, 3
        %s412 = smul.addr %s411, 2
        %s413 = scalar_lea.vmem %s1, %s412
        %p414 = pneg %p71
        %p415 = pneg %p68
        %s416 = smul.u32 2, %s24
        %p417 = scmp.lt.s32.totalorder %s416, 3
        %s418 = scalar_select %p417, %s416, 3
        %s419 = smul.addr %s418, 2
        %s420 = scalar_lea.vmem %s2, %s419
        %p421 = pneg %p97
        %p422 = pneg %p94
        %p423 = pneg %p118
        %p424 = pneg %p115
        %p425 = pneg %p139
        %p426 = pneg %p136
        %p427 = pneg %p160
        %p428 = pneg %p157
        %p429 = pneg %p181
        %p430 = pneg %p178
        %p431 = pneg %p202
        %p432 = pneg %p199
        %p433 = pneg %p223
        %p434 = pneg %p220
        %p435 = pneg %p244
        %p436 = pneg %p241
        %p437 = pneg %p265
        %p438 = pneg %p262
        %p439 = pneg %p291
        %p440 = pneg %p288
        %s441 = smul.u32 2, %s24
        %p442 = scmp.lt.s32.totalorder %s441, 3
        %s443 = scalar_select %p442, %s441, 3
        %s444 = smul.addr %s443, 2
        %s445 = smul.addr %s444, 8
        %s446 = scalar_lea.vmem %s11, %s445
        %s447 = smul.u32 2, %s24
        %p448 = scmp.lt.s32.totalorder %s447, 3
        %s449 = scalar_select %p448, %s447, 3
        %s450 = smul.addr %s449, 2
        %s451 = smul.addr %s450, 8
        %s452 = scalar_lea.vmem %s0, %s451
        %s453 = smul.u32 2, %s24
        %s454 = smul.u32 2, %s24
        %p455 = scmp.lt.s32.totalorder %s454, 3
        %s456 = scalar_select %p455, %s454, 3
        %s457 = smul.addr %s456, 2
        %s458 = scalar_lea.vmem %s1, %s457
        %s459 = smul.u32 2, %s24
        %s460 = smul.u32 2, %s24
        %p461 = scmp.lt.s32.totalorder %s460, 3
        %s462 = scalar_select %p461, %s460, 3
        %s463 = smul.addr %s462, 2
        %s464 = scalar_lea.vmem %s2, %s463
        %s465 = smul.u32 2, %s24
        %s466 = smul.u32 2, %s24
        %p467 = scmp.lt.s32.totalorder %s466, 3
        %s468 = scalar_select %p467, %s466, 3
        %s469 = smul.addr %s468, 2
        %s470 = smul.addr %s469, 8
        %s471 = scalar_lea.vmem %s11, %s470
        %s472 = smul.u32 2, %s24
        %v474 = vld [vmem:[%s452] sm:$0xff]
        %v475 = vld [vmem:[%s452 + $0x8] sm:$0xff]
        %v476 = vld [vmem:[%s452 + $0x10] sm:$0xff]
        %v477 = vld [vmem:[%s452 + $0x18] sm:$0xff]
        %v478 = vlaneseq
        %v479 = vand.u32 %v478, 127
        %vm480 = vcmp.lt.s32.totalorder %v479, 9
        %v481 = vsel %vm480, 0.0, -1e+30
        %v482 = vlaneseq
        %v483 = vshrl.u32 %v482, 7
        %v484 = vadd.s32 %v483, 8
        %vm485 = vcmp.lt.s32.totalorder %v483, 9
        %vm486 = vcmp.lt.s32.totalorder %v484, 9
        %v487 = vsel %vm485, 1, 0
        %v488 = vsel %vm486, 1, 0
        %v489 = vcvt.s32.f32 %v487
        %v490 = vcvt.s32.f32 %v488
        %491 = vadd.xlane.f32.xlu0 %v474
        %v492 = vpop.xlane.xlu0 %491
        %493 = vadd.xlane.f32.xlu0 %v475
        %v494 = vpop.xlane.xlu0 %493
        %495 = vadd.xlane.f32.xlu0 %v476
        %v496 = vpop.xlane.xlu0 %495
        %497 = vadd.xlane.f32.xlu0 %v477
        %v498 = vpop.xlane.xlu0 %497
        %v499 = vrcp.pop 128.0
        %v500 = vmul.f32 128.0, %v499
        %v501 = vsub.f32 1.0, %v500
        %v502 = vmul.f32 %v499, %v501
        %v503 = vadd.f32 %v499, %v502
        %vm504 = vweird.f32 %v499
        %v505 = vsel %vm504, %v499, %v503
        %v506 = vmul.f32 %v492, %v505
        %v507 = vmul.f32 %v494, %v505
        %v508 = vmul.f32 %v496, %v505
        %v509 = vmul.f32 %v498, %v505
        %v510 = vsub.f32 %v474, %v506
        %v511 = vsub.f32 %v475, %v507
        %v512 = vsub.f32 %v476, %v508
        %v513 = vsub.f32 %v477, %v509
        %v514 = vmul.f32 %v510, %v510
        %v515 = vmul.f32 %v511, %v511
        %v516 = vmul.f32 %v512, %v512
        %v517 = vmul.f32 %v513, %v513
        %518 = vadd.xlane.f32.xlu0 %v514
        %v519 = vpop.xlane.xlu0 %518
        %520 = vadd.xlane.f32.xlu0 %v515
        %v521 = vpop.xlane.xlu0 %520
        %522 = vadd.xlane.f32.xlu0 %v516
        %v523 = vpop.xlane.xlu0 %522
        %524 = vadd.xlane.f32.xlu0 %v517
        %v525 = vpop.xlane.xlu0 %524
        %v526 = vmul.f32 %v519, %v505
        %v527 = vmul.f32 %v521, %v505
        %v528 = vmul.f32 %v523, %v505
        %v529 = vmul.f32 %v525, %v505
        %v530 = vadd.f32 %v526, 1e-05
        %v531 = vadd.f32 %v527, 1e-05
        %v532 = vadd.f32 %v528, 1e-05
        %v533 = vadd.f32 %v529, 1e-05
        %v534 = vrsqrt.pop %v530
        %v535 = vmul.f32 %v534, %v530
        %v536 = vmul.f32 %v535, %v534
        %v537 = vmul.f32 0.5, %v536
        %v538 = vsub.f32 1.5, %v537
        %v539 = vmul.f32 %v534, %v538
        %vm540 = vweird.f32 %v530
        %vm541 = vweird.f32 %v534
        %vm542 = vmor %vm540, %vm541
        %v543 = vsel %vm542, %v534, %v539
        %v544 = vrsqrt.pop %v531
        %v545 = vmul.f32 %v544, %v531
        %v546 = vmul.f32 %v545, %v544
        %v547 = vmul.f32 0.5, %v546
        %v548 = vsub.f32 1.5, %v547
        %v549 = vmul.f32 %v544, %v548
        %vm550 = vweird.f32 %v531
        %vm551 = vweird.f32 %v544
        %vm552 = vmor %vm550, %vm551
        %v553 = vsel %vm552, %v544, %v549
        %v554 = vrsqrt.pop %v532
        %v555 = vmul.f32 %v554, %v532
        %v556 = vmul.f32 %v555, %v554
        %v557 = vmul.f32 0.5, %v556
        %v558 = vsub.f32 1.5, %v557
        %v559 = vmul.f32 %v554, %v558
        %vm560 = vweird.f32 %v532
        %vm561 = vweird.f32 %v554
        %vm562 = vmor %vm560, %vm561
        %v563 = vsel %vm562, %v554, %v559
        %v564 = vrsqrt.pop %v533
        %v565 = vmul.f32 %v564, %v533
        %v566 = vmul.f32 %v565, %v564
        %v567 = vmul.f32 0.5, %v566
        %v568 = vsub.f32 1.5, %v567
        %v569 = vmul.f32 %v564, %v568
        %vm570 = vweird.f32 %v533
        %vm571 = vweird.f32 %v564
        %vm572 = vmor %vm570, %vm571
        %v573 = vsel %vm572, %v564, %v569
        %v574 = vmul.f32 %v510, %v543
        %v575 = vmul.f32 %v511, %v553
        %v576 = vmul.f32 %v512, %v563
        %v577 = vmul.f32 %v513, %v573
        %v578 = vld [vmem:[%s458] sm:$0x1]
        %v579 = vld [vmem:[%s458 + $0x2] sm:$0x1]
        %v580 = vld [vmem:[%s458 + $0x1] sm:$0x1]
        %v581 = vld [vmem:[%s458 + $0x3] sm:$0x1]
        %v582 = vadd.f32 %v580, 1.0
        %v583 = vadd.f32 %v581, 1.0
        %v586 = vperm.slane %v582, 0
        %v587 = vperm.slane %v583, 0
        %v590 = vmul.f32 %v574, %v586
        %v591 = vmul.f32 %v575, %v586
        %v592 = vmul.f32 %v576, %v587
        %v593 = vmul.f32 %v577, %v587
        %v596 = vperm.slane %v578, 0
        %v597 = vperm.slane %v579, 0
        %v600 = vadd.f32 %v590, %v596
        %v601 = vadd.f32 %v591, %v596
        %v602 = vadd.f32 %v592, %v597
        %v603 = vadd.f32 %v593, %v597
        %v604 = vpack.c.bf16 %v601, %v600
        %v605 = vpack.c.bf16 %v603, %v602
        %v606 = vld [vmem:[#allocation2] sm:$0xff]
        %v607 = vld [vmem:[#allocation2 + $0x8] sm:$0xf]
        %v608 = vld [vmem:[#allocation2 + $0xc] sm:$0xff]
        %v609 = vld [vmem:[#allocation2 + $0x14] sm:$0xf]
        %v610 = vld [vmem:[#allocation2 + $0x18] sm:$0xff]
        %v611 = vld [vmem:[#allocation2 + $0x20] sm:$0xf]
        %v612 = vld [vmem:[#allocation2 + $0x24] sm:$0xff]
        %v613 = vld [vmem:[#allocation2 + $0x2c] sm:$0xf]
        %v614 = vld [vmem:[#allocation2 + $0x30] sm:$0xff]
        %v615 = vld [vmem:[#allocation2 + $0x38] sm:$0xf]
        %v616 = vld [vmem:[#allocation2 + $0x3c] sm:$0xff]
        %v617 = vld [vmem:[#allocation2 + $0x44] sm:$0xf]
        %v618 = vld [vmem:[#allocation2 + $0x48] sm:$0xff]
        %v619 = vld [vmem:[#allocation2 + $0x50] sm:$0xf]
        %v620 = vld [vmem:[#allocation2 + $0x54] sm:$0xff]
        %v621 = vld [vmem:[#allocation2 + $0x5c] sm:$0xf]
        %v622 = vld [vmem:[#allocation2 + $0x60] sm:$0xff]
        %v623 = vld [vmem:[#allocation2 + $0x68] sm:$0xf]
        %v624 = vld [vmem:[#allocation2 + $0x6c] sm:$0xff]
        %v625 = vld [vmem:[#allocation2 + $0x74] sm:$0xf]
        %v626 = vld [vmem:[#allocation2 + $0x78] sm:$0xff]
        %v627 = vld [vmem:[#allocation2 + $0x80] sm:$0xf]
        %v628 = vld [vmem:[#allocation2 + $0x84] sm:$0xff]
        %v629 = vld [vmem:[#allocation2 + $0x8c] sm:$0xf]
        %v630 = vld [vmem:[#allocation2 + $0x90] sm:$0xff]
        %v631 = vld [vmem:[#allocation2 + $0x98] sm:$0xf]
        %v632 = vld [vmem:[#allocation2 + $0x9c] sm:$0xff]
        %v633 = vld [vmem:[#allocation2 + $0xa4] sm:$0xf]
        %v634 = vld [vmem:[#allocation2 + $0xa8] sm:$0xff]
        %v635 = vld [vmem:[#allocation2 + $0xb0] sm:$0xf]
        %v636 = vld [vmem:[#allocation2 + $0xb4] sm:$0xff]
        %v637 = vld [vmem:[#allocation2 + $0xbc] sm:$0xf]
        %v638 = vld [vmem:[%s4] sm:$0x7]
        %v640 = vperm.slane %v638, 0
        %v641 = vperm.slane %v638, 1
        %v642 = vperm.slane %v638, 2
        %v678 = vunpack.c.l.b16 %v606
        %v679 = vunpack.c.h.b16 %v606
        %v680 = vunpack.c.l.b16 %v607
        %v681 = vunpack.c.l.b16 %v608
        %v682 = vunpack.c.h.b16 %v608
        %v683 = vunpack.c.l.b16 %v609
        %v684 = vunpack.c.l.b16 %v610
        %v685 = vunpack.c.h.b16 %v610
        %v686 = vunpack.c.l.b16 %v611
        %v687 = vunpack.c.l.b16 %v612
        %v688 = vunpack.c.h.b16 %v612
        %v689 = vunpack.c.l.b16 %v613
        %v690 = vunpack.c.l.b16 %v614
        %v691 = vunpack.c.h.b16 %v614
        %v692 = vunpack.c.l.b16 %v615
        %v693 = vunpack.c.l.b16 %v616
        %v694 = vunpack.c.h.b16 %v616
        %v695 = vunpack.c.l.b16 %v617
        %v696 = vunpack.c.l.b16 %v618
        %v697 = vunpack.c.h.b16 %v618
        %v698 = vunpack.c.l.b16 %v619
        %v699 = vunpack.c.l.b16 %v620
        %v700 = vunpack.c.h.b16 %v620
        %v701 = vunpack.c.l.b16 %v621
        %v702 = vunpack.c.l.b16 %v622
        %v703 = vunpack.c.h.b16 %v622
        %v704 = vunpack.c.l.b16 %v623
        %v705 = vunpack.c.l.b16 %v624
        %v706 = vunpack.c.h.b16 %v624
        %v707 = vunpack.c.l.b16 %v625
        %v708 = vunpack.c.l.b16 %v626
        %v709 = vunpack.c.h.b16 %v626
        %v710 = vunpack.c.l.b16 %v627
        %v711 = vunpack.c.l.b16 %v628
        %v712 = vunpack.c.h.b16 %v628
        %v713 = vunpack.c.l.b16 %v629
        %v714 = vunpack.c.l.b16 %v630
        %v715 = vunpack.c.h.b16 %v630
        %v716 = vunpack.c.l.b16 %v631
        %v717 = vunpack.c.l.b16 %v632
        %v718 = vunpack.c.h.b16 %v632
        %v719 = vunpack.c.l.b16 %v633
        %v720 = vunpack.c.l.b16 %v634
        %v721 = vunpack.c.h.b16 %v634
        %v722 = vunpack.c.l.b16 %v635
        %v723 = vunpack.c.l.b16 %v636
        %v724 = vunpack.c.h.b16 %v636
        %v725 = vunpack.c.l.b16 %v637
        %v726 = vpack.c.b16 %v681, %v678
        %v727 = vpack.c.b16 %v682, %v679
        %v728 = vpack.c.b16 %v683, %v680
        %v729 = vpack.c.b16 %v687, %v684
        %v730 = vpack.c.b16 %v688, %v685
        %v731 = vpack.c.b16 %v689, %v686
        %v732 = vpack.c.b16 %v693, %v690
        %v733 = vpack.c.b16 %v694, %v691
        %v734 = vpack.c.b16 %v695, %v692
        %v735 = vpack.c.b16 %v699, %v696
        %v736 = vpack.c.b16 %v700, %v697
        %v737 = vpack.c.b16 %v701, %v698
        %v738 = vpack.c.b16 %v705, %v702
        %v739 = vpack.c.b16 %v706, %v703
        %v740 = vpack.c.b16 %v707, %v704
        %v741 = vpack.c.b16 %v711, %v708
        %v742 = vpack.c.b16 %v712, %v709
        %v743 = vpack.c.b16 %v713, %v710
        %v744 = vpack.c.b16 %v717, %v714
        %v745 = vpack.c.b16 %v718, %v715
        %v746 = vpack.c.b16 %v719, %v716
        %v747 = vpack.c.b16 %v723, %v720
        %v748 = vpack.c.b16 %v724, %v721
        %v749 = vpack.c.b16 %v725, %v722
        %774 = vmatpush.bf16.msra.mxu0 %v747
        %775 = vmatpush.bf16.msra.mxu0 %v744
        %776 = vmatpush.bf16.msra.mxu0 %v741
        %777 = vmatpush.bf16.msra.mxu0 %v738
        %778 = vmatpush.bf16.msra.mxu0 %v735
        %779 = vmatpush.bf16.msra.mxu0 %v732
        %780 = vmatpush.bf16.msra.mxu0 %v729
        %781 = vmatpush.bf16.msra.mxu0 %v726
        %782 = vmatmul.bf16.gmra.mxu0 %v604
        %v783 = vpop.f32.mrf.mxu0
        %v784 = vadd.f32 %v640, %v783
        %v785 = vpop.f32.mrf.mxu0
        %v786 = vadd.f32 %v640, %v785
        %787 = vmatmul.bf16.gmra.mxu0 %v605
        %v788 = vpop.f32.mrf.mxu0
        %v789 = vadd.f32 %v640, %v788
        %v790 = vpop.f32.mrf.mxu0
        %v791 = vadd.f32 %v640, %v790
        %792 = vdwg.mxu0
        %793 = vmatpush.bf16.msra.mxu0 %v748
        %794 = vmatpush.bf16.msra.mxu0 %v745
        %795 = vmatpush.bf16.msra.mxu0 %v742
        %796 = vmatpush.bf16.msra.mxu0 %v739
        %797 = vmatpush.bf16.msra.mxu0 %v736
        %798 = vmatpush.bf16.msra.mxu0 %v733
        %799 = vmatpush.bf16.msra.mxu0 %v730
        %800 = vmatpush.bf16.msra.mxu0 %v727
        %801 = vmatmul.bf16.gmra.mxu0 %v604
        %v802 = vpop.f32.mrf.mxu0
        %v803 = vadd.f32 %v641, %v802
        %v804 = vpop.f32.mrf.mxu0
        %v805 = vadd.f32 %v641, %v804
        %806 = vmatmul.bf16.gmra.mxu0 %v605
        %v807 = vpop.f32.mrf.mxu0
        %v808 = vadd.f32 %v641, %v807
        %v809 = vpop.f32.mrf.mxu0
        %v810 = vadd.f32 %v641, %v809
        %811 = vdwg.mxu0
        %812 = vmatpush.bf16.msra.mxu0 %v749
        %813 = vmatpush.bf16.msra.mxu0 %v746
        %814 = vmatpush.bf16.msra.mxu0 %v743
        %815 = vmatpush.bf16.msra.mxu0 %v740
        %816 = vmatpush.bf16.msra.mxu0 %v737
        %817 = vmatpush.bf16.msra.mxu0 %v734
        %818 = vmatpush.bf16.msra.mxu0 %v731
        %819 = vmatpush.bf16.msra.mxu0 %v728
        %820 = vmatmul.bf16.gmra.mxu0 %v604
        %v821 = vpop.f32.mrf.mxu0
        %v822 = vadd.f32 %v642, %v821
        %v823 = vpop.f32.mrf.mxu0
        %v824 = vadd.f32 %v642, %v823
        %825 = vmatmul.bf16.gmra.mxu0 %v605
        %v826 = vpop.f32.mrf.mxu0
        %v827 = vadd.f32 %v642, %v826
        %v828 = vpop.f32.mrf.mxu0
        %v829 = vadd.f32 %v642, %v828
        %830 = vdwg.mxu0
        %v831 = vpack.c.bf16 %v803, %v784
        %v832 = vpack.c.bf16 %v822, %v822
        %v833 = vpack.c.bf16 %v805, %v786
        %v834 = vpack.c.bf16 %v824, %v824
        %v835 = vpack.c.bf16 %v808, %v789
        %v836 = vpack.c.bf16 %v827, %v827
        %v837 = vpack.c.bf16 %v810, %v791
        %v838 = vpack.c.bf16 %v829, %v829
        %v843 = vrot.slane %v831, 4
        %v844 = vrot.slane %v833, 4
        %v845 = vrot.slane %v835, 4
        %v846 = vrot.slane %v837, 4
        %v847 = vunpack.c.l.b16 %v831
        %v848 = vunpack.c.l.b16 %v833
        %v849 = vpack.c.b16 %v848, %v847
        %v850 = vunpack.c.l.b16 %v843
        %v851 = vunpack.c.l.b16 %v844
        %v852 = vpack.c.b16 %v851, %v850
        %vm853 = vcmask 261120
        %v855 = vsel %vm853, %v849, 0
        %v858 = vsel %vm853, %v852, 0
        %860 = vmatpush.bf16.xpose.msra.mxu0 0
        %861 = vmatpush.bf16.xpose.msra.mxu0 0
        %862 = vmatpush.bf16.xpose.msra.mxu0 0
        %863 = vmatpush.bf16.xpose.msra.mxu0 0
        %864 = vmatpush.bf16.xpose.msra.mxu0 0
        %865 = vmatpush.bf16.xpose.msra.mxu0 0
        %866 = vmatpush.bf16.xpose.msra.mxu0 0
        %867 = vmatpush.bf16.xpose.msra.mxu0 %v858
        %868 = vmatmul.bf16.gmra.mxu0 %v855
        %v869 = vpop.f32.mrf.mxu0
        %v870 = vadd.f32 0.0, %v869
        %v871 = vpop.f32.mrf.mxu0
        %v872 = vadd.f32 0.0, %v871
        %873 = vdwg.mxu0
        %v874 = vunpack.c.l.b16 %v835
        %v875 = vunpack.c.l.b16 %v837
        %v876 = vpack.c.b16 %v875, %v874
        %v877 = vunpack.c.l.b16 %v845
        %v878 = vunpack.c.l.b16 %v846
        %v879 = vpack.c.b16 %v878, %v877
        %v881 = vsel %vm853, %v876, 0
        %v884 = vsel %vm853, %v879, 0
        %886 = vmatpush.bf16.xpose.msra.mxu0 0
        %887 = vmatpush.bf16.xpose.msra.mxu0 0
        %888 = vmatpush.bf16.xpose.msra.mxu0 0
        %889 = vmatpush.bf16.xpose.msra.mxu0 0
        %890 = vmatpush.bf16.xpose.msra.mxu0 0
        %891 = vmatpush.bf16.xpose.msra.mxu0 0
        %892 = vmatpush.bf16.xpose.msra.mxu0 0
        %893 = vmatpush.bf16.xpose.msra.mxu0 %v884
        %894 = vmatmul.bf16.gmra.mxu0 %v881
        %v895 = vpop.f32.mrf.mxu0
        %v896 = vadd.f32 0.0, %v895
        %v897 = vpop.f32.mrf.mxu0
        %v898 = vadd.f32 0.0, %v897
        %899 = vdwg.mxu0
        %v900 = vmul.f32 %v870, 0.17677669
        %v901 = vmul.f32 %v872, 0.17677669
        %v902 = vmul.f32 %v896, 0.17677669
        %v903 = vmul.f32 %v898, 0.17677669
        %v904 = vadd.f32 %v900, %v481
        %v905 = vadd.f32 %v901, %v481
        %v906 = vadd.f32 %v902, %v481
        %v907 = vadd.f32 %v903, %v481
        %vm908 = vcmask 130048
        %v909 = vsel %vm908, %v904, -inf
        %910 = vmax.xlane.f32.xlu0 %v909
        %v911 = vpop.xlane.xlu0 %910
        %v912 = vsel %vm908, %v905, -inf
        %913 = vmax.xlane.f32.xlu0 %v912
        %v914 = vpop.xlane.xlu0 %913
        %v915 = vsel %vm908, %v906, -inf
        %916 = vmax.xlane.f32.xlu0 %v915
        %v917 = vpop.xlane.xlu0 %916
        %v918 = vsel %vm908, %v907, -inf
        %919 = vmax.xlane.f32.xlu0 %v918
        %v920 = vpop.xlane.xlu0 %919
        %v921 = vsub.f32 %v904, %v911
        %v922 = vsub.f32 %v905, %v914
        %v923 = vsub.f32 %v906, %v917
        %v924 = vsub.f32 %v907, %v920
        %v925 = vmul.f32 %v921, 1.442695
        %v926 = vpow.pop %v925
        %v927 = vmul.f32 %v922, 1.442695
        %v928 = vpow.pop %v927
        %v929 = vmul.f32 %v923, 1.442695
        %v930 = vpow.pop %v929
        %v931 = vmul.f32 %v924, 1.442695
        %v932 = vpow.pop %v931
        %v933 = vsel %vm908, %v926, 0.0
        %934 = vadd.xlane.f32.xlu0 %v933
        %v935 = vpop.xlane.xlu0 %934
        %v936 = vsel %vm908, %v928, 0.0
        %937 = vadd.xlane.f32.xlu0 %v936
        %v938 = vpop.xlane.xlu0 %937
        %v939 = vsel %vm908, %v930, 0.0
        %940 = vadd.xlane.f32.xlu0 %v939
        %v941 = vpop.xlane.xlu0 %940
        %v942 = vsel %vm908, %v932, 0.0
        %943 = vadd.xlane.f32.xlu0 %v942
        %v944 = vpop.xlane.xlu0 %943
        %v945 = vrcp.pop %v935
        %v946 = vrcp.pop %v938
        %v947 = vrcp.pop %v941
        %v948 = vrcp.pop %v944
        %v949 = vmul.f32 %v926, %v945
        %v950 = vmul.f32 %v928, %v946
        %v951 = vmul.f32 %v930, %v947
        %v952 = vmul.f32 %v932, %v948
        %v953 = vpack.c.bf16 %v949, %v949
        %v954 = vpack.c.bf16 %v950, %v950
        %v955 = vpack.c.bf16 %v951, %v951
        %v956 = vpack.c.bf16 %v952, %v952
        %v959 = vunpack.c.l.b16 %v953
        %v960 = vunpack.c.l.b16 %v954
        %v961 = vpack.c.b16 %v960, %v959
        %v964 = vunpack.c.l.b16 %v832
        %v965 = vunpack.c.l.b16 %v834
        %v966 = vpack.c.b16 %v965, %v964
        %v969 = vsel %vm908, %v961, 0
        %971 = vmatpush.bf16.msra.mxu0 0
        %972 = vmatpush.bf16.msra.mxu0 0
        %973 = vmatpush.bf16.msra.mxu0 0
        %974 = vmatpush.bf16.msra.mxu0 0
        %975 = vmatpush.bf16.msra.mxu0 0
        %976 = vmatpush.bf16.msra.mxu0 0
        %977 = vmatpush.bf16.msra.mxu0 0
        %978 = vmatpush.bf16.msra.mxu0 %v966
        %979 = vmatmul.bf16.gmra.mxu0 %v969
        %v980 = vpop.f32.mrf.mxu0
        %v981 = vadd.f32 0.0, %v980
        %v982 = vpop.f32.mrf.mxu0
        %v983 = vadd.f32 0.0, %v982
        %984 = vdwg.mxu0
        %v987 = vunpack.c.l.b16 %v955
        %v988 = vunpack.c.l.b16 %v956
        %v989 = vpack.c.b16 %v988, %v987
        %v992 = vunpack.c.l.b16 %v836
        %v993 = vunpack.c.l.b16 %v838
        %v994 = vpack.c.b16 %v993, %v992
        %v997 = vsel %vm908, %v989, 0
        %999 = vmatpush.bf16.msra.mxu0 0
        %1000 = vmatpush.bf16.msra.mxu0 0
        %1001 = vmatpush.bf16.msra.mxu0 0
        %1002 = vmatpush.bf16.msra.mxu0 0
        %1003 = vmatpush.bf16.msra.mxu0 0
        %1004 = vmatpush.bf16.msra.mxu0 0
        %1005 = vmatpush.bf16.msra.mxu0 0
        %1006 = vmatpush.bf16.msra.mxu0 %v994
        %1007 = vmatmul.bf16.gmra.mxu0 %v997
        %v1008 = vpop.f32.mrf.mxu0
        %v1009 = vadd.f32 0.0, %v1008
        %v1010 = vpop.f32.mrf.mxu0
        %v1011 = vadd.f32 0.0, %v1010
        %1012 = vdwg.mxu0
        %v1013 = vpack.c.bf16 %v983, %v981
        %v1014 = vpack.c.bf16 %v1011, %v1009
        %v1015 = vld [vmem:[%s5] sm:$0xf]
        %v1016 = vld [vmem:[%s5 + $0x4] sm:$0xf]
        %v1017 = vld [vmem:[%s5 + $0x8] sm:$0xf]
        %v1018 = vld [vmem:[%s5 + $0xc] sm:$0xf]
        %1019 = vrot.lane.b32.xlu0 %v831, 96
        %v1020 = vpop.permute.xlu0 %1019
        %1021 = vrot.lane.b32.xlu0 %v833, 96
        %v1022 = vpop.permute.xlu0 %1021
        %1023 = vrot.lane.b32.xlu0 %v835, 96
        %v1024 = vpop.permute.xlu0 %1023
        %1025 = vrot.lane.b32.xlu0 %v837, 96
        %v1026 = vpop.permute.xlu0 %1025
        %v1027 = vrot.slane %v1020, 4
        %v1028 = vrot.slane %v1022, 4
        %v1029 = vrot.slane %v1024, 4
        %v1030 = vrot.slane %v1026, 4
        %1031 = vrot.lane.b32.xlu0 %v849, 96
        %v1032 = vpop.permute.xlu0 %1031
        %v1033 = vunpack.c.l.b16 %v1027
        %v1034 = vunpack.c.l.b16 %v1028
        %v1035 = vpack.c.b16 %v1034, %v1033
        %v1037 = vsel %vm853, %v1032, 0
        %v1040 = vsel %vm853, %v1035, 0
        %1042 = vmatpush.bf16.xpose.msra.mxu0 0
        %1043 = vmatpush.bf16.xpose.msra.mxu0 0
        %1044 = vmatpush.bf16.xpose.msra.mxu0 0
        %1045 = vmatpush.bf16.xpose.msra.mxu0 0
        %1046 = vmatpush.bf16.xpose.msra.mxu0 0
        %1047 = vmatpush.bf16.xpose.msra.mxu0 0
        %1048 = vmatpush.bf16.xpose.msra.mxu0 0
        %1049 = vmatpush.bf16.xpose.msra.mxu0 %v1040
        %1050 = vmatmul.bf16.gmra.mxu0 %v1037
        %v1051 = vpop.f32.mrf.mxu0
        %v1052 = vadd.f32 0.0, %v1051
        %v1053 = vpop.f32.mrf.mxu0
        %v1054 = vadd.f32 0.0, %v1053
        %1055 = vdwg.mxu0
        %1056 = vrot.lane.b32.xlu0 %v876, 96
        %v1057 = vpop.permute.xlu0 %1056
        %v1058 = vunpack.c.l.b16 %v1029
        %v1059 = vunpack.c.l.b16 %v1030
        %v1060 = vpack.c.b16 %v1059, %v1058
        %v1062 = vsel %vm853, %v1057, 0
        %v1065 = vsel %vm853, %v1060, 0
        %1067 = vmatpush.bf16.xpose.msra.mxu0 0
        %1068 = vmatpush.bf16.xpose.msra.mxu0 0
        %1069 = vmatpush.bf16.xpose.msra.mxu0 0
        %1070 = vmatpush.bf16.xpose.msra.mxu0 0
        %1071 = vmatpush.bf16.xpose.msra.mxu0 0
        %1072 = vmatpush.bf16.xpose.msra.mxu0 0
        %1073 = vmatpush.bf16.xpose.msra.mxu0 0
        %1074 = vmatpush.bf16.xpose.msra.mxu0 %v1065
        %1075 = vmatmul.bf16.gmra.mxu0 %v1062
        %v1076 = vpop.f32.mrf.mxu0
        %v1077 = vadd.f32 0.0, %v1076
        %v1078 = vpop.f32.mrf.mxu0
        %v1079 = vadd.f32 0.0, %v1078
        %1080 = vdwg.mxu0
        %v1081 = vmul.f32 %v1052, 0.17677669
        %v1082 = vmul.f32 %v1054, 0.17677669
        %v1083 = vmul.f32 %v1077, 0.17677669
        %v1084 = vmul.f32 %v1079, 0.17677669
        %v1085 = vadd.f32 %v1081, %v481
        %v1086 = vadd.f32 %v1082, %v481
        %v1087 = vadd.f32 %v1083, %v481
        %v1088 = vadd.f32 %v1084, %v481
        %v1089 = vsel %vm908, %v1085, -inf
        %1090 = vmax.xlane.f32.xlu0 %v1089
        %v1091 = vpop.xlane.xlu0 %1090
        %v1092 = vsel %vm908, %v1086, -inf
        %1093 = vmax.xlane.f32.xlu0 %v1092
        %v1094 = vpop.xlane.xlu0 %1093
        %v1095 = vsel %vm908, %v1087, -inf
        %1096 = vmax.xlane.f32.xlu0 %v1095
        %v1097 = vpop.xlane.xlu0 %1096
        %v1098 = vsel %vm908, %v1088, -inf
        %1099 = vmax.xlane.f32.xlu0 %v1098
        %v1100 = vpop.xlane.xlu0 %1099
        %v1101 = vsub.f32 %v1085, %v1091
        %v1102 = vsub.f32 %v1086, %v1094
        %v1103 = vsub.f32 %v1087, %v1097
        %v1104 = vsub.f32 %v1088, %v1100
        %v1105 = vmul.f32 %v1101, 1.442695
        %v1106 = vpow.pop %v1105
        %v1107 = vmul.f32 %v1102, 1.442695
        %v1108 = vpow.pop %v1107
        %v1109 = vmul.f32 %v1103, 1.442695
        %v1110 = vpow.pop %v1109
        %v1111 = vmul.f32 %v1104, 1.442695
        %v1112 = vpow.pop %v1111
        %v1113 = vsel %vm908, %v1106, 0.0
        %1114 = vadd.xlane.f32.xlu0 %v1113
        %v1115 = vpop.xlane.xlu0 %1114
        %v1116 = vsel %vm908, %v1108, 0.0
        %1117 = vadd.xlane.f32.xlu0 %v1116
        %v1118 = vpop.xlane.xlu0 %1117
        %v1119 = vsel %vm908, %v1110, 0.0
        %1120 = vadd.xlane.f32.xlu0 %v1119
        %v1121 = vpop.xlane.xlu0 %1120
        %v1122 = vsel %vm908, %v1112, 0.0
        %1123 = vadd.xlane.f32.xlu0 %v1122
        %v1124 = vpop.xlane.xlu0 %1123
        %v1125 = vrcp.pop %v1115
        %v1126 = vrcp.pop %v1118
        %v1127 = vrcp.pop %v1121
        %v1128 = vrcp.pop %v1124
        %v1129 = vmul.f32 %v1106, %v1125
        %v1130 = vmul.f32 %v1108, %v1126
        %v1131 = vmul.f32 %v1110, %v1127
        %v1132 = vmul.f32 %v1112, %v1128
        %v1133 = vpack.c.bf16 %v1129, %v1129
        %v1134 = vpack.c.bf16 %v1130, %v1130
        %v1135 = vpack.c.bf16 %v1131, %v1131
        %v1136 = vpack.c.bf16 %v1132, %v1132
        %v1139 = vunpack.c.l.b16 %v1133
        %v1140 = vunpack.c.l.b16 %v1134
        %v1141 = vpack.c.b16 %v1140, %v1139
        %1142 = vrot.lane.b32.xlu0 %v966, 96
        %v1143 = vpop.permute.xlu0 %1142
        %v1146 = vsel %vm908, %v1141, 0
        %1148 = vmatpush.bf16.msra.mxu0 0
        %1149 = vmatpush.bf16.msra.mxu0 0
        %1150 = vmatpush.bf16.msra.mxu0 0
        %1151 = vmatpush.bf16.msra.mxu0 0
        %1152 = vmatpush.bf16.msra.mxu0 0
        %1153 = vmatpush.bf16.msra.mxu0 0
        %1154 = vmatpush.bf16.msra.mxu0 0
        %1155 = vmatpush.bf16.msra.mxu0 %v1143
        %1156 = vmatmul.bf16.gmra.mxu0 %v1146
        %v1157 = vpop.f32.mrf.mxu0
        %v1158 = vadd.f32 0.0, %v1157
        %v1159 = vpop.f32.mrf.mxu0
        %v1160 = vadd.f32 0.0, %v1159
        %1161 = vdwg.mxu0
        %v1164 = vunpack.c.l.b16 %v1135
        %v1165 = vunpack.c.l.b16 %v1136
        %v1166 = vpack.c.b16 %v1165, %v1164
        %1167 = vrot.lane.b32.xlu0 %v994, 96
        %v1168 = vpop.permute.xlu0 %1167
        %v1171 = vsel %vm908, %v1166, 0
        %1173 = vmatpush.bf16.msra.mxu0 0
        %1174 = vmatpush.bf16.msra.mxu0 0
        %1175 = vmatpush.bf16.msra.mxu0 0
        %1176 = vmatpush.bf16.msra.mxu0 0
        %1177 = vmatpush.bf16.msra.mxu0 0
        %1178 = vmatpush.bf16.msra.mxu0 0
        %1179 = vmatpush.bf16.msra.mxu0 0
        %1180 = vmatpush.bf16.msra.mxu0 %v1168
        %1181 = vmatmul.bf16.gmra.mxu0 %v1171
        %v1182 = vpop.f32.mrf.mxu0
        %v1183 = vadd.f32 0.0, %v1182
        %v1184 = vpop.f32.mrf.mxu0
        %v1185 = vadd.f32 0.0, %v1184
        %1186 = vdwg.mxu0
        %v1187 = vpack.c.bf16 %v1160, %v1158
        %v1188 = vpack.c.bf16 %v1185, %v1183
        %v1189 = vld [vmem:[%s5 + $0x10] sm:$0xf]
        %v1190 = vld [vmem:[%s5 + $0x14] sm:$0xf]
        %v1191 = vld [vmem:[%s5 + $0x18] sm:$0xf]
        %v1192 = vld [vmem:[%s5 + $0x1c] sm:$0xf]
        %v1197 = vunpack.c.l.b16 %v1189
        %v1198 = vunpack.c.l.b16 %v1190
        %v1199 = vunpack.c.l.b16 %v1191
        %v1200 = vunpack.c.l.b16 %v1192
        %v1201 = vpack.c.b16 %v1198, %v1197
        %v1202 = vpack.c.b16 %v1200, %v1199
        %v1206 = vsel %vm853, %v1187, 0
        %v1209 = vsel %vm853, %v1188, 0
        %1211 = vmatpush.bf16.msra.mxu0 0
        %1212 = vmatpush.bf16.msra.mxu0 0
        %1213 = vmatpush.bf16.msra.mxu0 0
        %1214 = vmatpush.bf16.msra.mxu0 0
        %1215 = vmatpush.bf16.msra.mxu0 0
        %1216 = vmatpush.bf16.msra.mxu0 0
        %1217 = vmatpush.bf16.msra.mxu0 %v1202
        %1218 = vmatpush.bf16.msra.mxu0 %v1201
        %1219 = vmatmul.bf16.gmra.mxu0 %v1206
        %v1220 = vpop.f32.mrf.mxu0
        %v1221 = vadd.f32 0.0, %v1220
        %v1222 = vpop.f32.mrf.mxu0
        %v1223 = vadd.f32 0.0, %v1222
        %1224 = vmatmul.bf16.gmra.mxu0 %v1209
        %v1225 = vpop.f32.mrf.mxu0
        %v1226 = vadd.f32 0.0, %v1225
        %v1227 = vpop.f32.mrf.mxu0
        %v1228 = vadd.f32 0.0, %v1227
        %1229 = vdwg.mxu0
        %v1234 = vunpack.c.l.b16 %v1015
        %v1235 = vunpack.c.l.b16 %v1016
        %v1236 = vunpack.c.l.b16 %v1017
        %v1237 = vunpack.c.l.b16 %v1018
        %v1238 = vpack.c.b16 %v1235, %v1234
        %v1239 = vpack.c.b16 %v1237, %v1236
        %v1243 = vsel %vm853, %v1013, 0
        %v1246 = vsel %vm853, %v1014, 0
        %1248 = vmatpush.bf16.msra.mxu0 0
        %1249 = vmatpush.bf16.msra.mxu0 0
        %1250 = vmatpush.bf16.msra.mxu0 0
        %1251 = vmatpush.bf16.msra.mxu0 0
        %1252 = vmatpush.bf16.msra.mxu0 0
        %1253 = vmatpush.bf16.msra.mxu0 0
        %1254 = vmatpush.bf16.msra.mxu0 %v1239
        %1255 = vmatpush.bf16.msra.mxu0 %v1238
        %1256 = vmatmul.bf16.gmra.mxu0 %v1243
        %v1257 = vpop.f32.mrf.mxu0
        %v1258 = vadd.f32 %v1221, %v1257
        %v1259 = vpop.f32.mrf.mxu0
        %v1260 = vadd.f32 %v1223, %v1259
        %1261 = vmatmul.bf16.gmra.mxu0 %v1246
        %v1262 = vpop.f32.mrf.mxu0
        %v1263 = vadd.f32 %v1226, %v1262
        %v1264 = vpop.f32.mrf.mxu0
        %v1265 = vadd.f32 %v1228, %v1264
        %1266 = vdwg.mxu0
        %1267 = vrot.lane.b32.xlu0 %v831, 64
        %v1268 = vpop.permute.xlu0 %1267
        %1269 = vrot.lane.b32.xlu0 %v833, 64
        %v1270 = vpop.permute.xlu0 %1269
        %1271 = vrot.lane.b32.xlu0 %v835, 64
        %v1272 = vpop.permute.xlu0 %1271
        %1273 = vrot.lane.b32.xlu0 %v837, 64
        %v1274 = vpop.permute.xlu0 %1273
        %v1275 = vrot.slane %v1268, 4
        %v1276 = vrot.slane %v1270, 4
        %v1277 = vrot.slane %v1272, 4
        %v1278 = vrot.slane %v1274, 4
        %1279 = vrot.lane.b32.xlu0 %v849, 64
        %v1280 = vpop.permute.xlu0 %1279
        %v1281 = vunpack.c.l.b16 %v1275
        %v1282 = vunpack.c.l.b16 %v1276
        %v1283 = vpack.c.b16 %v1282, %v1281
        %v1285 = vsel %vm853, %v1280, 0
        %v1288 = vsel %vm853, %v1283, 0
        %1290 = vmatpush.bf16.xpose.msra.mxu0 0
        %1291 = vmatpush.bf16.xpose.msra.mxu0 0
        %1292 = vmatpush.bf16.xpose.msra.mxu0 0
        %1293 = vmatpush.bf16.xpose.msra.mxu0 0
        %1294 = vmatpush.bf16.xpose.msra.mxu0 0
        %1295 = vmatpush.bf16.xpose.msra.mxu0 0
        %1296 = vmatpush.bf16.xpose.msra.mxu0 0
        %1297 = vmatpush.bf16.xpose.msra.mxu0 %v1288
        %1298 = vmatmul.bf16.gmra.mxu0 %v1285
        %v1299 = vpop.f32.mrf.mxu0
        %v1300 = vadd.f32 0.0, %v1299
        %v1301 = vpop.f32.mrf.mxu0
        %v1302 = vadd.f32 0.0, %v1301
        %1303 = vdwg.mxu0
        %1304 = vrot.lane.b32.xlu0 %v876, 64
        %v1305 = vpop.permute.xlu0 %1304
        %v1306 = vunpack.c.l.b16 %v1277
        %v1307 = vunpack.c.l.b16 %v1278
        %v1308 = vpack.c.b16 %v1307, %v1306
        %v1310 = vsel %vm853, %v1305, 0
        %v1313 = vsel %vm853, %v1308, 0
        %1315 = vmatpush.bf16.xpose.msra.mxu0 0
        %1316 = vmatpush.bf16.xpose.msra.mxu0 0
        %1317 = vmatpush.bf16.xpose.msra.mxu0 0
        %1318 = vmatpush.bf16.xpose.msra.mxu0 0
        %1319 = vmatpush.bf16.xpose.msra.mxu0 0
        %1320 = vmatpush.bf16.xpose.msra.mxu0 0
        %1321 = vmatpush.bf16.xpose.msra.mxu0 0
        %1322 = vmatpush.bf16.xpose.msra.mxu0 %v1313
        %1323 = vmatmul.bf16.gmra.mxu0 %v1310
        %v1324 = vpop.f32.mrf.mxu0
        %v1325 = vadd.f32 0.0, %v1324
        %v1326 = vpop.f32.mrf.mxu0
        %v1327 = vadd.f32 0.0, %v1326
        %1328 = vdwg.mxu0
        %v1329 = vmul.f32 %v1300, 0.17677669
        %v1330 = vmul.f32 %v1302, 0.17677669
        %v1331 = vmul.f32 %v1325, 0.17677669
        %v1332 = vmul.f32 %v1327, 0.17677669
        %v1333 = vadd.f32 %v1329, %v481
        %v1334 = vadd.f32 %v1330, %v481
        %v1335 = vadd.f32 %v1331, %v481
        %v1336 = vadd.f32 %v1332, %v481
        %v1337 = vsel %vm908, %v1333, -inf
        %1338 = vmax.xlane.f32.xlu0 %v1337
        %v1339 = vpop.xlane.xlu0 %1338
        %v1340 = vsel %vm908, %v1334, -inf
        %1341 = vmax.xlane.f32.xlu0 %v1340
        %v1342 = vpop.xlane.xlu0 %1341
        %v1343 = vsel %vm908, %v1335, -inf
        %1344 = vmax.xlane.f32.xlu0 %v1343
        %v1345 = vpop.xlane.xlu0 %1344
        %v1346 = vsel %vm908, %v1336, -inf
        %1347 = vmax.xlane.f32.xlu0 %v1346
        %v1348 = vpop.xlane.xlu0 %1347
        %v1349 = vsub.f32 %v1333, %v1339
        %v1350 = vsub.f32 %v1334, %v1342
        %v1351 = vsub.f32 %v1335, %v1345
        %v1352 = vsub.f32 %v1336, %v1348
        %v1353 = vmul.f32 %v1349, 1.442695
        %v1354 = vpow.pop %v1353
        %v1355 = vmul.f32 %v1350, 1.442695
        %v1356 = vpow.pop %v1355
        %v1357 = vmul.f32 %v1351, 1.442695
        %v1358 = vpow.pop %v1357
        %v1359 = vmul.f32 %v1352, 1.442695
        %v1360 = vpow.pop %v1359
        %v1361 = vsel %vm908, %v1354, 0.0
        %1362 = vadd.xlane.f32.xlu0 %v1361
        %v1363 = vpop.xlane.xlu0 %1362
        %v1364 = vsel %vm908, %v1356, 0.0
        %1365 = vadd.xlane.f32.xlu0 %v1364
        %v1366 = vpop.xlane.xlu0 %1365
        %v1367 = vsel %vm908, %v1358, 0.0
        %1368 = vadd.xlane.f32.xlu0 %v1367
        %v1369 = vpop.xlane.xlu0 %1368
        %v1370 = vsel %vm908, %v1360, 0.0
        %1371 = vadd.xlane.f32.xlu0 %v1370
        %v1372 = vpop.xlane.xlu0 %1371
        %v1373 = vrcp.pop %v1363
        %v1374 = vrcp.pop %v1366
        %v1375 = vrcp.pop %v1369
        %v1376 = vrcp.pop %v1372
        %v1377 = vmul.f32 %v1354, %v1373
        %v1378 = vmul.f32 %v1356, %v1374
        %v1379 = vmul.f32 %v1358, %v1375
        %v1380 = vmul.f32 %v1360, %v1376
        %v1381 = vpack.c.bf16 %v1377, %v1377
        %v1382 = vpack.c.bf16 %v1378, %v1378
        %v1383 = vpack.c.bf16 %v1379, %v1379
        %v1384 = vpack.c.bf16 %v1380, %v1380
        %v1387 = vunpack.c.l.b16 %v1381
        %v1388 = vunpack.c.l.b16 %v1382
        %v1389 = vpack.c.b16 %v1388, %v1387
        %1390 = vrot.lane.b32.xlu0 %v966, 64
        %v1391 = vpop.permute.xlu0 %1390
        %v1394 = vsel %vm908, %v1389, 0
        %1396 = vmatpush.bf16.msra.mxu0 0
        %1397 = vmatpush.bf16.msra.mxu0 0
        %1398 = vmatpush.bf16.msra.mxu0 0
        %1399 = vmatpush.bf16.msra.mxu0 0
        %1400 = vmatpush.bf16.msra.mxu0 0
        %1401 = vmatpush.bf16.msra.mxu0 0
        %1402 = vmatpush.bf16.msra.mxu0 0
        %1403 = vmatpush.bf16.msra.mxu0 %v1391
        %1404 = vmatmul.bf16.gmra.mxu0 %v1394
        %v1405 = vpop.f32.mrf.mxu0
        %v1406 = vadd.f32 0.0, %v1405
        %v1407 = vpop.f32.mrf.mxu0
        %v1408 = vadd.f32 0.0, %v1407
        %1409 = vdwg.mxu0
        %v1412 = vunpack.c.l.b16 %v1383
        %v1413 = vunpack.c.l.b16 %v1384
        %v1414 = vpack.c.b16 %v1413, %v1412
        %1415 = vrot.lane.b32.xlu0 %v994, 64
        %v1416 = vpop.permute.xlu0 %1415
        %v1419 = vsel %vm908, %v1414, 0
        %1421 = vmatpush.bf16.msra.mxu0 0
        %1422 = vmatpush.bf16.msra.mxu0 0
        %1423 = vmatpush.bf16.msra.mxu0 0
        %1424 = vmatpush.bf16.msra.mxu0 0
        %1425 = vmatpush.bf16.msra.mxu0 0
        %1426 = vmatpush.bf16.msra.mxu0 0
        %1427 = vmatpush.bf16.msra.mxu0 0
        %1428 = vmatpush.bf16.msra.mxu0 %v1416
        %1429 = vmatmul.bf16.gmra.mxu0 %v1419
        %v1430 = vpop.f32.mrf.mxu0
        %v1431 = vadd.f32 0.0, %v1430
        %v1432 = vpop.f32.mrf.mxu0
        %v1433 = vadd.f32 0.0, %v1432
        %1434 = vdwg.mxu0
        %v1435 = vpack.c.bf16 %v1408, %v1406
        %v1436 = vpack.c.bf16 %v1433, %v1431
        %v1437 = vld [vmem:[%s5 + $0x20] sm:$0xf]
        %v1438 = vld [vmem:[%s5 + $0x24] sm:$0xf]
        %v1439 = vld [vmem:[%s5 + $0x28] sm:$0xf]
        %v1440 = vld [vmem:[%s5 + $0x2c] sm:$0xf]
        %v1445 = vunpack.c.l.b16 %v1437
        %v1446 = vunpack.c.l.b16 %v1438
        %v1447 = vunpack.c.l.b16 %v1439
        %v1448 = vunpack.c.l.b16 %v1440
        %v1449 = vpack.c.b16 %v1446, %v1445
        %v1450 = vpack.c.b16 %v1448, %v1447
        %v1454 = vsel %vm853, %v1435, 0
        %v1457 = vsel %vm853, %v1436, 0
        %1459 = vmatpush.bf16.msra.mxu0 0
        %1460 = vmatpush.bf16.msra.mxu0 0
        %1461 = vmatpush.bf16.msra.mxu0 0
        %1462 = vmatpush.bf16.msra.mxu0 0
        %1463 = vmatpush.bf16.msra.mxu0 0
        %1464 = vmatpush.bf16.msra.mxu0 0
        %1465 = vmatpush.bf16.msra.mxu0 %v1450
        %1466 = vmatpush.bf16.msra.mxu0 %v1449
        %1467 = vmatmul.bf16.gmra.mxu0 %v1454
        %v1468 = vpop.f32.mrf.mxu0
        %v1469 = vadd.f32 0.0, %v1468
        %v1470 = vpop.f32.mrf.mxu0
        %v1471 = vadd.f32 0.0, %v1470
        %1472 = vmatmul.bf16.gmra.mxu0 %v1457
        %v1473 = vpop.f32.mrf.mxu0
        %v1474 = vadd.f32 0.0, %v1473
        %v1475 = vpop.f32.mrf.mxu0
        %v1476 = vadd.f32 0.0, %v1475
        %1477 = vdwg.mxu0
        %v1478 = vadd.f32 %v1258, %v1469
        %v1479 = vadd.f32 %v1260, %v1471
        %v1480 = vadd.f32 %v1263, %v1474
        %v1481 = vadd.f32 %v1265, %v1476
        %1482 = vrot.lane.b32.xlu0 %v831, 32
        %v1483 = vpop.permute.xlu0 %1482
        %1484 = vrot.lane.b32.xlu0 %v833, 32
        %v1485 = vpop.permute.xlu0 %1484
        %1486 = vrot.lane.b32.xlu0 %v835, 32
        %v1487 = vpop.permute.xlu0 %1486
        %1488 = vrot.lane.b32.xlu0 %v837, 32
        %v1489 = vpop.permute.xlu0 %1488
        %v1490 = vrot.slane %v1483, 4
        %v1491 = vrot.slane %v1485, 4
        %v1492 = vrot.slane %v1487, 4
        %v1493 = vrot.slane %v1489, 4
        %1494 = vrot.lane.b32.xlu0 %v849, 32
        %v1495 = vpop.permute.xlu0 %1494
        %v1496 = vunpack.c.l.b16 %v1490
        %v1497 = vunpack.c.l.b16 %v1491
        %v1498 = vpack.c.b16 %v1497, %v1496
        %v1500 = vsel %vm853, %v1495, 0
        %v1503 = vsel %vm853, %v1498, 0
        %1505 = vmatpush.bf16.xpose.msra.mxu0 0
        %1506 = vmatpush.bf16.xpose.msra.mxu0 0
        %1507 = vmatpush.bf16.xpose.msra.mxu0 0
        %1508 = vmatpush.bf16.xpose.msra.mxu0 0
        %1509 = vmatpush.bf16.xpose.msra.mxu0 0
        %1510 = vmatpush.bf16.xpose.msra.mxu0 0
        %1511 = vmatpush.bf16.xpose.msra.mxu0 0
        %1512 = vmatpush.bf16.xpose.msra.mxu0 %v1503
        %1513 = vmatmul.bf16.gmra.mxu0 %v1500
        %v1514 = vpop.f32.mrf.mxu0
        %v1515 = vadd.f32 0.0, %v1514
        %v1516 = vpop.f32.mrf.mxu0
        %v1517 = vadd.f32 0.0, %v1516
        %1518 = vdwg.mxu0
        %1519 = vrot.lane.b32.xlu0 %v876, 32
        %v1520 = vpop.permute.xlu0 %1519
        %v1521 = vunpack.c.l.b16 %v1492
        %v1522 = vunpack.c.l.b16 %v1493
        %v1523 = vpack.c.b16 %v1522, %v1521
        %v1525 = vsel %vm853, %v1520, 0
        %v1528 = vsel %vm853, %v1523, 0
        %1530 = vmatpush.bf16.xpose.msra.mxu0 0
        %1531 = vmatpush.bf16.xpose.msra.mxu0 0
        %1532 = vmatpush.bf16.xpose.msra.mxu0 0
        %1533 = vmatpush.bf16.xpose.msra.mxu0 0
        %1534 = vmatpush.bf16.xpose.msra.mxu0 0
        %1535 = vmatpush.bf16.xpose.msra.mxu0 0
        %1536 = vmatpush.bf16.xpose.msra.mxu0 0
        %1537 = vmatpush.bf16.xpose.msra.mxu0 %v1528
        %1538 = vmatmul.bf16.gmra.mxu0 %v1525
        %v1539 = vpop.f32.mrf.mxu0
        %v1540 = vadd.f32 0.0, %v1539
        %v1541 = vpop.f32.mrf.mxu0
        %v1542 = vadd.f32 0.0, %v1541
        %1543 = vdwg.mxu0
        %v1544 = vmul.f32 %v1515, 0.17677669
        %v1545 = vmul.f32 %v1517, 0.17677669
        %v1546 = vmul.f32 %v1540, 0.17677669
        %v1547 = vmul.f32 %v1542, 0.17677669
        %v1548 = vadd.f32 %v1544, %v481
        %v1549 = vadd.f32 %v1545, %v481
        %v1550 = vadd.f32 %v1546, %v481
        %v1551 = vadd.f32 %v1547, %v481
        %v1552 = vsel %vm908, %v1548, -inf
        %1553 = vmax.xlane.f32.xlu0 %v1552
        %v1554 = vpop.xlane.xlu0 %1553
        %v1555 = vsel %vm908, %v1549, -inf
        %1556 = vmax.xlane.f32.xlu0 %v1555
        %v1557 = vpop.xlane.xlu0 %1556
        %v1558 = vsel %vm908, %v1550, -inf
        %1559 = vmax.xlane.f32.xlu0 %v1558
        %v1560 = vpop.xlane.xlu0 %1559
        %v1561 = vsel %vm908, %v1551, -inf
        %1562 = vmax.xlane.f32.xlu0 %v1561
        %v1563 = vpop.xlane.xlu0 %1562
        %v1564 = vsub.f32 %v1548, %v1554
        %v1565 = vsub.f32 %v1549, %v1557
        %v1566 = vsub.f32 %v1550, %v1560
        %v1567 = vsub.f32 %v1551, %v1563
        %v1568 = vmul.f32 %v1564, 1.442695
        %v1569 = vpow.pop %v1568
        %v1570 = vmul.f32 %v1565, 1.442695
        %v1571 = vpow.pop %v1570
        %v1572 = vmul.f32 %v1566, 1.442695
        %v1573 = vpow.pop %v1572
        %v1574 = vmul.f32 %v1567, 1.442695
        %v1575 = vpow.pop %v1574
        %v1576 = vsel %vm908, %v1569, 0.0
        %1577 = vadd.xlane.f32.xlu0 %v1576
        %v1578 = vpop.xlane.xlu0 %1577
        %v1579 = vsel %vm908, %v1571, 0.0
        %1580 = vadd.xlane.f32.xlu0 %v1579
        %v1581 = vpop.xlane.xlu0 %1580
        %v1582 = vsel %vm908, %v1573, 0.0
        %1583 = vadd.xlane.f32.xlu0 %v1582
        %v1584 = vpop.xlane.xlu0 %1583
        %v1585 = vsel %vm908, %v1575, 0.0
        %1586 = vadd.xlane.f32.xlu0 %v1585
        %v1587 = vpop.xlane.xlu0 %1586
        %v1588 = vrcp.pop %v1578
        %v1589 = vrcp.pop %v1581
        %v1590 = vrcp.pop %v1584
        %v1591 = vrcp.pop %v1587
        %v1592 = vmul.f32 %v1569, %v1588
        %v1593 = vmul.f32 %v1571, %v1589
        %v1594 = vmul.f32 %v1573, %v1590
        %v1595 = vmul.f32 %v1575, %v1591
        %v1596 = vpack.c.bf16 %v1592, %v1592
        %v1597 = vpack.c.bf16 %v1593, %v1593
        %v1598 = vpack.c.bf16 %v1594, %v1594
        %v1599 = vpack.c.bf16 %v1595, %v1595
        %v1602 = vunpack.c.l.b16 %v1596
        %v1603 = vunpack.c.l.b16 %v1597
        %v1604 = vpack.c.b16 %v1603, %v1602
        %1605 = vrot.lane.b32.xlu0 %v966, 32
        %v1606 = vpop.permute.xlu0 %1605
        %v1609 = vsel %vm908, %v1604, 0
        %1611 = vmatpush.bf16.msra.mxu0 0
        %1612 = vmatpush.bf16.msra.mxu0 0
        %1613 = vmatpush.bf16.msra.mxu0 0
        %1614 = vmatpush.bf16.msra.mxu0 0
        %1615 = vmatpush.bf16.msra.mxu0 0
        %1616 = vmatpush.bf16.msra.mxu0 0
        %1617 = vmatpush.bf16.msra.mxu0 0
        %1618 = vmatpush.bf16.msra.mxu0 %v1606
        %1619 = vmatmul.bf16.gmra.mxu0 %v1609
        %v1620 = vpop.f32.mrf.mxu0
        %v1621 = vadd.f32 0.0, %v1620
        %v1622 = vpop.f32.mrf.mxu0
        %v1623 = vadd.f32 0.0, %v1622
        %1624 = vdwg.mxu0
        %v1627 = vunpack.c.l.b16 %v1598
        %v1628 = vunpack.c.l.b16 %v1599
        %v1629 = vpack.c.b16 %v1628, %v1627
        %1630 = vrot.lane.b32.xlu0 %v994, 32
        %v1631 = vpop.permute.xlu0 %1630
        %v1634 = vsel %vm908, %v1629, 0
        %1636 = vmatpush.bf16.msra.mxu0 0
        %1637 = vmatpush.bf16.msra.mxu0 0
        %1638 = vmatpush.bf16.msra.mxu0 0
        %1639 = vmatpush.bf16.msra.mxu0 0
        %1640 = vmatpush.bf16.msra.mxu0 0
        %1641 = vmatpush.bf16.msra.mxu0 0
        %1642 = vmatpush.bf16.msra.mxu0 0
        %1643 = vmatpush.bf16.msra.mxu0 %v1631
        %1644 = vmatmul.bf16.gmra.mxu0 %v1634
        %v1645 = vpop.f32.mrf.mxu0
        %v1646 = vadd.f32 0.0, %v1645
        %v1647 = vpop.f32.mrf.mxu0
        %v1648 = vadd.f32 0.0, %v1647
        %1649 = vdwg.mxu0
        %v1650 = vpack.c.bf16 %v1623, %v1621
        %v1651 = vpack.c.bf16 %v1648, %v1646
        %v1652 = vld [vmem:[%s5 + $0x30] sm:$0xf]
        %v1653 = vld [vmem:[%s5 + $0x34] sm:$0xf]
        %v1654 = vld [vmem:[%s5 + $0x38] sm:$0xf]
        %v1655 = vld [vmem:[%s5 + $0x3c] sm:$0xf]
        %v1660 = vunpack.c.l.b16 %v1652
        %v1661 = vunpack.c.l.b16 %v1653
        %v1662 = vunpack.c.l.b16 %v1654
        %v1663 = vunpack.c.l.b16 %v1655
        %v1664 = vpack.c.b16 %v1661, %v1660
        %v1665 = vpack.c.b16 %v1663, %v1662
        %v1669 = vsel %vm853, %v1650, 0
        %v1672 = vsel %vm853, %v1651, 0
        %1674 = vmatpush.bf16.msra.mxu0 0
        %1675 = vmatpush.bf16.msra.mxu0 0
        %1676 = vmatpush.bf16.msra.mxu0 0
        %1677 = vmatpush.bf16.msra.mxu0 0
        %1678 = vmatpush.bf16.msra.mxu0 0
        %1679 = vmatpush.bf16.msra.mxu0 0
        %1680 = vmatpush.bf16.msra.mxu0 %v1665
        %1681 = vmatpush.bf16.msra.mxu0 %v1664
        %1682 = vmatmul.bf16.gmra.mxu0 %v1669
        %v1683 = vpop.f32.mrf.mxu0
        %v1684 = vadd.f32 0.0, %v1683
        %v1685 = vpop.f32.mrf.mxu0
        %v1686 = vadd.f32 0.0, %v1685
        %1687 = vmatmul.bf16.gmra.mxu0 %v1672
        %v1688 = vpop.f32.mrf.mxu0
        %v1689 = vadd.f32 0.0, %v1688
        %v1690 = vpop.f32.mrf.mxu0
        %v1691 = vadd.f32 0.0, %v1690
        %1692 = vdwg.mxu0
        %v1693 = vadd.f32 %v1478, %v1684
        %v1694 = vadd.f32 %v1479, %v1686
        %v1695 = vadd.f32 %v1480, %v1689
        %v1696 = vadd.f32 %v1481, %v1691
        %v1697 = vld [vmem:[%s6] sm:$0x1]
        %v1699 = vperm.slane %v1697, 0
        %v1701 = vadd.f32 %v1693, %v1699
        %v1702 = vadd.f32 %v1694, %v1699
        %v1703 = vadd.f32 %v1695, %v1699
        %v1704 = vadd.f32 %v1696, %v1699
        %v1705 = vmul.f32 %v1701, %v489
        %v1706 = vmul.f32 %v1702, %v490
        %v1707 = vmul.f32 %v1703, %v489
        %v1708 = vmul.f32 %v1704, %v490
        %v1709 = vadd.f32 %v474, %v1705
        %v1710 = vadd.f32 %v475, %v1706
        %v1711 = vadd.f32 %v476, %v1707
        %v1712 = vadd.f32 %v477, %v1708
        %1713 = vadd.xlane.f32.xlu0 %v1709
        %v1714 = vpop.xlane.xlu0 %1713
        %1715 = vadd.xlane.f32.xlu0 %v1710
        %v1716 = vpop.xlane.xlu0 %1715
        %1717 = vadd.xlane.f32.xlu0 %v1711
        %v1718 = vpop.xlane.xlu0 %1717
        %1719 = vadd.xlane.f32.xlu0 %v1712
        %v1720 = vpop.xlane.xlu0 %1719
        %v1721 = vmul.f32 %v1714, %v505
        %v1722 = vmul.f32 %v1716, %v505
        %v1723 = vmul.f32 %v1718, %v505
        %v1724 = vmul.f32 %v1720, %v505
        %v1725 = vsub.f32 %v1709, %v1721
        %v1726 = vsub.f32 %v1710, %v1722
        %v1727 = vsub.f32 %v1711, %v1723
        %v1728 = vsub.f32 %v1712, %v1724
        %v1729 = vmul.f32 %v1725, %v1725
        %v1730 = vmul.f32 %v1726, %v1726
        %v1731 = vmul.f32 %v1727, %v1727
        %v1732 = vmul.f32 %v1728, %v1728
        %1733 = vadd.xlane.f32.xlu0 %v1729
        %v1734 = vpop.xlane.xlu0 %1733
        %1735 = vadd.xlane.f32.xlu0 %v1730
        %v1736 = vpop.xlane.xlu0 %1735
        %1737 = vadd.xlane.f32.xlu0 %v1731
        %v1738 = vpop.xlane.xlu0 %1737
        %1739 = vadd.xlane.f32.xlu0 %v1732
        %v1740 = vpop.xlane.xlu0 %1739
        %v1741 = vmul.f32 %v1734, %v505
        %v1742 = vmul.f32 %v1736, %v505
        %v1743 = vmul.f32 %v1738, %v505
        %v1744 = vmul.f32 %v1740, %v505
        %v1745 = vadd.f32 %v1741, 1e-05
        %v1746 = vadd.f32 %v1742, 1e-05
        %v1747 = vadd.f32 %v1743, 1e-05
        %v1748 = vadd.f32 %v1744, 1e-05
        %v1749 = vrsqrt.pop %v1745
        %v1750 = vmul.f32 %v1749, %v1745
        %v1751 = vmul.f32 %v1750, %v1749
        %v1752 = vmul.f32 0.5, %v1751
        %v1753 = vsub.f32 1.5, %v1752
        %v1754 = vmul.f32 %v1749, %v1753
        %vm1755 = vweird.f32 %v1745
        %vm1756 = vweird.f32 %v1749
        %vm1757 = vmor %vm1755, %vm1756
        %v1758 = vsel %vm1757, %v1749, %v1754
        %v1759 = vrsqrt.pop %v1746
        %v1760 = vmul.f32 %v1759, %v1746
        %v1761 = vmul.f32 %v1760, %v1759
        %v1762 = vmul.f32 0.5, %v1761
        %v1763 = vsub.f32 1.5, %v1762
        %v1764 = vmul.f32 %v1759, %v1763
        %vm1765 = vweird.f32 %v1746
        %vm1766 = vweird.f32 %v1759
        %vm1767 = vmor %vm1765, %vm1766
        %v1768 = vsel %vm1767, %v1759, %v1764
        %v1769 = vrsqrt.pop %v1747
        %v1770 = vmul.f32 %v1769, %v1747
        %v1771 = vmul.f32 %v1770, %v1769
        %v1772 = vmul.f32 0.5, %v1771
        %v1773 = vsub.f32 1.5, %v1772
        %v1774 = vmul.f32 %v1769, %v1773
        %vm1775 = vweird.f32 %v1747
        %vm1776 = vweird.f32 %v1769
        %vm1777 = vmor %vm1775, %vm1776
        %v1778 = vsel %vm1777, %v1769, %v1774
        %v1779 = vrsqrt.pop %v1748
        %v1780 = vmul.f32 %v1779, %v1748
        %v1781 = vmul.f32 %v1780, %v1779
        %v1782 = vmul.f32 0.5, %v1781
        %v1783 = vsub.f32 1.5, %v1782
        %v1784 = vmul.f32 %v1779, %v1783
        %vm1785 = vweird.f32 %v1748
        %vm1786 = vweird.f32 %v1779
        %vm1787 = vmor %vm1785, %vm1786
        %v1788 = vsel %vm1787, %v1779, %v1784
        %v1789 = vmul.f32 %v1725, %v1758
        %v1790 = vmul.f32 %v1726, %v1768
        %v1791 = vmul.f32 %v1727, %v1778
        %v1792 = vmul.f32 %v1728, %v1788
        %v1793 = vld [vmem:[%s464] sm:$0x1]
        %v1794 = vld [vmem:[%s464 + $0x2] sm:$0x1]
        %v1795 = vld [vmem:[%s464 + $0x1] sm:$0x1]
        %v1796 = vld [vmem:[%s464 + $0x3] sm:$0x1]
        %v1797 = vadd.f32 %v1795, 1.0
        %v1798 = vadd.f32 %v1796, 1.0
        %v1801 = vperm.slane %v1797, 0
        %v1802 = vperm.slane %v1798, 0
        %v1805 = vmul.f32 %v1789, %v1801
        %v1806 = vmul.f32 %v1790, %v1801
        %v1807 = vmul.f32 %v1791, %v1802
        %v1808 = vmul.f32 %v1792, %v1802
        %v1811 = vperm.slane %v1793, 0
        %v1812 = vperm.slane %v1794, 0
        %v1815 = vadd.f32 %v1805, %v1811
        %v1816 = vadd.f32 %v1806, %v1811
        %v1817 = vadd.f32 %v1807, %v1812
        %v1818 = vadd.f32 %v1808, %v1812
        %v1819 = vpack.c.bf16 %v1816, %v1815
        %v1820 = vpack.c.bf16 %v1818, %v1817
        %v1821 = vld [vmem:[%s7] sm:$0xff]
        %v1822 = vld [vmem:[%s7 + $0x8] sm:$0xff]
        %v1823 = vld [vmem:[%s7 + $0x10] sm:$0xff]
        %v1824 = vld [vmem:[%s7 + $0x18] sm:$0xff]
        %v1825 = vld [vmem:[%s7 + $0x20] sm:$0xff]
        %v1826 = vld [vmem:[%s7 + $0x28] sm:$0xff]
        %v1827 = vld [vmem:[%s7 + $0x30] sm:$0xff]
        %v1828 = vld [vmem:[%s7 + $0x38] sm:$0xff]
        %v1829 = vld [vmem:[%s7 + $0x40] sm:$0xff]
        %v1830 = vld [vmem:[%s7 + $0x48] sm:$0xff]
        %v1831 = vld [vmem:[%s7 + $0x50] sm:$0xff]
        %v1832 = vld [vmem:[%s7 + $0x58] sm:$0xff]
        %v1833 = vld [vmem:[%s7 + $0x60] sm:$0xff]
        %v1834 = vld [vmem:[%s7 + $0x68] sm:$0xff]
        %v1835 = vld [vmem:[%s7 + $0x70] sm:$0xff]
        %v1836 = vld [vmem:[%s7 + $0x78] sm:$0xff]
        %v1837 = vld [vmem:[%s7 + $0x80] sm:$0xff]
        %v1838 = vld [vmem:[%s7 + $0x88] sm:$0xff]
        %v1839 = vld [vmem:[%s7 + $0x90] sm:$0xff]
        %v1840 = vld [vmem:[%s7 + $0x98] sm:$0xff]
        %v1841 = vld [vmem:[%s7 + $0xa0] sm:$0xff]
        %v1842 = vld [vmem:[%s7 + $0xa8] sm:$0xff]
        %v1843 = vld [vmem:[%s7 + $0xb0] sm:$0xff]
        %v1844 = vld [vmem:[%s7 + $0xb8] sm:$0xff]
        %v1845 = vld [vmem:[%s7 + $0xc0] sm:$0xff]
        %v1846 = vld [vmem:[%s7 + $0xc8] sm:$0xff]
        %v1847 = vld [vmem:[%s7 + $0xd0] sm:$0xff]
        %v1848 = vld [vmem:[%s7 + $0xd8] sm:$0xff]
        %v1849 = vld [vmem:[%s7 + $0xe0] sm:$0xff]
        %v1850 = vld [vmem:[%s7 + $0xe8] sm:$0xff]
        %v1851 = vld [vmem:[%s7 + $0xf0] sm:$0xff]
        %v1852 = vld [vmem:[%s7 + $0xf8] sm:$0xff]
        %v1853 = vld [vmem:[%s8] sm:$0xf]
        %v1855 = vperm.slane %v1853, 0
        %v1856 = vperm.slane %v1853, 1
        %v1857 = vperm.slane %v1853, 2
        %v1858 = vperm.slane %v1853, 3
        %v1895 = vunpack.c.l.b16 %v1821
        %v1896 = vunpack.c.h.b16 %v1821
        %v1897 = vunpack.c.l.b16 %v1822
        %v1898 = vunpack.c.h.b16 %v1822
        %v1899 = vunpack.c.l.b16 %v1823
        %v1900 = vunpack.c.h.b16 %v1823
        %v1901 = vunpack.c.l.b16 %v1824
        %v1902 = vunpack.c.h.b16 %v1824
        %v1903 = vunpack.c.l.b16 %v1825
        %v1904 = vunpack.c.h.b16 %v1825
        %v1905 = vunpack.c.l.b16 %v1826
        %v1906 = vunpack.c.h.b16 %v1826
        %v1907 = vunpack.c.l.b16 %v1827
        %v1908 = vunpack.c.h.b16 %v1827
        %v1909 = vunpack.c.l.b16 %v1828
        %v1910 = vunpack.c.h.b16 %v1828
        %v1911 = vunpack.c.l.b16 %v1829
        %v1912 = vunpack.c.h.b16 %v1829
        %v1913 = vunpack.c.l.b16 %v1830
        %v1914 = vunpack.c.h.b16 %v1830
        %v1915 = vunpack.c.l.b16 %v1831
        %v1916 = vunpack.c.h.b16 %v1831
        %v1917 = vunpack.c.l.b16 %v1832
        %v1918 = vunpack.c.h.b16 %v1832
        %v1919 = vunpack.c.l.b16 %v1833
        %v1920 = vunpack.c.h.b16 %v1833
        %v1921 = vunpack.c.l.b16 %v1834
        %v1922 = vunpack.c.h.b16 %v1834
        %v1923 = vunpack.c.l.b16 %v1835
        %v1924 = vunpack.c.h.b16 %v1835
        %v1925 = vunpack.c.l.b16 %v1836
        %v1926 = vunpack.c.h.b16 %v1836
        %v1927 = vunpack.c.l.b16 %v1837
        %v1928 = vunpack.c.h.b16 %v1837
        %v1929 = vunpack.c.l.b16 %v1838
        %v1930 = vunpack.c.h.b16 %v1838
        %v1931 = vunpack.c.l.b16 %v1839
        %v1932 = vunpack.c.h.b16 %v1839
        %v1933 = vunpack.c.l.b16 %v1840
        %v1934 = vunpack.c.h.b16 %v1840
        %v1935 = vunpack.c.l.b16 %v1841
        %v1936 = vunpack.c.h.b16 %v1841
        %v1937 = vunpack.c.l.b16 %v1842
        %v1938 = vunpack.c.h.b16 %v1842
        %v1939 = vunpack.c.l.b16 %v1843
        %v1940 = vunpack.c.h.b16 %v1843
        %v1941 = vunpack.c.l.b16 %v1844
        %v1942 = vunpack.c.h.b16 %v1844
        %v1943 = vunpack.c.l.b16 %v1845
        %v1944 = vunpack.c.h.b16 %v1845
        %v1945 = vunpack.c.l.b16 %v1846
        %v1946 = vunpack.c.h.b16 %v1846
        %v1947 = vunpack.c.l.b16 %v1847
        %v1948 = vunpack.c.h.b16 %v1847
        %v1949 = vunpack.c.l.b16 %v1848
        %v1950 = vunpack.c.h.b16 %v1848
        %v1951 = vunpack.c.l.b16 %v1849
        %v1952 = vunpack.c.h.b16 %v1849
        %v1953 = vunpack.c.l.b16 %v1850
        %v1954 = vunpack.c.h.b16 %v1850
        %v1955 = vunpack.c.l.b16 %v1851
        %v1956 = vunpack.c.h.b16 %v1851
        %v1957 = vunpack.c.l.b16 %v1852
        %v1958 = vunpack.c.h.b16 %v1852
        %v1959 = vpack.c.b16 %v1899, %v1895
        %v1960 = vpack.c.b16 %v1900, %v1896
        %v1961 = vpack.c.b16 %v1901, %v1897
        %v1962 = vpack.c.b16 %v1902, %v1898
        %v1963 = vpack.c.b16 %v1907, %v1903
        %v1964 = vpack.c.b16 %v1908, %v1904
        %v1965 = vpack.c.b16 %v1909, %v1905
        %v1966 = vpack.c.b16 %v1910, %v1906
        %v1967 = vpack.c.b16 %v1915, %v1911
        %v1968 = vpack.c.b16 %v1916, %v1912
        %v1969 = vpack.c.b16 %v1917, %v1913
        %v1970 = vpack.c.b16 %v1918, %v1914
        %v1971 = vpack.c.b16 %v1923, %v1919
        %v1972 = vpack.c.b16 %v1924, %v1920
        %v1973 = vpack.c.b16 %v1925, %v1921
        %v1974 = vpack.c.b16 %v1926, %v1922
        %v1975 = vpack.c.b16 %v1931, %v1927
        %v1976 = vpack.c.b16 %v1932, %v1928
        %v1977 = vpack.c.b16 %v1933, %v1929
        %v1978 = vpack.c.b16 %v1934, %v1930
        %v1979 = vpack.c.b16 %v1939, %v1935
        %v1980 = vpack.c.b16 %v1940, %v1936
        %v1981 = vpack.c.b16 %v1941, %v1937
        %v1982 = vpack.c.b16 %v1942, %v1938
        %v1983 = vpack.c.b16 %v1947, %v1943
        %v1984 = vpack.c.b16 %v1948, %v1944
        %v1985 = vpack.c.b16 %v1949, %v1945
        %v1986 = vpack.c.b16 %v1950, %v1946
        %v1987 = vpack.c.b16 %v1955, %v1951
        %v1988 = vpack.c.b16 %v1956, %v1952
        %v1989 = vpack.c.b16 %v1957, %v1953
        %v1990 = vpack.c.b16 %v1958, %v1954
        %2023 = vmatpush.bf16.msra.mxu0 %v1987
        %2024 = vmatpush.bf16.msra.mxu0 %v1983
        %2025 = vmatpush.bf16.msra.mxu0 %v1979
        %2026 = vmatpush.bf16.msra.mxu0 %v1975
        %2027 = vmatpush.bf16.msra.mxu0 %v1971
        %2028 = vmatpush.bf16.msra.mxu0 %v1967
        %2029 = vmatpush.bf16.msra.mxu0 %v1963
        %2030 = vmatpush.bf16.msra.mxu0 %v1959
        %2031 = vmatmul.bf16.gmra.mxu0 %v1819
        %v2032 = vpop.f32.mrf.mxu0
        %v2033 = vadd.f32 %v1855, %v2032
        %v2034 = vpop.f32.mrf.mxu0
        %v2035 = vadd.f32 %v1855, %v2034
        %2036 = vmatmul.bf16.gmra.mxu0 %v1820
        %v2037 = vpop.f32.mrf.mxu0
        %v2038 = vadd.f32 %v1855, %v2037
        %v2039 = vpop.f32.mrf.mxu0
        %v2040 = vadd.f32 %v1855, %v2039
        %2041 = vdwg.mxu0
        %2042 = vmatpush.bf16.msra.mxu0 %v1988
        %2043 = vmatpush.bf16.msra.mxu0 %v1984
        %2044 = vmatpush.bf16.msra.mxu0 %v1980
        %2045 = vmatpush.bf16.msra.mxu0 %v1976
        %2046 = vmatpush.bf16.msra.mxu0 %v1972
        %2047 = vmatpush.bf16.msra.mxu0 %v1968
        %2048 = vmatpush.bf16.msra.mxu0 %v1964
        %2049 = vmatpush.bf16.msra.mxu0 %v1960
        %2050 = vmatmul.bf16.gmra.mxu0 %v1819
        %v2051 = vpop.f32.mrf.mxu0
        %v2052 = vadd.f32 %v1856, %v2051
        %v2053 = vpop.f32.mrf.mxu0
        %v2054 = vadd.f32 %v1856, %v2053
        %2055 = vmatmul.bf16.gmra.mxu0 %v1820
        %v2056 = vpop.f32.mrf.mxu0
        %v2057 = vadd.f32 %v1856, %v2056
        %v2058 = vpop.f32.mrf.mxu0
        %v2059 = vadd.f32 %v1856, %v2058
        %2060 = vdwg.mxu0
        %2061 = vmatpush.bf16.msra.mxu0 %v1989
        %2062 = vmatpush.bf16.msra.mxu0 %v1985
        %2063 = vmatpush.bf16.msra.mxu0 %v1981
        %2064 = vmatpush.bf16.msra.mxu0 %v1977
        %2065 = vmatpush.bf16.msra.mxu0 %v1973
        %2066 = vmatpush.bf16.msra.mxu0 %v1969
        %2067 = vmatpush.bf16.msra.mxu0 %v1965
        %2068 = vmatpush.bf16.msra.mxu0 %v1961
        %2069 = vmatmul.bf16.gmra.mxu0 %v1819
        %v2070 = vpop.f32.mrf.mxu0
        %v2071 = vadd.f32 %v1857, %v2070
        %v2072 = vpop.f32.mrf.mxu0
        %v2073 = vadd.f32 %v1857, %v2072
        %2074 = vmatmul.bf16.gmra.mxu0 %v1820
        %v2075 = vpop.f32.mrf.mxu0
        %v2076 = vadd.f32 %v1857, %v2075
        %v2077 = vpop.f32.mrf.mxu0
        %v2078 = vadd.f32 %v1857, %v2077
        %2079 = vdwg.mxu0
        %2080 = vmatpush.bf16.msra.mxu0 %v1990
        %2081 = vmatpush.bf16.msra.mxu0 %v1986
        %2082 = vmatpush.bf16.msra.mxu0 %v1982
        %2083 = vmatpush.bf16.msra.mxu0 %v1978
        %2084 = vmatpush.bf16.msra.mxu0 %v1974
        %2085 = vmatpush.bf16.msra.mxu0 %v1970
        %2086 = vmatpush.bf16.msra.mxu0 %v1966
        %2087 = vmatpush.bf16.msra.mxu0 %v1962
        %2088 = vmatmul.bf16.gmra.mxu0 %v1819
        %v2089 = vpop.f32.mrf.mxu0
        %v2090 = vadd.f32 %v1858, %v2089
        %v2091 = vpop.f32.mrf.mxu0
        %v2092 = vadd.f32 %v1858, %v2091
        %2093 = vmatmul.bf16.gmra.mxu0 %v1820
        %v2094 = vpop.f32.mrf.mxu0
        %v2095 = vadd.f32 %v1858, %v2094
        %v2096 = vpop.f32.mrf.mxu0
        %v2097 = vadd.f32 %v1858, %v2096
        %2098 = vdwg.mxu0
        %v2099 = vmul.f32 %v2033, %v2033
        %v2100 = vmul.f32 %v2052, %v2052
        %v2101 = vmul.f32 %v2071, %v2071
        %v2102 = vmul.f32 %v2090, %v2090
        %v2103 = vmul.f32 %v2035, %v2035
        %v2104 = vmul.f32 %v2054, %v2054
        %v2105 = vmul.f32 %v2073, %v2073
        %v2106 = vmul.f32 %v2092, %v2092
        %v2107 = vmul.f32 %v2038, %v2038
        %v2108 = vmul.f32 %v2057, %v2057
        %v2109 = vmul.f32 %v2076, %v2076
        %v2110 = vmul.f32 %v2095, %v2095
        %v2111 = vmul.f32 %v2040, %v2040
        %v2112 = vmul.f32 %v2059, %v2059
        %v2113 = vmul.f32 %v2078, %v2078
        %v2114 = vmul.f32 %v2097, %v2097
        %v2115 = vmul.f32 %v2033, %v2099
        %v2116 = vmul.f32 %v2052, %v2100
        %v2117 = vmul.f32 %v2071, %v2101
        %v2118 = vmul.f32 %v2090, %v2102
        %v2119 = vmul.f32 %v2035, %v2103
        %v2120 = vmul.f32 %v2054, %v2104
        %v2121 = vmul.f32 %v2073, %v2105
        %v2122 = vmul.f32 %v2092, %v2106
        %v2123 = vmul.f32 %v2038, %v2107
        %v2124 = vmul.f32 %v2057, %v2108
        %v2125 = vmul.f32 %v2076, %v2109
        %v2126 = vmul.f32 %v2095, %v2110
        %v2127 = vmul.f32 %v2040, %v2111
        %v2128 = vmul.f32 %v2059, %v2112
        %v2129 = vmul.f32 %v2078, %v2113
        %v2130 = vmul.f32 %v2097, %v2114
        %v2131 = vmul.f32 %v2115, 0.044715
        %v2132 = vmul.f32 %v2116, 0.044715
        %v2133 = vmul.f32 %v2117, 0.044715
        %v2134 = vmul.f32 %v2118, 0.044715
        %v2135 = vmul.f32 %v2119, 0.044715
        %v2136 = vmul.f32 %v2120, 0.044715
        %v2137 = vmul.f32 %v2121, 0.044715
        %v2138 = vmul.f32 %v2122, 0.044715
        %v2139 = vmul.f32 %v2123, 0.044715
        %v2140 = vmul.f32 %v2124, 0.044715
        %v2141 = vmul.f32 %v2125, 0.044715
        %v2142 = vmul.f32 %v2126, 0.044715
        %v2143 = vmul.f32 %v2127, 0.044715
        %v2144 = vmul.f32 %v2128, 0.044715
        %v2145 = vmul.f32 %v2129, 0.044715
        %v2146 = vmul.f32 %v2130, 0.044715
        %v2147 = vadd.f32 %v2033, %v2131
        %v2148 = vadd.f32 %v2052, %v2132
        %v2149 = vadd.f32 %v2071, %v2133
        %v2150 = vadd.f32 %v2090, %v2134
        %v2151 = vadd.f32 %v2035, %v2135
        %v2152 = vadd.f32 %v2054, %v2136
        %v2153 = vadd.f32 %v2073, %v2137
        %v2154 = vadd.f32 %v2092, %v2138
        %v2155 = vadd.f32 %v2038, %v2139
        %v2156 = vadd.f32 %v2057, %v2140
        %v2157 = vadd.f32 %v2076, %v2141
        %v2158 = vadd.f32 %v2095, %v2142
        %v2159 = vadd.f32 %v2040, %v2143
        %v2160 = vadd.f32 %v2059, %v2144
        %v2161 = vadd.f32 %v2078, %v2145
        %v2162 = vadd.f32 %v2097, %v2146
        %v2163 = vmul.f32 %v2147, 0.7978846
        %v2164 = vmul.f32 %v2148, 0.7978846
        %v2165 = vmul.f32 %v2149, 0.7978846
        %v2166 = vmul.f32 %v2150, 0.7978846
        %v2167 = vmul.f32 %v2151, 0.7978846
        %v2168 = vmul.f32 %v2152, 0.7978846
        %v2169 = vmul.f32 %v2153, 0.7978846
        %v2170 = vmul.f32 %v2154, 0.7978846
        %v2171 = vmul.f32 %v2155, 0.7978846
        %v2172 = vmul.f32 %v2156, 0.7978846
        %v2173 = vmul.f32 %v2157, 0.7978846
        %v2174 = vmul.f32 %v2158, 0.7978846
        %v2175 = vmul.f32 %v2159, 0.7978846
        %v2176 = vmul.f32 %v2160, 0.7978846
        %v2177 = vmul.f32 %v2161, 0.7978846
        %v2178 = vmul.f32 %v2162, 0.7978846
        %v2179 = vtanh.pop %v2163
        %v2180 = vtanh.pop %v2164
        %v2181 = vtanh.pop %v2165
        %v2182 = vtanh.pop %v2166
        %v2183 = vtanh.pop %v2167
        %v2184 = vtanh.pop %v2168
        %v2185 = vtanh.pop %v2169
        %v2186 = vtanh.pop %v2170
        %v2187 = vtanh.pop %v2171
        %v2188 = vtanh.pop %v2172
        %v2189 = vtanh.pop %v2173
        %v2190 = vtanh.pop %v2174
        %v2191 = vtanh.pop %v2175
        %v2192 = vtanh.pop %v2176
        %v2193 = vtanh.pop %v2177
        %v2194 = vtanh.pop %v2178
        %v2195 = vadd.f32 %v2179, 1.0
        %v2196 = vadd.f32 %v2180, 1.0
        %v2197 = vadd.f32 %v2181, 1.0
        %v2198 = vadd.f32 %v2182, 1.0
        %v2199 = vadd.f32 %v2183, 1.0
        %v2200 = vadd.f32 %v2184, 1.0
        %v2201 = vadd.f32 %v2185, 1.0
        %v2202 = vadd.f32 %v2186, 1.0
        %v2203 = vadd.f32 %v2187, 1.0
        %v2204 = vadd.f32 %v2188, 1.0
        %v2205 = vadd.f32 %v2189, 1.0
        %v2206 = vadd.f32 %v2190, 1.0
        %v2207 = vadd.f32 %v2191, 1.0
        %v2208 = vadd.f32 %v2192, 1.0
        %v2209 = vadd.f32 %v2193, 1.0
        %v2210 = vadd.f32 %v2194, 1.0
        %v2211 = vmul.f32 %v2195, 0.5
        %v2212 = vmul.f32 %v2196, 0.5
        %v2213 = vmul.f32 %v2197, 0.5
        %v2214 = vmul.f32 %v2198, 0.5
        %v2215 = vmul.f32 %v2199, 0.5
        %v2216 = vmul.f32 %v2200, 0.5
        %v2217 = vmul.f32 %v2201, 0.5
        %v2218 = vmul.f32 %v2202, 0.5
        %v2219 = vmul.f32 %v2203, 0.5
        %v2220 = vmul.f32 %v2204, 0.5
        %v2221 = vmul.f32 %v2205, 0.5
        %v2222 = vmul.f32 %v2206, 0.5
        %v2223 = vmul.f32 %v2207, 0.5
        %v2224 = vmul.f32 %v2208, 0.5
        %v2225 = vmul.f32 %v2209, 0.5
        %v2226 = vmul.f32 %v2210, 0.5
        %v2227 = vmul.f32 %v2033, %v2211
        %v2228 = vmul.f32 %v2052, %v2212
        %v2229 = vmul.f32 %v2071, %v2213
        %v2230 = vmul.f32 %v2090, %v2214
        %v2231 = vmul.f32 %v2035, %v2215
        %v2232 = vmul.f32 %v2054, %v2216
        %v2233 = vmul.f32 %v2073, %v2217
        %v2234 = vmul.f32 %v2092, %v2218
        %v2235 = vmul.f32 %v2038, %v2219
        %v2236 = vmul.f32 %v2057, %v2220
        %v2237 = vmul.f32 %v2076, %v2221
        %v2238 = vmul.f32 %v2095, %v2222
        %v2239 = vmul.f32 %v2040, %v2223
        %v2240 = vmul.f32 %v2059, %v2224
        %v2241 = vmul.f32 %v2078, %v2225
        %v2242 = vmul.f32 %v2097, %v2226
        %v2243 = vpack.c.bf16 %v2231, %v2227
        %v2244 = vpack.c.bf16 %v2232, %v2228
        %v2245 = vpack.c.bf16 %v2233, %v2229
        %v2246 = vpack.c.bf16 %v2234, %v2230
        %v2247 = vpack.c.bf16 %v2239, %v2235
        %v2248 = vpack.c.bf16 %v2240, %v2236
        %v2249 = vpack.c.bf16 %v2241, %v2237
        %v2250 = vpack.c.bf16 %v2242, %v2238
        %v2251 = vld [vmem:[#allocation4] sm:$0xf]
        %v2252 = vld [vmem:[#allocation4 + $0x4] sm:$0xf]
        %v2253 = vld [vmem:[#allocation4 + $0x8] sm:$0xf]
        %v2254 = vld [vmem:[#allocation4 + $0xc] sm:$0xf]
        %v2255 = vld [vmem:[#allocation4 + $0x10] sm:$0xf]
        %v2256 = vld [vmem:[#allocation4 + $0x14] sm:$0xf]
        %v2257 = vld [vmem:[#allocation4 + $0x18] sm:$0xf]
        %v2258 = vld [vmem:[#allocation4 + $0x1c] sm:$0xf]
        %v2259 = vld [vmem:[#allocation4 + $0x20] sm:$0xf]
        %v2260 = vld [vmem:[#allocation4 + $0x24] sm:$0xf]
        %v2261 = vld [vmem:[#allocation4 + $0x28] sm:$0xf]
        %v2262 = vld [vmem:[#allocation4 + $0x2c] sm:$0xf]
        %v2263 = vld [vmem:[#allocation4 + $0x30] sm:$0xf]
        %v2264 = vld [vmem:[#allocation4 + $0x34] sm:$0xf]
        %v2265 = vld [vmem:[#allocation4 + $0x38] sm:$0xf]
        %v2266 = vld [vmem:[#allocation4 + $0x3c] sm:$0xf]
        %v2267 = vld [vmem:[#allocation4 + $0x40] sm:$0xf]
        %v2268 = vld [vmem:[#allocation4 + $0x44] sm:$0xf]
        %v2269 = vld [vmem:[#allocation4 + $0x48] sm:$0xf]
        %v2270 = vld [vmem:[#allocation4 + $0x4c] sm:$0xf]
        %v2271 = vld [vmem:[#allocation4 + $0x50] sm:$0xf]
        %v2272 = vld [vmem:[#allocation4 + $0x54] sm:$0xf]
        %v2273 = vld [vmem:[#allocation4 + $0x58] sm:$0xf]
        %v2274 = vld [vmem:[#allocation4 + $0x5c] sm:$0xf]
        %v2275 = vld [vmem:[#allocation4 + $0x60] sm:$0xf]
        %v2276 = vld [vmem:[#allocation4 + $0x64] sm:$0xf]
        %v2277 = vld [vmem:[#allocation4 + $0x68] sm:$0xf]
        %v2278 = vld [vmem:[#allocation4 + $0x6c] sm:$0xf]
        %v2279 = vld [vmem:[#allocation4 + $0x70] sm:$0xf]
        %v2280 = vld [vmem:[#allocation4 + $0x74] sm:$0xf]
        %v2281 = vld [vmem:[#allocation4 + $0x78] sm:$0xf]
        %v2282 = vld [vmem:[#allocation4 + $0x7c] sm:$0xf]
        %v2283 = vld [vmem:[#allocation4 + $0x80] sm:$0xf]
        %v2284 = vld [vmem:[#allocation4 + $0x84] sm:$0xf]
        %v2285 = vld [vmem:[#allocation4 + $0x88] sm:$0xf]
        %v2286 = vld [vmem:[#allocation4 + $0x8c] sm:$0xf]
        %v2287 = vld [vmem:[#allocation4 + $0x90] sm:$0xf]
        %v2288 = vld [vmem:[#allocation4 + $0x94] sm:$0xf]
        %v2289 = vld [vmem:[#allocation4 + $0x98] sm:$0xf]
        %v2290 = vld [vmem:[#allocation4 + $0x9c] sm:$0xf]
        %v2291 = vld [vmem:[#allocation4 + $0xa0] sm:$0xf]
        %v2292 = vld [vmem:[#allocation4 + $0xa4] sm:$0xf]
        %v2293 = vld [vmem:[#allocation4 + $0xa8] sm:$0xf]
        %v2294 = vld [vmem:[#allocation4 + $0xac] sm:$0xf]
        %v2295 = vld [vmem:[#allocation4 + $0xb0] sm:$0xf]
        %v2296 = vld [vmem:[#allocation4 + $0xb4] sm:$0xf]
        %v2297 = vld [vmem:[#allocation4 + $0xb8] sm:$0xf]
        %v2298 = vld [vmem:[#allocation4 + $0xbc] sm:$0xf]
        %v2299 = vld [vmem:[#allocation4 + $0xc0] sm:$0xf]
        %v2300 = vld [vmem:[#allocation4 + $0xc4] sm:$0xf]
        %v2301 = vld [vmem:[#allocation4 + $0xc8] sm:$0xf]
        %v2302 = vld [vmem:[#allocation4 + $0xcc] sm:$0xf]
        %v2303 = vld [vmem:[#allocation4 + $0xd0] sm:$0xf]
        %v2304 = vld [vmem:[#allocation4 + $0xd4] sm:$0xf]
        %v2305 = vld [vmem:[#allocation4 + $0xd8] sm:$0xf]
        %v2306 = vld [vmem:[#allocation4 + $0xdc] sm:$0xf]
        %v2307 = vld [vmem:[#allocation4 + $0xe0] sm:$0xf]
        %v2308 = vld [vmem:[#allocation4 + $0xe4] sm:$0xf]
        %v2309 = vld [vmem:[#allocation4 + $0xe8] sm:$0xf]
        %v2310 = vld [vmem:[#allocation4 + $0xec] sm:$0xf]
        %v2311 = vld [vmem:[#allocation4 + $0xf0] sm:$0xf]
        %v2312 = vld [vmem:[#allocation4 + $0xf4] sm:$0xf]
        %v2313 = vld [vmem:[#allocation4 + $0xf8] sm:$0xf]
        %v2314 = vld [vmem:[#allocation4 + $0xfc] sm:$0xf]
        %v2315 = vld [vmem:[%s10] sm:$0x1]
        %v2317 = vperm.slane %v2315, 0
        %v2383 = vunpack.c.l.b16 %v2251
        %v2384 = vunpack.c.l.b16 %v2252
        %v2385 = vunpack.c.l.b16 %v2253
        %v2386 = vunpack.c.l.b16 %v2254
        %v2387 = vunpack.c.l.b16 %v2255
        %v2388 = vunpack.c.l.b16 %v2256
        %v2389 = vunpack.c.l.b16 %v2257
        %v2390 = vunpack.c.l.b16 %v2258
        %v2391 = vunpack.c.l.b16 %v2259
        %v2392 = vunpack.c.l.b16 %v2260
        %v2393 = vunpack.c.l.b16 %v2261
        %v2394 = vunpack.c.l.b16 %v2262
        %v2395 = vunpack.c.l.b16 %v2263
        %v2396 = vunpack.c.l.b16 %v2264
        %v2397 = vunpack.c.l.b16 %v2265
        %v2398 = vunpack.c.l.b16 %v2266
        %v2399 = vunpack.c.l.b16 %v2267
        %v2400 = vunpack.c.l.b16 %v2268
        %v2401 = vunpack.c.l.b16 %v2269
        %v2402 = vunpack.c.l.b16 %v2270
        %v2403 = vunpack.c.l.b16 %v2271
        %v2404 = vunpack.c.l.b16 %v2272
        %v2405 = vunpack.c.l.b16 %v2273
        %v2406 = vunpack.c.l.b16 %v2274
        %v2407 = vunpack.c.l.b16 %v2275
        %v2408 = vunpack.c.l.b16 %v2276
        %v2409 = vunpack.c.l.b16 %v2277
        %v2410 = vunpack.c.l.b16 %v2278
        %v2411 = vunpack.c.l.b16 %v2279
        %v2412 = vunpack.c.l.b16 %v2280
        %v2413 = vunpack.c.l.b16 %v2281
        %v2414 = vunpack.c.l.b16 %v2282
        %v2415 = vunpack.c.l.b16 %v2283
        %v2416 = vunpack.c.l.b16 %v2284
        %v2417 = vunpack.c.l.b16 %v2285
        %v2418 = vunpack.c.l.b16 %v2286
        %v2419 = vunpack.c.l.b16 %v2287
        %v2420 = vunpack.c.l.b16 %v2288
        %v2421 = vunpack.c.l.b16 %v2289
        %v2422 = vunpack.c.l.b16 %v2290
        %v2423 = vunpack.c.l.b16 %v2291
        %v2424 = vunpack.c.l.b16 %v2292
        %v2425 = vunpack.c.l.b16 %v2293
        %v2426 = vunpack.c.l.b16 %v2294
        %v2427 = vunpack.c.l.b16 %v2295
        %v2428 = vunpack.c.l.b16 %v2296
        %v2429 = vunpack.c.l.b16 %v2297
        %v2430 = vunpack.c.l.b16 %v2298
        %v2431 = vunpack.c.l.b16 %v2299
        %v2432 = vunpack.c.l.b16 %v2300
        %v2433 = vunpack.c.l.b16 %v2301
        %v2434 = vunpack.c.l.b16 %v2302
        %v2435 = vunpack.c.l.b16 %v2303
        %v2436 = vunpack.c.l.b16 %v2304
        %v2437 = vunpack.c.l.b16 %v2305
        %v2438 = vunpack.c.l.b16 %v2306
        %v2439 = vunpack.c.l.b16 %v2307
        %v2440 = vunpack.c.l.b16 %v2308
        %v2441 = vunpack.c.l.b16 %v2309
        %v2442 = vunpack.c.l.b16 %v2310
        %v2443 = vunpack.c.l.b16 %v2311
        %v2444 = vunpack.c.l.b16 %v2312
        %v2445 = vunpack.c.l.b16 %v2313
        %v2446 = vunpack.c.l.b16 %v2314
        %v2447 = vpack.c.b16 %v2384, %v2383
        %v2448 = vpack.c.b16 %v2386, %v2385
        %v2449 = vpack.c.b16 %v2388, %v2387
        %v2450 = vpack.c.b16 %v2390, %v2389
        %v2451 = vpack.c.b16 %v2392, %v2391
        %v2452 = vpack.c.b16 %v2394, %v2393
        %v2453 = vpack.c.b16 %v2396, %v2395
        %v2454 = vpack.c.b16 %v2398, %v2397
        %v2455 = vpack.c.b16 %v2400, %v2399
        %v2456 = vpack.c.b16 %v2402, %v2401
        %v2457 = vpack.c.b16 %v2404, %v2403
        %v2458 = vpack.c.b16 %v2406, %v2405
        %v2459 = vpack.c.b16 %v2408, %v2407
        %v2460 = vpack.c.b16 %v2410, %v2409
        %v2461 = vpack.c.b16 %v2412, %v2411
        %v2462 = vpack.c.b16 %v2414, %v2413
        %v2463 = vpack.c.b16 %v2416, %v2415
        %v2464 = vpack.c.b16 %v2418, %v2417
        %v2465 = vpack.c.b16 %v2420, %v2419
        %v2466 = vpack.c.b16 %v2422, %v2421
        %v2467 = vpack.c.b16 %v2424, %v2423
        %v2468 = vpack.c.b16 %v2426, %v2425
        %v2469 = vpack.c.b16 %v2428, %v2427
        %v2470 = vpack.c.b16 %v2430, %v2429
        %v2471 = vpack.c.b16 %v2432, %v2431
        %v2472 = vpack.c.b16 %v2434, %v2433
        %v2473 = vpack.c.b16 %v2436, %v2435
        %v2474 = vpack.c.b16 %v2438, %v2437
        %v2475 = vpack.c.b16 %v2440, %v2439
        %v2476 = vpack.c.b16 %v2442, %v2441
        %v2477 = vpack.c.b16 %v2444, %v2443
        %v2478 = vpack.c.b16 %v2446, %v2445
        %2511 = vmatpush.bf16.msra.mxu0 %v2454
        %2512 = vmatpush.bf16.msra.mxu0 %v2453
        %2513 = vmatpush.bf16.msra.mxu0 %v2452
        %2514 = vmatpush.bf16.msra.mxu0 %v2451
        %2515 = vmatpush.bf16.msra.mxu0 %v2450
        %2516 = vmatpush.bf16.msra.mxu0 %v2449
        %2517 = vmatpush.bf16.msra.mxu0 %v2448
        %2518 = vmatpush.bf16.msra.mxu0 %v2447
        %2519 = vmatmul.bf16.gmra.mxu0 %v2243
        %v2520 = vpop.f32.mrf.mxu0
        %v2521 = vadd.f32 %v2317, %v2520
        %v2522 = vpop.f32.mrf.mxu0
        %v2523 = vadd.f32 %v2317, %v2522
        %2524 = vmatmul.bf16.gmra.mxu0 %v2247
        %v2525 = vpop.f32.mrf.mxu0
        %v2526 = vadd.f32 %v2317, %v2525
        %v2527 = vpop.f32.mrf.mxu0
        %v2528 = vadd.f32 %v2317, %v2527
        %2529 = vdwg.mxu0
        %2530 = vmatpush.bf16.msra.mxu0 %v2462
        %2531 = vmatpush.bf16.msra.mxu0 %v2461
        %2532 = vmatpush.bf16.msra.mxu0 %v2460
        %2533 = vmatpush.bf16.msra.mxu0 %v2459
        %2534 = vmatpush.bf16.msra.mxu0 %v2458
        %2535 = vmatpush.bf16.msra.mxu0 %v2457
        %2536 = vmatpush.bf16.msra.mxu0 %v2456
        %2537 = vmatpush.bf16.msra.mxu0 %v2455
        %2538 = vmatmul.bf16.gmra.mxu0 %v2244
        %v2539 = vpop.f32.mrf.mxu0
        %v2540 = vadd.f32 %v2521, %v2539
        %v2541 = vpop.f32.mrf.mxu0
        %v2542 = vadd.f32 %v2523, %v2541
        %2543 = vmatmul.bf16.gmra.mxu0 %v2248
        %v2544 = vpop.f32.mrf.mxu0
        %v2545 = vadd.f32 %v2526, %v2544
        %v2546 = vpop.f32.mrf.mxu0
        %v2547 = vadd.f32 %v2528, %v2546
        %2548 = vdwg.mxu0
        %2549 = vmatpush.bf16.msra.mxu0 %v2470
        %2550 = vmatpush.bf16.msra.mxu0 %v2469
        %2551 = vmatpush.bf16.msra.mxu0 %v2468
        %2552 = vmatpush.bf16.msra.mxu0 %v2467
        %2553 = vmatpush.bf16.msra.mxu0 %v2466
        %2554 = vmatpush.bf16.msra.mxu0 %v2465
        %2555 = vmatpush.bf16.msra.mxu0 %v2464
        %2556 = vmatpush.bf16.msra.mxu0 %v2463
        %2557 = vmatmul.bf16.gmra.mxu0 %v2245
        %v2558 = vpop.f32.mrf.mxu0
        %v2559 = vadd.f32 %v2540, %v2558
        %v2560 = vpop.f32.mrf.mxu0
        %v2561 = vadd.f32 %v2542, %v2560
        %2562 = vmatmul.bf16.gmra.mxu0 %v2249
        %v2563 = vpop.f32.mrf.mxu0
        %v2564 = vadd.f32 %v2545, %v2563
        %v2565 = vpop.f32.mrf.mxu0
        %v2566 = vadd.f32 %v2547, %v2565
        %2567 = vdwg.mxu0
        %2568 = vmatpush.bf16.msra.mxu0 %v2478
        %2569 = vmatpush.bf16.msra.mxu0 %v2477
        %2570 = vmatpush.bf16.msra.mxu0 %v2476
        %2571 = vmatpush.bf16.msra.mxu0 %v2475
        %2572 = vmatpush.bf16.msra.mxu0 %v2474
        %2573 = vmatpush.bf16.msra.mxu0 %v2473
        %2574 = vmatpush.bf16.msra.mxu0 %v2472
        %2575 = vmatpush.bf16.msra.mxu0 %v2471
        %2576 = vmatmul.bf16.gmra.mxu0 %v2246
        %v2577 = vpop.f32.mrf.mxu0
        %v2578 = vadd.f32 %v2559, %v2577
        %v2579 = vpop.f32.mrf.mxu0
        %v2580 = vadd.f32 %v2561, %v2579
        %2581 = vmatmul.bf16.gmra.mxu0 %v2250
        %v2582 = vpop.f32.mrf.mxu0
        %v2583 = vadd.f32 %v2564, %v2582
        %v2584 = vpop.f32.mrf.mxu0
        %v2585 = vadd.f32 %v2566, %v2584
        %2586 = vdwg.mxu0
        %v2587 = vmul.f32 %v2578, %v489
        %v2588 = vmul.f32 %v2580, %v490
        %v2589 = vmul.f32 %v2583, %v489
        %v2590 = vmul.f32 %v2585, %v490
        %v2591 = vadd.f32 %v1709, %v2587
        %v2592 = vadd.f32 %v1710, %v2588
        %v2593 = vadd.f32 %v1711, %v2589
        %v2594 = vadd.f32 %v1712, %v2590
        %2595 = vst [vmem:[%s471] sm:$0xff] %v2591
        %2596 = vst [vmem:[%s471 + $0x8] sm:$0xff] %v2592
        %2597 = vst [vmem:[%s471 + $0x10] sm:$0xff] %v2593
        %2598 = vst [vmem:[%s471 + $0x18] sm:$0xff] %v2594
        %s2599 = smul.u32 2, %s24
        %p2600 = scmp.lt.s32.totalorder %s2599, 3
        %s2601 = scalar_select %p2600, %s2599, 3
        %s2602 = smul.addr %s2601, 2
        %s2603 = smul.addr %s2602, 8
        %s2604 = scalar_lea.vmem %s11, %s2603
        // Predicated region
        $region73: #{transformer_sequence_classifier.5} parent=63 // pred_check
          %p2605 = pneg %p288
        $region74: #{transformer_sequence_classifier.5} parent=63 // pred_check_branch
          %2607 = sbr.rel (%p2605) target = $region76
        $region75: #{transformer_sequence_classifier.5} parent=63 // pred_region
          %s2608 = smul.u32 2, %s24
        $region76: #{transformer_sequence_classifier.5} parent=63 // pred_fallthru
          _
      $region64: #{transformer_sequence_classifier.5} parent=5 // pred_fallthru
        _
      %p2609 = scmp.le.s32.totalorder 2, %s19
      // Predicated region
      $region77: #{transformer_sequence_classifier.5} parent=5 // pred_check
        %p2610 = pneg %p2609
      $region78: #{transformer_sequence_classifier.5} parent=5 // pred_check_branch
        %2612 = sbr.rel (%p2610) target = $region80
      $region79: #{transformer_sequence_classifier.5} parent=5 // pred_region
        %s2613 = ssub.s32 %s19, 2
        // Predicated region
        $region81: #{transformer_sequence_classifier.5} parent=79 // pred_check
          %p2614 = pneg %p294
        $region82: #{transformer_sequence_classifier.5} parent=79 // pred_check_branch
          %2616 = sbr.rel (%p2614) target = $region84
        $region83: #{transformer_sequence_classifier.5} parent=79 // pred_region
          %s2617 = smul.u32 2, %s25
          %p2618 = scmp.lt.s32.totalorder %s2617, 3
          %s2619 = scalar_select %p2618, %s2617, 3
          %s2620 = smul.addr %s2619, 2
          %s2621 = smul.addr %s2620, 8
          %s2622 = scalar_lea.vmem %s11, %s2621
        $region84: #{transformer_sequence_classifier.5} parent=79 // pred_fallthru
          _
      $region80: #{transformer_sequence_classifier.5} parent=5 // pred_fallthru
        _
    $region6: #{transformer_sequence_classifier.5} parent=1 // loop_footer
      %s23 = sadd.s32 1, %s19
    $region7: #{transformer_sequence_classifier.5} parent=1 // loop_footer_branch
      %18 = sbr.rel target = $region3
    $region8: #{transformer_sequence_classifier.5} parent=1 // loop_exit
      _
    %2623 = vsyncpa [#allocation3], 1
    %s2624 = scalar_lea.sflag [#allocation3], 1
    %2625 = vsyncpa %s2624, 1
    %2626 = vsyncpa [#allocation5], 1

// kernel: transformer_sequence_classifier.6
$region0: #{transformer_sequence_classifier.6}
  #allocation0 [shape = 'u32[]', space=smem, size = 0x4, offset = 0x4, fixed_abs, tag = 'smem constant byte address 0x4 - core index']
  #allocation1 [shape = 'u32[72,128]{1,0:T(1,128)}', space=vmem, size = 0x9000, scoped, tag = 'internal scratch']
  %s0 = inlined_call_operand.vmem [shape: f32[4,16,128], index: 0, kind: input, shape index: {}]
  %s1 = inlined_call_operand.vmem [shape: f32[4,1,256], index: 1, kind: input, shape index: {}]
  %s2 = inlined_call_operand.vmem [shape: f32[4,1,256], index: 2, kind: input, shape index: {}]
  %s3 = inlined_call_operand.hbm [shape: bf16[128,384], index: 3, kind: input, shape index: {}]
  %s4 = inlined_call_operand.vmem [shape: f32[1,384], index: 4, kind: input, shape index: {}]
  %s5 = inlined_call_operand.hbm [shape: bf16[128,128], index: 5, kind: input, shape index: {}]
  %s6 = inlined_call_operand.vmem [shape: f32[1,128], index: 6, kind: input, shape index: {}]
  %s7 = inlined_call_operand.hbm [shape: bf16[128,512], index: 7, kind: input, shape index: {}]
  %s8 = inlined_call_operand.vmem [shape: f32[1,512], index: 8, kind: input, shape index: {}]
  %s9 = inlined_call_operand.hbm [shape: bf16[512,128], index: 9, kind: input, shape index: {}]
  %s10 = inlined_call_operand.vmem [shape: f32[1,128], index: 10, kind: input, shape index: {}]
  %s11 = inlined_call_operand.vmem [shape: f32[4,16,128], index: 11, kind: output, shape index: {}]
  %s12 = sld [smem:[#allocation0]]
  $region93: #{transformer_sequence_classifier.6} parent=0
    _
  %s14 = ssub.s32 1, %s12
  %s15 = scalar_select 0, %s14, %s12
  $region1: #{transformer_sequence_classifier.6} parent=0
    #allocation2 [shape = 'u8[98304]{0}', space=vmem, size = 0x18000, scoped, tag = 'input window, operand 3, single buffered']
    #allocation3 [shape = 's32[2]{0}', space=sflag, size = 0x8, scoped, tag = 'scoped memory for transformer_sequence_classifier.6']
    #allocation4 [shape = 'u8[32768]{0}', space=vmem, size = 0x8000, scoped, tag = 'input window, operand 5, single buffered']
    #allocation5 [shape = 's32[1]{0}', space=sflag, size = 0x4, scoped, tag = 'scoped memory for transformer_sequence_classifier.6']
    #allocation6 [shape = 'u8[131072]{0}', space=vmem, size = 0x20000, scoped, tag = 'input window, operand 7, single buffered']
    #allocation7 [shape = 'u8[131072]{0}', space=vmem, size = 0x20000, scoped, tag = 'input window, operand 9, single buffered']
    #allocation8 [shape = 's32[1]{0}', space=sflag, size = 0x4, scoped, tag = 'scoped memory for transformer_sequence_classifier.6']
    %16 = vsyncpa [#allocation3], 0
    %17 = vsyncpa [#allocation5], 0
    %18 = vsyncpa [#allocation8], 0
    loop: start=0, step=1, limit=4
    $region2: #{transformer_sequence_classifier.6} parent=1 // loop_pre_header
      _
    $region3: #{transformer_sequence_classifier.6} parent=1 // loop_header
      %s20 = sphi 0, %s24
      %p21 = scmp.ge.s32.totalorder %s20, 4
      %s30 = sphi 0, %s32
      %s33 = sphi 0, %s30
      %s34 = sphi 0, %s33
      %s50 = sphi 0, %s34
      %s56 = sphi 0, %s58
      %s59 = sphi 0, %s56
      %s60 = sphi 0, %s59
      %s76 = sphi 0, %s60
      %s82 = sphi 0, %s84
      %s85 = sphi 0, %s82
      %s86 = sphi 0, %s85
      %s102 = sphi 0, %s86
      %s106 = sphi 0, %s106
      %s108 = sphi 0, %s106
      %s109 = sphi 0, %s108
      %s123 = sphi 0, %s109
      %s127 = sphi 0, %s127
      %s129 = sphi 0, %s127
      %s130 = sphi 0, %s129
      %s144 = sphi 0, %s130
      %s148 = sphi 0, %s148
      %s150 = sphi 0, %s148
      %s151 = sphi 0, %s150
      %s165 = sphi 0, %s151
      %s169 = sphi 0, %s169
      %s171 = sphi 0, %s169
      %s172 = sphi 0, %s171
      %s186 = sphi 0, %s172
      %s190 = sphi 0, %s190
      %s192 = sphi 0, %s190
      %s193 = sphi 0, %s192
      %s207 = sphi 0, %s193
      %s211 = sphi 0, %s211
      %s213 = sphi 0, %s211
      %s214 = sphi 0, %s213
      %s228 = sphi 0, %s214
      %s232 = sphi 0, %s232
      %s234 = sphi 0, %s232
      %s235 = sphi 0, %s234
      %s249 = sphi 0, %s235
      %s253 = sphi 0, %s253
      %s255 = sphi 0, %s253
      %s256 = sphi 0, %s255
      %s270 = sphi 0, %s256
      %s276 = sphi 0, %s278
      %s279 = sphi 0, %s276
      %s280 = sphi 0, %s279
      %s296 = sphi 0, %s280
    $region4: #{transformer_sequence_classifier.6} parent=1 // loop_header_branch
      %23 = sbr.rel (%p21) target = $region8
    $region5: #{transformer_sequence_classifier.6} parent=1 // loop_body
      %s25 = ssub.s32 %s20, 1
      %s26 = ssub.s32 %s20, 2
      %s27 = sadd.s32 %s20, 1
      %s28 = ssub.s32 %s20, %s27
      %p29 = scmp.eq.s32.totalorder %s28, 0
      %s31 = sadd.s32 %s30, 1
      %s32 = scalar_select %p29, %s30, %s31
      %p35 = pneg %p29
      %p36 = scmp.eq.s32.totalorder %s20, 1
      %p37 = por %p35, %p36
      %p38 = scmp.ne.s32.totalorder %s30, %s33
      %p39 = scmp.eq.s32.totalorder %s20, 0
      %p40 = por %p38, %p39
      %p41 = scmp.ne.s32.totalorder %s30, %s33
      %p42 = scmp.eq.s32.totalorder %s25, 1
      %p43 = por %p41, %p42
      %p44 = scmp.ne.s32.totalorder %s33, %s34
      %p45 = scmp.eq.s32.totalorder %s25, 0
      %p46 = por %p44, %p45
      %p47 = scmp.ne.s32.totalorder %s33, %s34
      %p48 = scmp.eq.s32.totalorder %s26, 1
      %p49 = por %p47, %p48
      %p51 = scmp.ne.s32.totalorder %s34, %s50
      %p52 = scmp.eq.s32.totalorder %s26, 0
      %p53 = por %p51, %p52
      %s54 = ssub.s32 %s20, %s27
      %p55 = scmp.eq.s32.totalorder %s54, 0
      %s57 = sadd.s32 %s56, 1
      %s58 = scalar_select %p55, %s56, %s57
      %p61 = pneg %p55
      %p62 = scmp.eq.s32.totalorder %s20, 1
      %p63 = por %p61, %p62
      %p64 = scmp.ne.s32.totalorder %s56, %s59
      %p65 = scmp.eq.s32.totalorder %s20, 0
      %p66 = por %p64, %p65
      %p67 = scmp.ne.s32.totalorder %s56, %s59
      %p68 = scmp.eq.s32.totalorder %s25, 1
      %p69 = por %p67, %p68
      %p70 = scmp.ne.s32.totalorder %s59, %s60
      %p71 = scmp.eq.s32.totalorder %s25, 0
      %p72 = por %p70, %p71
      %p73 = scmp.ne.s32.totalorder %s59, %s60
      %p74 = scmp.eq.s32.totalorder %s26, 1
      %p75 = por %p73, %p74
      %p77 = scmp.ne.s32.totalorder %s60, %s76
      %p78 = scmp.eq.s32.totalorder %s26, 0
      %p79 = por %p77, %p78
      %s80 = ssub.s32 %s20, %s27
      %p81 = scmp.eq.s32.totalorder %s80, 0
      %s83 = sadd.s32 %s82, 1
      %s84 = scalar_select %p81, %s82, %s83
      %p87 = pneg %p81
      %p88 = scmp.eq.s32.totalorder %s20, 1
      %p89 = por %p87, %p88
      %p90 = scmp.ne.s32.totalorder %s82, %s85
      %p91 = scmp.eq.s32.totalorder %s20, 0
      %p92 = por %p90, %p91
      %p93 = scmp.ne.s32.totalorder %s82, %s85
      %p94 = scmp.eq.s32.totalorder %s25, 1
      %p95 = por %p93, %p94
      %p96 = scmp.ne.s32.totalorder %s85, %s86
      %p97 = scmp.eq.s32.totalorder %s25, 0
      %p98 = por %p96, %p97
      %p99 = scmp.ne.s32.totalorder %s85, %s86
      %p100 = scmp.eq.s32.totalorder %s26, 1
      %p101 = por %p99, %p100
      %p103 = scmp.ne.s32.totalorder %s86, %s102
      %p104 = scmp.eq.s32.totalorder %s26, 0
      %p105 = por %p103, %p104
      %s107 = sadd.s32 %s106, 1
      %p110 = scmp.eq.s32.totalorder %s20, 1
      %p111 = scmp.ne.s32.totalorder %s106, %s108
      %p112 = scmp.eq.s32.totalorder %s20, 0
      %p113 = por %p111, %p112
      %p114 = scmp.ne.s32.totalorder %s106, %s108
      %p115 = scmp.eq.s32.totalorder %s25, 1
      %p116 = por %p114, %p115
      %p117 = scmp.ne.s32.totalorder %s108, %s109
      %p118 = scmp.eq.s32.totalorder %s25, 0
      %p119 = por %p117, %p118
      %p120 = scmp.ne.s32.totalorder %s108, %s109
      %p121 = scmp.eq.s32.totalorder %s26, 1
      %p122 = por %p120, %p121
      %p124 = scmp.ne.s32.totalorder %s109, %s123
      %p125 = scmp.eq.s32.totalorder %s26, 0
      %p126 = por %p124, %p125
      %s128 = sadd.s32 %s127, 1
      %p131 = scmp.eq.s32.totalorder %s20, 1
      %p132 = scmp.ne.s32.totalorder %s127, %s129
      %p133 = scmp.eq.s32.totalorder %s20, 0
      %p134 = por %p132, %p133
      %p135 = scmp.ne.s32.totalorder %s127, %s129
      %p136 = scmp.eq.s32.totalorder %s25, 1
      %p137 = por %p135, %p136
      %p138 = scmp.ne.s32.totalorder %s129, %s130
      %p139 = scmp.eq.s32.totalorder %s25, 0
      %p140 = por %p138, %p139
      %p141 = scmp.ne.s32.totalorder %s129, %s130
      %p142 = scmp.eq.s32.totalorder %s26, 1
      %p143 = por %p141, %p142
      %p145 = scmp.ne.s32.totalorder %s130, %s144
      %p146 = scmp.eq.s32.totalorder %s26, 0
      %p147 = por %p145, %p146
      %s149 = sadd.s32 %s148, 1
      %p152 = scmp.eq.s32.totalorder %s20, 1
      %p153 = scmp.ne.s32.totalorder %s148, %s150
      %p154 = scmp.eq.s32.totalorder %s20, 0
      %p155 = por %p153, %p154
      %p156 = scmp.ne.s32.totalorder %s148, %s150
      %p157 = scmp.eq.s32.totalorder %s25, 1
      %p158 = por %p156, %p157
      %p159 = scmp.ne.s32.totalorder %s150, %s151
      %p160 = scmp.eq.s32.totalorder %s25, 0
      %p161 = por %p159, %p160
      %p162 = scmp.ne.s32.totalorder %s150, %s151
      %p163 = scmp.eq.s32.totalorder %s26, 1
      %p164 = por %p162, %p163
      %p166 = scmp.ne.s32.totalorder %s151, %s165
      %p167 = scmp.eq.s32.totalorder %s26, 0
      %p168 = por %p166, %p167
      %s170 = sadd.s32 %s169, 1
      %p173 = scmp.eq.s32.totalorder %s20, 1
      %p174 = scmp.ne.s32.totalorder %s169, %s171
      %p175 = scmp.eq.s32.totalorder %s20, 0
      %p176 = por %p174, %p175
      %p177 = scmp.ne.s32.totalorder %s169, %s171
      %p178 = scmp.eq.s32.totalorder %s25, 1
      %p179 = por %p177, %p178
      %p180 = scmp.ne.s32.totalorder %s171, %s172
      %p181 = scmp.eq.s32.totalorder %s25, 0
      %p182 = por %p180, %p181
      %p183 = scmp.ne.s32.totalorder %s171, %s172
      %p184 = scmp.eq.s32.totalorder %s26, 1
      %p185 = por %p183, %p184
      %p187 = scmp.ne.s32.totalorder %s172, %s186
      %p188 = scmp.eq.s32.totalorder %s26, 0
      %p189 = por %p187, %p188
      %s191 = sadd.s32 %s190, 1
      %p194 = scmp.eq.s32.totalorder %s20, 1
      %p195 = scmp.ne.s32.totalorder %s190, %s192
      %p196 = scmp.eq.s32.totalorder %s20, 0
      %p197 = por %p195, %p196
      %p198 = scmp.ne.s32.totalorder %s190, %s192
      %p199 = scmp.eq.s32.totalorder %s25, 1
      %p200 = por %p198, %p199
      %p201 = scmp.ne.s32.totalorder %s192, %s193
      %p202 = scmp.eq.s32.totalorder %s25, 0
      %p203 = por %p201, %p202
      %p204 = scmp.ne.s32.totalorder %s192, %s193
      %p205 = scmp.eq.s32.totalorder %s26, 1
      %p206 = por %p204, %p205
      %p208 = scmp.ne.s32.totalorder %s193, %s207
      %p209 = scmp.eq.s32.totalorder %s26, 0
      %p210 = por %p208, %p209
      %s212 = sadd.s32 %s211, 1
      %p215 = scmp.eq.s32.totalorder %s20, 1
      %p216 = scmp.ne.s32.totalorder %s211, %s213
      %p217 = scmp.eq.s32.totalorder %s20, 0
      %p218 = por %p216, %p217
      %p219 = scmp.ne.s32.totalorder %s211, %s213
      %p220 = scmp.eq.s32.totalorder %s25, 1
      %p221 = por %p219, %p220
      %p222 = scmp.ne.s32.totalorder %s213, %s214
      %p223 = scmp.eq.s32.totalorder %s25, 0
      %p224 = por %p222, %p223
      %p225 = scmp.ne.s32.totalorder %s213, %s214
      %p226 = scmp.eq.s32.totalorder %s26, 1
      %p227 = por %p225, %p226
      %p229 = scmp.ne.s32.totalorder %s214, %s228
      %p230 = scmp.eq.s32.totalorder %s26, 0
      %p231 = por %p229, %p230
      %s233 = sadd.s32 %s232, 1
      %p236 = scmp.eq.s32.totalorder %s20, 1
      %p237 = scmp.ne.s32.totalorder %s232, %s234
      %p238 = scmp.eq.s32.totalorder %s20, 0
      %p239 = por %p237, %p238
      %p240 = scmp.ne.s32.totalorder %s232, %s234
      %p241 = scmp.eq.s32.totalorder %s25, 1
      %p242 = por %p240, %p241
      %p243 = scmp.ne.s32.totalorder %s234, %s235
      %p244 = scmp.eq.s32.totalorder %s25, 0
      %p245 = por %p243, %p244
      %p246 = scmp.ne.s32.totalorder %s234, %s235
      %p247 = scmp.eq.s32.totalorder %s26, 1
      %p248 = por %p246, %p247
      %p250 = scmp.ne.s32.totalorder %s235, %s249
      %p251 = scmp.eq.s32.totalorder %s26, 0
      %p252 = por %p250, %p251
      %s254 = sadd.s32 %s253, 1
      %p257 = scmp.eq.s32.totalorder %s20, 1
      %p258 = scmp.ne.s32.totalorder %s253, %s255
      %p259 = scmp.eq.s32.totalorder %s20, 0
      %p260 = por %p258, %p259
      %p261 = scmp.ne.s32.totalorder %s253, %s255
      %p262 = scmp.eq.s32.totalorder %s25, 1
      %p263 = por %p261, %p262
      %p264 = scmp.ne.s32.totalorder %s255, %s256
      %p265 = scmp.eq.s32.totalorder %s25, 0
      %p266 = por %p264, %p265
      %p267 = scmp.ne.s32.totalorder %s255, %s256
      %p268 = scmp.eq.s32.totalorder %s26, 1
      %p269 = por %p267, %p268
      %p271 = scmp.ne.s32.totalorder %s256, %s270
      %p272 = scmp.eq.s32.totalorder %s26, 0
      %p273 = por %p271, %p272
      %s274 = ssub.s32 %s20, %s27
      %p275 = scmp.eq.s32.totalorder %s274, 0
      %s277 = sadd.s32 %s276, 1
      %s278 = scalar_select %p275, %s276, %s277
      %p281 = pneg %p275
      %p282 = scmp.eq.s32.totalorder %s20, 1
      %p283 = por %p281, %p282
      %p284 = scmp.ne.s32.totalorder %s276, %s279
      %p285 = scmp.eq.s32.totalorder %s20, 0
      %p286 = por %p284, %p285
      %p287 = scmp.ne.s32.totalorder %s276, %s279
      %p288 = scmp.eq.s32.totalorder %s25, 1
      %p289 = por %p287, %p288
      %p290 = scmp.ne.s32.totalorder %s279, %s280
      %p291 = scmp.eq.s32.totalorder %s25, 0
      %p292 = por %p290, %p291
      %p293 = scmp.ne.s32.totalorder %s279, %s280
      %p294 = scmp.eq.s32.totalorder %s26, 1
      %p295 = por %p293, %p294
      %p297 = scmp.ne.s32.totalorder %s280, %s296
      %p298 = scmp.eq.s32.totalorder %s26, 0
      %p299 = por %p297, %p298
      %p300 = scmp.le.s32.totalorder 1, %s20
      %p301 = scmp.lt.s32.totalorder %s20, 3
      %p302 = pnand %p300, %p301
      %p303 = pneg %p302
      // Predicated region
      $region9: #{transformer_sequence_classifier.6} parent=5 // pred_check
        _
      $region10: #{transformer_sequence_classifier.6} parent=5 // pred_check_branch
        %305 = sbr.rel (%p302) target = $region12
      $region11: #{transformer_sequence_classifier.6} parent=5 // pred_region
        %s306 = ssub.s32 %s20, 1
        // Predicated region
        $region13: #{transformer_sequence_classifier.6} parent=11 // pred_check
          %p307 = pneg %p119
        $region14: #{transformer_sequence_classifier.6} parent=11 // pred_check_branch
          %309 = sbr.rel (%p307) target = $region16
        $region15: #{transformer_sequence_classifier.6} parent=11 // pred_region
          %311 = vsyncadd [#allocation3], 0
          %s312 = sshll.u32 %s3, 4
          %s313 = int_to_ptr.hbm [resolvable:$true] %s312
          %s314 = sshll.u32 [#allocation2], 4
          %s315 = int_to_ptr.vmem [resolvable:$true] %s314
          %320 = dma.hbm_to_vmem [thread:$0]  %s313, 3072, %s315, [#allocation3], 192, 192, 12
        $region16: #{transformer_sequence_classifier.6} parent=11 // pred_fallthru
          _
        // Predicated region
        $region17: #{transformer_sequence_classifier.6} parent=11 // pred_check
          %p321 = pneg %p140
        $region18: #{transformer_sequence_classifier.6} parent=11 // pred_check_branch
          %323 = sbr.rel (%p321) target = $region20
        $region19: #{transformer_sequence_classifier.6} parent=11 // pred_region
          _
        $region20: #{transformer_sequence_classifier.6} parent=11 // pred_fallthru
          _
        // Predicated region
        $region21: #{transformer_sequence_classifier.6} parent=11 // pred_check
          %p324 = pneg %p161
        $region22: #{transformer_sequence_classifier.6} parent=11 // pred_check_branch
          %326 = sbr.rel (%p324) target = $region24
        $region23: #{transformer_sequence_classifier.6} parent=11 // pred_region
          %328 = vsyncadd [#allocation5], 0
          %s329 = sshll.u32 %s5, 4
          %s330 = int_to_ptr.hbm [resolvable:$true] %s329
          %s331 = sshll.u32 [#allocation4], 4
          %s332 = int_to_ptr.vmem [resolvable:$true] %s331
          %337 = dma.hbm_to_vmem [thread:$0]  %s330, 1024, %s332, [#allocation5], 64, 64, 4
        $region24: #{transformer_sequence_classifier.6} parent=11 // pred_fallthru
          _
        // Predicated region
        $region25: #{transformer_sequence_classifier.6} parent=11 // pred_check
          %p338 = pneg %p182
        $region26: #{transformer_sequence_classifier.6} parent=11 // pred_check_branch
          %340 = sbr.rel (%p338) target = $region28
        $region27: #{transformer_sequence_classifier.6} parent=11 // pred_region
          _
        $region28: #{transformer_sequence_classifier.6} parent=11 // pred_fallthru
          _
        // Predicated region
        $region29: #{transformer_sequence_classifier.6} parent=11 // pred_check
          %p341 = pneg %p203
        $region30: #{transformer_sequence_classifier.6} parent=11 // pred_check_branch
          %343 = sbr.rel (%p341) target = $region32
        $region31: #{transformer_sequence_classifier.6} parent=11 // pred_region
          %345 = vsyncadd [#allocation5], 0
          %s346 = sshll.u32 %s7, 4
          %s347 = int_to_ptr.hbm [resolvable:$true] %s346
          %s348 = sshll.u32 [#allocation6], 4
          %s349 = int_to_ptr.vmem [resolvable:$true] %s348
          %354 = dma.hbm_to_vmem [thread:$0]  %s347, 4096, %s349, [#allocation5], 256, 256, 16
        $region32: #{transformer_sequence_classifier.6} parent=11 // pred_fallthru
          _
        // Predicated region
        $region33: #{transformer_sequence_classifier.6} parent=11 // pred_check
          %p355 = pneg %p224
        $region34: #{transformer_sequence_classifier.6} parent=11 // pred_check_branch
          %357 = sbr.rel (%p355) target = $region36
        $region35: #{transformer_sequence_classifier.6} parent=11 // pred_region
          _
        $region36: #{transformer_sequence_classifier.6} parent=11 // pred_fallthru
          _
        // Predicated region
        $region37: #{transformer_sequence_classifier.6} parent=11 // pred_check
          %p358 = pneg %p245
        $region38: #{transformer_sequence_classifier.6} parent=11 // pred_check_branch
          %360 = sbr.rel (%p358) target = $region40
        $region39: #{transformer_sequence_classifier.6} parent=11 // pred_region
          %362 = vsyncadd [#allocation8], 0
          %s363 = sshll.u32 %s9, 4
          %s364 = int_to_ptr.hbm [resolvable:$true] %s363
          %s365 = sshll.u32 [#allocation7], 4
          %s366 = int_to_ptr.vmem [resolvable:$true] %s365
          %371 = dma.hbm_to_vmem [thread:$0]  %s364, 4096, %s366, [#allocation8], 64, 64, 4
        $region40: #{transformer_sequence_classifier.6} parent=11 // pred_fallthru
          _
        // Predicated region
        $region41: #{transformer_sequence_classifier.6} parent=11 // pred_check
          %p372 = pneg %p266
        $region42: #{transformer_sequence_classifier.6} parent=11 // pred_check_branch
          %374 = sbr.rel (%p372) target = $region44
        $region43: #{transformer_sequence_classifier.6} parent=11 // pred_region
          _
        $region44: #{transformer_sequence_classifier.6} parent=11 // pred_fallthru
          _
      $region12: #{transformer_sequence_classifier.6} parent=5 // pred_fallthru
        _
      %p375 = scmp.lt.s32.totalorder %s20, 2
      // Predicated region
      $region45: #{transformer_sequence_classifier.6} parent=5 // pred_check
        %p376 = pneg %p375
      $region46: #{transformer_sequence_classifier.6} parent=5 // pred_check_branch
        %378 = sbr.rel (%p376) target = $region48
      $region47: #{transformer_sequence_classifier.6} parent=5 // pred_region
        // Predicated region
        $region49: #{transformer_sequence_classifier.6} parent=47 // pred_check
          %p379 = pneg %p40
        $region50: #{transformer_sequence_classifier.6} parent=47 // pred_check_branch
          %381 = sbr.rel (%p379) target = $region52
        $region51: #{transformer_sequence_classifier.6} parent=47 // pred_region
          %s382 = smul.u32 2, %s20
          %p383 = scmp.lt.s32.totalorder %s382, 3
          %s384 = scalar_select %p383, %s382, 3
          %s385 = smul.addr %s384, 2
          %s386 = smul.addr %s385, 8
          %s387 = scalar_lea.vmem %s0, %s386
          %s388 = smul.u32 2, %s20
        $region52: #{transformer_sequence_classifier.6} parent=47 // pred_fallthru
          _
        // Predicated region
        $region53: #{transformer_sequence_classifier.6} parent=47 // pred_check
          %p389 = pneg %p66
        $region54: #{transformer_sequence_classifier.6} parent=47 // pred_check_branch
          %391 = sbr.rel (%p389) target = $region56
        $region55: #{transformer_sequence_classifier.6} parent=47 // pred_region
          %s392 = smul.u32 2, %s20
          %p393 = scmp.lt.s32.totalorder %s392, 3
          %s394 = scalar_select %p393, %s392, 3
          %s395 = smul.addr %s394, 2
          %s396 = scalar_lea.vmem %s1, %s395
          %s397 = smul.u32 2, %s20
        $region56: #{transformer_sequence_classifier.6} parent=47 // pred_fallthru
          _
        // Predicated region
        $region57: #{transformer_sequence_classifier.6} parent=47 // pred_check
          %p398 = pneg %p92
        $region58: #{transformer_sequence_classifier.6} parent=47 // pred_check_branch
          %400 = sbr.rel (%p398) target = $region60
        $region59: #{transformer_sequence_classifier.6} parent=47 // pred_region
          %s401 = smul.u32 2, %s20
          %p402 = scmp.lt.s32.totalorder %s401, 3
          %s403 = scalar_select %p402, %s401, 3
          %s404 = smul.addr %s403, 2
          %s405 = scalar_lea.vmem %s2, %s404
          %s406 = smul.u32 2, %s20
        $region60: #{transformer_sequence_classifier.6} parent=47 // pred_fallthru
          _
      $region48: #{transformer_sequence_classifier.6} parent=5 // pred_fallthru
        _
      %p407 = scmp.le.s32.totalorder 1, %s20
      %p408 = scmp.lt.s32.totalorder %s20, 3
      %p409 = pnand %p407, %p408
      %p410 = pneg %p409
      // Predicated region
      $region61: #{transformer_sequence_classifier.6} parent=5 // pred_check
        _
      $region62: #{transformer_sequence_classifier.6} parent=5 // pred_check_branch
        %412 = sbr.rel (%p409) target = $region64
      $region63: #{transformer_sequence_classifier.6} parent=5 // pred_region
        %s413 = ssub.s32 %s20, 1
        // Predicated region
        $region65: #{transformer_sequence_classifier.6} parent=63 // pred_check
          %p414 = pneg %p119
        $region66: #{transformer_sequence_classifier.6} parent=63 // pred_check_branch
          %416 = sbr.rel (%p414) target = $region68
        $region67: #{transformer_sequence_classifier.6} parent=63 // pred_region
          %418 = dma.done [#allocation3], 3072
        $region68: #{transformer_sequence_classifier.6} parent=63 // pred_fallthru
          _
        // Predicated region
        $region69: #{transformer_sequence_classifier.6} parent=63 // pred_check
          %p419 = pneg %p161
        $region70: #{transformer_sequence_classifier.6} parent=63 // pred_check_branch
          %421 = sbr.rel (%p419) target = $region72
        $region71: #{transformer_sequence_classifier.6} parent=63 // pred_region
          %423 = dma.done [#allocation5], 1024
        $region72: #{transformer_sequence_classifier.6} parent=63 // pred_fallthru
          _
        // Predicated region
        $region73: #{transformer_sequence_classifier.6} parent=63 // pred_check
          %p424 = pneg %p203
        $region74: #{transformer_sequence_classifier.6} parent=63 // pred_check_branch
          %426 = sbr.rel (%p424) target = $region76
        $region75: #{transformer_sequence_classifier.6} parent=63 // pred_region
          %428 = dma.done [#allocation5], 4096
        $region76: #{transformer_sequence_classifier.6} parent=63 // pred_fallthru
          _
        // Predicated region
        $region77: #{transformer_sequence_classifier.6} parent=63 // pred_check
          %p429 = pneg %p245
        $region78: #{transformer_sequence_classifier.6} parent=63 // pred_check_branch
          %431 = sbr.rel (%p429) target = $region80
        $region79: #{transformer_sequence_classifier.6} parent=63 // pred_region
          %433 = dma.done [#allocation8], 4096
        $region80: #{transformer_sequence_classifier.6} parent=63 // pred_fallthru
          _
        %s434 = smul.u32 2, %s25
        %p435 = scmp.lt.s32.totalorder %s434, 3
        %s436 = scalar_select %p435, %s434, 3
        %s437 = smul.addr %s436, 2
        %s438 = smul.addr %s437, 8
        %s439 = scalar_lea.vmem %s0, %s438
        %p440 = pneg %p46
        %p441 = pneg %p43
        %s442 = smul.u32 2, %s25
        %p443 = scmp.lt.s32.totalorder %s442, 3
        %s444 = scalar_select %p443, %s442, 3
        %s445 = smul.addr %s444, 2
        %s446 = scalar_lea.vmem %s1, %s445
        %p447 = pneg %p72
        %p448 = pneg %p69
        %s449 = smul.u32 2, %s25
        %p450 = scmp.lt.s32.totalorder %s449, 3
        %s451 = scalar_select %p450, %s449, 3
        %s452 = smul.addr %s451, 2
        %s453 = scalar_lea.vmem %s2, %s452
        %p454 = pneg %p98
        %p455 = pneg %p95
        %p456 = pneg %p119
        %p457 = pneg %p116
        %p458 = pneg %p140
        %p459 = pneg %p137
        %p460 = pneg %p161
        %p461 = pneg %p158
        %p462 = pneg %p182
        %p463 = pneg %p179
        %p464 = pneg %p203
        %p465 = pneg %p200
        %p466 = pneg %p224
        %p467 = pneg %p221
        %p468 = pneg %p245
        %p469 = pneg %p242
        %p470 = pneg %p266
        %p471 = pneg %p263
        %p472 = pneg %p292
        %p473 = pneg %p289
        %s474 = smul.u32 2, %s25
        %p475 = scmp.lt.s32.totalorder %s474, 3
        %s476 = scalar_select %p475, %s474, 3
        %s477 = smul.addr %s476, 2
        %s478 = smul.addr %s477, 8
        %s479 = scalar_lea.vmem %s11, %s478
        %s480 = smul.u32 2, %s25
        %p481 = scmp.lt.s32.totalorder %s480, 3
        %s482 = scalar_select %p481, %s480, 3
        %s483 = smul.addr %s482, 2
        %s484 = smul.addr %s483, 8
        %s485 = scalar_lea.vmem %s0, %s484
        %s486 = smul.u32 2, %s25
        %s487 = smul.u32 2, %s25
        %p488 = scmp.lt.s32.totalorder %s487, 3
        %s489 = scalar_select %p488, %s487, 3
        %s490 = smul.addr %s489, 2
        %s491 = scalar_lea.vmem %s1, %s490
        %s492 = smul.u32 2, %s25
        %s493 = smul.u32 2, %s25
        %p494 = scmp.lt.s32.totalorder %s493, 3
        %s495 = scalar_select %p494, %s493, 3
        %s496 = smul.addr %s495, 2
        %s497 = scalar_lea.vmem %s2, %s496
        %s498 = smul.u32 2, %s25
        %s499 = smul.u32 2, %s25
        %p500 = scmp.lt.s32.totalorder %s499, 3
        %s501 = scalar_select %p500, %s499, 3
        %s502 = smul.addr %s501, 2
        %s503 = smul.addr %s502, 8
        %s504 = scalar_lea.vmem %s11, %s503
        %s505 = smul.u32 2, %s25
        %v507 = vld [vmem:[%s485] sm:$0xff]
        %v508 = vld [vmem:[%s485 + $0x8] sm:$0xff]
        %v509 = vld [vmem:[%s485 + $0x10] sm:$0xff]
        %v510 = vld [vmem:[%s485 + $0x18] sm:$0xff]
        %v511 = vlaneseq
        %v512 = vand.u32 %v511, 127
        %vm513 = vcmp.lt.s32.totalorder %v512, 9
        %v514 = vsel %vm513, 0.0, -1e+30
        %v515 = vlaneseq
        %v516 = vshrl.u32 %v515, 7
        %v517 = vadd.s32 %v516, 8
        %vm518 = vcmp.lt.s32.totalorder %v516, 9
        %vm519 = vcmp.lt.s32.totalorder %v517, 9
        %v520 = vsel %vm518, 1, 0
        %v521 = vsel %vm519, 1, 0
        %v522 = vcvt.s32.f32 %v520
        %v523 = vcvt.s32.f32 %v521
        %524 = vadd.xlane.f32.xlu0 %v507
        %v525 = vpop.xlane.xlu0 %524
        %526 = vadd.xlane.f32.xlu0 %v508
        %v527 = vpop.xlane.xlu0 %526
        %528 = vadd.xlane.f32.xlu0 %v509
        %v529 = vpop.xlane.xlu0 %528
        %530 = vadd.xlane.f32.xlu0 %v510
        %v531 = vpop.xlane.xlu0 %530
        %v532 = vrcp.pop 128.0
        %v533 = vmul.f32 128.0, %v532
        %v534 = vsub.f32 1.0, %v533
        %v535 = vmul.f32 %v532, %v534
        %v536 = vadd.f32 %v532, %v535
        %vm537 = vweird.f32 %v532
        %v538 = vsel %vm537, %v532, %v536
        %v539 = vmul.f32 %v525, %v538
        %v540 = vmul.f32 %v527, %v538
        %v541 = vmul.f32 %v529, %v538
        %v542 = vmul.f32 %v531, %v538
        %v543 = vsub.f32 %v507, %v539
        %v544 = vsub.f32 %v508, %v540
        %v545 = vsub.f32 %v509, %v541
        %v546 = vsub.f32 %v510, %v542
        %v547 = vmul.f32 %v543, %v543
        %v548 = vmul.f32 %v544, %v544
        %v549 = vmul.f32 %v545, %v545
        %v550 = vmul.f32 %v546, %v546
        %551 = vadd.xlane.f32.xlu0 %v547
        %v552 = vpop.xlane.xlu0 %551
        %553 = vadd.xlane.f32.xlu0 %v548
        %v554 = vpop.xlane.xlu0 %553
        %555 = vadd.xlane.f32.xlu0 %v549
        %v556 = vpop.xlane.xlu0 %555
        %557 = vadd.xlane.f32.xlu0 %v550
        %v558 = vpop.xlane.xlu0 %557
        %v559 = vmul.f32 %v552, %v538
        %v560 = vmul.f32 %v554, %v538
        %v561 = vmul.f32 %v556, %v538
        %v562 = vmul.f32 %v558, %v538
        %v563 = vadd.f32 %v559, 1e-05
        %v564 = vadd.f32 %v560, 1e-05
        %v565 = vadd.f32 %v561, 1e-05
        %v566 = vadd.f32 %v562, 1e-05
        %v567 = vrsqrt.pop %v563
        %v568 = vmul.f32 %v567, %v563
        %v569 = vmul.f32 %v568, %v567
        %v570 = vmul.f32 0.5, %v569
        %v571 = vsub.f32 1.5, %v570
        %v572 = vmul.f32 %v567, %v571
        %vm573 = vweird.f32 %v563
        %vm574 = vweird.f32 %v567
        %vm575 = vmor %vm573, %vm574
        %v576 = vsel %vm575, %v567, %v572
        %v577 = vrsqrt.pop %v564
        %v578 = vmul.f32 %v577, %v564
        %v579 = vmul.f32 %v578, %v577
        %v580 = vmul.f32 0.5, %v579
        %v581 = vsub.f32 1.5, %v580
        %v582 = vmul.f32 %v577, %v581
        %vm583 = vweird.f32 %v564
        %vm584 = vweird.f32 %v577
        %vm585 = vmor %vm583, %vm584
        %v586 = vsel %vm585, %v577, %v582
        %v587 = vrsqrt.pop %v565
        %v588 = vmul.f32 %v587, %v565
        %v589 = vmul.f32 %v588, %v587
        %v590 = vmul.f32 0.5, %v589
        %v591 = vsub.f32 1.5, %v590
        %v592 = vmul.f32 %v587, %v591
        %vm593 = vweird.f32 %v565
        %vm594 = vweird.f32 %v587
        %vm595 = vmor %vm593, %vm594
        %v596 = vsel %vm595, %v587, %v592
        %v597 = vrsqrt.pop %v566
        %v598 = vmul.f32 %v597, %v566
        %v599 = vmul.f32 %v598, %v597
        %v600 = vmul.f32 0.5, %v599
        %v601 = vsub.f32 1.5, %v600
        %v602 = vmul.f32 %v597, %v601
        %vm603 = vweird.f32 %v566
        %vm604 = vweird.f32 %v597
        %vm605 = vmor %vm603, %vm604
        %v606 = vsel %vm605, %v597, %v602
        %v607 = vmul.f32 %v543, %v576
        %v608 = vmul.f32 %v544, %v586
        %v609 = vmul.f32 %v545, %v596
        %v610 = vmul.f32 %v546, %v606
        %v611 = vld [vmem:[%s491] sm:$0x1]
        %v612 = vld [vmem:[%s491 + $0x2] sm:$0x1]
        %v613 = vld [vmem:[%s491 + $0x1] sm:$0x1]
        %v614 = vld [vmem:[%s491 + $0x3] sm:$0x1]
        %v615 = vadd.f32 %v613, 1.0
        %v616 = vadd.f32 %v614, 1.0
        %v619 = vperm.slane %v615, 0
        %v620 = vperm.slane %v616, 0
        %v623 = vmul.f32 %v607, %v619
        %v624 = vmul.f32 %v608, %v619
        %v625 = vmul.f32 %v609, %v620
        %v626 = vmul.f32 %v610, %v620
        %v629 = vperm.slane %v611, 0
        %v630 = vperm.slane %v612, 0
        %v633 = vadd.f32 %v623, %v629
        %v634 = vadd.f32 %v624, %v629
        %v635 = vadd.f32 %v625, %v630
        %v636 = vadd.f32 %v626, %v630
        %v637 = vpack.c.bf16 %v634, %v633
        %v638 = vpack.c.bf16 %v636, %v635
        %v639 = vld [vmem:[#allocation2] sm:$0xff]
        %v640 = vld [vmem:[#allocation2 + $0x8] sm:$0xf]
        %v641 = vld [vmem:[#allocation2 + $0xc] sm:$0xff]
        %v642 = vld [vmem:[#allocation2 + $0x14] sm:$0xf]
        %v643 = vld [vmem:[#allocation2 + $0x18] sm:$0xff]
        %v644 = vld [vmem:[#allocation2 + $0x20] sm:$0xf]
        %v645 = vld [vmem:[#allocation2 + $0x24] sm:$0xff]
        %v646 = vld [vmem:[#allocation2 + $0x2c] sm:$0xf]
        %v647 = vld [vmem:[#allocation2 + $0x30] sm:$0xff]
        %v648 = vld [vmem:[#allocation2 + $0x38] sm:$0xf]
        %v649 = vld [vmem:[#allocation2 + $0x3c] sm:$0xff]
        %v650 = vld [vmem:[#allocation2 + $0x44] sm:$0xf]
        %v651 = vld [vmem:[#allocation2 + $0x48] sm:$0xff]
        %v652 = vld [vmem:[#allocation2 + $0x50] sm:$0xf]
        %v653 = vld [vmem:[#allocation2 + $0x54] sm:$0xff]
        %v654 = vld [vmem:[#allocation2 + $0x5c] sm:$0xf]
        %v655 = vld [vmem:[#allocation2 + $0x60] sm:$0xff]
        %v656 = vld [vmem:[#allocation2 + $0x68] sm:$0xf]
        %v657 = vld [vmem:[#allocation2 + $0x6c] sm:$0xff]
        %v658 = vld [vmem:[#allocation2 + $0x74] sm:$0xf]
        %v659 = vld [vmem:[#allocation2 + $0x78] sm:$0xff]
        %v660 = vld [vmem:[#allocation2 + $0x80] sm:$0xf]
        %v661 = vld [vmem:[#allocation2 + $0x84] sm:$0xff]
        %v662 = vld [vmem:[#allocation2 + $0x8c] sm:$0xf]
        %v663 = vld [vmem:[#allocation2 + $0x90] sm:$0xff]
        %v664 = vld [vmem:[#allocation2 + $0x98] sm:$0xf]
        %v665 = vld [vmem:[#allocation2 + $0x9c] sm:$0xff]
        %v666 = vld [vmem:[#allocation2 + $0xa4] sm:$0xf]
        %v667 = vld [vmem:[#allocation2 + $0xa8] sm:$0xff]
        %v668 = vld [vmem:[#allocation2 + $0xb0] sm:$0xf]
        %v669 = vld [vmem:[#allocation2 + $0xb4] sm:$0xff]
        %v670 = vld [vmem:[#allocation2 + $0xbc] sm:$0xf]
        %v671 = vld [vmem:[%s4] sm:$0x7]
        %v673 = vperm.slane %v671, 0
        %v674 = vperm.slane %v671, 1
        %v675 = vperm.slane %v671, 2
        %v711 = vunpack.c.l.b16 %v639
        %v712 = vunpack.c.h.b16 %v639
        %v713 = vunpack.c.l.b16 %v640
        %v714 = vunpack.c.l.b16 %v641
        %v715 = vunpack.c.h.b16 %v641
        %v716 = vunpack.c.l.b16 %v642
        %v717 = vunpack.c.l.b16 %v643
        %v718 = vunpack.c.h.b16 %v643
        %v719 = vunpack.c.l.b16 %v644
        %v720 = vunpack.c.l.b16 %v645
        %v721 = vunpack.c.h.b16 %v645
        %v722 = vunpack.c.l.b16 %v646
        %v723 = vunpack.c.l.b16 %v647
        %v724 = vunpack.c.h.b16 %v647
        %v725 = vunpack.c.l.b16 %v648
        %v726 = vunpack.c.l.b16 %v649
        %v727 = vunpack.c.h.b16 %v649
        %v728 = vunpack.c.l.b16 %v650
        %v729 = vunpack.c.l.b16 %v651
        %v730 = vunpack.c.h.b16 %v651
        %v731 = vunpack.c.l.b16 %v652
        %v732 = vunpack.c.l.b16 %v653
        %v733 = vunpack.c.h.b16 %v653
        %v734 = vunpack.c.l.b16 %v654
        %v735 = vunpack.c.l.b16 %v655
        %v736 = vunpack.c.h.b16 %v655
        %v737 = vunpack.c.l.b16 %v656
        %v738 = vunpack.c.l.b16 %v657
        %v739 = vunpack.c.h.b16 %v657
        %v740 = vunpack.c.l.b16 %v658
        %v741 = vunpack.c.l.b16 %v659
        %v742 = vunpack.c.h.b16 %v659
        %v743 = vunpack.c.l.b16 %v660
        %v744 = vunpack.c.l.b16 %v661
        %v745 = vunpack.c.h.b16 %v661
        %v746 = vunpack.c.l.b16 %v662
        %v747 = vunpack.c.l.b16 %v663
        %v748 = vunpack.c.h.b16 %v663
        %v749 = vunpack.c.l.b16 %v664
        %v750 = vunpack.c.l.b16 %v665
        %v751 = vunpack.c.h.b16 %v665
        %v752 = vunpack.c.l.b16 %v666
        %v753 = vunpack.c.l.b16 %v667
        %v754 = vunpack.c.h.b16 %v667
        %v755 = vunpack.c.l.b16 %v668
        %v756 = vunpack.c.l.b16 %v669
        %v757 = vunpack.c.h.b16 %v669
        %v758 = vunpack.c.l.b16 %v670
        %v759 = vpack.c.b16 %v714, %v711
        %v760 = vpack.c.b16 %v715, %v712
        %v761 = vpack.c.b16 %v716, %v713
        %v762 = vpack.c.b16 %v720, %v717
        %v763 = vpack.c.b16 %v721, %v718
        %v764 = vpack.c.b16 %v722, %v719
        %v765 = vpack.c.b16 %v726, %v723
        %v766 = vpack.c.b16 %v727, %v724
        %v767 = vpack.c.b16 %v728, %v725
        %v768 = vpack.c.b16 %v732, %v729
        %v769 = vpack.c.b16 %v733, %v730
        %v770 = vpack.c.b16 %v734, %v731
        %v771 = vpack.c.b16 %v738, %v735
        %v772 = vpack.c.b16 %v739, %v736
        %v773 = vpack.c.b16 %v740, %v737
        %v774 = vpack.c.b16 %v744, %v741
        %v775 = vpack.c.b16 %v745, %v742
        %v776 = vpack.c.b16 %v746, %v743
        %v777 = vpack.c.b16 %v750, %v747
        %v778 = vpack.c.b16 %v751, %v748
        %v779 = vpack.c.b16 %v752, %v749
        %v780 = vpack.c.b16 %v756, %v753
        %v781 = vpack.c.b16 %v757, %v754
        %v782 = vpack.c.b16 %v758, %v755
        %807 = vmatpush.bf16.msra.mxu0 %v780
        %808 = vmatpush.bf16.msra.mxu0 %v777
        %809 = vmatpush.bf16.msra.mxu0 %v774
        %810 = vmatpush.bf16.msra.mxu0 %v771
        %811 = vmatpush.bf16.msra.mxu0 %v768
        %812 = vmatpush.bf16.msra.mxu0 %v765
        %813 = vmatpush.bf16.msra.mxu0 %v762
        %814 = vmatpush.bf16.msra.mxu0 %v759
        %815 = vmatmul.bf16.gmra.mxu0 %v637
        %v816 = vpop.f32.mrf.mxu0
        %v817 = vadd.f32 %v673, %v816
        %v818 = vpop.f32.mrf.mxu0
        %v819 = vadd.f32 %v673, %v818
        %820 = vmatmul.bf16.gmra.mxu0 %v638
        %v821 = vpop.f32.mrf.mxu0
        %v822 = vadd.f32 %v673, %v821
        %v823 = vpop.f32.mrf.mxu0
        %v824 = vadd.f32 %v673, %v823
        %825 = vdwg.mxu0
        %826 = vmatpush.bf16.msra.mxu0 %v781
        %827 = vmatpush.bf16.msra.mxu0 %v778
        %828 = vmatpush.bf16.msra.mxu0 %v775
        %829 = vmatpush.bf16.msra.mxu0 %v772
        %830 = vmatpush.bf16.msra.mxu0 %v769
        %831 = vmatpush.bf16.msra.mxu0 %v766
        %832 = vmatpush.bf16.msra.mxu0 %v763
        %833 = vmatpush.bf16.msra.mxu0 %v760
        %834 = vmatmul.bf16.gmra.mxu0 %v637
        %v835 = vpop.f32.mrf.mxu0
        %v836 = vadd.f32 %v674, %v835
        %v837 = vpop.f32.mrf.mxu0
        %v838 = vadd.f32 %v674, %v837
        %839 = vmatmul.bf16.gmra.mxu0 %v638
        %v840 = vpop.f32.mrf.mxu0
        %v841 = vadd.f32 %v674, %v840
        %v842 = vpop.f32.mrf.mxu0
        %v843 = vadd.f32 %v674, %v842
        %844 = vdwg.mxu0
        %845 = vmatpush.bf16.msra.mxu0 %v782
        %846 = vmatpush.bf16.msra.mxu0 %v779
        %847 = vmatpush.bf16.msra.mxu0 %v776
        %848 = vmatpush.bf16.msra.mxu0 %v773
        %849 = vmatpush.bf16.msra.mxu0 %v770
        %850 = vmatpush.bf16.msra.mxu0 %v767
        %851 = vmatpush.bf16.msra.mxu0 %v764
        %852 = vmatpush.bf16.msra.mxu0 %v761
        %853 = vmatmul.bf16.gmra.mxu0 %v637
        %v854 = vpop.f32.mrf.mxu0
        %v855 = vadd.f32 %v675, %v854
        %v856 = vpop.f32.mrf.mxu0
        %v857 = vadd.f32 %v675, %v856
        %858 = vmatmul.bf16.gmra.mxu0 %v638
        %v859 = vpop.f32.mrf.mxu0
        %v860 = vadd.f32 %v675, %v859
        %v861 = vpop.f32.mrf.mxu0
        %v862 = vadd.f32 %v675, %v861
        %863 = vdwg.mxu0
        %v864 = vpack.c.bf16 %v836, %v817
        %v865 = vpack.c.bf16 %v855, %v855
        %v866 = vpack.c.bf16 %v838, %v819
        %v867 = vpack.c.bf16 %v857, %v857
        %v868 = vpack.c.bf16 %v841, %v822
        %v869 = vpack.c.bf16 %v860, %v860
        %v870 = vpack.c.bf16 %v843, %v824
        %v871 = vpack.c.bf16 %v862, %v862
        %v876 = vrot.slane %v864, 4
        %v877 = vrot.slane %v866, 4
        %v878 = vrot.slane %v868, 4
        %v879 = vrot.slane %v870, 4
        %v880 = vunpack.c.l.b16 %v864
        %v881 = vunpack.c.l.b16 %v866
        %v882 = vpack.c.b16 %v881, %v880
        %v883 = vunpack.c.l.b16 %v876
        %v884 = vunpack.c.l.b16 %v877
        %v885 = vpack.c.b16 %v884, %v883
        %vm886 = vcmask 261120
        %v888 = vsel %vm886, %v882, 0
        %v891 = vsel %vm886, %v885, 0
        %893 = vmatpush.bf16.xpose.msra.mxu0 0
        %894 = vmatpush.bf16.xpose.msra.mxu0 0
        %895 = vmatpush.bf16.xpose.msra.mxu0 0
        %896 = vmatpush.bf16.xpose.msra.mxu0 0
        %897 = vmatpush.bf16.xpose.msra.mxu0 0
        %898 = vmatpush.bf16.xpose.msra.mxu0 0
        %899 = vmatpush.bf16.xpose.msra.mxu0 0
        %900 = vmatpush.bf16.xpose.msra.mxu0 %v891
        %901 = vmatmul.bf16.gmra.mxu0 %v888
        %v902 = vpop.f32.mrf.mxu0
        %v903 = vadd.f32 0.0, %v902
        %v904 = vpop.f32.mrf.mxu0
        %v905 = vadd.f32 0.0, %v904
        %906 = vdwg.mxu0
        %v907 = vunpack.c.l.b16 %v868
        %v908 = vunpack.c.l.b16 %v870
        %v909 = vpack.c.b16 %v908, %v907
        %v910 = vunpack.c.l.b16 %v878
        %v911 = vunpack.c.l.b16 %v879
        %v912 = vpack.c.b16 %v911, %v910
        %v914 = vsel %vm886, %v909, 0
        %v917 = vsel %vm886, %v912, 0
        %919 = vmatpush.bf16.xpose.msra.mxu0 0
        %920 = vmatpush.bf16.xpose.msra.mxu0 0
        %921 = vmatpush.bf16.xpose.msra.mxu0 0
        %922 = vmatpush.bf16.xpose.msra.mxu0 0
        %923 = vmatpush.bf16.xpose.msra.mxu0 0
        %924 = vmatpush.bf16.xpose.msra.mxu0 0
        %925 = vmatpush.bf16.xpose.msra.mxu0 0
        %926 = vmatpush.bf16.xpose.msra.mxu0 %v917
        %927 = vmatmul.bf16.gmra.mxu0 %v914
        %v928 = vpop.f32.mrf.mxu0
        %v929 = vadd.f32 0.0, %v928
        %v930 = vpop.f32.mrf.mxu0
        %v931 = vadd.f32 0.0, %v930
        %932 = vdwg.mxu0
        %v933 = vmul.f32 %v903, 0.17677669
        %v934 = vmul.f32 %v905, 0.17677669
        %v935 = vmul.f32 %v929, 0.17677669
        %v936 = vmul.f32 %v931, 0.17677669
        %v937 = vadd.f32 %v933, %v514
        %v938 = vadd.f32 %v934, %v514
        %v939 = vadd.f32 %v935, %v514
        %v940 = vadd.f32 %v936, %v514
        %vm941 = vcmask 130048
        %v942 = vsel %vm941, %v937, -inf
        %943 = vmax.xlane.f32.xlu0 %v942
        %v944 = vpop.xlane.xlu0 %943
        %v945 = vsel %vm941, %v938, -inf
        %946 = vmax.xlane.f32.xlu0 %v945
        %v947 = vpop.xlane.xlu0 %946
        %v948 = vsel %vm941, %v939, -inf
        %949 = vmax.xlane.f32.xlu0 %v948
        %v950 = vpop.xlane.xlu0 %949
        %v951 = vsel %vm941, %v940, -inf
        %952 = vmax.xlane.f32.xlu0 %v951
        %v953 = vpop.xlane.xlu0 %952
        %v954 = vsub.f32 %v937, %v944
        %v955 = vsub.f32 %v938, %v947
        %v956 = vsub.f32 %v939, %v950
        %v957 = vsub.f32 %v940, %v953
        %v958 = vmul.f32 %v954, 1.442695
        %v959 = vpow.pop %v958
        %v960 = vmul.f32 %v955, 1.442695
        %v961 = vpow.pop %v960
        %v962 = vmul.f32 %v956, 1.442695
        %v963 = vpow.pop %v962
        %v964 = vmul.f32 %v957, 1.442695
        %v965 = vpow.pop %v964
        %v966 = vsel %vm941, %v959, 0.0
        %967 = vadd.xlane.f32.xlu0 %v966
        %v968 = vpop.xlane.xlu0 %967
        %v969 = vsel %vm941, %v961, 0.0
        %970 = vadd.xlane.f32.xlu0 %v969
        %v971 = vpop.xlane.xlu0 %970
        %v972 = vsel %vm941, %v963, 0.0
        %973 = vadd.xlane.f32.xlu0 %v972
        %v974 = vpop.xlane.xlu0 %973
        %v975 = vsel %vm941, %v965, 0.0
        %976 = vadd.xlane.f32.xlu0 %v975
        %v977 = vpop.xlane.xlu0 %976
        %v978 = vrcp.pop %v968
        %v979 = vrcp.pop %v971
        %v980 = vrcp.pop %v974
        %v981 = vrcp.pop %v977
        %v982 = vmul.f32 %v959, %v978
        %v983 = vmul.f32 %v961, %v979
        %v984 = vmul.f32 %v963, %v980
        %v985 = vmul.f32 %v965, %v981
        %v986 = vpack.c.bf16 %v982, %v982
        %v987 = vpack.c.bf16 %v983, %v983
        %v988 = vpack.c.bf16 %v984, %v984
        %v989 = vpack.c.bf16 %v985, %v985
        %v992 = vunpack.c.l.b16 %v986
        %v993 = vunpack.c.l.b16 %v987
        %v994 = vpack.c.b16 %v993, %v992
        %v997 = vunpack.c.l.b16 %v865
        %v998 = vunpack.c.l.b16 %v867
        %v999 = vpack.c.b16 %v998, %v997
        %v1002 = vsel %vm941, %v994, 0
        %1004 = vmatpush.bf16.msra.mxu0 0
        %1005 = vmatpush.bf16.msra.mxu0 0
        %1006 = vmatpush.bf16.msra.mxu0 0
        %1007 = vmatpush.bf16.msra.mxu0 0
        %1008 = vmatpush.bf16.msra.mxu0 0
        %1009 = vmatpush.bf16.msra.mxu0 0
        %1010 = vmatpush.bf16.msra.mxu0 0
        %1011 = vmatpush.bf16.msra.mxu0 %v999
        %1012 = vmatmul.bf16.gmra.mxu0 %v1002
        %v1013 = vpop.f32.mrf.mxu0
        %v1014 = vadd.f32 0.0, %v1013
        %v1015 = vpop.f32.mrf.mxu0
        %v1016 = vadd.f32 0.0, %v1015
        %1017 = vdwg.mxu0
        %v1020 = vunpack.c.l.b16 %v988
        %v1021 = vunpack.c.l.b16 %v989
        %v1022 = vpack.c.b16 %v1021, %v1020
        %v1025 = vunpack.c.l.b16 %v869
        %v1026 = vunpack.c.l.b16 %v871
        %v1027 = vpack.c.b16 %v1026, %v1025
        %v1030 = vsel %vm941, %v1022, 0
        %1032 = vmatpush.bf16.msra.mxu0 0
        %1033 = vmatpush.bf16.msra.mxu0 0
        %1034 = vmatpush.bf16.msra.mxu0 0
        %1035 = vmatpush.bf16.msra.mxu0 0
        %1036 = vmatpush.bf16.msra.mxu0 0
        %1037 = vmatpush.bf16.msra.mxu0 0
        %1038 = vmatpush.bf16.msra.mxu0 0
        %1039 = vmatpush.bf16.msra.mxu0 %v1027
        %1040 = vmatmul.bf16.gmra.mxu0 %v1030
        %v1041 = vpop.f32.mrf.mxu0
        %v1042 = vadd.f32 0.0, %v1041
        %v1043 = vpop.f32.mrf.mxu0
        %v1044 = vadd.f32 0.0, %v1043
        %1045 = vdwg.mxu0
        %v1046 = vpack.c.bf16 %v1016, %v1014
        %v1047 = vpack.c.bf16 %v1044, %v1042
        %v1048 = vld [vmem:[#allocation4] sm:$0xf]
        %v1049 = vld [vmem:[#allocation4 + $0x4] sm:$0xf]
        %v1050 = vld [vmem:[#allocation4 + $0x8] sm:$0xf]
        %v1051 = vld [vmem:[#allocation4 + $0xc] sm:$0xf]
        %1052 = vrot.lane.b32.xlu0 %v864, 96
        %v1053 = vpop.permute.xlu0 %1052
        %1054 = vrot.lane.b32.xlu0 %v866, 96
        %v1055 = vpop.permute.xlu0 %1054
        %1056 = vrot.lane.b32.xlu0 %v868, 96
        %v1057 = vpop.permute.xlu0 %1056
        %1058 = vrot.lane.b32.xlu0 %v870, 96
        %v1059 = vpop.permute.xlu0 %1058
        %v1060 = vrot.slane %v1053, 4
        %v1061 = vrot.slane %v1055, 4
        %v1062 = vrot.slane %v1057, 4
        %v1063 = vrot.slane %v1059, 4
        %1064 = vrot.lane.b32.xlu0 %v882, 96
        %v1065 = vpop.permute.xlu0 %1064
        %v1066 = vunpack.c.l.b16 %v1060
        %v1067 = vunpack.c.l.b16 %v1061
        %v1068 = vpack.c.b16 %v1067, %v1066
        %v1070 = vsel %vm886, %v1065, 0
        %v1073 = vsel %vm886, %v1068, 0
        %1075 = vmatpush.bf16.xpose.msra.mxu0 0
        %1076 = vmatpush.bf16.xpose.msra.mxu0 0
        %1077 = vmatpush.bf16.xpose.msra.mxu0 0
        %1078 = vmatpush.bf16.xpose.msra.mxu0 0
        %1079 = vmatpush.bf16.xpose.msra.mxu0 0
        %1080 = vmatpush.bf16.xpose.msra.mxu0 0
        %1081 = vmatpush.bf16.xpose.msra.mxu0 0
        %1082 = vmatpush.bf16.xpose.msra.mxu0 %v1073
        %1083 = vmatmul.bf16.gmra.mxu0 %v1070
        %v1084 = vpop.f32.mrf.mxu0
        %v1085 = vadd.f32 0.0, %v1084
        %v1086 = vpop.f32.mrf.mxu0
        %v1087 = vadd.f32 0.0, %v1086
        %1088 = vdwg.mxu0
        %1089 = vrot.lane.b32.xlu0 %v909, 96
        %v1090 = vpop.permute.xlu0 %1089
        %v1091 = vunpack.c.l.b16 %v1062
        %v1092 = vunpack.c.l.b16 %v1063
        %v1093 = vpack.c.b16 %v1092, %v1091
        %v1095 = vsel %vm886, %v1090, 0
        %v1098 = vsel %vm886, %v1093, 0
        %1100 = vmatpush.bf16.xpose.msra.mxu0 0
        %1101 = vmatpush.bf16.xpose.msra.mxu0 0
        %1102 = vmatpush.bf16.xpose.msra.mxu0 0
        %1103 = vmatpush.bf16.xpose.msra.mxu0 0
        %1104 = vmatpush.bf16.xpose.msra.mxu0 0
        %1105 = vmatpush.bf16.xpose.msra.mxu0 0
        %1106 = vmatpush.bf16.xpose.msra.mxu0 0
        %1107 = vmatpush.bf16.xpose.msra.mxu0 %v1098
        %1108 = vmatmul.bf16.gmra.mxu0 %v1095
        %v1109 = vpop.f32.mrf.mxu0
        %v1110 = vadd.f32 0.0, %v1109
        %v1111 = vpop.f32.mrf.mxu0
        %v1112 = vadd.f32 0.0, %v1111
        %1113 = vdwg.mxu0
        %v1114 = vmul.f32 %v1085, 0.17677669
        %v1115 = vmul.f32 %v1087, 0.17677669
        %v1116 = vmul.f32 %v1110, 0.17677669
        %v1117 = vmul.f32 %v1112, 0.17677669
        %v1118 = vadd.f32 %v1114, %v514
        %v1119 = vadd.f32 %v1115, %v514
        %v1120 = vadd.f32 %v1116, %v514
        %v1121 = vadd.f32 %v1117, %v514
        %v1122 = vsel %vm941, %v1118, -inf
        %1123 = vmax.xlane.f32.xlu0 %v1122
        %v1124 = vpop.xlane.xlu0 %1123
        %v1125 = vsel %vm941, %v1119, -inf
        %1126 = vmax.xlane.f32.xlu0 %v1125
        %v1127 = vpop.xlane.xlu0 %1126
        %v1128 = vsel %vm941, %v1120, -inf
        %1129 = vmax.xlane.f32.xlu0 %v1128
        %v1130 = vpop.xlane.xlu0 %1129
        %v1131 = vsel %vm941, %v1121, -inf
        %1132 = vmax.xlane.f32.xlu0 %v1131
        %v1133 = vpop.xlane.xlu0 %1132
        %v1134 = vsub.f32 %v1118, %v1124
        %v1135 = vsub.f32 %v1119, %v1127
        %v1136 = vsub.f32 %v1120, %v1130
        %v1137 = vsub.f32 %v1121, %v1133
        %v1138 = vmul.f32 %v1134, 1.442695
        %v1139 = vpow.pop %v1138
        %v1140 = vmul.f32 %v1135, 1.442695
        %v1141 = vpow.pop %v1140
        %v1142 = vmul.f32 %v1136, 1.442695
        %v1143 = vpow.pop %v1142
        %v1144 = vmul.f32 %v1137, 1.442695
        %v1145 = vpow.pop %v1144
        %v1146 = vsel %vm941, %v1139, 0.0
        %1147 = vadd.xlane.f32.xlu0 %v1146
        %v1148 = vpop.xlane.xlu0 %1147
        %v1149 = vsel %vm941, %v1141, 0.0
        %1150 = vadd.xlane.f32.xlu0 %v1149
        %v1151 = vpop.xlane.xlu0 %1150
        %v1152 = vsel %vm941, %v1143, 0.0
        %1153 = vadd.xlane.f32.xlu0 %v1152
        %v1154 = vpop.xlane.xlu0 %1153
        %v1155 = vsel %vm941, %v1145, 0.0
        %1156 = vadd.xlane.f32.xlu0 %v1155
        %v1157 = vpop.xlane.xlu0 %1156
        %v1158 = vrcp.pop %v1148
        %v1159 = vrcp.pop %v1151
        %v1160 = vrcp.pop %v1154
        %v1161 = vrcp.pop %v1157
        %v1162 = vmul.f32 %v1139, %v1158
        %v1163 = vmul.f32 %v1141, %v1159
        %v1164 = vmul.f32 %v1143, %v1160
        %v1165 = vmul.f32 %v1145, %v1161
        %v1166 = vpack.c.bf16 %v1162, %v1162
        %v1167 = vpack.c.bf16 %v1163, %v1163
        %v1168 = vpack.c.bf16 %v1164, %v1164
        %v1169 = vpack.c.bf16 %v1165, %v1165
        %v1172 = vunpack.c.l.b16 %v1166
        %v1173 = vunpack.c.l.b16 %v1167
        %v1174 = vpack.c.b16 %v1173, %v1172
        %1175 = vrot.lane.b32.xlu0 %v999, 96
        %v1176 = vpop.permute.xlu0 %1175
        %v1179 = vsel %vm941, %v1174, 0
        %1181 = vmatpush.bf16.msra.mxu0 0
        %1182 = vmatpush.bf16.msra.mxu0 0
        %1183 = vmatpush.bf16.msra.mxu0 0
        %1184 = vmatpush.bf16.msra.mxu0 0
        %1185 = vmatpush.bf16.msra.mxu0 0
        %1186 = vmatpush.bf16.msra.mxu0 0
        %1187 = vmatpush.bf16.msra.mxu0 0
        %1188 = vmatpush.bf16.msra.mxu0 %v1176
        %1189 = vmatmul.bf16.gmra.mxu0 %v1179
        %v1190 = vpop.f32.mrf.mxu0
        %v1191 = vadd.f32 0.0, %v1190
        %v1192 = vpop.f32.mrf.mxu0
        %v1193 = vadd.f32 0.0, %v1192
        %1194 = vdwg.mxu0
        %v1197 = vunpack.c.l.b16 %v1168
        %v1198 = vunpack.c.l.b16 %v1169
        %v1199 = vpack.c.b16 %v1198, %v1197
        %1200 = vrot.lane.b32.xlu0 %v1027, 96
        %v1201 = vpop.permute.xlu0 %1200
        %v1204 = vsel %vm941, %v1199, 0
        %1206 = vmatpush.bf16.msra.mxu0 0
        %1207 = vmatpush.bf16.msra.mxu0 0
        %1208 = vmatpush.bf16.msra.mxu0 0
        %1209 = vmatpush.bf16.msra.mxu0 0
        %1210 = vmatpush.bf16.msra.mxu0 0
        %1211 = vmatpush.bf16.msra.mxu0 0
        %1212 = vmatpush.bf16.msra.mxu0 0
        %1213 = vmatpush.bf16.msra.mxu0 %v1201
        %1214 = vmatmul.bf16.gmra.mxu0 %v1204
        %v1215 = vpop.f32.mrf.mxu0
        %v1216 = vadd.f32 0.0, %v1215
        %v1217 = vpop.f32.mrf.mxu0
        %v1218 = vadd.f32 0.0, %v1217
        %1219 = vdwg.mxu0
        %v1220 = vpack.c.bf16 %v1193, %v1191
        %v1221 = vpack.c.bf16 %v1218, %v1216
        %v1222 = vld [vmem:[#allocation4 + $0x10] sm:$0xf]
        %v1223 = vld [vmem:[#allocation4 + $0x14] sm:$0xf]
        %v1224 = vld [vmem:[#allocation4 + $0x18] sm:$0xf]
        %v1225 = vld [vmem:[#allocation4 + $0x1c] sm:$0xf]
        %v1230 = vunpack.c.l.b16 %v1222
        %v1231 = vunpack.c.l.b16 %v1223
        %v1232 = vunpack.c.l.b16 %v1224
        %v1233 = vunpack.c.l.b16 %v1225
        %v1234 = vpack.c.b16 %v1231, %v1230
        %v1235 = vpack.c.b16 %v1233, %v1232
        %v1239 = vsel %vm886, %v1220, 0
        %v1242 = vsel %vm886, %v1221, 0
        %1244 = vmatpush.bf16.msra.mxu0 0
        %1245 = vmatpush.bf16.msra.mxu0 0
        %1246 = vmatpush.bf16.msra.mxu0 0
        %1247 = vmatpush.bf16.msra.mxu0 0
        %1248 = vmatpush.bf16.msra.mxu0 0
        %1249 = vmatpush.bf16.msra.mxu0 0
        %1250 = vmatpush.bf16.msra.mxu0 %v1235
        %1251 = vmatpush.bf16.msra.mxu0 %v1234
        %1252 = vmatmul.bf16.gmra.mxu0 %v1239
        %v1253 = vpop.f32.mrf.mxu0
        %v1254 = vadd.f32 0.0, %v1253
        %v1255 = vpop.f32.mrf.mxu0
        %v1256 = vadd.f32 0.0, %v1255
        %1257 = vmatmul.bf16.gmra.mxu0 %v1242
        %v1258 = vpop.f32.mrf.mxu0
        %v1259 = vadd.f32 0.0, %v1258
        %v1260 = vpop.f32.mrf.mxu0
        %v1261 = vadd.f32 0.0, %v1260
        %1262 = vdwg.mxu0
        %v1267 = vunpack.c.l.b16 %v1048
        %v1268 = vunpack.c.l.b16 %v1049
        %v1269 = vunpack.c.l.b16 %v1050
        %v1270 = vunpack.c.l.b16 %v1051
        %v1271 = vpack.c.b16 %v1268, %v1267
        %v1272 = vpack.c.b16 %v1270, %v1269
        %v1276 = vsel %vm886, %v1046, 0
        %v1279 = vsel %vm886, %v1047, 0
        %1281 = vmatpush.bf16.msra.mxu0 0
        %1282 = vmatpush.bf16.msra.mxu0 0
        %1283 = vmatpush.bf16.msra.mxu0 0
        %1284 = vmatpush.bf16.msra.mxu0 0
        %1285 = vmatpush.bf16.msra.mxu0 0
        %1286 = vmatpush.bf16.msra.mxu0 0
        %1287 = vmatpush.bf16.msra.mxu0 %v1272
        %1288 = vmatpush.bf16.msra.mxu0 %v1271
        %1289 = vmatmul.bf16.gmra.mxu0 %v1276
        %v1290 = vpop.f32.mrf.mxu0
        %v1291 = vadd.f32 %v1254, %v1290
        %v1292 = vpop.f32.mrf.mxu0
        %v1293 = vadd.f32 %v1256, %v1292
        %1294 = vmatmul.bf16.gmra.mxu0 %v1279
        %v1295 = vpop.f32.mrf.mxu0
        %v1296 = vadd.f32 %v1259, %v1295
        %v1297 = vpop.f32.mrf.mxu0
        %v1298 = vadd.f32 %v1261, %v1297
        %1299 = vdwg.mxu0
        %1300 = vrot.lane.b32.xlu0 %v864, 64
        %v1301 = vpop.permute.xlu0 %1300
        %1302 = vrot.lane.b32.xlu0 %v866, 64
        %v1303 = vpop.permute.xlu0 %1302
        %1304 = vrot.lane.b32.xlu0 %v868, 64
        %v1305 = vpop.permute.xlu0 %1304
        %1306 = vrot.lane.b32.xlu0 %v870, 64
        %v1307 = vpop.permute.xlu0 %1306
        %v1308 = vrot.slane %v1301, 4
        %v1309 = vrot.slane %v1303, 4
        %v1310 = vrot.slane %v1305, 4
        %v1311 = vrot.slane %v1307, 4
        %1312 = vrot.lane.b32.xlu0 %v882, 64
        %v1313 = vpop.permute.xlu0 %1312
        %v1314 = vunpack.c.l.b16 %v1308
        %v1315 = vunpack.c.l.b16 %v1309
        %v1316 = vpack.c.b16 %v1315, %v1314
        %v1318 = vsel %vm886, %v1313, 0
        %v1321 = vsel %vm886, %v1316, 0
        %1323 = vmatpush.bf16.xpose.msra.mxu0 0
        %1324 = vmatpush.bf16.xpose.msra.mxu0 0
        %1325 = vmatpush.bf16.xpose.msra.mxu0 0
        %1326 = vmatpush.bf16.xpose.msra.mxu0 0
        %1327 = vmatpush.bf16.xpose.msra.mxu0 0
        %1328 = vmatpush.bf16.xpose.msra.mxu0 0
        %1329 = vmatpush.bf16.xpose.msra.mxu0 0
        %1330 = vmatpush.bf16.xpose.msra.mxu0 %v1321
        %1331 = vmatmul.bf16.gmra.mxu0 %v1318
        %v1332 = vpop.f32.mrf.mxu0
        %v1333 = vadd.f32 0.0, %v1332
        %v1334 = vpop.f32.mrf.mxu0
        %v1335 = vadd.f32 0.0, %v1334
        %1336 = vdwg.mxu0
        %1337 = vrot.lane.b32.xlu0 %v909, 64
        %v1338 = vpop.permute.xlu0 %1337
        %v1339 = vunpack.c.l.b16 %v1310
        %v1340 = vunpack.c.l.b16 %v1311
        %v1341 = vpack.c.b16 %v1340, %v1339
        %v1343 = vsel %vm886, %v1338, 0
        %v1346 = vsel %vm886, %v1341, 0
        %1348 = vmatpush.bf16.xpose.msra.mxu0 0
        %1349 = vmatpush.bf16.xpose.msra.mxu0 0
        %1350 = vmatpush.bf16.xpose.msra.mxu0 0
        %1351 = vmatpush.bf16.xpose.msra.mxu0 0
        %1352 = vmatpush.bf16.xpose.msra.mxu0 0
        %1353 = vmatpush.bf16.xpose.msra.mxu0 0
        %1354 = vmatpush.bf16.xpose.msra.mxu0 0
        %1355 = vmatpush.bf16.xpose.msra.mxu0 %v1346
        %1356 = vmatmul.bf16.gmra.mxu0 %v1343
        %v1357 = vpop.f32.mrf.mxu0
        %v1358 = vadd.f32 0.0, %v1357
        %v1359 = vpop.f32.mrf.mxu0
        %v1360 = vadd.f32 0.0, %v1359
        %1361 = vdwg.mxu0
        %v1362 = vmul.f32 %v1333, 0.17677669
        %v1363 = vmul.f32 %v1335, 0.17677669
        %v1364 = vmul.f32 %v1358, 0.17677669
        %v1365 = vmul.f32 %v1360, 0.17677669
        %v1366 = vadd.f32 %v1362, %v514
        %v1367 = vadd.f32 %v1363, %v514
        %v1368 = vadd.f32 %v1364, %v514
        %v1369 = vadd.f32 %v1365, %v514
        %v1370 = vsel %vm941, %v1366, -inf
        %1371 = vmax.xlane.f32.xlu0 %v1370
        %v1372 = vpop.xlane.xlu0 %1371
        %v1373 = vsel %vm941, %v1367, -inf
        %1374 = vmax.xlane.f32.xlu0 %v1373
        %v1375 = vpop.xlane.xlu0 %1374
        %v1376 = vsel %vm941, %v1368, -inf
        %1377 = vmax.xlane.f32.xlu0 %v1376
        %v1378 = vpop.xlane.xlu0 %1377
        %v1379 = vsel %vm941, %v1369, -inf
        %1380 = vmax.xlane.f32.xlu0 %v1379
        %v1381 = vpop.xlane.xlu0 %1380
        %v1382 = vsub.f32 %v1366, %v1372
        %v1383 = vsub.f32 %v1367, %v1375
        %v1384 = vsub.f32 %v1368, %v1378
        %v1385 = vsub.f32 %v1369, %v1381
        %v1386 = vmul.f32 %v1382, 1.442695
        %v1387 = vpow.pop %v1386
        %v1388 = vmul.f32 %v1383, 1.442695
        %v1389 = vpow.pop %v1388
        %v1390 = vmul.f32 %v1384, 1.442695
        %v1391 = vpow.pop %v1390
        %v1392 = vmul.f32 %v1385, 1.442695
        %v1393 = vpow.pop %v1392
        %v1394 = vsel %vm941, %v1387, 0.0
        %1395 = vadd.xlane.f32.xlu0 %v1394
        %v1396 = vpop.xlane.xlu0 %1395
        %v1397 = vsel %vm941, %v1389, 0.0
        %1398 = vadd.xlane.f32.xlu0 %v1397
        %v1399 = vpop.xlane.xlu0 %1398
        %v1400 = vsel %vm941, %v1391, 0.0
        %1401 = vadd.xlane.f32.xlu0 %v1400
        %v1402 = vpop.xlane.xlu0 %1401
        %v1403 = vsel %vm941, %v1393, 0.0
        %1404 = vadd.xlane.f32.xlu0 %v1403
        %v1405 = vpop.xlane.xlu0 %1404
        %v1406 = vrcp.pop %v1396
        %v1407 = vrcp.pop %v1399
        %v1408 = vrcp.pop %v1402
        %v1409 = vrcp.pop %v1405
        %v1410 = vmul.f32 %v1387, %v1406
        %v1411 = vmul.f32 %v1389, %v1407
        %v1412 = vmul.f32 %v1391, %v1408
        %v1413 = vmul.f32 %v1393, %v1409
        %v1414 = vpack.c.bf16 %v1410, %v1410
        %v1415 = vpack.c.bf16 %v1411, %v1411
        %v1416 = vpack.c.bf16 %v1412, %v1412
        %v1417 = vpack.c.bf16 %v1413, %v1413
        %v1420 = vunpack.c.l.b16 %v1414
        %v1421 = vunpack.c.l.b16 %v1415
        %v1422 = vpack.c.b16 %v1421, %v1420
        %1423 = vrot.lane.b32.xlu0 %v999, 64
        %v1424 = vpop.permute.xlu0 %1423
        %v1427 = vsel %vm941, %v1422, 0
        %1429 = vmatpush.bf16.msra.mxu0 0
        %1430 = vmatpush.bf16.msra.mxu0 0
        %1431 = vmatpush.bf16.msra.mxu0 0
        %1432 = vmatpush.bf16.msra.mxu0 0
        %1433 = vmatpush.bf16.msra.mxu0 0
        %1434 = vmatpush.bf16.msra.mxu0 0
        %1435 = vmatpush.bf16.msra.mxu0 0
        %1436 = vmatpush.bf16.msra.mxu0 %v1424
        %1437 = vmatmul.bf16.gmra.mxu0 %v1427
        %v1438 = vpop.f32.mrf.mxu0
        %v1439 = vadd.f32 0.0, %v1438
        %v1440 = vpop.f32.mrf.mxu0
        %v1441 = vadd.f32 0.0, %v1440
        %1442 = vdwg.mxu0
        %v1445 = vunpack.c.l.b16 %v1416
        %v1446 = vunpack.c.l.b16 %v1417
        %v1447 = vpack.c.b16 %v1446, %v1445
        %1448 = vrot.lane.b32.xlu0 %v1027, 64
        %v1449 = vpop.permute.xlu0 %1448
        %v1452 = vsel %vm941, %v1447, 0
        %1454 = vmatpush.bf16.msra.mxu0 0
        %1455 = vmatpush.bf16.msra.mxu0 0
        %1456 = vmatpush.bf16.msra.mxu0 0
        %1457 = vmatpush.bf16.msra.mxu0 0
        %1458 = vmatpush.bf16.msra.mxu0 0
        %1459 = vmatpush.bf16.msra.mxu0 0
        %1460 = vmatpush.bf16.msra.mxu0 0
        %1461 = vmatpush.bf16.msra.mxu0 %v1449
        %1462 = vmatmul.bf16.gmra.mxu0 %v1452
        %v1463 = vpop.f32.mrf.mxu0
        %v1464 = vadd.f32 0.0, %v1463
        %v1465 = vpop.f32.mrf.mxu0
        %v1466 = vadd.f32 0.0, %v1465
        %1467 = vdwg.mxu0
        %v1468 = vpack.c.bf16 %v1441, %v1439
        %v1469 = vpack.c.bf16 %v1466, %v1464
        %v1470 = vld [vmem:[#allocation4 + $0x20] sm:$0xf]
        %v1471 = vld [vmem:[#allocation4 + $0x24] sm:$0xf]
        %v1472 = vld [vmem:[#allocation4 + $0x28] sm:$0xf]
        %v1473 = vld [vmem:[#allocation4 + $0x2c] sm:$0xf]
        %v1478 = vunpack.c.l.b16 %v1470
        %v1479 = vunpack.c.l.b16 %v1471
        %v1480 = vunpack.c.l.b16 %v1472
        %v1481 = vunpack.c.l.b16 %v1473
        %v1482 = vpack.c.b16 %v1479, %v1478
        %v1483 = vpack.c.b16 %v1481, %v1480
        %v1487 = vsel %vm886, %v1468, 0
        %v1490 = vsel %vm886, %v1469, 0
        %1492 = vmatpush.bf16.msra.mxu0 0
        %1493 = vmatpush.bf16.msra.mxu0 0
        %1494 = vmatpush.bf16.msra.mxu0 0
        %1495 = vmatpush.bf16.msra.mxu0 0
        %1496 = vmatpush.bf16.msra.mxu0 0
        %1497 = vmatpush.bf16.msra.mxu0 0
        %1498 = vmatpush.bf16.msra.mxu0 %v1483
        %1499 = vmatpush.bf16.msra.mxu0 %v1482
        %1500 = vmatmul.bf16.gmra.mxu0 %v1487
        %v1501 = vpop.f32.mrf.mxu0
        %v1502 = vadd.f32 0.0, %v1501
        %v1503 = vpop.f32.mrf.mxu0
        %v1504 = vadd.f32 0.0, %v1503
        %1505 = vmatmul.bf16.gmra.mxu0 %v1490
        %v1506 = vpop.f32.mrf.mxu0
        %v1507 = vadd.f32 0.0, %v1506
        %v1508 = vpop.f32.mrf.mxu0
        %v1509 = vadd.f32 0.0, %v1508
        %1510 = vdwg.mxu0
        %v1511 = vadd.f32 %v1291, %v1502
        %v1512 = vadd.f32 %v1293, %v1504
        %v1513 = vadd.f32 %v1296, %v1507
        %v1514 = vadd.f32 %v1298, %v1509
        %1515 = vrot.lane.b32.xlu0 %v864, 32
        %v1516 = vpop.permute.xlu0 %1515
        %1517 = vrot.lane.b32.xlu0 %v866, 32
        %v1518 = vpop.permute.xlu0 %1517
        %1519 = vrot.lane.b32.xlu0 %v868, 32
        %v1520 = vpop.permute.xlu0 %1519
        %1521 = vrot.lane.b32.xlu0 %v870, 32
        %v1522 = vpop.permute.xlu0 %1521
        %v1523 = vrot.slane %v1516, 4
        %v1524 = vrot.slane %v1518, 4
        %v1525 = vrot.slane %v1520, 4
        %v1526 = vrot.slane %v1522, 4
        %1527 = vrot.lane.b32.xlu0 %v882, 32
        %v1528 = vpop.permute.xlu0 %1527
        %v1529 = vunpack.c.l.b16 %v1523
        %v1530 = vunpack.c.l.b16 %v1524
        %v1531 = vpack.c.b16 %v1530, %v1529
        %v1533 = vsel %vm886, %v1528, 0
        %v1536 = vsel %vm886, %v1531, 0
        %1538 = vmatpush.bf16.xpose.msra.mxu0 0
        %1539 = vmatpush.bf16.xpose.msra.mxu0 0
        %1540 = vmatpush.bf16.xpose.msra.mxu0 0
        %1541 = vmatpush.bf16.xpose.msra.mxu0 0
        %1542 = vmatpush.bf16.xpose.msra.mxu0 0
        %1543 = vmatpush.bf16.xpose.msra.mxu0 0
        %1544 = vmatpush.bf16.xpose.msra.mxu0 0
        %1545 = vmatpush.bf16.xpose.msra.mxu0 %v1536
        %1546 = vmatmul.bf16.gmra.mxu0 %v1533
        %v1547 = vpop.f32.mrf.mxu0
        %v1548 = vadd.f32 0.0, %v1547
        %v1549 = vpop.f32.mrf.mxu0
        %v1550 = vadd.f32 0.0, %v1549
        %1551 = vdwg.mxu0
        %1552 = vrot.lane.b32.xlu0 %v909, 32
        %v1553 = vpop.permute.xlu0 %1552
        %v1554 = vunpack.c.l.b16 %v1525
        %v1555 = vunpack.c.l.b16 %v1526
        %v1556 = vpack.c.b16 %v1555, %v1554
        %v1558 = vsel %vm886, %v1553, 0
        %v1561 = vsel %vm886, %v1556, 0
        %1563 = vmatpush.bf16.xpose.msra.mxu0 0
        %1564 = vmatpush.bf16.xpose.msra.mxu0 0
        %1565 = vmatpush.bf16.xpose.msra.mxu0 0
        %1566 = vmatpush.bf16.xpose.msra.mxu0 0
        %1567 = vmatpush.bf16.xpose.msra.mxu0 0
        %1568 = vmatpush.bf16.xpose.msra.mxu0 0
        %1569 = vmatpush.bf16.xpose.msra.mxu0 0
        %1570 = vmatpush.bf16.xpose.msra.mxu0 %v1561
        %1571 = vmatmul.bf16.gmra.mxu0 %v1558
        %v1572 = vpop.f32.mrf.mxu0
        %v1573 = vadd.f32 0.0, %v1572
        %v1574 = vpop.f32.mrf.mxu0
        %v1575 = vadd.f32 0.0, %v1574
        %1576 = vdwg.mxu0
        %v1577 = vmul.f32 %v1548, 0.17677669
        %v1578 = vmul.f32 %v1550, 0.17677669
        %v1579 = vmul.f32 %v1573, 0.17677669
        %v1580 = vmul.f32 %v1575, 0.17677669
        %v1581 = vadd.f32 %v1577, %v514
        %v1582 = vadd.f32 %v1578, %v514
        %v1583 = vadd.f32 %v1579, %v514
        %v1584 = vadd.f32 %v1580, %v514
        %v1585 = vsel %vm941, %v1581, -inf
        %1586 = vmax.xlane.f32.xlu0 %v1585
        %v1587 = vpop.xlane.xlu0 %1586
        %v1588 = vsel %vm941, %v1582, -inf
        %1589 = vmax.xlane.f32.xlu0 %v1588
        %v1590 = vpop.xlane.xlu0 %1589
        %v1591 = vsel %vm941, %v1583, -inf
        %1592 = vmax.xlane.f32.xlu0 %v1591
        %v1593 = vpop.xlane.xlu0 %1592
        %v1594 = vsel %vm941, %v1584, -inf
        %1595 = vmax.xlane.f32.xlu0 %v1594
        %v1596 = vpop.xlane.xlu0 %1595
        %v1597 = vsub.f32 %v1581, %v1587
        %v1598 = vsub.f32 %v1582, %v1590
        %v1599 = vsub.f32 %v1583, %v1593
        %v1600 = vsub.f32 %v1584, %v1596
        %v1601 = vmul.f32 %v1597, 1.442695
        %v1602 = vpow.pop %v1601
        %v1603 = vmul.f32 %v1598, 1.442695
        %v1604 = vpow.pop %v1603
        %v1605 = vmul.f32 %v1599, 1.442695
        %v1606 = vpow.pop %v1605
        %v1607 = vmul.f32 %v1600, 1.442695
        %v1608 = vpow.pop %v1607
        %v1609 = vsel %vm941, %v1602, 0.0
        %1610 = vadd.xlane.f32.xlu0 %v1609
        %v1611 = vpop.xlane.xlu0 %1610
        %v1612 = vsel %vm941, %v1604, 0.0
        %1613 = vadd.xlane.f32.xlu0 %v1612
        %v1614 = vpop.xlane.xlu0 %1613
        %v1615 = vsel %vm941, %v1606, 0.0
        %1616 = vadd.xlane.f32.xlu0 %v1615
        %v1617 = vpop.xlane.xlu0 %1616
        %v1618 = vsel %vm941, %v1608, 0.0
        %1619 = vadd.xlane.f32.xlu0 %v1618
        %v1620 = vpop.xlane.xlu0 %1619
        %v1621 = vrcp.pop %v1611
        %v1622 = vrcp.pop %v1614
        %v1623 = vrcp.pop %v1617
        %v1624 = vrcp.pop %v1620
        %v1625 = vmul.f32 %v1602, %v1621
        %v1626 = vmul.f32 %v1604, %v1622
        %v1627 = vmul.f32 %v1606, %v1623
        %v1628 = vmul.f32 %v1608, %v1624
        %v1629 = vpack.c.bf16 %v1625, %v1625
        %v1630 = vpack.c.bf16 %v1626, %v1626
        %v1631 = vpack.c.bf16 %v1627, %v1627
        %v1632 = vpack.c.bf16 %v1628, %v1628
        %v1635 = vunpack.c.l.b16 %v1629
        %v1636 = vunpack.c.l.b16 %v1630
        %v1637 = vpack.c.b16 %v1636, %v1635
        %1638 = vrot.lane.b32.xlu0 %v999, 32
        %v1639 = vpop.permute.xlu0 %1638
        %v1642 = vsel %vm941, %v1637, 0
        %1644 = vmatpush.bf16.msra.mxu0 0
        %1645 = vmatpush.bf16.msra.mxu0 0
        %1646 = vmatpush.bf16.msra.mxu0 0
        %1647 = vmatpush.bf16.msra.mxu0 0
        %1648 = vmatpush.bf16.msra.mxu0 0
        %1649 = vmatpush.bf16.msra.mxu0 0
        %1650 = vmatpush.bf16.msra.mxu0 0
        %1651 = vmatpush.bf16.msra.mxu0 %v1639
        %1652 = vmatmul.bf16.gmra.mxu0 %v1642
        %v1653 = vpop.f32.mrf.mxu0
        %v1654 = vadd.f32 0.0, %v1653
        %v1655 = vpop.f32.mrf.mxu0
        %v1656 = vadd.f32 0.0, %v1655
        %1657 = vdwg.mxu0
        %v1660 = vunpack.c.l.b16 %v1631
        %v1661 = vunpack.c.l.b16 %v1632
        %v1662 = vpack.c.b16 %v1661, %v1660
        %1663 = vrot.lane.b32.xlu0 %v1027, 32
        %v1664 = vpop.permute.xlu0 %1663
        %v1667 = vsel %vm941, %v1662, 0
        %1669 = vmatpush.bf16.msra.mxu0 0
        %1670 = vmatpush.bf16.msra.mxu0 0
        %1671 = vmatpush.bf16.msra.mxu0 0
        %1672 = vmatpush.bf16.msra.mxu0 0
        %1673 = vmatpush.bf16.msra.mxu0 0
        %1674 = vmatpush.bf16.msra.mxu0 0
        %1675 = vmatpush.bf16.msra.mxu0 0
        %1676 = vmatpush.bf16.msra.mxu0 %v1664
        %1677 = vmatmul.bf16.gmra.mxu0 %v1667
        %v1678 = vpop.f32.mrf.mxu0
        %v1679 = vadd.f32 0.0, %v1678
        %v1680 = vpop.f32.mrf.mxu0
        %v1681 = vadd.f32 0.0, %v1680
        %1682 = vdwg.mxu0
        %v1683 = vpack.c.bf16 %v1656, %v1654
        %v1684 = vpack.c.bf16 %v1681, %v1679
        %v1685 = vld [vmem:[#allocation4 + $0x30] sm:$0xf]
        %v1686 = vld [vmem:[#allocation4 + $0x34] sm:$0xf]
        %v1687 = vld [vmem:[#allocation4 + $0x38] sm:$0xf]
        %v1688 = vld [vmem:[#allocation4 + $0x3c] sm:$0xf]
        %v1693 = vunpack.c.l.b16 %v1685
        %v1694 = vunpack.c.l.b16 %v1686
        %v1695 = vunpack.c.l.b16 %v1687
        %v1696 = vunpack.c.l.b16 %v1688
        %v1697 = vpack.c.b16 %v1694, %v1693
        %v1698 = vpack.c.b16 %v1696, %v1695
        %v1702 = vsel %vm886, %v1683, 0
        %v1705 = vsel %vm886, %v1684, 0
        %1707 = vmatpush.bf16.msra.mxu0 0
        %1708 = vmatpush.bf16.msra.mxu0 0
        %1709 = vmatpush.bf16.msra.mxu0 0
        %1710 = vmatpush.bf16.msra.mxu0 0
        %1711 = vmatpush.bf16.msra.mxu0 0
        %1712 = vmatpush.bf16.msra.mxu0 0
        %1713 = vmatpush.bf16.msra.mxu0 %v1698
        %1714 = vmatpush.bf16.msra.mxu0 %v1697
        %1715 = vmatmul.bf16.gmra.mxu0 %v1702
        %v1716 = vpop.f32.mrf.mxu0
        %v1717 = vadd.f32 0.0, %v1716
        %v1718 = vpop.f32.mrf.mxu0
        %v1719 = vadd.f32 0.0, %v1718
        %1720 = vmatmul.bf16.gmra.mxu0 %v1705
        %v1721 = vpop.f32.mrf.mxu0
        %v1722 = vadd.f32 0.0, %v1721
        %v1723 = vpop.f32.mrf.mxu0
        %v1724 = vadd.f32 0.0, %v1723
        %1725 = vdwg.mxu0
        %v1726 = vadd.f32 %v1511, %v1717
        %v1727 = vadd.f32 %v1512, %v1719
        %v1728 = vadd.f32 %v1513, %v1722
        %v1729 = vadd.f32 %v1514, %v1724
        %v1730 = vld [vmem:[%s6] sm:$0x1]
        %v1732 = vperm.slane %v1730, 0
        %v1734 = vadd.f32 %v1726, %v1732
        %v1735 = vadd.f32 %v1727, %v1732
        %v1736 = vadd.f32 %v1728, %v1732
        %v1737 = vadd.f32 %v1729, %v1732
        %v1738 = vmul.f32 %v1734, %v522
        %v1739 = vmul.f32 %v1735, %v523
        %v1740 = vmul.f32 %v1736, %v522
        %v1741 = vmul.f32 %v1737, %v523
        %v1742 = vadd.f32 %v507, %v1738
        %v1743 = vadd.f32 %v508, %v1739
        %v1744 = vadd.f32 %v509, %v1740
        %v1745 = vadd.f32 %v510, %v1741
        %1746 = vadd.xlane.f32.xlu0 %v1742
        %v1747 = vpop.xlane.xlu0 %1746
        %1748 = vadd.xlane.f32.xlu0 %v1743
        %v1749 = vpop.xlane.xlu0 %1748
        %1750 = vadd.xlane.f32.xlu0 %v1744
        %v1751 = vpop.xlane.xlu0 %1750
        %1752 = vadd.xlane.f32.xlu0 %v1745
        %v1753 = vpop.xlane.xlu0 %1752
        %v1754 = vmul.f32 %v1747, %v538
        %v1755 = vmul.f32 %v1749, %v538
        %v1756 = vmul.f32 %v1751, %v538
        %v1757 = vmul.f32 %v1753, %v538
        %v1758 = vsub.f32 %v1742, %v1754
        %v1759 = vsub.f32 %v1743, %v1755
        %v1760 = vsub.f32 %v1744, %v1756
        %v1761 = vsub.f32 %v1745, %v1757
        %v1762 = vmul.f32 %v1758, %v1758
        %v1763 = vmul.f32 %v1759, %v1759
        %v1764 = vmul.f32 %v1760, %v1760
        %v1765 = vmul.f32 %v1761, %v1761
        %1766 = vadd.xlane.f32.xlu0 %v1762
        %v1767 = vpop.xlane.xlu0 %1766
        %1768 = vadd.xlane.f32.xlu0 %v1763
        %v1769 = vpop.xlane.xlu0 %1768
        %1770 = vadd.xlane.f32.xlu0 %v1764
        %v1771 = vpop.xlane.xlu0 %1770
        %1772 = vadd.xlane.f32.xlu0 %v1765
        %v1773 = vpop.xlane.xlu0 %1772
        %v1774 = vmul.f32 %v1767, %v538
        %v1775 = vmul.f32 %v1769, %v538
        %v1776 = vmul.f32 %v1771, %v538
        %v1777 = vmul.f32 %v1773, %v538
        %v1778 = vadd.f32 %v1774, 1e-05
        %v1779 = vadd.f32 %v1775, 1e-05
        %v1780 = vadd.f32 %v1776, 1e-05
        %v1781 = vadd.f32 %v1777, 1e-05
        %v1782 = vrsqrt.pop %v1778
        %v1783 = vmul.f32 %v1782, %v1778
        %v1784 = vmul.f32 %v1783, %v1782
        %v1785 = vmul.f32 0.5, %v1784
        %v1786 = vsub.f32 1.5, %v1785
        %v1787 = vmul.f32 %v1782, %v1786
        %vm1788 = vweird.f32 %v1778
        %vm1789 = vweird.f32 %v1782
        %vm1790 = vmor %vm1788, %vm1789
        %v1791 = vsel %vm1790, %v1782, %v1787
        %v1792 = vrsqrt.pop %v1779
        %v1793 = vmul.f32 %v1792, %v1779
        %v1794 = vmul.f32 %v1793, %v1792
        %v1795 = vmul.f32 0.5, %v1794
        %v1796 = vsub.f32 1.5, %v1795
        %v1797 = vmul.f32 %v1792, %v1796
        %vm1798 = vweird.f32 %v1779
        %vm1799 = vweird.f32 %v1792
        %vm1800 = vmor %vm1798, %vm1799
        %v1801 = vsel %vm1800, %v1792, %v1797
        %v1802 = vrsqrt.pop %v1780
        %v1803 = vmul.f32 %v1802, %v1780
        %v1804 = vmul.f32 %v1803, %v1802
        %v1805 = vmul.f32 0.5, %v1804
        %v1806 = vsub.f32 1.5, %v1805
        %v1807 = vmul.f32 %v1802, %v1806
        %vm1808 = vweird.f32 %v1780
        %vm1809 = vweird.f32 %v1802
        %vm1810 = vmor %vm1808, %vm1809
        %v1811 = vsel %vm1810, %v1802, %v1807
        %v1812 = vrsqrt.pop %v1781
        %v1813 = vmul.f32 %v1812, %v1781
        %v1814 = vmul.f32 %v1813, %v1812
        %v1815 = vmul.f32 0.5, %v1814
        %v1816 = vsub.f32 1.5, %v1815
        %v1817 = vmul.f32 %v1812, %v1816
        %vm1818 = vweird.f32 %v1781
        %vm1819 = vweird.f32 %v1812
        %vm1820 = vmor %vm1818, %vm1819
        %v1821 = vsel %vm1820, %v1812, %v1817
        %v1822 = vmul.f32 %v1758, %v1791
        %v1823 = vmul.f32 %v1759, %v1801
        %v1824 = vmul.f32 %v1760, %v1811
        %v1825 = vmul.f32 %v1761, %v1821
        %v1826 = vld [vmem:[%s497] sm:$0x1]
        %v1827 = vld [vmem:[%s497 + $0x2] sm:$0x1]
        %v1828 = vld [vmem:[%s497 + $0x1] sm:$0x1]
        %v1829 = vld [vmem:[%s497 + $0x3] sm:$0x1]
        %v1830 = vadd.f32 %v1828, 1.0
        %v1831 = vadd.f32 %v1829, 1.0
        %v1834 = vperm.slane %v1830, 0
        %v1835 = vperm.slane %v1831, 0
        %v1838 = vmul.f32 %v1822, %v1834
        %v1839 = vmul.f32 %v1823, %v1834
        %v1840 = vmul.f32 %v1824, %v1835
        %v1841 = vmul.f32 %v1825, %v1835
        %v1844 = vperm.slane %v1826, 0
        %v1845 = vperm.slane %v1827, 0
        %v1848 = vadd.f32 %v1838, %v1844
        %v1849 = vadd.f32 %v1839, %v1844
        %v1850 = vadd.f32 %v1840, %v1845
        %v1851 = vadd.f32 %v1841, %v1845
        %v1852 = vpack.c.bf16 %v1849, %v1848
        %v1853 = vpack.c.bf16 %v1851, %v1850
        %v1854 = vld [vmem:[#allocation6] sm:$0xff]
        %v1855 = vld [vmem:[#allocation6 + $0x8] sm:$0xff]
        %v1856 = vld [vmem:[#allocation6 + $0x10] sm:$0xff]
        %v1857 = vld [vmem:[#allocation6 + $0x18] sm:$0xff]
        %v1858 = vld [vmem:[#allocation6 + $0x20] sm:$0xff]
        %v1859 = vld [vmem:[#allocation6 + $0x28] sm:$0xff]
        %v1860 = vld [vmem:[#allocation6 + $0x30] sm:$0xff]
        %v1861 = vld [vmem:[#allocation6 + $0x38] sm:$0xff]
        %v1862 = vld [vmem:[#allocation6 + $0x40] sm:$0xff]
        %v1863 = vld [vmem:[#allocation6 + $0x48] sm:$0xff]
        %v1864 = vld [vmem:[#allocation6 + $0x50] sm:$0xff]
        %v1865 = vld [vmem:[#allocation6 + $0x58] sm:$0xff]
        %v1866 = vld [vmem:[#allocation6 + $0x60] sm:$0xff]
        %v1867 = vld [vmem:[#allocation6 + $0x68] sm:$0xff]
        %v1868 = vld [vmem:[#allocation6 + $0x70] sm:$0xff]
        %v1869 = vld [vmem:[#allocation6 + $0x78] sm:$0xff]
        %v1870 = vld [vmem:[#allocation6 + $0x80] sm:$0xff]
        %v1871 = vld [vmem:[#allocation6 + $0x88] sm:$0xff]
        %v1872 = vld [vmem:[#allocation6 + $0x90] sm:$0xff]
        %v1873 = vld [vmem:[#allocation6 + $0x98] sm:$0xff]
        %v1874 = vld [vmem:[#allocation6 + $0xa0] sm:$0xff]
        %v1875 = vld [vmem:[#allocation6 + $0xa8] sm:$0xff]
        %v1876 = vld [vmem:[#allocation6 + $0xb0] sm:$0xff]
        %v1877 = vld [vmem:[#allocation6 + $0xb8] sm:$0xff]
        %v1878 = vld [vmem:[#allocation6 + $0xc0] sm:$0xff]
        %v1879 = vld [vmem:[#allocation6 + $0xc8] sm:$0xff]
        %v1880 = vld [vmem:[#allocation6 + $0xd0] sm:$0xff]
        %v1881 = vld [vmem:[#allocation6 + $0xd8] sm:$0xff]
        %v1882 = vld [vmem:[#allocation6 + $0xe0] sm:$0xff]
        %v1883 = vld [vmem:[#allocation6 + $0xe8] sm:$0xff]
        %v1884 = vld [vmem:[#allocation6 + $0xf0] sm:$0xff]
        %v1885 = vld [vmem:[#allocation6 + $0xf8] sm:$0xff]
        %v1886 = vld [vmem:[%s8] sm:$0xf]
        %v1888 = vperm.slane %v1886, 0
        %v1889 = vperm.slane %v1886, 1
        %v1890 = vperm.slane %v1886, 2
        %v1891 = vperm.slane %v1886, 3
        %v1928 = vunpack.c.l.b16 %v1854
        %v1929 = vunpack.c.h.b16 %v1854
        %v1930 = vunpack.c.l.b16 %v1855
        %v1931 = vunpack.c.h.b16 %v1855
        %v1932 = vunpack.c.l.b16 %v1856
        %v1933 = vunpack.c.h.b16 %v1856
        %v1934 = vunpack.c.l.b16 %v1857
        %v1935 = vunpack.c.h.b16 %v1857
        %v1936 = vunpack.c.l.b16 %v1858
        %v1937 = vunpack.c.h.b16 %v1858
        %v1938 = vunpack.c.l.b16 %v1859
        %v1939 = vunpack.c.h.b16 %v1859
        %v1940 = vunpack.c.l.b16 %v1860
        %v1941 = vunpack.c.h.b16 %v1860
        %v1942 = vunpack.c.l.b16 %v1861
        %v1943 = vunpack.c.h.b16 %v1861
        %v1944 = vunpack.c.l.b16 %v1862
        %v1945 = vunpack.c.h.b16 %v1862
        %v1946 = vunpack.c.l.b16 %v1863
        %v1947 = vunpack.c.h.b16 %v1863
        %v1948 = vunpack.c.l.b16 %v1864
        %v1949 = vunpack.c.h.b16 %v1864
        %v1950 = vunpack.c.l.b16 %v1865
        %v1951 = vunpack.c.h.b16 %v1865
        %v1952 = vunpack.c.l.b16 %v1866
        %v1953 = vunpack.c.h.b16 %v1866
        %v1954 = vunpack.c.l.b16 %v1867
        %v1955 = vunpack.c.h.b16 %v1867
        %v1956 = vunpack.c.l.b16 %v1868
        %v1957 = vunpack.c.h.b16 %v1868
        %v1958 = vunpack.c.l.b16 %v1869
        %v1959 = vunpack.c.h.b16 %v1869
        %v1960 = vunpack.c.l.b16 %v1870
        %v1961 = vunpack.c.h.b16 %v1870
        %v1962 = vunpack.c.l.b16 %v1871
        %v1963 = vunpack.c.h.b16 %v1871
        %v1964 = vunpack.c.l.b16 %v1872
        %v1965 = vunpack.c.h.b16 %v1872
        %v1966 = vunpack.c.l.b16 %v1873
        %v1967 = vunpack.c.h.b16 %v1873
        %v1968 = vunpack.c.l.b16 %v1874
        %v1969 = vunpack.c.h.b16 %v1874
        %v1970 = vunpack.c.l.b16 %v1875
        %v1971 = vunpack.c.h.b16 %v1875
        %v1972 = vunpack.c.l.b16 %v1876
        %v1973 = vunpack.c.h.b16 %v1876
        %v1974 = vunpack.c.l.b16 %v1877
        %v1975 = vunpack.c.h.b16 %v1877
        %v1976 = vunpack.c.l.b16 %v1878
        %v1977 = vunpack.c.h.b16 %v1878
        %v1978 = vunpack.c.l.b16 %v1879
        %v1979 = vunpack.c.h.b16 %v1879
        %v1980 = vunpack.c.l.b16 %v1880
        %v1981 = vunpack.c.h.b16 %v1880
        %v1982 = vunpack.c.l.b16 %v1881
        %v1983 = vunpack.c.h.b16 %v1881
        %v1984 = vunpack.c.l.b16 %v1882
        %v1985 = vunpack.c.h.b16 %v1882
        %v1986 = vunpack.c.l.b16 %v1883
        %v1987 = vunpack.c.h.b16 %v1883
        %v1988 = vunpack.c.l.b16 %v1884
        %v1989 = vunpack.c.h.b16 %v1884
        %v1990 = vunpack.c.l.b16 %v1885
        %v1991 = vunpack.c.h.b16 %v1885
        %v1992 = vpack.c.b16 %v1932, %v1928
        %v1993 = vpack.c.b16 %v1933, %v1929
        %v1994 = vpack.c.b16 %v1934, %v1930
        %v1995 = vpack.c.b16 %v1935, %v1931
        %v1996 = vpack.c.b16 %v1940, %v1936
        %v1997 = vpack.c.b16 %v1941, %v1937
        %v1998 = vpack.c.b16 %v1942, %v1938
        %v1999 = vpack.c.b16 %v1943, %v1939
        %v2000 = vpack.c.b16 %v1948, %v1944
        %v2001 = vpack.c.b16 %v1949, %v1945
        %v2002 = vpack.c.b16 %v1950, %v1946
        %v2003 = vpack.c.b16 %v1951, %v1947
        %v2004 = vpack.c.b16 %v1956, %v1952
        %v2005 = vpack.c.b16 %v1957, %v1953
        %v2006 = vpack.c.b16 %v1958, %v1954
        %v2007 = vpack.c.b16 %v1959, %v1955
        %v2008 = vpack.c.b16 %v1964, %v1960
        %v2009 = vpack.c.b16 %v1965, %v1961
        %v2010 = vpack.c.b16 %v1966, %v1962
        %v2011 = vpack.c.b16 %v1967, %v1963
        %v2012 = vpack.c.b16 %v1972, %v1968
        %v2013 = vpack.c.b16 %v1973, %v1969
        %v2014 = vpack.c.b16 %v1974, %v1970
        %v2015 = vpack.c.b16 %v1975, %v1971
        %v2016 = vpack.c.b16 %v1980, %v1976
        %v2017 = vpack.c.b16 %v1981, %v1977
        %v2018 = vpack.c.b16 %v1982, %v1978
        %v2019 = vpack.c.b16 %v1983, %v1979
        %v2020 = vpack.c.b16 %v1988, %v1984
        %v2021 = vpack.c.b16 %v1989, %v1985
        %v2022 = vpack.c.b16 %v1990, %v1986
        %v2023 = vpack.c.b16 %v1991, %v1987
        %2056 = vmatpush.bf16.msra.mxu0 %v2020
        %2057 = vmatpush.bf16.msra.mxu0 %v2016
        %2058 = vmatpush.bf16.msra.mxu0 %v2012
        %2059 = vmatpush.bf16.msra.mxu0 %v2008
        %2060 = vmatpush.bf16.msra.mxu0 %v2004
        %2061 = vmatpush.bf16.msra.mxu0 %v2000
        %2062 = vmatpush.bf16.msra.mxu0 %v1996
        %2063 = vmatpush.bf16.msra.mxu0 %v1992
        %2064 = vmatmul.bf16.gmra.mxu0 %v1852
        %v2065 = vpop.f32.mrf.mxu0
        %v2066 = vadd.f32 %v1888, %v2065
        %v2067 = vpop.f32.mrf.mxu0
        %v2068 = vadd.f32 %v1888, %v2067
        %2069 = vmatmul.bf16.gmra.mxu0 %v1853
        %v2070 = vpop.f32.mrf.mxu0
        %v2071 = vadd.f32 %v1888, %v2070
        %v2072 = vpop.f32.mrf.mxu0
        %v2073 = vadd.f32 %v1888, %v2072
        %2074 = vdwg.mxu0
        %2075 = vmatpush.bf16.msra.mxu0 %v2021
        %2076 = vmatpush.bf16.msra.mxu0 %v2017
        %2077 = vmatpush.bf16.msra.mxu0 %v2013
        %2078 = vmatpush.bf16.msra.mxu0 %v2009
        %2079 = vmatpush.bf16.msra.mxu0 %v2005
        %2080 = vmatpush.bf16.msra.mxu0 %v2001
        %2081 = vmatpush.bf16.msra.mxu0 %v1997
        %2082 = vmatpush.bf16.msra.mxu0 %v1993
        %2083 = vmatmul.bf16.gmra.mxu0 %v1852
        %v2084 = vpop.f32.mrf.mxu0
        %v2085 = vadd.f32 %v1889, %v2084
        %v2086 = vpop.f32.mrf.mxu0
        %v2087 = vadd.f32 %v1889, %v2086
        %2088 = vmatmul.bf16.gmra.mxu0 %v1853
        %v2089 = vpop.f32.mrf.mxu0
        %v2090 = vadd.f32 %v1889, %v2089
        %v2091 = vpop.f32.mrf.mxu0
        %v2092 = vadd.f32 %v1889, %v2091
        %2093 = vdwg.mxu0
        %2094 = vmatpush.bf16.msra.mxu0 %v2022
        %2095 = vmatpush.bf16.msra.mxu0 %v2018
        %2096 = vmatpush.bf16.msra.mxu0 %v2014
        %2097 = vmatpush.bf16.msra.mxu0 %v2010
        %2098 = vmatpush.bf16.msra.mxu0 %v2006
        %2099 = vmatpush.bf16.msra.mxu0 %v2002
        %2100 = vmatpush.bf16.msra.mxu0 %v1998
        %2101 = vmatpush.bf16.msra.mxu0 %v1994
        %2102 = vmatmul.bf16.gmra.mxu0 %v1852
        %v2103 = vpop.f32.mrf.mxu0
        %v2104 = vadd.f32 %v1890, %v2103
        %v2105 = vpop.f32.mrf.mxu0
        %v2106 = vadd.f32 %v1890, %v2105
        %2107 = vmatmul.bf16.gmra.mxu0 %v1853
        %v2108 = vpop.f32.mrf.mxu0
        %v2109 = vadd.f32 %v1890, %v2108
        %v2110 = vpop.f32.mrf.mxu0
        %v2111 = vadd.f32 %v1890, %v2110
        %2112 = vdwg.mxu0
        %2113 = vmatpush.bf16.msra.mxu0 %v2023
        %2114 = vmatpush.bf16.msra.mxu0 %v2019
        %2115 = vmatpush.bf16.msra.mxu0 %v2015
        %2116 = vmatpush.bf16.msra.mxu0 %v2011
        %2117 = vmatpush.bf16.msra.mxu0 %v2007
        %2118 = vmatpush.bf16.msra.mxu0 %v2003
        %2119 = vmatpush.bf16.msra.mxu0 %v1999
        %2120 = vmatpush.bf16.msra.mxu0 %v1995
        %2121 = vmatmul.bf16.gmra.mxu0 %v1852
        %v2122 = vpop.f32.mrf.mxu0
        %v2123 = vadd.f32 %v1891, %v2122
        %v2124 = vpop.f32.mrf.mxu0
        %v2125 = vadd.f32 %v1891, %v2124
        %2126 = vmatmul.bf16.gmra.mxu0 %v1853
        %v2127 = vpop.f32.mrf.mxu0
        %v2128 = vadd.f32 %v1891, %v2127
        %v2129 = vpop.f32.mrf.mxu0
        %v2130 = vadd.f32 %v1891, %v2129
        %2131 = vdwg.mxu0
        %v2132 = vmul.f32 %v2066, %v2066
        %v2133 = vmul.f32 %v2085, %v2085
        %v2134 = vmul.f32 %v2104, %v2104
        %v2135 = vmul.f32 %v2123, %v2123
        %v2136 = vmul.f32 %v2068, %v2068
        %v2137 = vmul.f32 %v2087, %v2087
        %v2138 = vmul.f32 %v2106, %v2106
        %v2139 = vmul.f32 %v2125, %v2125
        %v2140 = vmul.f32 %v2071, %v2071
        %v2141 = vmul.f32 %v2090, %v2090
        %v2142 = vmul.f32 %v2109, %v2109
        %v2143 = vmul.f32 %v2128, %v2128
        %v2144 = vmul.f32 %v2073, %v2073
        %v2145 = vmul.f32 %v2092, %v2092
        %v2146 = vmul.f32 %v2111, %v2111
        %v2147 = vmul.f32 %v2130, %v2130
        %v2148 = vmul.f32 %v2066, %v2132
        %v2149 = vmul.f32 %v2085, %v2133
        %v2150 = vmul.f32 %v2104, %v2134
        %v2151 = vmul.f32 %v2123, %v2135
        %v2152 = vmul.f32 %v2068, %v2136
        %v2153 = vmul.f32 %v2087, %v2137
        %v2154 = vmul.f32 %v2106, %v2138
        %v2155 = vmul.f32 %v2125, %v2139
        %v2156 = vmul.f32 %v2071, %v2140
        %v2157 = vmul.f32 %v2090, %v2141
        %v2158 = vmul.f32 %v2109, %v2142
        %v2159 = vmul.f32 %v2128, %v2143
        %v2160 = vmul.f32 %v2073, %v2144
        %v2161 = vmul.f32 %v2092, %v2145
        %v2162 = vmul.f32 %v2111, %v2146
        %v2163 = vmul.f32 %v2130, %v2147
        %v2164 = vmul.f32 %v2148, 0.044715
        %v2165 = vmul.f32 %v2149, 0.044715
        %v2166 = vmul.f32 %v2150, 0.044715
        %v2167 = vmul.f32 %v2151, 0.044715
        %v2168 = vmul.f32 %v2152, 0.044715
        %v2169 = vmul.f32 %v2153, 0.044715
        %v2170 = vmul.f32 %v2154, 0.044715
        %v2171 = vmul.f32 %v2155, 0.044715
        %v2172 = vmul.f32 %v2156, 0.044715
        %v2173 = vmul.f32 %v2157, 0.044715
        %v2174 = vmul.f32 %v2158, 0.044715
        %v2175 = vmul.f32 %v2159, 0.044715
        %v2176 = vmul.f32 %v2160, 0.044715
        %v2177 = vmul.f32 %v2161, 0.044715
        %v2178 = vmul.f32 %v2162, 0.044715
        %v2179 = vmul.f32 %v2163, 0.044715
        %v2180 = vadd.f32 %v2066, %v2164
        %v2181 = vadd.f32 %v2085, %v2165
        %v2182 = vadd.f32 %v2104, %v2166
        %v2183 = vadd.f32 %v2123, %v2167
        %v2184 = vadd.f32 %v2068, %v2168
        %v2185 = vadd.f32 %v2087, %v2169
        %v2186 = vadd.f32 %v2106, %v2170
        %v2187 = vadd.f32 %v2125, %v2171
        %v2188 = vadd.f32 %v2071, %v2172
        %v2189 = vadd.f32 %v2090, %v2173
        %v2190 = vadd.f32 %v2109, %v2174
        %v2191 = vadd.f32 %v2128, %v2175
        %v2192 = vadd.f32 %v2073, %v2176
        %v2193 = vadd.f32 %v2092, %v2177
        %v2194 = vadd.f32 %v2111, %v2178
        %v2195 = vadd.f32 %v2130, %v2179
        %v2196 = vmul.f32 %v2180, 0.7978846
        %v2197 = vmul.f32 %v2181, 0.7978846
        %v2198 = vmul.f32 %v2182, 0.7978846
        %v2199 = vmul.f32 %v2183, 0.7978846
        %v2200 = vmul.f32 %v2184, 0.7978846
        %v2201 = vmul.f32 %v2185, 0.7978846
        %v2202 = vmul.f32 %v2186, 0.7978846
        %v2203 = vmul.f32 %v2187, 0.7978846
        %v2204 = vmul.f32 %v2188, 0.7978846
        %v2205 = vmul.f32 %v2189, 0.7978846
        %v2206 = vmul.f32 %v2190, 0.7978846
        %v2207 = vmul.f32 %v2191, 0.7978846
        %v2208 = vmul.f32 %v2192, 0.7978846
        %v2209 = vmul.f32 %v2193, 0.7978846
        %v2210 = vmul.f32 %v2194, 0.7978846
        %v2211 = vmul.f32 %v2195, 0.7978846
        %v2212 = vtanh.pop %v2196
        %v2213 = vtanh.pop %v2197
        %v2214 = vtanh.pop %v2198
        %v2215 = vtanh.pop %v2199
        %v2216 = vtanh.pop %v2200
        %v2217 = vtanh.pop %v2201
        %v2218 = vtanh.pop %v2202
        %v2219 = vtanh.pop %v2203
        %v2220 = vtanh.pop %v2204
        %v2221 = vtanh.pop %v2205
        %v2222 = vtanh.pop %v2206
        %v2223 = vtanh.pop %v2207
        %v2224 = vtanh.pop %v2208
        %v2225 = vtanh.pop %v2209
        %v2226 = vtanh.pop %v2210
        %v2227 = vtanh.pop %v2211
        %v2228 = vadd.f32 %v2212, 1.0
        %v2229 = vadd.f32 %v2213, 1.0
        %v2230 = vadd.f32 %v2214, 1.0
        %v2231 = vadd.f32 %v2215, 1.0
        %v2232 = vadd.f32 %v2216, 1.0
        %v2233 = vadd.f32 %v2217, 1.0
        %v2234 = vadd.f32 %v2218, 1.0
        %v2235 = vadd.f32 %v2219, 1.0
        %v2236 = vadd.f32 %v2220, 1.0
        %v2237 = vadd.f32 %v2221, 1.0
        %v2238 = vadd.f32 %v2222, 1.0
        %v2239 = vadd.f32 %v2223, 1.0
        %v2240 = vadd.f32 %v2224, 1.0
        %v2241 = vadd.f32 %v2225, 1.0
        %v2242 = vadd.f32 %v2226, 1.0
        %v2243 = vadd.f32 %v2227, 1.0
        %v2244 = vmul.f32 %v2228, 0.5
        %v2245 = vmul.f32 %v2229, 0.5
        %v2246 = vmul.f32 %v2230, 0.5
        %v2247 = vmul.f32 %v2231, 0.5
        %v2248 = vmul.f32 %v2232, 0.5
        %v2249 = vmul.f32 %v2233, 0.5
        %v2250 = vmul.f32 %v2234, 0.5
        %v2251 = vmul.f32 %v2235, 0.5
        %v2252 = vmul.f32 %v2236, 0.5
        %v2253 = vmul.f32 %v2237, 0.5
        %v2254 = vmul.f32 %v2238, 0.5
        %v2255 = vmul.f32 %v2239, 0.5
        %v2256 = vmul.f32 %v2240, 0.5
        %v2257 = vmul.f32 %v2241, 0.5
        %v2258 = vmul.f32 %v2242, 0.5
        %v2259 = vmul.f32 %v2243, 0.5
        %v2260 = vmul.f32 %v2066, %v2244
        %v2261 = vmul.f32 %v2085, %v2245
        %v2262 = vmul.f32 %v2104, %v2246
        %v2263 = vmul.f32 %v2123, %v2247
        %v2264 = vmul.f32 %v2068, %v2248
        %v2265 = vmul.f32 %v2087, %v2249
        %v2266 = vmul.f32 %v2106, %v2250
        %v2267 = vmul.f32 %v2125, %v2251
        %v2268 = vmul.f32 %v2071, %v2252
        %v2269 = vmul.f32 %v2090, %v2253
        %v2270 = vmul.f32 %v2109, %v2254
        %v2271 = vmul.f32 %v2128, %v2255
        %v2272 = vmul.f32 %v2073, %v2256
        %v2273 = vmul.f32 %v2092, %v2257
        %v2274 = vmul.f32 %v2111, %v2258
        %v2275 = vmul.f32 %v2130, %v2259
        %v2276 = vpack.c.bf16 %v2264, %v2260
        %v2277 = vpack.c.bf16 %v2265, %v2261
        %v2278 = vpack.c.bf16 %v2266, %v2262
        %v2279 = vpack.c.bf16 %v2267, %v2263
        %v2280 = vpack.c.bf16 %v2272, %v2268
        %v2281 = vpack.c.bf16 %v2273, %v2269
        %v2282 = vpack.c.bf16 %v2274, %v2270
        %v2283 = vpack.c.bf16 %v2275, %v2271
        %v2284 = vld [vmem:[#allocation7] sm:$0xf]
        %v2285 = vld [vmem:[#allocation7 + $0x4] sm:$0xf]
        %v2286 = vld [vmem:[#allocation7 + $0x8] sm:$0xf]
        %v2287 = vld [vmem:[#allocation7 + $0xc] sm:$0xf]
        %v2288 = vld [vmem:[#allocation7 + $0x10] sm:$0xf]
        %v2289 = vld [vmem:[#allocation7 + $0x14] sm:$0xf]
        %v2290 = vld [vmem:[#allocation7 + $0x18] sm:$0xf]
        %v2291 = vld [vmem:[#allocation7 + $0x1c] sm:$0xf]
        %v2292 = vld [vmem:[#allocation7 + $0x20] sm:$0xf]
        %v2293 = vld [vmem:[#allocation7 + $0x24] sm:$0xf]
        %v2294 = vld [vmem:[#allocation7 + $0x28] sm:$0xf]
        %v2295 = vld [vmem:[#allocation7 + $0x2c] sm:$0xf]
        %v2296 = vld [vmem:[#allocation7 + $0x30] sm:$0xf]
        %v2297 = vld [vmem:[#allocation7 + $0x34] sm:$0xf]
        %v2298 = vld [vmem:[#allocation7 + $0x38] sm:$0xf]
        %v2299 = vld [vmem:[#allocation7 + $0x3c] sm:$0xf]
        %v2300 = vld [vmem:[#allocation7 + $0x40] sm:$0xf]
        %v2301 = vld [vmem:[#allocation7 + $0x44] sm:$0xf]
        %v2302 = vld [vmem:[#allocation7 + $0x48] sm:$0xf]
        %v2303 = vld [vmem:[#allocation7 + $0x4c] sm:$0xf]
        %v2304 = vld [vmem:[#allocation7 + $0x50] sm:$0xf]
        %v2305 = vld [vmem:[#allocation7 + $0x54] sm:$0xf]
        %v2306 = vld [vmem:[#allocation7 + $0x58] sm:$0xf]
        %v2307 = vld [vmem:[#allocation7 + $0x5c] sm:$0xf]
        %v2308 = vld [vmem:[#allocation7 + $0x60] sm:$0xf]
        %v2309 = vld [vmem:[#allocation7 + $0x64] sm:$0xf]
        %v2310 = vld [vmem:[#allocation7 + $0x68] sm:$0xf]
        %v2311 = vld [vmem:[#allocation7 + $0x6c] sm:$0xf]
        %v2312 = vld [vmem:[#allocation7 + $0x70] sm:$0xf]
        %v2313 = vld [vmem:[#allocation7 + $0x74] sm:$0xf]
        %v2314 = vld [vmem:[#allocation7 + $0x78] sm:$0xf]
        %v2315 = vld [vmem:[#allocation7 + $0x7c] sm:$0xf]
        %v2316 = vld [vmem:[#allocation7 + $0x80] sm:$0xf]
        %v2317 = vld [vmem:[#allocation7 + $0x84] sm:$0xf]
        %v2318 = vld [vmem:[#allocation7 + $0x88] sm:$0xf]
        %v2319 = vld [vmem:[#allocation7 + $0x8c] sm:$0xf]
        %v2320 = vld [vmem:[#allocation7 + $0x90] sm:$0xf]
        %v2321 = vld [vmem:[#allocation7 + $0x94] sm:$0xf]
        %v2322 = vld [vmem:[#allocation7 + $0x98] sm:$0xf]
        %v2323 = vld [vmem:[#allocation7 + $0x9c] sm:$0xf]
        %v2324 = vld [vmem:[#allocation7 + $0xa0] sm:$0xf]
        %v2325 = vld [vmem:[#allocation7 + $0xa4] sm:$0xf]
        %v2326 = vld [vmem:[#allocation7 + $0xa8] sm:$0xf]
        %v2327 = vld [vmem:[#allocation7 + $0xac] sm:$0xf]
        %v2328 = vld [vmem:[#allocation7 + $0xb0] sm:$0xf]
        %v2329 = vld [vmem:[#allocation7 + $0xb4] sm:$0xf]
        %v2330 = vld [vmem:[#allocation7 + $0xb8] sm:$0xf]
        %v2331 = vld [vmem:[#allocation7 + $0xbc] sm:$0xf]
        %v2332 = vld [vmem:[#allocation7 + $0xc0] sm:$0xf]
        %v2333 = vld [vmem:[#allocation7 + $0xc4] sm:$0xf]
        %v2334 = vld [vmem:[#allocation7 + $0xc8] sm:$0xf]
        %v2335 = vld [vmem:[#allocation7 + $0xcc] sm:$0xf]
        %v2336 = vld [vmem:[#allocation7 + $0xd0] sm:$0xf]
        %v2337 = vld [vmem:[#allocation7 + $0xd4] sm:$0xf]
        %v2338 = vld [vmem:[#allocation7 + $0xd8] sm:$0xf]
        %v2339 = vld [vmem:[#allocation7 + $0xdc] sm:$0xf]
        %v2340 = vld [vmem:[#allocation7 + $0xe0] sm:$0xf]
        %v2341 = vld [vmem:[#allocation7 + $0xe4] sm:$0xf]
        %v2342 = vld [vmem:[#allocation7 + $0xe8] sm:$0xf]
        %v2343 = vld [vmem:[#allocation7 + $0xec] sm:$0xf]
        %v2344 = vld [vmem:[#allocation7 + $0xf0] sm:$0xf]
        %v2345 = vld [vmem:[#allocation7 + $0xf4] sm:$0xf]
        %v2346 = vld [vmem:[#allocation7 + $0xf8] sm:$0xf]
        %v2347 = vld [vmem:[#allocation7 + $0xfc] sm:$0xf]
        %v2348 = vld [vmem:[%s10] sm:$0x1]
        %v2350 = vperm.slane %v2348, 0
        %v2416 = vunpack.c.l.b16 %v2284
        %v2417 = vunpack.c.l.b16 %v2285
        %v2418 = vunpack.c.l.b16 %v2286
        %v2419 = vunpack.c.l.b16 %v2287
        %v2420 = vunpack.c.l.b16 %v2288
        %v2421 = vunpack.c.l.b16 %v2289
        %v2422 = vunpack.c.l.b16 %v2290
        %v2423 = vunpack.c.l.b16 %v2291
        %v2424 = vunpack.c.l.b16 %v2292
        %v2425 = vunpack.c.l.b16 %v2293
        %v2426 = vunpack.c.l.b16 %v2294
        %v2427 = vunpack.c.l.b16 %v2295
        %v2428 = vunpack.c.l.b16 %v2296
        %v2429 = vunpack.c.l.b16 %v2297
        %v2430 = vunpack.c.l.b16 %v2298
        %v2431 = vunpack.c.l.b16 %v2299
        %v2432 = vunpack.c.l.b16 %v2300
        %v2433 = vunpack.c.l.b16 %v2301
        %v2434 = vunpack.c.l.b16 %v2302
        %v2435 = vunpack.c.l.b16 %v2303
        %v2436 = vunpack.c.l.b16 %v2304
        %v2437 = vunpack.c.l.b16 %v2305
        %v2438 = vunpack.c.l.b16 %v2306
        %v2439 = vunpack.c.l.b16 %v2307
        %v2440 = vunpack.c.l.b16 %v2308
        %v2441 = vunpack.c.l.b16 %v2309
        %v2442 = vunpack.c.l.b16 %v2310
        %v2443 = vunpack.c.l.b16 %v2311
        %v2444 = vunpack.c.l.b16 %v2312
        %v2445 = vunpack.c.l.b16 %v2313
        %v2446 = vunpack.c.l.b16 %v2314
        %v2447 = vunpack.c.l.b16 %v2315
        %v2448 = vunpack.c.l.b16 %v2316
        %v2449 = vunpack.c.l.b16 %v2317
        %v2450 = vunpack.c.l.b16 %v2318
        %v2451 = vunpack.c.l.b16 %v2319
        %v2452 = vunpack.c.l.b16 %v2320
        %v2453 = vunpack.c.l.b16 %v2321
        %v2454 = vunpack.c.l.b16 %v2322
        %v2455 = vunpack.c.l.b16 %v2323
        %v2456 = vunpack.c.l.b16 %v2324
        %v2457 = vunpack.c.l.b16 %v2325
        %v2458 = vunpack.c.l.b16 %v2326
        %v2459 = vunpack.c.l.b16 %v2327
        %v2460 = vunpack.c.l.b16 %v2328
        %v2461 = vunpack.c.l.b16 %v2329
        %v2462 = vunpack.c.l.b16 %v2330
        %v2463 = vunpack.c.l.b16 %v2331
        %v2464 = vunpack.c.l.b16 %v2332
        %v2465 = vunpack.c.l.b16 %v2333
        %v2466 = vunpack.c.l.b16 %v2334
        %v2467 = vunpack.c.l.b16 %v2335
        %v2468 = vunpack.c.l.b16 %v2336
        %v2469 = vunpack.c.l.b16 %v2337
        %v2470 = vunpack.c.l.b16 %v2338
        %v2471 = vunpack.c.l.b16 %v2339
        %v2472 = vunpack.c.l.b16 %v2340
        %v2473 = vunpack.c.l.b16 %v2341
        %v2474 = vunpack.c.l.b16 %v2342
        %v2475 = vunpack.c.l.b16 %v2343
        %v2476 = vunpack.c.l.b16 %v2344
        %v2477 = vunpack.c.l.b16 %v2345
        %v2478 = vunpack.c.l.b16 %v2346
        %v2479 = vunpack.c.l.b16 %v2347
        %v2480 = vpack.c.b16 %v2417, %v2416
        %v2481 = vpack.c.b16 %v2419, %v2418
        %v2482 = vpack.c.b16 %v2421, %v2420
        %v2483 = vpack.c.b16 %v2423, %v2422
        %v2484 = vpack.c.b16 %v2425, %v2424
        %v2485 = vpack.c.b16 %v2427, %v2426
        %v2486 = vpack.c.b16 %v2429, %v2428
        %v2487 = vpack.c.b16 %v2431, %v2430
        %v2488 = vpack.c.b16 %v2433, %v2432
        %v2489 = vpack.c.b16 %v2435, %v2434
        %v2490 = vpack.c.b16 %v2437, %v2436
        %v2491 = vpack.c.b16 %v2439, %v2438
        %v2492 = vpack.c.b16 %v2441, %v2440
        %v2493 = vpack.c.b16 %v2443, %v2442
        %v2494 = vpack.c.b16 %v2445, %v2444
        %v2495 = vpack.c.b16 %v2447, %v2446
        %v2496 = vpack.c.b16 %v2449, %v2448
        %v2497 = vpack.c.b16 %v2451, %v2450
        %v2498 = vpack.c.b16 %v2453, %v2452
        %v2499 = vpack.c.b16 %v2455, %v2454
        %v2500 = vpack.c.b16 %v2457, %v2456
        %v2501 = vpack.c.b16 %v2459, %v2458
        %v2502 = vpack.c.b16 %v2461, %v2460
        %v2503 = vpack.c.b16 %v2463, %v2462
        %v2504 = vpack.c.b16 %v2465, %v2464
        %v2505 = vpack.c.b16 %v2467, %v2466
        %v2506 = vpack.c.b16 %v2469, %v2468
        %v2507 = vpack.c.b16 %v2471, %v2470
        %v2508 = vpack.c.b16 %v2473, %v2472
        %v2509 = vpack.c.b16 %v2475, %v2474
        %v2510 = vpack.c.b16 %v2477, %v2476
        %v2511 = vpack.c.b16 %v2479, %v2478
        %2544 = vmatpush.bf16.msra.mxu0 %v2487
        %2545 = vmatpush.bf16.msra.mxu0 %v2486
        %2546 = vmatpush.bf16.msra.mxu0 %v2485
        %2547 = vmatpush.bf16.msra.mxu0 %v2484
        %2548 = vmatpush.bf16.msra.mxu0 %v2483
        %2549 = vmatpush.bf16.msra.mxu0 %v2482
        %2550 = vmatpush.bf16.msra.mxu0 %v2481
        %2551 = vmatpush.bf16.msra.mxu0 %v2480
        %2552 = vmatmul.bf16.gmra.mxu0 %v2276
        %v2553 = vpop.f32.mrf.mxu0
        %v2554 = vadd.f32 %v2350, %v2553
        %v2555 = vpop.f32.mrf.mxu0
        %v2556 = vadd.f32 %v2350, %v2555
        %2557 = vmatmul.bf16.gmra.mxu0 %v2280
        %v2558 = vpop.f32.mrf.mxu0
        %v2559 = vadd.f32 %v2350, %v2558
        %v2560 = vpop.f32.mrf.mxu0
        %v2561 = vadd.f32 %v2350, %v2560
        %2562 = vdwg.mxu0
        %2563 = vmatpush.bf16.msra.mxu0 %v2495
        %2564 = vmatpush.bf16.msra.mxu0 %v2494
        %2565 = vmatpush.bf16.msra.mxu0 %v2493
        %2566 = vmatpush.bf16.msra.mxu0 %v2492
        %2567 = vmatpush.bf16.msra.mxu0 %v2491
        %2568 = vmatpush.bf16.msra.mxu0 %v2490
        %2569 = vmatpush.bf16.msra.mxu0 %v2489
        %2570 = vmatpush.bf16.msra.mxu0 %v2488
        %2571 = vmatmul.bf16.gmra.mxu0 %v2277
        %v2572 = vpop.f32.mrf.mxu0
        %v2573 = vadd.f32 %v2554, %v2572
        %v2574 = vpop.f32.mrf.mxu0
        %v2575 = vadd.f32 %v2556, %v2574
        %2576 = vmatmul.bf16.gmra.mxu0 %v2281
        %v2577 = vpop.f32.mrf.mxu0
        %v2578 = vadd.f32 %v2559, %v2577
        %v2579 = vpop.f32.mrf.mxu0
        %v2580 = vadd.f32 %v2561, %v2579
        %2581 = vdwg.mxu0
        %2582 = vmatpush.bf16.msra.mxu0 %v2503
        %2583 = vmatpush.bf16.msra.mxu0 %v2502
        %2584 = vmatpush.bf16.msra.mxu0 %v2501
        %2585 = vmatpush.bf16.msra.mxu0 %v2500
        %2586 = vmatpush.bf16.msra.mxu0 %v2499
        %2587 = vmatpush.bf16.msra.mxu0 %v2498
        %2588 = vmatpush.bf16.msra.mxu0 %v2497
        %2589 = vmatpush.bf16.msra.mxu0 %v2496
        %2590 = vmatmul.bf16.gmra.mxu0 %v2278
        %v2591 = vpop.f32.mrf.mxu0
        %v2592 = vadd.f32 %v2573, %v2591
        %v2593 = vpop.f32.mrf.mxu0
        %v2594 = vadd.f32 %v2575, %v2593
        %2595 = vmatmul.bf16.gmra.mxu0 %v2282
        %v2596 = vpop.f32.mrf.mxu0
        %v2597 = vadd.f32 %v2578, %v2596
        %v2598 = vpop.f32.mrf.mxu0
        %v2599 = vadd.f32 %v2580, %v2598
        %2600 = vdwg.mxu0
        %2601 = vmatpush.bf16.msra.mxu0 %v2511
        %2602 = vmatpush.bf16.msra.mxu0 %v2510
        %2603 = vmatpush.bf16.msra.mxu0 %v2509
        %2604 = vmatpush.bf16.msra.mxu0 %v2508
        %2605 = vmatpush.bf16.msra.mxu0 %v2507
        %2606 = vmatpush.bf16.msra.mxu0 %v2506
        %2607 = vmatpush.bf16.msra.mxu0 %v2505
        %2608 = vmatpush.bf16.msra.mxu0 %v2504
        %2609 = vmatmul.bf16.gmra.mxu0 %v2279
        %v2610 = vpop.f32.mrf.mxu0
        %v2611 = vadd.f32 %v2592, %v2610
        %v2612 = vpop.f32.mrf.mxu0
        %v2613 = vadd.f32 %v2594, %v2612
        %2614 = vmatmul.bf16.gmra.mxu0 %v2283
        %v2615 = vpop.f32.mrf.mxu0
        %v2616 = vadd.f32 %v2597, %v2615
        %v2617 = vpop.f32.mrf.mxu0
        %v2618 = vadd.f32 %v2599, %v2617
        %2619 = vdwg.mxu0
        %v2620 = vmul.f32 %v2611, %v522
        %v2621 = vmul.f32 %v2613, %v523
        %v2622 = vmul.f32 %v2616, %v522
        %v2623 = vmul.f32 %v2618, %v523
        %v2624 = vadd.f32 %v1742, %v2620
        %v2625 = vadd.f32 %v1743, %v2621
        %v2626 = vadd.f32 %v1744, %v2622
        %v2627 = vadd.f32 %v1745, %v2623
        %2628 = vst [vmem:[%s504] sm:$0xff] %v2624
        %2629 = vst [vmem:[%s504 + $0x8] sm:$0xff] %v2625
        %2630 = vst [vmem:[%s504 + $0x10] sm:$0xff] %v2626
        %2631 = vst [vmem:[%s504 + $0x18] sm:$0xff] %v2627
        %s2632 = smul.u32 2, %s25
        %p2633 = scmp.lt.s32.totalorder %s2632, 3
        %s2634 = scalar_select %p2633, %s2632, 3
        %s2635 = smul.addr %s2634, 2
        %s2636 = smul.addr %s2635, 8
        %s2637 = scalar_lea.vmem %s11, %s2636
        // Predicated region
        $region81: #{transformer_sequence_classifier.6} parent=63 // pred_check
          %p2638 = pneg %p289
        $region82: #{transformer_sequence_classifier.6} parent=63 // pred_check_branch
          %2640 = sbr.rel (%p2638) target = $region84
        $region83: #{transformer_sequence_classifier.6} parent=63 // pred_region
          %s2641 = smul.u32 2, %s25
        $region84: #{transformer_sequence_classifier.6} parent=63 // pred_fallthru
          _
      $region64: #{transformer_sequence_classifier.6} parent=5 // pred_fallthru
        _
      %p2642 = scmp.le.s32.totalorder 2, %s20
      // Predicated region
      $region85: #{transformer_sequence_classifier.6} parent=5 // pred_check
        %p2643 = pneg %p2642
      $region86: #{transformer_sequence_classifier.6} parent=5 // pred_check_branch
        %2645 = sbr.rel (%p2643) target = $region88
      $region87: #{transformer_sequence_classifier.6} parent=5 // pred_region
        %s2646 = ssub.s32 %s20, 2
        // Predicated region
        $region89: #{transformer_sequence_classifier.6} parent=87 // pred_check
          %p2647 = pneg %p295
        $region90: #{transformer_sequence_classifier.6} parent=87 // pred_check_branch
          %2649 = sbr.rel (%p2647) target = $region92
        $region91: #{transformer_sequence_classifier.6} parent=87 // pred_region
          %s2650 = smul.u32 2, %s26
          %p2651 = scmp.lt.s32.totalorder %s2650, 3
          %s2652 = scalar_select %p2651, %s2650, 3
          %s2653 = smul.addr %s2652, 2
          %s2654 = smul.addr %s2653, 8
          %s2655 = scalar_lea.vmem %s11, %s2654
        $region92: #{transformer_sequence_classifier.6} parent=87 // pred_fallthru
          _
      $region88: #{transformer_sequence_classifier.6} parent=5 // pred_fallthru
        _
    $region6: #{transformer_sequence_classifier.6} parent=1 // loop_footer
      %s24 = sadd.s32 1, %s20
    $region7: #{transformer_sequence_classifier.6} parent=1 // loop_footer_branch
      %19 = sbr.rel target = $region3
    $region8: #{transformer_sequence_classifier.6} parent=1 // loop_exit
      _
    %2656 = vsyncpa [#allocation3], 1
    %s2657 = scalar_lea.sflag [#allocation3], 1
    %2658 = vsyncpa %s2657, 1
    %2659 = vsyncpa [#allocation5], 1
    %2660 = vsyncpa [#allocation8], 1

</llo_original>
